<compile_context>
chip_gen: v6e
topology: v6e:2x2x1
jax: 0.10.0
libtpu: 0.0.40
codegen_flags: <defaults>
</compile_context>

<pallas_src>
import math

import jax
import jax.numpy as jnp
from jax import lax
from jax.experimental import pallas as pl
from jax.experimental.pallas import tpu as pltpu

NULL_TOKEN = 0
START_TOKEN = 1
END_TOKEN = 2


def _sigmoid(x):
    # tanh-based sigmoid: single EUP op on the serial recurrence critical path.
    return 0.5 * (jnp.tanh(0.5 * x) + 1.0)


def _round_up(n, m):
    return ((n + m - 1) // m) * m


def _pad_axis(a, target, axis):
    pad = target - a.shape[axis]
    if pad <= 0:
        return a
    widths = [(0, 0)] * a.ndim
    widths[axis] = (0, pad)
    return jnp.pad(a, widths)


def _pad_gate_cols(w, hp):
    # (..., 4H) -> (..., 4Hp): zero-pad each of the i/f/g/o gate blocks so the
    # in-kernel gate slices stay 128-lane aligned.  Zero-padded gate lanes give
    # g=0 -> i=f=o=0.5, ghat=0 -> c,h stay exactly 0, so padding is exact.
    # NOTE: biases MUST be padded per gate block too (prep_b below does this).
    parts = jnp.split(w, 4, axis=-1)
    return jnp.concatenate([_pad_axis(q, hp, -1) for q in parts], axis=-1)


def _device_kind():
    try:
        return jax.devices()[0].device_kind.lower()
    except Exception:
        return ""


def _default_num_cores():
    kind = _device_kind()
    # v7x has 2 TensorCores/chip -> split the batch across them; single-core
    # parts keep num_cores=1 (a grid split would serialize the recurrence).
    return 2 if ("v7" in kind or "7x" in kind) else 1


def _vmem_limit_bytes(est_bytes):
    kind = _device_kind()
    # v7x: 64 MiB physical -> leave compiler headroom; v5e/v6e: 128 MiB.
    cap = (44 << 20) if ("v7" in kind or "7x" in kind) else (96 << 20)
    want = int(1.8 * est_bytes) + (4 << 20)
    return min(max(want, 32 << 20), cap)


def _nbytes(shape, itemsize):
    return math.prod(shape) * itemsize


# ----------------------------------------------------------------------------
# Pallas kernel: full forward pass -> per-core partial (loss_sum, valid_count)
# ----------------------------------------------------------------------------
def seq2seq_kernel(
    # activations / masks (batch-split per grid program)
    xemb_ref, yemb_ref, sel_ref, valid_ref, tgt_ref,
    # encoder LSTM weights
    eWi0_ref, eW0cat_ref, eWh1_ref, eb0_ref, eb1_ref,
    # decoder LSTM weights
    dWe0_ref, dWy0_ref, dW0cat_ref, dWh1_ref, db0_ref, db1_ref,
    # output projection (bias in VMEM, weight stays in HBM -> manual DMA)
    linb_ref, linW_hbm_ref,
    # output: (8, 128) block, [0,0]=partial loss sum, [0,1]=partial valid count
    out_ref,
    # scratch
    enc_proj_ref, dec_proj_ref, enc_h_ref, dec_h_ref, linW_vmem_ref, dma_sem,
):
    f32 = jnp.float32
    bf16 = jnp.bfloat16

    T_in, Nc, H4 = enc_proj_ref.shape
    T_dec = dec_proj_ref.shape[0]
    H = H4 // 4                      # padded hidden size (multiple of 128)
    Vp = linW_vmem_ref.shape[1]

    # Kick off the largest weight transfer immediately; the serial encoder +
    # decoder recurrences below hide this HBM->VMEM DMA, and we only wait
    # right before the deferred output projection.
    linW_cp = pltpu.make_async_copy(linW_hbm_ref, linW_vmem_ref, dma_sem)
    linW_cp.start()

    # Fused recurrent weights, loaded once:
    #   W0cat = [Whh0 | Wih1]  (H, 8H): one MXU push per step yields both the
    #   next step's layer-0 recurrent term and this step's layer-1 input term.
    eW0cat = eW0cat_ref[...]
    eWh1 = eWh1_ref[...]
    dW0cat = dW0cat_ref[...]
    dWh1 = dWh1_ref[...]

    # layer-1 biases pre-broadcast once (hoisted out of the loops)
    eb1 = jnp.broadcast_to(eb1_ref[...], (Nc, H4))
    db1 = jnp.broadcast_to(db1_ref[...], (Nc, H4))

    def lstm_from_gates(g, c):
        # PyTorch gate order: i, f, g, o.  Every slice is 128-lane aligned.
        i = _sigmoid(g[:, 0:H])
        f = _sigmoid(g[:, H:2 * H])
        gg = jnp.tanh(g[:, 2 * H:3 * H])
        o = _sigmoid(g[:, 3 * H:4 * H])
        c_new = f * c + i * gg
        h_new = o * jnp.tanh(c_new)
        return h_new, c_new

    zeros_N4H = jnp.zeros((Nc, H4), f32)
    zeros_NH = jnp.zeros((Nc, H), f32)

    # shape-dependent unroll: full at short T, partial beyond (vreg pressure)
    enc_unroll = T_in if T_in <= 16 else 4
    dec_unroll = T_dec if T_dec <= 16 else 4

    # ------------------------------ encoder ------------------------------
    # Batched input-to-hidden projection for all timesteps (one MXU matmul),
    # layer-0 bias folded in; the serial loop then does 2 matmuls per step.
    xe = xemb_ref[...].reshape(T_in * Nc, -1)
    xp = jnp.dot(xe, eWi0_ref[...], preferred_element_type=f32) + eb0_ref[...]
    enc_proj_ref[...] = xp.reshape(T_in, Nc, H4).astype(enc_proj_ref.dtype)

    def enc_body(t, carry):
        g0hh, c0, h1, c1 = carry          # g0hh = h0_{t-1} @ Whh0 (f32)
        g0 = enc_proj_ref[t].astype(f32) + g0hh
        h0, c0 = lstm_from_gates(g0, c0)
        m = jnp.dot(h0.astype(bf16), eW0cat, preferred_element_type=f32)  # (Nc,8H)
        g1 = (m[:, H4:]
              + jnp.dot(h1.astype(bf16), eWh1, preferred_element_type=f32)
              + eb1)
        h1, c1 = lstm_from_gates(g1, c1)
        enc_h_ref[t] = h1.astype(enc_h_ref.dtype)
        return (m[:, :H4], c0, h1, c1)

    lax.fori_loop(0, T_in, enc_body,
                  (zeros_N4H, zeros_NH, zeros_NH, zeros_NH), unroll=enc_unroll)

    # encoded = layer-1 h at the last non-NULL input position (one-hot sum)
    encoded = jnp.sum(sel_ref[...] * enc_h_ref[...].astype(f32), axis=0)
    encoded = encoded.astype(bf16)                                      # (Nc, H)

    # ------------------------------ decoder ------------------------------
    # encoded@We0 is loop-invariant -> computed once; the decoder-embedding
    # projection is batched over all steps; both folded (with the bias) into a
    # single precomputed per-step additive term.
    enc_term = (jnp.dot(encoded, dWe0_ref[...], preferred_element_type=f32)
                + db0_ref[...])                                          # (Nc, 4H)
    ye = yemb_ref[...].reshape(T_dec * Nc, -1)
    yp = jnp.dot(ye, dWy0_ref[...], preferred_element_type=f32)
    dec_proj_ref[...] = (yp.reshape(T_dec, Nc, H4)
                         + enc_term[None]).astype(dec_proj_ref.dtype)

    def dec_body(t, carry):
        g0hh, c0, h1, c1 = carry
        g0 = dec_proj_ref[t].astype(f32) + g0hh
        h0, c0 = lstm_from_gates(g0, c0)
        m = jnp.dot(h0.astype(bf16), dW0cat, preferred_element_type=f32)
        g1 = (m[:, H4:]
              + jnp.dot(h1.astype(bf16), dWh1, preferred_element_type=f32)
              + db1)
        h1, c1 = lstm_from_gates(g1, c1)
        dec_h_ref[t] = h1.astype(dec_h_ref.dtype)
        return (m[:, :H4], c0, h1, c1)

    lax.fori_loop(0, T_dec, dec_body,
                  (zeros_N4H, zeros_NH, zeros_NH, zeros_NH), unroll=dec_unroll)

    # ---------------- deferred projection + masked CE ----------------
    linW_cp.wait()            # DMA fully hidden behind the recurrences
    h_all = dec_h_ref[...].reshape(T_dec * Nc, H)                        # bf16
    logits = jnp.dot(h_all, linW_vmem_ref[...], preferred_element_type=f32)
    logits = logits + linb_ref[...]        # padded vocab lanes carry -1e9 (f32)

    mx = jnp.max(logits, axis=1, keepdims=True)
    lse = mx + jnp.log(jnp.sum(jnp.exp(logits - mx), axis=1, keepdims=True))
    tgt = tgt_ref[...].reshape(T_dec * Nc, 1)                            # int32
    lane_v = lax.broadcasted_iota(jnp.int32, (T_dec * Nc, Vp), 1)
    # no f32 one-hot: select the target logit directly
    tlogit = jnp.sum(jnp.where(lane_v == tgt, logits, 0.0),
                     axis=1, keepdims=True)
    ce = lse - tlogit                                                    # (T*Nc,1)

    valid = valid_ref[...].reshape(T_dec * Nc, 1)
    lsum = jnp.sum(ce * valid, keepdims=True)                            # (1,1)
    cnt = jnp.sum(valid, keepdims=True)                                  # (1,1)

    # per-core partial (lsum, cnt) in a lane-dense (8,128) output block; the
    # wrapper combines the partials and applies the /0 guard.
    lane = lax.broadcasted_iota(jnp.int32, (8, 128), 1)
    zeros_blk = jnp.zeros((8, 128), jnp.float32)
    out_ref[...] = jnp.where(lane == 0, lsum,
                             jnp.where(lane == 1, cnt, zeros_blk))


# ----------------------------------------------------------------------------
# Wrapper: index glue + padding/bf16 prep in plain JAX, heavy compute in kernel.
# ----------------------------------------------------------------------------
def seq2seq_forward(x, y, p, num_cores=None):
    N, T_in = x.shape
    _, T_out = y.shape
    T_dec = T_out - 1            # last decoder step's target is always padding

    D = p["enc_emb"].shape[1]
    H = p["enc_Whh0"].shape[0]
    V_out = p["dec_emb"].shape[0]

    if num_cores is None:
        num_cores = _default_num_cores()

    f32, bf16 = jnp.float32, jnp.bfloat16

    # bf16 packs 16 rows per vreg -> pad the per-core batch to a multiple of 16
    # sublanes; features / vocab to multiples of 128 lanes.
    Np = _round_up(N, 16 * num_cores)
    Nc = Np // num_cores
    Dp = _round_up(D, 128)
    Hp = _round_up(H, 128)
    Vp = _round_up(V_out, 128)
    H4 = 4 * Hp

    # NULL(0)-padded batch rows; they carry zero loss weight
    x = _pad_axis(x.astype(jnp.int32), Np, 0)
    y = _pad_axis(y.astype(jnp.int32), Np, 0)

    # before_rnn glue (PyTorch CPU loop):
    #   idx[i] = first t with x[i,t]!=NULL and x[i,t+1]==NULL, else T-1
    x_rep = jnp.where(x == NULL_TOKEN, 0, x)
    y_rep = jnp.where(y == NULL_TOKEN, 0, y)
    cond = (x[:, :-1] != NULL_TOKEN) & (x[:, 1:] == NULL_TOKEN)
    tpos = jnp.arange(T_in - 1, dtype=jnp.int32)
    idx = jnp.min(jnp.where(cond, tpos[None, :], T_in - 1), axis=1)       # (Np,)
    sel = (jnp.arange(T_in, dtype=jnp.int32)[:, None] == idx[None, :])
    sel = sel.astype(f32)[:, :, None]                                     # (T_in,Np,1)

    # embedding lookups precomputed here (plain gathers) -> (T, Np, Dp) bf16
    enc_emb = _pad_axis(p["enc_emb"], Dp, 1)
    dec_emb = _pad_axis(p["dec_emb"], Dp, 1)
    x_emb = jnp.transpose(enc_emb[x_rep], (1, 0, 2)).astype(bf16)         # (T_in,Np,Dp)
    y_emb = jnp.transpose(dec_emb[y_rep[:, :T_dec]], (1, 0, 2)).astype(bf16)

    # loss targets / masks: logits[:, t] predicts y[:, t+1]; NULL targets masked
    tgt = jnp.transpose(y[:, 1:])[:, :, None].astype(jnp.int32)           # (T_dec,Np,1)
    valid = (tgt != NULL_TOKEN).astype(f32)                               # (T_dec,Np,1)

    # weights: per-gate lane padding + bf16 cast (biases stay f32)
    def prep_w(w, rows):
        return _pad_gate_cols(_pad_axis(w, rows, 0), Hp).astype(bf16)

    def prep_b(b):
        return _pad_gate_cols(b, Hp).astype(f32)      # per-gate zero padding!

    eWi0 = prep_w(p["enc_Wih0"], Dp)
    eW0cat = jnp.concatenate(                       # [Whh0 | Wih1]  (Hp, 8Hp)
        [prep_w(p["enc_Whh0"], Hp), prep_w(p["enc_Wih1"], Hp)], axis=1)
    eWh1 = prep_w(p["enc_Whh1"], Hp)
    eb0, eb1 = prep_b(p["enc_b0"]), prep_b(p["enc_b1"])

    dWe0 = prep_w(p["dec_We0"], Hp)
    dWy0 = prep_w(p["dec_Wy0"], Dp)
    dW0cat = jnp.concatenate(
        [prep_w(p["dec_Whh0"], Hp), prep_w(p["dec_Wih1"], Hp)], axis=1)
    dWh1 = prep_w(p["dec_Whh1"], Hp)
    db0, db1 = prep_b(p["dec_b0"]), prep_b(p["dec_b1"])

    linW = _pad_axis(_pad_axis(p["lin_W"], Hp, 0), Vp, 1).astype(bf16)
    linb = p["lin_b"].astype(f32)
    if Vp > V_out:   # padded vocab lanes get -1e9 (f32!) so the softmax ignores them
        linb = jnp.concatenate(
            [linb, jnp.full((1, Vp - V_out), -1e9, f32)], axis=1)

    args = [
        x_emb, y_emb, sel, valid, tgt,
        eWi0, eW0cat, eWh1, eb0, eb1,
        dWe0, dWy0, dW0cat, dWh1, db0, db1,
        linb, linW,
    ]

    def _rep(a):   # weight replicated to every program (full block, index 0)
        zeros = (0,) * a.ndim
        return pl.BlockSpec(tuple(a.shape), lambda i, _z=zeros: _z)

    def _bsplit(t_dim, last_dim):   # batch-split along axis 1
        return pl.BlockSpec((t_dim, Nc, last_dim), lambda i: (0, i, 0))

    in_specs = [
        _bsplit(T_in, Dp),            # x_emb
        _bsplit(T_dec, Dp),           # y_emb
        _bsplit(T_in, 1),             # sel
        _bsplit(T_dec, 1),            # valid
        _bsplit(T_dec, 1),            # tgt
        _rep(eWi0), _rep(eW0cat), _rep(eWh1), _rep(eb0), _rep(eb1),
        _rep(dWe0), _rep(dWy0), _rep(dW0cat), _rep(dWh1), _rep(db0), _rep(db1),
        _rep(linb),
        pl.BlockSpec(memory_space=pl.ANY),   # linW: stays in HBM, manual DMA
    ]

    scratch_shapes = [
        pltpu.VMEM((T_in, Nc, H4), bf16),     # enc layer-0 input proj (bf16)
        pltpu.VMEM((T_dec, Nc, H4), bf16),    # dec layer-0 input proj (bf16)
        pltpu.VMEM((T_in, Nc, Hp), bf16),     # enc layer-1 h history
        pltpu.VMEM((T_dec, Nc, Hp), bf16),    # dec layer-1 h history
        pltpu.VMEM((Hp, Vp), bf16),           # linW landing buffer
        pltpu.SemaphoreType.DMA(()),
    ]

    # shape-derived VMEM budget (double-buffered batch blocks + weights +
    # scratch + logits working set), chip-capped with headroom
    blk_bytes = (_nbytes((T_in, Nc, Dp), 2) + _nbytes((T_dec, Nc, Dp), 2)
                 + _nbytes((T_in, Nc, 1), 4) + 2 * _nbytes((T_dec, Nc, 1), 4))
    w_bytes = sum(math.prod(a.shape) * a.dtype.itemsize for a in args[5:17])
    scr_bytes = (_nbytes((T_in, Nc, H4), 2) + _nbytes((T_dec, Nc, H4), 2)
                 + _nbytes((T_in, Nc, Hp), 2) + _nbytes((T_dec, Nc, Hp), 2)
                 + _nbytes((Hp, Vp), 2))
    logit_bytes = 2 * _nbytes((T_dec * Nc, Vp), 4)
    est = 2 * (blk_bytes + w_bytes) + scr_bytes + logit_bytes + 8 * 128 * 4

    flops = 2 * (T_in * Np * Dp * H4                  # enc input proj
                 + T_in * Np * Hp * 12 * Hp           # enc recurrence (8H+4H)
                 + Np * Hp * H4                       # encoded@We0
                 + T_dec * Np * Dp * H4               # dec input proj
                 + T_dec * Np * Hp * 12 * Hp          # dec recurrence
                 + T_dec * Np * Hp * Vp)              # output projection
    transcendentals = (T_in + T_dec) * Np * 6 * Hp + T_dec * Np * Vp
    bytes_accessed = (sum(math.prod(a.shape) * a.dtype.itemsize for a in args)
                      + num_cores * 8 * 128 * 4)
    cost = pl.CostEstimate(flops=int(flops),
                           transcendentals=int(transcendentals),
                           bytes_accessed=int(bytes_accessed))

    out = pl.pallas_call(
        seq2seq_kernel,
        out_shape=jax.ShapeDtypeStruct((num_cores * 8, 128), f32),
        grid_spec=pltpu.PrefetchScalarGridSpec(
            num_scalar_prefetch=0,
            grid=(num_cores,),
            in_specs=in_specs,
            out_specs=pl.BlockSpec((8, 128), lambda i: (i, 0)),
            scratch_shapes=scratch_shapes,
        ),
        compiler_params=pltpu.CompilerParams(
            dimension_semantics=("parallel",),
            vmem_limit_bytes=_vmem_limit_bytes(est),
        ),
        cost_estimate=cost,
    )(*args)

    lsum = jnp.sum(out[0::8, 0])
    cnt = jnp.sum(out[0::8, 1])
    return lsum / jnp.maximum(cnt, 1.0)               # /0 guard


# ----------------------------------------------------------------------------
# Pure-JAX reference (mirrors the PyTorch forward) for verification.
# ----------------------------------------------------------------------------
def ref_forward(x, y, p):
    N, T_in = x.shape
    _, T_out = y.shape
    H = p["enc_Whh0"].shape[0]

    cond = (x[:, :-1] != NULL_TOKEN) & (x[:, 1:] == NULL_TOKEN)
    tpos = jnp.arange(T_in - 1, dtype=jnp.int32)
    idx = jnp.min(jnp.where(cond, tpos[None, :], T_in - 1), axis=1)

    def lstm_layer(Wi, Wh, b, xs):          # xs: (N,T,F) -> (N,T,H)
        def step(carry, xt):
            h, c = carry
            g = xt @ Wi + h @ Wh + b
            i = jax.nn.sigmoid(g[:, :H]); f = jax.nn.sigmoid(g[:, H:2 * H])
            gg = jnp.tanh(g[:, 2 * H:3 * H]); o = jax.nn.sigmoid(g[:, 3 * H:])
            c = f * c + i * gg
            h = o * jnp.tanh(c)
            return (h, c), h
        z = jnp.zeros((xs.shape[0], H), jnp.float32)
        _, hs = lax.scan(step, (z, z), jnp.swapaxes(xs, 0, 1))
        return jnp.swapaxes(hs, 0, 1)

    x_emb = p["enc_emb"][jnp.where(x == NULL_TOKEN, 0, x)]
    h0 = lstm_layer(p["enc_Wih0"], p["enc_Whh0"], p["enc_b0"], x_emb)
    h1 = lstm_layer(p["enc_Wih1"], p["enc_Whh1"], p["enc_b1"], h0)
    encoded = h1[jnp.arange(N), idx]                        # (N,H)

    y_emb = p["dec_emb"][jnp.where(y == NULL_TOKEN, 0, y)]
    enc_rep = jnp.broadcast_to(encoded[:, None, :], (N, T_out, H))
    rnn_in = jnp.concatenate([enc_rep, y_emb], axis=2)
    W0 = jnp.concatenate([p["dec_We0"], p["dec_Wy0"]], axis=0)
    d0 = lstm_layer(W0, p["dec_Whh0"], p["dec_b0"], rnn_in)
    d1 = lstm_layer(p["dec_Wih1"], p["dec_Whh1"], p["dec_b1"], d0)
    logits = d1 @ p["lin_W"] + p["lin_b"]                   # (N,T_out,V)

    mask = (y != NULL_TOKEN)
    valid = mask[:, 1:].astype(jnp.float32)
    lg = logits[:, :-1, :]
    tgt = y[:, 1:]
    lse = jax.nn.logsumexp(lg, axis=-1)
    tlog = jnp.take_along_axis(lg, tgt[:, :, None], axis=-1)[:, :, 0]
    ce = lse - tlog
    return jnp.sum(ce * valid) / jnp.sum(valid)


# ----------------------------------------------------------------------------
# Deterministic parameter init (synthetic — shapes from the module __init__).
# PyTorch's separate b_ih/b_hh biases are folded into a single bias per layer.
# ----------------------------------------------------------------------------
def make_params(key, V_in, V_out, D, H):
    ks = jax.random.split(key, 17)
    w = lambda k, shape, s: jax.random.normal(k, shape, jnp.float32) * s
    s = 0.1
    return {
        "enc_emb": w(ks[0], (V_in, D), 0.5),
        "dec_emb": w(ks[1], (V_out, D), 0.5),
        "enc_Wih0": w(ks[2], (D, 4 * H), s), "enc_Whh0": w(ks[3], (H, 4 * H), s),
        "enc_b0": w(ks[4], (1, 4 * H), s),
        "enc_Wih1": w(ks[5], (H, 4 * H), s), "enc_Whh1": w(ks[6], (H, 4 * H), s),
        "enc_b1": w(ks[7], (1, 4 * H), s),
        "dec_We0": w(ks[8], (H, 4 * H), s), "dec_Wy0": w(ks[9], (D, 4 * H), s),
        "dec_Whh0": w(ks[10], (H, 4 * H), s), "dec_b0": w(ks[11], (1, 4 * H), s),
        "dec_Wih1": w(ks[12], (H, 4 * H), s), "dec_Whh1": w(ks[13], (H, 4 * H), s),
        "dec_b1": w(ks[14], (1, 4 * H), s),
        "lin_W": w(ks[15], (H, V_out), s), "lin_b": w(ks[16], (1, V_out), s),
    }


if __name__ == "__main__":
    # small shapes consistent with the module's forward
    N, T_in, T_out = 2, 8, 8
    V_in = V_out = 32
    D, H = 32, 32

    key = jax.random.PRNGKey(0)
    kx, ky, kp = jax.random.split(key, 3)

    # token sequences: content tokens in [3, V), left-aligned, NULL(0)-padded
    x = jax.random.randint(kx, (N, T_in), 3, V_in, dtype=jnp.int32)
    len_x = jnp.array([6, 4])
    x = jnp.where(jnp.arange(T_in)[None, :] < len_x[:, None], x, NULL_TOKEN)

    y = jax.random.randint(ky, (N, T_out), 3, V_out, dtype=jnp.int32)
    y = y.at[:, 0].set(START_TOKEN)
    len_y = jnp.array([5, 7])
    y = jnp.where(jnp.arange(T_out)[None, :] < len_y[:, None], y, NULL_TOKEN)

    params = make_params(kp, V_in, V_out, D, H)

    loss = jax.block_until_ready(jax.jit(seq2seq_forward)(x, y, params))
    loss_ref = jax.block_until_ready(ref_forward(x, y, params))

    # kernel uses bf16 matmul operands / bf16 projection scratch (f32 gate math
    # and accumulation) vs the pure-f32 reference, so tolerance is loosened.
    assert jnp.allclose(loss, loss_ref, rtol=5e-2, atol=5e-2), (loss, loss_ref)
    print("KERNEL_OK")
</pallas_src>

<mosaic_0001>
module attributes {stable_mosaic.version = 11 : i64} {
  func.func @seq2seq_kernel(%arg0: i32, %arg1: memref<8x16x128xbf16, #tpu.memory_space<vmem>>, %arg2: memref<7x16x128xbf16, #tpu.memory_space<vmem>>, %arg3: memref<8x16x1xf32, #tpu.memory_space<vmem>>, %arg4: memref<7x16x1xf32, #tpu.memory_space<vmem>>, %arg5: memref<7x16x1xi32, #tpu.memory_space<vmem>>, %arg6: memref<128x512xbf16, #tpu.memory_space<vmem>>, %arg7: memref<128x1024xbf16, #tpu.memory_space<vmem>>, %arg8: memref<128x512xbf16, #tpu.memory_space<vmem>>, %arg9: memref<1x512xf32, #tpu.memory_space<vmem>>, %arg10: memref<1x512xf32, #tpu.memory_space<vmem>>, %arg11: memref<128x512xbf16, #tpu.memory_space<vmem>>, %arg12: memref<128x512xbf16, #tpu.memory_space<vmem>>, %arg13: memref<128x1024xbf16, #tpu.memory_space<vmem>>, %arg14: memref<128x512xbf16, #tpu.memory_space<vmem>>, %arg15: memref<1x512xf32, #tpu.memory_space<vmem>>, %arg16: memref<1x512xf32, #tpu.memory_space<vmem>>, %arg17: memref<1x128xf32, #tpu.memory_space<vmem>>, %arg18: memref<128x128xbf16, #tpu.memory_space<any>>, %arg19: memref<8x128xf32, #tpu.memory_space<vmem>>, %arg20: memref<8x16x512xbf16, #tpu.memory_space<vmem>>, %arg21: memref<7x16x512xbf16, #tpu.memory_space<vmem>>, %arg22: memref<8x16x128xbf16, #tpu.memory_space<vmem>>, %arg23: memref<7x16x128xbf16, #tpu.memory_space<vmem>>, %arg24: memref<128x128xbf16, #tpu.memory_space<vmem>>, %arg25: memref<!tpu.dma_semaphore, #tpu.memory_space<semaphore_mem>>) attributes {dimension_semantics = [#tpu.dimension_semantics<parallel>], iteration_bounds = array<i64: 1>, scalar_prefetch = 0 : i64, scratch_operands = 6 : i64, tpu.core_type = #tpu.core_type<tc>, window_params = [{transform_indices = @transform_0, window_bounds = array<i64: 8, 16, 128>}, {transform_indices = @transform_1, window_bounds = array<i64: 7, 16, 128>}, {transform_indices = @transform_2, window_bounds = array<i64: 8, 16, 1>}, {transform_indices = @transform_3, window_bounds = array<i64: 7, 16, 1>}, {transform_indices = @transform_4, window_bounds = array<i64: 7, 16, 1>}, {pipeline_mode = #tpu.pipeline_mode<synchronous>, transform_indices = @transform_5, window_bounds = array<i64: 128, 512>}, {pipeline_mode = #tpu.pipeline_mode<synchronous>, transform_indices = @transform_6, window_bounds = array<i64: 128, 1024>}, {pipeline_mode = #tpu.pipeline_mode<synchronous>, transform_indices = @transform_7, window_bounds = array<i64: 128, 512>}, {pipeline_mode = #tpu.pipeline_mode<synchronous>, transform_indices = @transform_8, window_bounds = array<i64: 1, 512>}, {pipeline_mode = #tpu.pipeline_mode<synchronous>, transform_indices = @transform_9, window_bounds = array<i64: 1, 512>}, {pipeline_mode = #tpu.pipeline_mode<synchronous>, transform_indices = @transform_10, window_bounds = array<i64: 128, 512>}, {pipeline_mode = #tpu.pipeline_mode<synchronous>, transform_indices = @transform_11, window_bounds = array<i64: 128, 512>}, {pipeline_mode = #tpu.pipeline_mode<synchronous>, transform_indices = @transform_12, window_bounds = array<i64: 128, 1024>}, {pipeline_mode = #tpu.pipeline_mode<synchronous>, transform_indices = @transform_13, window_bounds = array<i64: 128, 512>}, {pipeline_mode = #tpu.pipeline_mode<synchronous>, transform_indices = @transform_14, window_bounds = array<i64: 1, 512>}, {pipeline_mode = #tpu.pipeline_mode<synchronous>, transform_indices = @transform_15, window_bounds = array<i64: 1, 512>}, {pipeline_mode = #tpu.pipeline_mode<synchronous>, transform_indices = @transform_16, window_bounds = array<i64: 1, 128>}, {}, {transform_indices = @transform_18, window_bounds = array<i64: 8, 128>}]} {
    tpu.enqueue_dma source(%arg18 : memref<128x128xbf16, #tpu.memory_space<any>>) target(%arg24 : memref<128x128xbf16, #tpu.memory_space<vmem>>) target_semaphore(%arg25 : memref<!tpu.dma_semaphore, #tpu.memory_space<semaphore_mem>>)
    %c0 = arith.constant 0 : index
    %c0_0 = arith.constant 0 : index
    %0 = vector.load %arg7[%c0, %c0_0] : memref<128x1024xbf16, #tpu.memory_space<vmem>>, vector<128x1024xbf16>
    %c0_1 = arith.constant 0 : index
    %c0_2 = arith.constant 0 : index
    %1 = vector.load %arg8[%c0_1, %c0_2] : memref<128x512xbf16, #tpu.memory_space<vmem>>, vector<128x512xbf16>
    %c0_3 = arith.constant 0 : index
    %c0_4 = arith.constant 0 : index
    %2 = vector.load %arg13[%c0_3, %c0_4] : memref<128x1024xbf16, #tpu.memory_space<vmem>>, vector<128x1024xbf16>
    %c0_5 = arith.constant 0 : index
    %c0_6 = arith.constant 0 : index
    %3 = vector.load %arg14[%c0_5, %c0_6] : memref<128x512xbf16, #tpu.memory_space<vmem>>, vector<128x512xbf16>
    %c0_7 = arith.constant 0 : index
    %c0_8 = arith.constant 0 : index
    %4 = vector.load %arg10[%c0_7, %c0_8] : memref<1x512xf32, #tpu.memory_space<vmem>>, vector<1x512xf32>
    %5 = vector.shape_cast %4 : vector<1x512xf32> to vector<1x512xf32>
    %6 = vector.broadcast %5 : vector<1x512xf32> to vector<16x512xf32>
    %c0_9 = arith.constant 0 : index
    %c0_10 = arith.constant 0 : index
    %7 = vector.load %arg16[%c0_9, %c0_10] : memref<1x512xf32, #tpu.memory_space<vmem>>, vector<1x512xf32>
    %8 = vector.shape_cast %7 : vector<1x512xf32> to vector<1x512xf32>
    %9 = vector.broadcast %8 : vector<1x512xf32> to vector<16x512xf32>
    %cst = arith.constant 0.000000e+00 : f32
    %10 = vector.broadcast %cst : f32 to vector<16x512xf32>
    %cst_11 = arith.constant 0.000000e+00 : f32
    %11 = vector.broadcast %cst_11 : f32 to vector<16x128xf32>
    %c0_12 = arith.constant 0 : index
    %c0_13 = arith.constant 0 : index
    %c0_14 = arith.constant 0 : index
    %12 = vector.load %arg1[%c0_12, %c0_13, %c0_14] : memref<8x16x128xbf16, #tpu.memory_space<vmem>>, vector<8x16x128xbf16>
    %13 = vector.shape_cast %12 : vector<8x16x128xbf16> to vector<128x128xbf16>
    %c0_15 = arith.constant 0 : index
    %c0_16 = arith.constant 0 : index
    %14 = vector.load %arg6[%c0_15, %c0_16] : memref<128x512xbf16, #tpu.memory_space<vmem>>, vector<128x512xbf16>
    %cst_17 = arith.constant dense<0.000000e+00> : vector<128x512xf32>
    %15 = tpu.matmul %13, %14, %cst_17 {dimension_numbers = #tpu.dot_dimension_numbers<[1], [0], [0], [1], [0, 0, 1, 1], [], []>} : vector<128x128xbf16>, vector<128x512xbf16>, vector<128x512xf32> -> vector<128x512xf32>
    %c0_18 = arith.constant 0 : index
    %c0_19 = arith.constant 0 : index
    %16 = vector.load %arg9[%c0_18, %c0_19] : memref<1x512xf32, #tpu.memory_space<vmem>>, vector<1x512xf32>
    %17 = vector.broadcast %16 : vector<1x512xf32> to vector<128x512xf32>
    %18 = arith.addf %15, %17 : vector<128x512xf32>
    %19 = vector.shape_cast %18 : vector<128x512xf32> to vector<8x16x512xf32>
    %20 = arith.truncf %19 : vector<8x16x512xf32> to vector<8x16x512xbf16>
    %c0_20 = arith.constant 0 : index
    %c0_21 = arith.constant 0 : index
    %c0_22 = arith.constant 0 : index
    %21 = vector.load %arg20[%c0_20, %c0_21, %c0_22] : memref<8x16x512xbf16, #tpu.memory_space<vmem>>, vector<8x16x512xbf16>
    tpu.vector_store %arg20[%c0_20, %c0_21, %c0_22], %20 {strides = array<i32>} : memref<8x16x512xbf16, #tpu.memory_space<vmem>>, vector<8x16x512xbf16>,
    %c0_i32 = arith.constant 0 : i32
    %22 = arith.index_cast %c0_i32 : i32 to index
    %c0_23 = arith.constant 0 : index
    %c0_24 = arith.constant 0 : index
    %23 = vector.load %arg20[%22, %c0_23, %c0_24] : memref<8x16x512xbf16, #tpu.memory_space<vmem>>, vector<1x16x512xbf16>
    %24 = vector.shape_cast %23 : vector<1x16x512xbf16> to vector<16x512xbf16>
    %25 = arith.extf %24 : vector<16x512xbf16> to vector<16x512xf32>
    %26 = arith.addf %25, %10 : vector<16x512xf32>
    %27 = vector.extract_strided_slice %26 {offsets = [0, 0], sizes = [16, 128], strides = [1, 1]} : vector<16x512xf32> to vector<16x128xf32>
    %cst_25 = arith.constant 5.000000e-01 : f32
    %28 = vector.broadcast %cst_25 : f32 to vector<16x128xf32>
    %29 = arith.mulf %28, %27 : vector<16x128xf32>
    %30 = math.tanh %29 : vector<16x128xf32>
    %cst_26 = arith.constant 1.000000e+00 : f32
    %31 = vector.broadcast %cst_26 : f32 to vector<16x128xf32>
    %32 = arith.addf %30, %31 : vector<16x128xf32>
    %cst_27 = arith.constant 5.000000e-01 : f32
    %33 = vector.broadcast %cst_27 : f32 to vector<16x128xf32>
    %34 = arith.mulf %33, %32 : vector<16x128xf32>
    %35 = vector.extract_strided_slice %26 {offsets = [0, 128], sizes = [16, 128], strides = [1, 1]} : vector<16x512xf32> to vector<16x128xf32>
    %cst_28 = arith.constant 5.000000e-01 : f32
    %36 = vector.broadcast %cst_28 : f32 to vector<16x128xf32>
    %37 = arith.mulf %36, %35 : vector<16x128xf32>
    %38 = math.tanh %37 : vector<16x128xf32>
    %cst_29 = arith.constant 1.000000e+00 : f32
    %39 = vector.broadcast %cst_29 : f32 to vector<16x128xf32>
    %40 = arith.addf %38, %39 : vector<16x128xf32>
    %cst_30 = arith.constant 5.000000e-01 : f32
    %41 = vector.broadcast %cst_30 : f32 to vector<16x128xf32>
    %42 = arith.mulf %41, %40 : vector<16x128xf32>
    %43 = vector.extract_strided_slice %26 {offsets = [0, 256], sizes = [16, 128], strides = [1, 1]} : vector<16x512xf32> to vector<16x128xf32>
    %44 = math.tanh %43 : vector<16x128xf32>
    %45 = vector.extract_strided_slice %26 {offsets = [0, 384], sizes = [16, 128], strides = [1, 1]} : vector<16x512xf32> to vector<16x128xf32>
    %cst_31 = arith.constant 5.000000e-01 : f32
    %46 = vector.broadcast %cst_31 : f32 to vector<16x128xf32>
    %47 = arith.mulf %46, %45 : vector<16x128xf32>
    %48 = math.tanh %47 : vector<16x128xf32>
    %cst_32 = arith.constant 1.000000e+00 : f32
    %49 = vector.broadcast %cst_32 : f32 to vector<16x128xf32>
    %50 = arith.addf %48, %49 : vector<16x128xf32>
    %cst_33 = arith.constant 5.000000e-01 : f32
    %51 = vector.broadcast %cst_33 : f32 to vector<16x128xf32>
    %52 = arith.mulf %51, %50 : vector<16x128xf32>
    %53 = arith.mulf %42, %11 : vector<16x128xf32>
    %54 = arith.mulf %34, %44 : vector<16x128xf32>
    %55 = arith.addf %53, %54 : vector<16x128xf32>
    %56 = math.tanh %55 : vector<16x128xf32>
    %57 = arith.mulf %52, %56 : vector<16x128xf32>
    %58 = arith.truncf %57 : vector<16x128xf32> to vector<16x128xbf16>
    %cst_34 = arith.constant dense<0.000000e+00> : vector<16x1024xf32>
    %59 = tpu.matmul %58, %0, %cst_34 {dimension_numbers = #tpu.dot_dimension_numbers<[1], [0], [0], [1], [0, 0, 1, 1], [], []>} : vector<16x128xbf16>, vector<128x1024xbf16>, vector<16x1024xf32> -> vector<16x1024xf32>
    %60 = vector.extract_strided_slice %59 {offsets = [0, 512], sizes = [16, 512], strides = [1, 1]} : vector<16x1024xf32> to vector<16x512xf32>
    %61 = arith.truncf %11 : vector<16x128xf32> to vector<16x128xbf16>
    %cst_35 = arith.constant dense<0.000000e+00> : vector<16x512xf32>
    %62 = tpu.matmul %61, %1, %cst_35 {dimension_numbers = #tpu.dot_dimension_numbers<[1], [0], [0], [1], [0, 0, 1, 1], [], []>} : vector<16x128xbf16>, vector<128x512xbf16>, vector<16x512xf32> -> vector<16x512xf32>
    %63 = arith.addf %60, %62 : vector<16x512xf32>
    %64 = arith.addf %63, %6 : vector<16x512xf32>
    %65 = vector.extract_strided_slice %64 {offsets = [0, 0], sizes = [16, 128], strides = [1, 1]} : vector<16x512xf32> to vector<16x128xf32>
    %cst_36 = arith.constant 5.000000e-01 : f32
    %66 = vector.broadcast %cst_36 : f32 to vector<16x128xf32>
    %67 = arith.mulf %66, %65 : vector<16x128xf32>
    %68 = math.tanh %67 : vector<16x128xf32>
    %cst_37 = arith.constant 1.000000e+00 : f32
    %69 = vector.broadcast %cst_37 : f32 to vector<16x128xf32>
    %70 = arith.addf %68, %69 : vector<16x128xf32>
    %cst_38 = arith.constant 5.000000e-01 : f32
    %71 = vector.broadcast %cst_38 : f32 to vector<16x128xf32>
    %72 = arith.mulf %71, %70 : vector<16x128xf32>
    %73 = vector.extract_strided_slice %64 {offsets = [0, 128], sizes = [16, 128], strides = [1, 1]} : vector<16x512xf32> to vector<16x128xf32>
    %cst_39 = arith.constant 5.000000e-01 : f32
    %74 = vector.broadcast %cst_39 : f32 to vector<16x128xf32>
    %75 = arith.mulf %74, %73 : vector<16x128xf32>
    %76 = math.tanh %75 : vector<16x128xf32>
    %cst_40 = arith.constant 1.000000e+00 : f32
    %77 = vector.broadcast %cst_40 : f32 to vector<16x128xf32>
    %78 = arith.addf %76, %77 : vector<16x128xf32>
    %cst_41 = arith.constant 5.000000e-01 : f32
    %79 = vector.broadcast %cst_41 : f32 to vector<16x128xf32>
    %80 = arith.mulf %79, %78 : vector<16x128xf32>
    %81 = vector.extract_strided_slice %64 {offsets = [0, 256], sizes = [16, 128], strides = [1, 1]} : vector<16x512xf32> to vector<16x128xf32>
    %82 = math.tanh %81 : vector<16x128xf32>
    %83 = vector.extract_strided_slice %64 {offsets = [0, 384], sizes = [16, 128], strides = [1, 1]} : vector<16x512xf32> to vector<16x128xf32>
    %cst_42 = arith.constant 5.000000e-01 : f32
    %84 = vector.broadcast %cst_42 : f32 to vector<16x128xf32>
    %85 = arith.mulf %84, %83 : vector<16x128xf32>
    %86 = math.tanh %85 : vector<16x128xf32>
    %cst_43 = arith.constant 1.000000e+00 : f32
    %87 = vector.broadcast %cst_43 : f32 to vector<16x128xf32>
    %88 = arith.addf %86, %87 : vector<16x128xf32>
    %cst_44 = arith.constant 5.000000e-01 : f32
    %89 = vector.broadcast %cst_44 : f32 to vector<16x128xf32>
    %90 = arith.mulf %89, %88 : vector<16x128xf32>
    %91 = arith.mulf %80, %11 : vector<16x128xf32>
    %92 = arith.mulf %72, %82 : vector<16x128xf32>
    %93 = arith.addf %91, %92 : vector<16x128xf32>
    %94 = math.tanh %93 : vector<16x128xf32>
    %95 = arith.mulf %90, %94 : vector<16x128xf32>
    %96 = arith.truncf %95 : vector<16x128xf32> to vector<16x128xbf16>
    %97 = arith.index_cast %c0_i32 : i32 to index
    %c0_45 = arith.constant 0 : index
    %c0_46 = arith.constant 0 : index
    %98 = vector.load %arg22[%97, %c0_45, %c0_46] : memref<8x16x128xbf16, #tpu.memory_space<vmem>>, vector<1x16x128xbf16>
    %99 = vector.shape_cast %98 : vector<1x16x128xbf16> to vector<16x128xbf16>
    %100 = vector.shape_cast %96 : vector<16x128xbf16> to vector<1x16x128xbf16>
    tpu.vector_store %arg22[%97, %c0_45, %c0_46], %100 {strides = array<i32>} : memref<8x16x128xbf16, #tpu.memory_space<vmem>>, vector<1x16x128xbf16>,
    %101 = vector.extract_strided_slice %59 {offsets = [0, 0], sizes = [16, 512], strides = [1, 1]} : vector<16x1024xf32> to vector<16x512xf32>
    %c1_i32 = arith.constant 1 : i32
    %102 = arith.index_cast %c1_i32 : i32 to index
    %c0_47 = arith.constant 0 : index
    %c0_48 = arith.constant 0 : index
    %103 = vector.load %arg20[%102, %c0_47, %c0_48] : memref<8x16x512xbf16, #tpu.memory_space<vmem>>, vector<1x16x512xbf16>
    %104 = vector.shape_cast %103 : vector<1x16x512xbf16> to vector<16x512xbf16>
    %105 = arith.extf %104 : vector<16x512xbf16> to vector<16x512xf32>
    %106 = arith.addf %105, %101 : vector<16x512xf32>
    %107 = vector.extract_strided_slice %106 {offsets = [0, 0], sizes = [16, 128], strides = [1, 1]} : vector<16x512xf32> to vector<16x128xf32>
    %cst_49 = arith.constant 5.000000e-01 : f32
    %108 = vector.broadcast %cst_49 : f32 to vector<16x128xf32>
    %109 = arith.mulf %108, %107 : vector<16x128xf32>
    %110 = math.tanh %109 : vector<16x128xf32>
    %cst_50 = arith.constant 1.000000e+00 : f32
    %111 = vector.broadcast %cst_50 : f32 to vector<16x128xf32>
    %112 = arith.addf %110, %111 : vector<16x128xf32>
    %cst_51 = arith.constant 5.000000e-01 : f32
    %113 = vector.broadcast %cst_51 : f32 to vector<16x128xf32>
    %114 = arith.mulf %113, %112 : vector<16x128xf32>
    %115 = vector.extract_strided_slice %106 {offsets = [0, 128], sizes = [16, 128], strides = [1, 1]} : vector<16x512xf32> to vector<16x128xf32>
    %cst_52 = arith.constant 5.000000e-01 : f32
    %116 = vector.broadcast %cst_52 : f32 to vector<16x128xf32>
    %117 = arith.mulf %116, %115 : vector<16x128xf32>
    %118 = math.tanh %117 : vector<16x128xf32>
    %cst_53 = arith.constant 1.000000e+00 : f32
    %119 = vector.broadcast %cst_53 : f32 to vector<16x128xf32>
    %120 = arith.addf %118, %119 : vector<16x128xf32>
    %cst_54 = arith.constant 5.000000e-01 : f32
    %121 = vector.broadcast %cst_54 : f32 to vector<16x128xf32>
    %122 = arith.mulf %121, %120 : vector<16x128xf32>
    %123 = vector.extract_strided_slice %106 {offsets = [0, 256], sizes = [16, 128], strides = [1, 1]} : vector<16x512xf32> to vector<16x128xf32>
    %124 = math.tanh %123 : vector<16x128xf32>
    %125 = vector.extract_strided_slice %106 {offsets = [0, 384], sizes = [16, 128], strides = [1, 1]} : vector<16x512xf32> to vector<16x128xf32>
    %cst_55 = arith.constant 5.000000e-01 : f32
    %126 = vector.broadcast %cst_55 : f32 to vector<16x128xf32>
    %127 = arith.mulf %126, %125 : vector<16x128xf32>
    %128 = math.tanh %127 : vector<16x128xf32>
    %cst_56 = arith.constant 1.000000e+00 : f32
    %129 = vector.broadcast %cst_56 : f32 to vector<16x128xf32>
    %130 = arith.addf %128, %129 : vector<16x128xf32>
    %cst_57 = arith.constant 5.000000e-01 : f32
    %131 = vector.broadcast %cst_57 : f32 to vector<16x128xf32>
    %132 = arith.mulf %131, %130 : vector<16x128xf32>
    %133 = arith.mulf %122, %55 : vector<16x128xf32>
    %134 = arith.mulf %114, %124 : vector<16x128xf32>
    %135 = arith.addf %133, %134 : vector<16x128xf32>
    %136 = math.tanh %135 : vector<16x128xf32>
    %137 = arith.mulf %132, %136 : vector<16x128xf32>
    %138 = arith.truncf %137 : vector<16x128xf32> to vector<16x128xbf16>
    %cst_58 = arith.constant dense<0.000000e+00> : vector<16x1024xf32>
    %139 = tpu.matmul %138, %0, %cst_58 {dimension_numbers = #tpu.dot_dimension_numbers<[1], [0], [0], [1], [0, 0, 1, 1], [], []>} : vector<16x128xbf16>, vector<128x1024xbf16>, vector<16x1024xf32> -> vector<16x1024xf32>
    %140 = vector.extract_strided_slice %139 {offsets = [0, 512], sizes = [16, 512], strides = [1, 1]} : vector<16x1024xf32> to vector<16x512xf32>
    %141 = arith.truncf %95 : vector<16x128xf32> to vector<16x128xbf16>
    %cst_59 = arith.constant dense<0.000000e+00> : vector<16x512xf32>
    %142 = tpu.matmul %141, %1, %cst_59 {dimension_numbers = #tpu.dot_dimension_numbers<[1], [0], [0], [1], [0, 0, 1, 1], [], []>} : vector<16x128xbf16>, vector<128x512xbf16>, vector<16x512xf32> -> vector<16x512xf32>
    %143 = arith.addf %140, %142 : vector<16x512xf32>
    %144 = arith.addf %143, %6 : vector<16x512xf32>
    %145 = vector.extract_strided_slice %144 {offsets = [0, 0], sizes = [16, 128], strides = [1, 1]} : vector<16x512xf32> to vector<16x128xf32>
    %cst_60 = arith.constant 5.000000e-01 : f32
    %146 = vector.broadcast %cst_60 : f32 to vector<16x128xf32>
    %147 = arith.mulf %146, %145 : vector<16x128xf32>
    %148 = math.tanh %147 : vector<16x128xf32>
    %cst_61 = arith.constant 1.000000e+00 : f32
    %149 = vector.broadcast %cst_61 : f32 to vector<16x128xf32>
    %150 = arith.addf %148, %149 : vector<16x128xf32>
    %cst_62 = arith.constant 5.000000e-01 : f32
    %151 = vector.broadcast %cst_62 : f32 to vector<16x128xf32>
    %152 = arith.mulf %151, %150 : vector<16x128xf32>
    %153 = vector.extract_strided_slice %144 {offsets = [0, 128], sizes = [16, 128], strides = [1, 1]} : vector<16x512xf32> to vector<16x128xf32>
    %cst_63 = arith.constant 5.000000e-01 : f32
    %154 = vector.broadcast %cst_63 : f32 to vector<16x128xf32>
    %155 = arith.mulf %154, %153 : vector<16x128xf32>
    %156 = math.tanh %155 : vector<16x128xf32>
    %cst_64 = arith.constant 1.000000e+00 : f32
    %157 = vector.broadcast %cst_64 : f32 to vector<16x128xf32>
    %158 = arith.addf %156, %157 : vector<16x128xf32>
    %cst_65 = arith.constant 5.000000e-01 : f32
    %159 = vector.broadcast %cst_65 : f32 to vector<16x128xf32>
    %160 = arith.mulf %159, %158 : vector<16x128xf32>
    %161 = vector.extract_strided_slice %144 {offsets = [0, 256], sizes = [16, 128], strides = [1, 1]} : vector<16x512xf32> to vector<16x128xf32>
    %162 = math.tanh %161 : vector<16x128xf32>
    %163 = vector.extract_strided_slice %144 {offsets = [0, 384], sizes = [16, 128], strides = [1, 1]} : vector<16x512xf32> to vector<16x128xf32>
    %cst_66 = arith.constant 5.000000e-01 : f32
    %164 = vector.broadcast %cst_66 : f32 to vector<16x128xf32>
    %165 = arith.mulf %164, %163 : vector<16x128xf32>
    %166 = math.tanh %165 : vector<16x128xf32>
    %cst_67 = arith.constant 1.000000e+00 : f32
    %167 = vector.broadcast %cst_67 : f32 to vector<16x128xf32>
    %168 = arith.addf %166, %167 : vector<16x128xf32>
    %cst_68 = arith.constant 5.000000e-01 : f32
    %169 = vector.broadcast %cst_68 : f32 to vector<16x128xf32>
    %170 = arith.mulf %169, %168 : vector<16x128xf32>
    %171 = arith.mulf %160, %93 : vector<16x128xf32>
    %172 = arith.mulf %152, %162 : vector<16x128xf32>
    %173 = arith.addf %171, %172 : vector<16x128xf32>
    %174 = math.tanh %173 : vector<16x128xf32>
    %175 = arith.mulf %170, %174 : vector<16x128xf32>
    %176 = arith.truncf %175 : vector<16x128xf32> to vector<16x128xbf16>
    %177 = arith.index_cast %c1_i32 : i32 to index
    %c0_69 = arith.constant 0 : index
    %c0_70 = arith.constant 0 : index
    %178 = vector.load %arg22[%177, %c0_69, %c0_70] : memref<8x16x128xbf16, #tpu.memory_space<vmem>>, vector<1x16x128xbf16>
    %179 = vector.shape_cast %178 : vector<1x16x128xbf16> to vector<16x128xbf16>
    %180 = vector.shape_cast %176 : vector<16x128xbf16> to vector<1x16x128xbf16>
    tpu.vector_store %arg22[%177, %c0_69, %c0_70], %180 {strides = array<i32>} : memref<8x16x128xbf16, #tpu.memory_space<vmem>>, vector<1x16x128xbf16>,
    %181 = vector.extract_strided_slice %139 {offsets = [0, 0], sizes = [16, 512], strides = [1, 1]} : vector<16x1024xf32> to vector<16x512xf32>
    %c2_i32 = arith.constant 2 : i32
    %182 = arith.index_cast %c2_i32 : i32 to index
    %c0_71 = arith.constant 0 : index
    %c0_72 = arith.constant 0 : index
    %183 = vector.load %arg20[%182, %c0_71, %c0_72] : memref<8x16x512xbf16, #tpu.memory_space<vmem>>, vector<1x16x512xbf16>
    %184 = vector.shape_cast %183 : vector<1x16x512xbf16> to vector<16x512xbf16>
    %185 = arith.extf %184 : vector<16x512xbf16> to vector<16x512xf32>
    %186 = arith.addf %185, %181 : vector<16x512xf32>
    %187 = vector.extract_strided_slice %186 {offsets = [0, 0], sizes = [16, 128], strides = [1, 1]} : vector<16x512xf32> to vector<16x128xf32>
    %cst_73 = arith.constant 5.000000e-01 : f32
    %188 = vector.broadcast %cst_73 : f32 to vector<16x128xf32>
    %189 = arith.mulf %188, %187 : vector<16x128xf32>
    %190 = math.tanh %189 : vector<16x128xf32>
    %cst_74 = arith.constant 1.000000e+00 : f32
    %191 = vector.broadcast %cst_74 : f32 to vector<16x128xf32>
    %192 = arith.addf %190, %191 : vector<16x128xf32>
    %cst_75 = arith.constant 5.000000e-01 : f32
    %193 = vector.broadcast %cst_75 : f32 to vector<16x128xf32>
    %194 = arith.mulf %193, %192 : vector<16x128xf32>
    %195 = vector.extract_strided_slice %186 {offsets = [0, 128], sizes = [16, 128], strides = [1, 1]} : vector<16x512xf32> to vector<16x128xf32>
    %cst_76 = arith.constant 5.000000e-01 : f32
    %196 = vector.broadcast %cst_76 : f32 to vector<16x128xf32>
    %197 = arith.mulf %196, %195 : vector<16x128xf32>
    %198 = math.tanh %197 : vector<16x128xf32>
    %cst_77 = arith.constant 1.000000e+00 : f32
    %199 = vector.broadcast %cst_77 : f32 to vector<16x128xf32>
    %200 = arith.addf %198, %199 : vector<16x128xf32>
    %cst_78 = arith.constant 5.000000e-01 : f32
    %201 = vector.broadcast %cst_78 : f32 to vector<16x128xf32>
    %202 = arith.mulf %201, %200 : vector<16x128xf32>
    %203 = vector.extract_strided_slice %186 {offsets = [0, 256], sizes = [16, 128], strides = [1, 1]} : vector<16x512xf32> to vector<16x128xf32>
    %204 = math.tanh %203 : vector<16x128xf32>
    %205 = vector.extract_strided_slice %186 {offsets = [0, 384], sizes = [16, 128], strides = [1, 1]} : vector<16x512xf32> to vector<16x128xf32>
    %cst_79 = arith.constant 5.000000e-01 : f32
    %206 = vector.broadcast %cst_79 : f32 to vector<16x128xf32>
    %207 = arith.mulf %206, %205 : vector<16x128xf32>
    %208 = math.tanh %207 : vector<16x128xf32>
    %cst_80 = arith.constant 1.000000e+00 : f32
    %209 = vector.broadcast %cst_80 : f32 to vector<16x128xf32>
    %210 = arith.addf %208, %209 : vector<16x128xf32>
    %cst_81 = arith.constant 5.000000e-01 : f32
    %211 = vector.broadcast %cst_81 : f32 to vector<16x128xf32>
    %212 = arith.mulf %211, %210 : vector<16x128xf32>
    %213 = arith.mulf %202, %135 : vector<16x128xf32>
    %214 = arith.mulf %194, %204 : vector<16x128xf32>
    %215 = arith.addf %213, %214 : vector<16x128xf32>
    %216 = math.tanh %215 : vector<16x128xf32>
    %217 = arith.mulf %212, %216 : vector<16x128xf32>
    %218 = arith.truncf %217 : vector<16x128xf32> to vector<16x128xbf16>
    %cst_82 = arith.constant dense<0.000000e+00> : vector<16x1024xf32>
    %219 = tpu.matmul %218, %0, %cst_82 {dimension_numbers = #tpu.dot_dimension_numbers<[1], [0], [0], [1], [0, 0, 1, 1], [], []>} : vector<16x128xbf16>, vector<128x1024xbf16>, vector<16x1024xf32> -> vector<16x1024xf32>
    %220 = vector.extract_strided_slice %219 {offsets = [0, 512], sizes = [16, 512], strides = [1, 1]} : vector<16x1024xf32> to vector<16x512xf32>
    %221 = arith.truncf %175 : vector<16x128xf32> to vector<16x128xbf16>
    %cst_83 = arith.constant dense<0.000000e+00> : vector<16x512xf32>
    %222 = tpu.matmul %221, %1, %cst_83 {dimension_numbers = #tpu.dot_dimension_numbers<[1], [0], [0], [1], [0, 0, 1, 1], [], []>} : vector<16x128xbf16>, vector<128x512xbf16>, vector<16x512xf32> -> vector<16x512xf32>
    %223 = arith.addf %220, %222 : vector<16x512xf32>
    %224 = arith.addf %223, %6 : vector<16x512xf32>
    %225 = vector.extract_strided_slice %224 {offsets = [0, 0], sizes = [16, 128], strides = [1, 1]} : vector<16x512xf32> to vector<16x128xf32>
    %cst_84 = arith.constant 5.000000e-01 : f32
    %226 = vector.broadcast %cst_84 : f32 to vector<16x128xf32>
    %227 = arith.mulf %226, %225 : vector<16x128xf32>
    %228 = math.tanh %227 : vector<16x128xf32>
    %cst_85 = arith.constant 1.000000e+00 : f32
    %229 = vector.broadcast %cst_85 : f32 to vector<16x128xf32>
    %230 = arith.addf %228, %229 : vector<16x128xf32>
    %cst_86 = arith.constant 5.000000e-01 : f32
    %231 = vector.broadcast %cst_86 : f32 to vector<16x128xf32>
    %232 = arith.mulf %231, %230 : vector<16x128xf32>
    %233 = vector.extract_strided_slice %224 {offsets = [0, 128], sizes = [16, 128], strides = [1, 1]} : vector<16x512xf32> to vector<16x128xf32>
    %cst_87 = arith.constant 5.000000e-01 : f32
    %234 = vector.broadcast %cst_87 : f32 to vector<16x128xf32>
    %235 = arith.mulf %234, %233 : vector<16x128xf32>
    %236 = math.tanh %235 : vector<16x128xf32>
    %cst_88 = arith.constant 1.000000e+00 : f32
    %237 = vector.broadcast %cst_88 : f32 to vector<16x128xf32>
    %238 = arith.addf %236, %237 : vector<16x128xf32>
    %cst_89 = arith.constant 5.000000e-01 : f32
    %239 = vector.broadcast %cst_89 : f32 to vector<16x128xf32>
    %240 = arith.mulf %239, %238 : vector<16x128xf32>
    %241 = vector.extract_strided_slice %224 {offsets = [0, 256], sizes = [16, 128], strides = [1, 1]} : vector<16x512xf32> to vector<16x128xf32>
    %242 = math.tanh %241 : vector<16x128xf32>
    %243 = vector.extract_strided_slice %224 {offsets = [0, 384], sizes = [16, 128], strides = [1, 1]} : vector<16x512xf32> to vector<16x128xf32>
    %cst_90 = arith.constant 5.000000e-01 : f32
    %244 = vector.broadcast %cst_90 : f32 to vector<16x128xf32>
    %245 = arith.mulf %244, %243 : vector<16x128xf32>
    %246 = math.tanh %245 : vector<16x128xf32>
    %cst_91 = arith.constant 1.000000e+00 : f32
    %247 = vector.broadcast %cst_91 : f32 to vector<16x128xf32>
    %248 = arith.addf %246, %247 : vector<16x128xf32>
    %cst_92 = arith.constant 5.000000e-01 : f32
    %249 = vector.broadcast %cst_92 : f32 to vector<16x128xf32>
    %250 = arith.mulf %249, %248 : vector<16x128xf32>
    %251 = arith.mulf %240, %173 : vector<16x128xf32>
    %252 = arith.mulf %232, %242 : vector<16x128xf32>
    %253 = arith.addf %251, %252 : vector<16x128xf32>
    %254 = math.tanh %253 : vector<16x128xf32>
    %255 = arith.mulf %250, %254 : vector<16x128xf32>
    %256 = arith.truncf %255 : vector<16x128xf32> to vector<16x128xbf16>
    %257 = arith.index_cast %c2_i32 : i32 to index
    %c0_93 = arith.constant 0 : index
    %c0_94 = arith.constant 0 : index
    %258 = vector.load %arg22[%257, %c0_93, %c0_94] : memref<8x16x128xbf16, #tpu.memory_space<vmem>>, vector<1x16x128xbf16>
    %259 = vector.shape_cast %258 : vector<1x16x128xbf16> to vector<16x128xbf16>
    %260 = vector.shape_cast %256 : vector<16x128xbf16> to vector<1x16x128xbf16>
    tpu.vector_store %arg22[%257, %c0_93, %c0_94], %260 {strides = array<i32>} : memref<8x16x128xbf16, #tpu.memory_space<vmem>>, vector<1x16x128xbf16>,
    %261 = vector.extract_strided_slice %219 {offsets = [0, 0], sizes = [16, 512], strides = [1, 1]} : vector<16x1024xf32> to vector<16x512xf32>
    %c3_i32 = arith.constant 3 : i32
    %262 = arith.index_cast %c3_i32 : i32 to index
    %c0_95 = arith.constant 0 : index
    %c0_96 = arith.constant 0 : index
    %263 = vector.load %arg20[%262, %c0_95, %c0_96] : memref<8x16x512xbf16, #tpu.memory_space<vmem>>, vector<1x16x512xbf16>
    %264 = vector.shape_cast %263 : vector<1x16x512xbf16> to vector<16x512xbf16>
    %265 = arith.extf %264 : vector<16x512xbf16> to vector<16x512xf32>
    %266 = arith.addf %265, %261 : vector<16x512xf32>
    %267 = vector.extract_strided_slice %266 {offsets = [0, 0], sizes = [16, 128], strides = [1, 1]} : vector<16x512xf32> to vector<16x128xf32>
    %cst_97 = arith.constant 5.000000e-01 : f32
    %268 = vector.broadcast %cst_97 : f32 to vector<16x128xf32>
    %269 = arith.mulf %268, %267 : vector<16x128xf32>
    %270 = math.tanh %269 : vector<16x128xf32>
    %cst_98 = arith.constant 1.000000e+00 : f32
    %271 = vector.broadcast %cst_98 : f32 to vector<16x128xf32>
    %272 = arith.addf %270, %271 : vector<16x128xf32>
    %cst_99 = arith.constant 5.000000e-01 : f32
    %273 = vector.broadcast %cst_99 : f32 to vector<16x128xf32>
    %274 = arith.mulf %273, %272 : vector<16x128xf32>
    %275 = vector.extract_strided_slice %266 {offsets = [0, 128], sizes = [16, 128], strides = [1, 1]} : vector<16x512xf32> to vector<16x128xf32>
    %cst_100 = arith.constant 5.000000e-01 : f32
    %276 = vector.broadcast %cst_100 : f32 to vector<16x128xf32>
    %277 = arith.mulf %276, %275 : vector<16x128xf32>
    %278 = math.tanh %277 : vector<16x128xf32>
    %cst_101 = arith.constant 1.000000e+00 : f32
    %279 = vector.broadcast %cst_101 : f32 to vector<16x128xf32>
    %280 = arith.addf %278, %279 : vector<16x128xf32>
    %cst_102 = arith.constant 5.000000e-01 : f32
    %281 = vector.broadcast %cst_102 : f32 to vector<16x128xf32>
    %282 = arith.mulf %281, %280 : vector<16x128xf32>
    %283 = vector.extract_strided_slice %266 {offsets = [0, 256], sizes = [16, 128], strides = [1, 1]} : vector<16x512xf32> to vector<16x128xf32>
    %284 = math.tanh %283 : vector<16x128xf32>
    %285 = vector.extract_strided_slice %266 {offsets = [0, 384], sizes = [16, 128], strides = [1, 1]} : vector<16x512xf32> to vector<16x128xf32>
    %cst_103 = arith.constant 5.000000e-01 : f32
    %286 = vector.broadcast %cst_103 : f32 to vector<16x128xf32>
    %287 = arith.mulf %286, %285 : vector<16x128xf32>
    %288 = math.tanh %287 : vector<16x128xf32>
    %cst_104 = arith.constant 1.000000e+00 : f32
    %289 = vector.broadcast %cst_104 : f32 to vector<16x128xf32>
    %290 = arith.addf %288, %289 : vector<16x128xf32>
    %cst_105 = arith.constant 5.000000e-01 : f32
    %291 = vector.broadcast %cst_105 : f32 to vector<16x128xf32>
    %292 = arith.mulf %291, %290 : vector<16x128xf32>
    %293 = arith.mulf %282, %215 : vector<16x128xf32>
    %294 = arith.mulf %274, %284 : vector<16x128xf32>
    %295 = arith.addf %293, %294 : vector<16x128xf32>
    %296 = math.tanh %295 : vector<16x128xf32>
    %297 = arith.mulf %292, %296 : vector<16x128xf32>
    %298 = arith.truncf %297 : vector<16x128xf32> to vector<16x128xbf16>
    %cst_106 = arith.constant dense<0.000000e+00> : vector<16x1024xf32>
    %299 = tpu.matmul %298, %0, %cst_106 {dimension_numbers = #tpu.dot_dimension_numbers<[1], [0], [0], [1], [0, 0, 1, 1], [], []>} : vector<16x128xbf16>, vector<128x1024xbf16>, vector<16x1024xf32> -> vector<16x1024xf32>
    %300 = vector.extract_strided_slice %299 {offsets = [0, 512], sizes = [16, 512], strides = [1, 1]} : vector<16x1024xf32> to vector<16x512xf32>
    %301 = arith.truncf %255 : vector<16x128xf32> to vector<16x128xbf16>
    %cst_107 = arith.constant dense<0.000000e+00> : vector<16x512xf32>
    %302 = tpu.matmul %301, %1, %cst_107 {dimension_numbers = #tpu.dot_dimension_numbers<[1], [0], [0], [1], [0, 0, 1, 1], [], []>} : vector<16x128xbf16>, vector<128x512xbf16>, vector<16x512xf32> -> vector<16x512xf32>
    %303 = arith.addf %300, %302 : vector<16x512xf32>
    %304 = arith.addf %303, %6 : vector<16x512xf32>
    %305 = vector.extract_strided_slice %304 {offsets = [0, 0], sizes = [16, 128], strides = [1, 1]} : vector<16x512xf32> to vector<16x128xf32>
    %cst_108 = arith.constant 5.000000e-01 : f32
    %306 = vector.broadcast %cst_108 : f32 to vector<16x128xf32>
    %307 = arith.mulf %306, %305 : vector<16x128xf32>
    %308 = math.tanh %307 : vector<16x128xf32>
    %cst_109 = arith.constant 1.000000e+00 : f32
    %309 = vector.broadcast %cst_109 : f32 to vector<16x128xf32>
    %310 = arith.addf %308, %309 : vector<16x128xf32>
    %cst_110 = arith.constant 5.000000e-01 : f32
    %311 = vector.broadcast %cst_110 : f32 to vector<16x128xf32>
    %312 = arith.mulf %311, %310 : vector<16x128xf32>
    %313 = vector.extract_strided_slice %304 {offsets = [0, 128], sizes = [16, 128], strides = [1, 1]} : vector<16x512xf32> to vector<16x128xf32>
    %cst_111 = arith.constant 5.000000e-01 : f32
    %314 = vector.broadcast %cst_111 : f32 to vector<16x128xf32>
    %315 = arith.mulf %314, %313 : vector<16x128xf32>
    %316 = math.tanh %315 : vector<16x128xf32>
    %cst_112 = arith.constant 1.000000e+00 : f32
    %317 = vector.broadcast %cst_112 : f32 to vector<16x128xf32>
    %318 = arith.addf %316, %317 : vector<16x128xf32>
    %cst_113 = arith.constant 5.000000e-01 : f32
    %319 = vector.broadcast %cst_113 : f32 to vector<16x128xf32>
    %320 = arith.mulf %319, %318 : vector<16x128xf32>
    %321 = vector.extract_strided_slice %304 {offsets = [0, 256], sizes = [16, 128], strides = [1, 1]} : vector<16x512xf32> to vector<16x128xf32>
    %322 = math.tanh %321 : vector<16x128xf32>
    %323 = vector.extract_strided_slice %304 {offsets = [0, 384], sizes = [16, 128], strides = [1, 1]} : vector<16x512xf32> to vector<16x128xf32>
    %cst_114 = arith.constant 5.000000e-01 : f32
    %324 = vector.broadcast %cst_114 : f32 to vector<16x128xf32>
    %325 = arith.mulf %324, %323 : vector<16x128xf32>
    %326 = math.tanh %325 : vector<16x128xf32>
    %cst_115 = arith.constant 1.000000e+00 : f32
    %327 = vector.broadcast %cst_115 : f32 to vector<16x128xf32>
    %328 = arith.addf %326, %327 : vector<16x128xf32>
    %cst_116 = arith.constant 5.000000e-01 : f32
    %329 = vector.broadcast %cst_116 : f32 to vector<16x128xf32>
    %330 = arith.mulf %329, %328 : vector<16x128xf32>
    %331 = arith.mulf %320, %253 : vector<16x128xf32>
    %332 = arith.mulf %312, %322 : vector<16x128xf32>
    %333 = arith.addf %331, %332 : vector<16x128xf32>
    %334 = math.tanh %333 : vector<16x128xf32>
    %335 = arith.mulf %330, %334 : vector<16x128xf32>
    %336 = arith.truncf %335 : vector<16x128xf32> to vector<16x128xbf16>
    %337 = arith.index_cast %c3_i32 : i32 to index
    %c0_117 = arith.constant 0 : index
    %c0_118 = arith.constant 0 : index
    %338 = vector.load %arg22[%337, %c0_117, %c0_118] : memref<8x16x128xbf16, #tpu.memory_space<vmem>>, vector<1x16x128xbf16>
    %339 = vector.shape_cast %338 : vector<1x16x128xbf16> to vector<16x128xbf16>
    %340 = vector.shape_cast %336 : vector<16x128xbf16> to vector<1x16x128xbf16>
    tpu.vector_store %arg22[%337, %c0_117, %c0_118], %340 {strides = array<i32>} : memref<8x16x128xbf16, #tpu.memory_space<vmem>>, vector<1x16x128xbf16>,
    %341 = vector.extract_strided_slice %299 {offsets = [0, 0], sizes = [16, 512], strides = [1, 1]} : vector<16x1024xf32> to vector<16x512xf32>
    %c4_i32 = arith.constant 4 : i32
    %342 = arith.index_cast %c4_i32 : i32 to index
    %c0_119 = arith.constant 0 : index
    %c0_120 = arith.constant 0 : index
    %343 = vector.load %arg20[%342, %c0_119, %c0_120] : memref<8x16x512xbf16, #tpu.memory_space<vmem>>, vector<1x16x512xbf16>
    %344 = vector.shape_cast %343 : vector<1x16x512xbf16> to vector<16x512xbf16>
    %345 = arith.extf %344 : vector<16x512xbf16> to vector<16x512xf32>
    %346 = arith.addf %345, %341 : vector<16x512xf32>
    %347 = vector.extract_strided_slice %346 {offsets = [0, 0], sizes = [16, 128], strides = [1, 1]} : vector<16x512xf32> to vector<16x128xf32>
    %cst_121 = arith.constant 5.000000e-01 : f32
    %348 = vector.broadcast %cst_121 : f32 to vector<16x128xf32>
    %349 = arith.mulf %348, %347 : vector<16x128xf32>
    %350 = math.tanh %349 : vector<16x128xf32>
    %cst_122 = arith.constant 1.000000e+00 : f32
    %351 = vector.broadcast %cst_122 : f32 to vector<16x128xf32>
    %352 = arith.addf %350, %351 : vector<16x128xf32>
    %cst_123 = arith.constant 5.000000e-01 : f32
    %353 = vector.broadcast %cst_123 : f32 to vector<16x128xf32>
    %354 = arith.mulf %353, %352 : vector<16x128xf32>
    %355 = vector.extract_strided_slice %346 {offsets = [0, 128], sizes = [16, 128], strides = [1, 1]} : vector<16x512xf32> to vector<16x128xf32>
    %cst_124 = arith.constant 5.000000e-01 : f32
    %356 = vector.broadcast %cst_124 : f32 to vector<16x128xf32>
    %357 = arith.mulf %356, %355 : vector<16x128xf32>
    %358 = math.tanh %357 : vector<16x128xf32>
    %cst_125 = arith.constant 1.000000e+00 : f32
    %359 = vector.broadcast %cst_125 : f32 to vector<16x128xf32>
    %360 = arith.addf %358, %359 : vector<16x128xf32>
    %cst_126 = arith.constant 5.000000e-01 : f32
    %361 = vector.broadcast %cst_126 : f32 to vector<16x128xf32>
    %362 = arith.mulf %361, %360 : vector<16x128xf32>
    %363 = vector.extract_strided_slice %346 {offsets = [0, 256], sizes = [16, 128], strides = [1, 1]} : vector<16x512xf32> to vector<16x128xf32>
    %364 = math.tanh %363 : vector<16x128xf32>
    %365 = vector.extract_strided_slice %346 {offsets = [0, 384], sizes = [16, 128], strides = [1, 1]} : vector<16x512xf32> to vector<16x128xf32>
    %cst_127 = arith.constant 5.000000e-01 : f32
    %366 = vector.broadcast %cst_127 : f32 to vector<16x128xf32>
    %367 = arith.mulf %366, %365 : vector<16x128xf32>
    %368 = math.tanh %367 : vector<16x128xf32>
    %cst_128 = arith.constant 1.000000e+00 : f32
    %369 = vector.broadcast %cst_128 : f32 to vector<16x128xf32>
    %370 = arith.addf %368, %369 : vector<16x128xf32>
    %cst_129 = arith.constant 5.000000e-01 : f32
    %371 = vector.broadcast %cst_129 : f32 to vector<16x128xf32>
    %372 = arith.mulf %371, %370 : vector<16x128xf32>
    %373 = arith.mulf %362, %295 : vector<16x128xf32>
    %374 = arith.mulf %354, %364 : vector<16x128xf32>
    %375 = arith.addf %373, %374 : vector<16x128xf32>
    %376 = math.tanh %375 : vector<16x128xf32>
    %377 = arith.mulf %372, %376 : vector<16x128xf32>
    %378 = arith.truncf %377 : vector<16x128xf32> to vector<16x128xbf16>
    %cst_130 = arith.constant dense<0.000000e+00> : vector<16x1024xf32>
    %379 = tpu.matmul %378, %0, %cst_130 {dimension_numbers = #tpu.dot_dimension_numbers<[1], [0], [0], [1], [0, 0, 1, 1], [], []>} : vector<16x128xbf16>, vector<128x1024xbf16>, vector<16x1024xf32> -> vector<16x1024xf32>
    %380 = vector.extract_strided_slice %379 {offsets = [0, 512], sizes = [16, 512], strides = [1, 1]} : vector<16x1024xf32> to vector<16x512xf32>
    %381 = arith.truncf %335 : vector<16x128xf32> to vector<16x128xbf16>
    %cst_131 = arith.constant dense<0.000000e+00> : vector<16x512xf32>
    %382 = tpu.matmul %381, %1, %cst_131 {dimension_numbers = #tpu.dot_dimension_numbers<[1], [0], [0], [1], [0, 0, 1, 1], [], []>} : vector<16x128xbf16>, vector<128x512xbf16>, vector<16x512xf32> -> vector<16x512xf32>
    %383 = arith.addf %380, %382 : vector<16x512xf32>
    %384 = arith.addf %383, %6 : vector<16x512xf32>
    %385 = vector.extract_strided_slice %384 {offsets = [0, 0], sizes = [16, 128], strides = [1, 1]} : vector<16x512xf32> to vector<16x128xf32>
    %cst_132 = arith.constant 5.000000e-01 : f32
    %386 = vector.broadcast %cst_132 : f32 to vector<16x128xf32>
    %387 = arith.mulf %386, %385 : vector<16x128xf32>
    %388 = math.tanh %387 : vector<16x128xf32>
    %cst_133 = arith.constant 1.000000e+00 : f32
    %389 = vector.broadcast %cst_133 : f32 to vector<16x128xf32>
    %390 = arith.addf %388, %389 : vector<16x128xf32>
    %cst_134 = arith.constant 5.000000e-01 : f32
    %391 = vector.broadcast %cst_134 : f32 to vector<16x128xf32>
    %392 = arith.mulf %391, %390 : vector<16x128xf32>
    %393 = vector.extract_strided_slice %384 {offsets = [0, 128], sizes = [16, 128], strides = [1, 1]} : vector<16x512xf32> to vector<16x128xf32>
    %cst_135 = arith.constant 5.000000e-01 : f32
    %394 = vector.broadcast %cst_135 : f32 to vector<16x128xf32>
    %395 = arith.mulf %394, %393 : vector<16x128xf32>
    %396 = math.tanh %395 : vector<16x128xf32>
    %cst_136 = arith.constant 1.000000e+00 : f32
    %397 = vector.broadcast %cst_136 : f32 to vector<16x128xf32>
    %398 = arith.addf %396, %397 : vector<16x128xf32>
    %cst_137 = arith.constant 5.000000e-01 : f32
    %399 = vector.broadcast %cst_137 : f32 to vector<16x128xf32>
    %400 = arith.mulf %399, %398 : vector<16x128xf32>
    %401 = vector.extract_strided_slice %384 {offsets = [0, 256], sizes = [16, 128], strides = [1, 1]} : vector<16x512xf32> to vector<16x128xf32>
    %402 = math.tanh %401 : vector<16x128xf32>
    %403 = vector.extract_strided_slice %384 {offsets = [0, 384], sizes = [16, 128], strides = [1, 1]} : vector<16x512xf32> to vector<16x128xf32>
    %cst_138 = arith.constant 5.000000e-01 : f32
    %404 = vector.broadcast %cst_138 : f32 to vector<16x128xf32>
    %405 = arith.mulf %404, %403 : vector<16x128xf32>
    %406 = math.tanh %405 : vector<16x128xf32>
    %cst_139 = arith.constant 1.000000e+00 : f32
    %407 = vector.broadcast %cst_139 : f32 to vector<16x128xf32>
    %408 = arith.addf %406, %407 : vector<16x128xf32>
    %cst_140 = arith.constant 5.000000e-01 : f32
    %409 = vector.broadcast %cst_140 : f32 to vector<16x128xf32>
    %410 = arith.mulf %409, %408 : vector<16x128xf32>
    %411 = arith.mulf %400, %333 : vector<16x128xf32>
    %412 = arith.mulf %392, %402 : vector<16x128xf32>
    %413 = arith.addf %411, %412 : vector<16x128xf32>
    %414 = math.tanh %413 : vector<16x128xf32>
    %415 = arith.mulf %410, %414 : vector<16x128xf32>
    %416 = arith.truncf %415 : vector<16x128xf32> to vector<16x128xbf16>
    %417 = arith.index_cast %c4_i32 : i32 to index
    %c0_141 = arith.constant 0 : index
    %c0_142 = arith.constant 0 : index
    %418 = vector.load %arg22[%417, %c0_141, %c0_142] : memref<8x16x128xbf16, #tpu.memory_space<vmem>>, vector<1x16x128xbf16>
    %419 = vector.shape_cast %418 : vector<1x16x128xbf16> to vector<16x128xbf16>
    %420 = vector.shape_cast %416 : vector<16x128xbf16> to vector<1x16x128xbf16>
    tpu.vector_store %arg22[%417, %c0_141, %c0_142], %420 {strides = array<i32>} : memref<8x16x128xbf16, #tpu.memory_space<vmem>>, vector<1x16x128xbf16>,
    %421 = vector.extract_strided_slice %379 {offsets = [0, 0], sizes = [16, 512], strides = [1, 1]} : vector<16x1024xf32> to vector<16x512xf32>
    %c5_i32 = arith.constant 5 : i32
    %422 = arith.index_cast %c5_i32 : i32 to index
    %c0_143 = arith.constant 0 : index
    %c0_144 = arith.constant 0 : index
    %423 = vector.load %arg20[%422, %c0_143, %c0_144] : memref<8x16x512xbf16, #tpu.memory_space<vmem>>, vector<1x16x512xbf16>
    %424 = vector.shape_cast %423 : vector<1x16x512xbf16> to vector<16x512xbf16>
    %425 = arith.extf %424 : vector<16x512xbf16> to vector<16x512xf32>
    %426 = arith.addf %425, %421 : vector<16x512xf32>
    %427 = vector.extract_strided_slice %426 {offsets = [0, 0], sizes = [16, 128], strides = [1, 1]} : vector<16x512xf32> to vector<16x128xf32>
    %cst_145 = arith.constant 5.000000e-01 : f32
    %428 = vector.broadcast %cst_145 : f32 to vector<16x128xf32>
    %429 = arith.mulf %428, %427 : vector<16x128xf32>
    %430 = math.tanh %429 : vector<16x128xf32>
    %cst_146 = arith.constant 1.000000e+00 : f32
    %431 = vector.broadcast %cst_146 : f32 to vector<16x128xf32>
    %432 = arith.addf %430, %431 : vector<16x128xf32>
    %cst_147 = arith.constant 5.000000e-01 : f32
    %433 = vector.broadcast %cst_147 : f32 to vector<16x128xf32>
    %434 = arith.mulf %433, %432 : vector<16x128xf32>
    %435 = vector.extract_strided_slice %426 {offsets = [0, 128], sizes = [16, 128], strides = [1, 1]} : vector<16x512xf32> to vector<16x128xf32>
    %cst_148 = arith.constant 5.000000e-01 : f32
    %436 = vector.broadcast %cst_148 : f32 to vector<16x128xf32>
    %437 = arith.mulf %436, %435 : vector<16x128xf32>
    %438 = math.tanh %437 : vector<16x128xf32>
    %cst_149 = arith.constant 1.000000e+00 : f32
    %439 = vector.broadcast %cst_149 : f32 to vector<16x128xf32>
    %440 = arith.addf %438, %439 : vector<16x128xf32>
    %cst_150 = arith.constant 5.000000e-01 : f32
    %441 = vector.broadcast %cst_150 : f32 to vector<16x128xf32>
    %442 = arith.mulf %441, %440 : vector<16x128xf32>
    %443 = vector.extract_strided_slice %426 {offsets = [0, 256], sizes = [16, 128], strides = [1, 1]} : vector<16x512xf32> to vector<16x128xf32>
    %444 = math.tanh %443 : vector<16x128xf32>
    %445 = vector.extract_strided_slice %426 {offsets = [0, 384], sizes = [16, 128], strides = [1, 1]} : vector<16x512xf32> to vector<16x128xf32>
    %cst_151 = arith.constant 5.000000e-01 : f32
    %446 = vector.broadcast %cst_151 : f32 to vector<16x128xf32>
    %447 = arith.mulf %446, %445 : vector<16x128xf32>
    %448 = math.tanh %447 : vector<16x128xf32>
    %cst_152 = arith.constant 1.000000e+00 : f32
    %449 = vector.broadcast %cst_152 : f32 to vector<16x128xf32>
    %450 = arith.addf %448, %449 : vector<16x128xf32>
    %cst_153 = arith.constant 5.000000e-01 : f32
    %451 = vector.broadcast %cst_153 : f32 to vector<16x128xf32>
    %452 = arith.mulf %451, %450 : vector<16x128xf32>
    %453 = arith.mulf %442, %375 : vector<16x128xf32>
    %454 = arith.mulf %434, %444 : vector<16x128xf32>
    %455 = arith.addf %453, %454 : vector<16x128xf32>
    %456 = math.tanh %455 : vector<16x128xf32>
    %457 = arith.mulf %452, %456 : vector<16x128xf32>
    %458 = arith.truncf %457 : vector<16x128xf32> to vector<16x128xbf16>
    %cst_154 = arith.constant dense<0.000000e+00> : vector<16x1024xf32>
    %459 = tpu.matmul %458, %0, %cst_154 {dimension_numbers = #tpu.dot_dimension_numbers<[1], [0], [0], [1], [0, 0, 1, 1], [], []>} : vector<16x128xbf16>, vector<128x1024xbf16>, vector<16x1024xf32> -> vector<16x1024xf32>
    %460 = vector.extract_strided_slice %459 {offsets = [0, 512], sizes = [16, 512], strides = [1, 1]} : vector<16x1024xf32> to vector<16x512xf32>
    %461 = arith.truncf %415 : vector<16x128xf32> to vector<16x128xbf16>
    %cst_155 = arith.constant dense<0.000000e+00> : vector<16x512xf32>
    %462 = tpu.matmul %461, %1, %cst_155 {dimension_numbers = #tpu.dot_dimension_numbers<[1], [0], [0], [1], [0, 0, 1, 1], [], []>} : vector<16x128xbf16>, vector<128x512xbf16>, vector<16x512xf32> -> vector<16x512xf32>
    %463 = arith.addf %460, %462 : vector<16x512xf32>
    %464 = arith.addf %463, %6 : vector<16x512xf32>
    %465 = vector.extract_strided_slice %464 {offsets = [0, 0], sizes = [16, 128], strides = [1, 1]} : vector<16x512xf32> to vector<16x128xf32>
    %cst_156 = arith.constant 5.000000e-01 : f32
    %466 = vector.broadcast %cst_156 : f32 to vector<16x128xf32>
    %467 = arith.mulf %466, %465 : vector<16x128xf32>
    %468 = math.tanh %467 : vector<16x128xf32>
    %cst_157 = arith.constant 1.000000e+00 : f32
    %469 = vector.broadcast %cst_157 : f32 to vector<16x128xf32>
    %470 = arith.addf %468, %469 : vector<16x128xf32>
    %cst_158 = arith.constant 5.000000e-01 : f32
    %471 = vector.broadcast %cst_158 : f32 to vector<16x128xf32>
    %472 = arith.mulf %471, %470 : vector<16x128xf32>
    %473 = vector.extract_strided_slice %464 {offsets = [0, 128], sizes = [16, 128], strides = [1, 1]} : vector<16x512xf32> to vector<16x128xf32>
    %cst_159 = arith.constant 5.000000e-01 : f32
    %474 = vector.broadcast %cst_159 : f32 to vector<16x128xf32>
    %475 = arith.mulf %474, %473 : vector<16x128xf32>
    %476 = math.tanh %475 : vector<16x128xf32>
    %cst_160 = arith.constant 1.000000e+00 : f32
    %477 = vector.broadcast %cst_160 : f32 to vector<16x128xf32>
    %478 = arith.addf %476, %477 : vector<16x128xf32>
    %cst_161 = arith.constant 5.000000e-01 : f32
    %479 = vector.broadcast %cst_161 : f32 to vector<16x128xf32>
    %480 = arith.mulf %479, %478 : vector<16x128xf32>
    %481 = vector.extract_strided_slice %464 {offsets = [0, 256], sizes = [16, 128], strides = [1, 1]} : vector<16x512xf32> to vector<16x128xf32>
    %482 = math.tanh %481 : vector<16x128xf32>
    %483 = vector.extract_strided_slice %464 {offsets = [0, 384], sizes = [16, 128], strides = [1, 1]} : vector<16x512xf32> to vector<16x128xf32>
    %cst_162 = arith.constant 5.000000e-01 : f32
    %484 = vector.broadcast %cst_162 : f32 to vector<16x128xf32>
    %485 = arith.mulf %484, %483 : vector<16x128xf32>
    %486 = math.tanh %485 : vector<16x128xf32>
    %cst_163 = arith.constant 1.000000e+00 : f32
    %487 = vector.broadcast %cst_163 : f32 to vector<16x128xf32>
    %488 = arith.addf %486, %487 : vector<16x128xf32>
    %cst_164 = arith.constant 5.000000e-01 : f32
    %489 = vector.broadcast %cst_164 : f32 to vector<16x128xf32>
    %490 = arith.mulf %489, %488 : vector<16x128xf32>
    %491 = arith.mulf %480, %413 : vector<16x128xf32>
    %492 = arith.mulf %472, %482 : vector<16x128xf32>
    %493 = arith.addf %491, %492 : vector<16x128xf32>
    %494 = math.tanh %493 : vector<16x128xf32>
    %495 = arith.mulf %490, %494 : vector<16x128xf32>
    %496 = arith.truncf %495 : vector<16x128xf32> to vector<16x128xbf16>
    %497 = arith.index_cast %c5_i32 : i32 to index
    %c0_165 = arith.constant 0 : index
    %c0_166 = arith.constant 0 : index
    %498 = vector.load %arg22[%497, %c0_165, %c0_166] : memref<8x16x128xbf16, #tpu.memory_space<vmem>>, vector<1x16x128xbf16>
    %499 = vector.shape_cast %498 : vector<1x16x128xbf16> to vector<16x128xbf16>
    %500 = vector.shape_cast %496 : vector<16x128xbf16> to vector<1x16x128xbf16>
    tpu.vector_store %arg22[%497, %c0_165, %c0_166], %500 {strides = array<i32>} : memref<8x16x128xbf16, #tpu.memory_space<vmem>>, vector<1x16x128xbf16>,
    %501 = vector.extract_strided_slice %459 {offsets = [0, 0], sizes = [16, 512], strides = [1, 1]} : vector<16x1024xf32> to vector<16x512xf32>
    %c6_i32 = arith.constant 6 : i32
    %502 = arith.index_cast %c6_i32 : i32 to index
    %c0_167 = arith.constant 0 : index
    %c0_168 = arith.constant 0 : index
    %503 = vector.load %arg20[%502, %c0_167, %c0_168] : memref<8x16x512xbf16, #tpu.memory_space<vmem>>, vector<1x16x512xbf16>
    %504 = vector.shape_cast %503 : vector<1x16x512xbf16> to vector<16x512xbf16>
    %505 = arith.extf %504 : vector<16x512xbf16> to vector<16x512xf32>
    %506 = arith.addf %505, %501 : vector<16x512xf32>
    %507 = vector.extract_strided_slice %506 {offsets = [0, 0], sizes = [16, 128], strides = [1, 1]} : vector<16x512xf32> to vector<16x128xf32>
    %cst_169 = arith.constant 5.000000e-01 : f32
    %508 = vector.broadcast %cst_169 : f32 to vector<16x128xf32>
    %509 = arith.mulf %508, %507 : vector<16x128xf32>
    %510 = math.tanh %509 : vector<16x128xf32>
    %cst_170 = arith.constant 1.000000e+00 : f32
    %511 = vector.broadcast %cst_170 : f32 to vector<16x128xf32>
    %512 = arith.addf %510, %511 : vector<16x128xf32>
    %cst_171 = arith.constant 5.000000e-01 : f32
    %513 = vector.broadcast %cst_171 : f32 to vector<16x128xf32>
    %514 = arith.mulf %513, %512 : vector<16x128xf32>
    %515 = vector.extract_strided_slice %506 {offsets = [0, 128], sizes = [16, 128], strides = [1, 1]} : vector<16x512xf32> to vector<16x128xf32>
    %cst_172 = arith.constant 5.000000e-01 : f32
    %516 = vector.broadcast %cst_172 : f32 to vector<16x128xf32>
    %517 = arith.mulf %516, %515 : vector<16x128xf32>
    %518 = math.tanh %517 : vector<16x128xf32>
    %cst_173 = arith.constant 1.000000e+00 : f32
    %519 = vector.broadcast %cst_173 : f32 to vector<16x128xf32>
    %520 = arith.addf %518, %519 : vector<16x128xf32>
    %cst_174 = arith.constant 5.000000e-01 : f32
    %521 = vector.broadcast %cst_174 : f32 to vector<16x128xf32>
    %522 = arith.mulf %521, %520 : vector<16x128xf32>
    %523 = vector.extract_strided_slice %506 {offsets = [0, 256], sizes = [16, 128], strides = [1, 1]} : vector<16x512xf32> to vector<16x128xf32>
    %524 = math.tanh %523 : vector<16x128xf32>
    %525 = vector.extract_strided_slice %506 {offsets = [0, 384], sizes = [16, 128], strides = [1, 1]} : vector<16x512xf32> to vector<16x128xf32>
    %cst_175 = arith.constant 5.000000e-01 : f32
    %526 = vector.broadcast %cst_175 : f32 to vector<16x128xf32>
    %527 = arith.mulf %526, %525 : vector<16x128xf32>
    %528 = math.tanh %527 : vector<16x128xf32>
    %cst_176 = arith.constant 1.000000e+00 : f32
    %529 = vector.broadcast %cst_176 : f32 to vector<16x128xf32>
    %530 = arith.addf %528, %529 : vector<16x128xf32>
    %cst_177 = arith.constant 5.000000e-01 : f32
    %531 = vector.broadcast %cst_177 : f32 to vector<16x128xf32>
    %532 = arith.mulf %531, %530 : vector<16x128xf32>
    %533 = arith.mulf %522, %455 : vector<16x128xf32>
    %534 = arith.mulf %514, %524 : vector<16x128xf32>
    %535 = arith.addf %533, %534 : vector<16x128xf32>
    %536 = math.tanh %535 : vector<16x128xf32>
    %537 = arith.mulf %532, %536 : vector<16x128xf32>
    %538 = arith.truncf %537 : vector<16x128xf32> to vector<16x128xbf16>
    %cst_178 = arith.constant dense<0.000000e+00> : vector<16x1024xf32>
    %539 = tpu.matmul %538, %0, %cst_178 {dimension_numbers = #tpu.dot_dimension_numbers<[1], [0], [0], [1], [0, 0, 1, 1], [], []>} : vector<16x128xbf16>, vector<128x1024xbf16>, vector<16x1024xf32> -> vector<16x1024xf32>
    %540 = vector.extract_strided_slice %539 {offsets = [0, 512], sizes = [16, 512], strides = [1, 1]} : vector<16x1024xf32> to vector<16x512xf32>
    %541 = arith.truncf %495 : vector<16x128xf32> to vector<16x128xbf16>
    %cst_179 = arith.constant dense<0.000000e+00> : vector<16x512xf32>
    %542 = tpu.matmul %541, %1, %cst_179 {dimension_numbers = #tpu.dot_dimension_numbers<[1], [0], [0], [1], [0, 0, 1, 1], [], []>} : vector<16x128xbf16>, vector<128x512xbf16>, vector<16x512xf32> -> vector<16x512xf32>
    %543 = arith.addf %540, %542 : vector<16x512xf32>
    %544 = arith.addf %543, %6 : vector<16x512xf32>
    %545 = vector.extract_strided_slice %544 {offsets = [0, 0], sizes = [16, 128], strides = [1, 1]} : vector<16x512xf32> to vector<16x128xf32>
    %cst_180 = arith.constant 5.000000e-01 : f32
    %546 = vector.broadcast %cst_180 : f32 to vector<16x128xf32>
    %547 = arith.mulf %546, %545 : vector<16x128xf32>
    %548 = math.tanh %547 : vector<16x128xf32>
    %cst_181 = arith.constant 1.000000e+00 : f32
    %549 = vector.broadcast %cst_181 : f32 to vector<16x128xf32>
    %550 = arith.addf %548, %549 : vector<16x128xf32>
    %cst_182 = arith.constant 5.000000e-01 : f32
    %551 = vector.broadcast %cst_182 : f32 to vector<16x128xf32>
    %552 = arith.mulf %551, %550 : vector<16x128xf32>
    %553 = vector.extract_strided_slice %544 {offsets = [0, 128], sizes = [16, 128], strides = [1, 1]} : vector<16x512xf32> to vector<16x128xf32>
    %cst_183 = arith.constant 5.000000e-01 : f32
    %554 = vector.broadcast %cst_183 : f32 to vector<16x128xf32>
    %555 = arith.mulf %554, %553 : vector<16x128xf32>
    %556 = math.tanh %555 : vector<16x128xf32>
    %cst_184 = arith.constant 1.000000e+00 : f32
    %557 = vector.broadcast %cst_184 : f32 to vector<16x128xf32>
    %558 = arith.addf %556, %557 : vector<16x128xf32>
    %cst_185 = arith.constant 5.000000e-01 : f32
    %559 = vector.broadcast %cst_185 : f32 to vector<16x128xf32>
    %560 = arith.mulf %559, %558 : vector<16x128xf32>
    %561 = vector.extract_strided_slice %544 {offsets = [0, 256], sizes = [16, 128], strides = [1, 1]} : vector<16x512xf32> to vector<16x128xf32>
    %562 = math.tanh %561 : vector<16x128xf32>
    %563 = vector.extract_strided_slice %544 {offsets = [0, 384], sizes = [16, 128], strides = [1, 1]} : vector<16x512xf32> to vector<16x128xf32>
    %cst_186 = arith.constant 5.000000e-01 : f32
    %564 = vector.broadcast %cst_186 : f32 to vector<16x128xf32>
    %565 = arith.mulf %564, %563 : vector<16x128xf32>
    %566 = math.tanh %565 : vector<16x128xf32>
    %cst_187 = arith.constant 1.000000e+00 : f32
    %567 = vector.broadcast %cst_187 : f32 to vector<16x128xf32>
    %568 = arith.addf %566, %567 : vector<16x128xf32>
    %cst_188 = arith.constant 5.000000e-01 : f32
    %569 = vector.broadcast %cst_188 : f32 to vector<16x128xf32>
    %570 = arith.mulf %569, %568 : vector<16x128xf32>
    %571 = arith.mulf %560, %493 : vector<16x128xf32>
    %572 = arith.mulf %552, %562 : vector<16x128xf32>
    %573 = arith.addf %571, %572 : vector<16x128xf32>
    %574 = math.tanh %573 : vector<16x128xf32>
    %575 = arith.mulf %570, %574 : vector<16x128xf32>
    %576 = arith.truncf %575 : vector<16x128xf32> to vector<16x128xbf16>
    %577 = arith.index_cast %c6_i32 : i32 to index
    %c0_189 = arith.constant 0 : index
    %c0_190 = arith.constant 0 : index
    %578 = vector.load %arg22[%577, %c0_189, %c0_190] : memref<8x16x128xbf16, #tpu.memory_space<vmem>>, vector<1x16x128xbf16>
    %579 = vector.shape_cast %578 : vector<1x16x128xbf16> to vector<16x128xbf16>
    %580 = vector.shape_cast %576 : vector<16x128xbf16> to vector<1x16x128xbf16>
    tpu.vector_store %arg22[%577, %c0_189, %c0_190], %580 {strides = array<i32>} : memref<8x16x128xbf16, #tpu.memory_space<vmem>>, vector<1x16x128xbf16>,
    %581 = vector.extract_strided_slice %539 {offsets = [0, 0], sizes = [16, 512], strides = [1, 1]} : vector<16x1024xf32> to vector<16x512xf32>
    %c7_i32 = arith.constant 7 : i32
    %582 = arith.index_cast %c7_i32 : i32 to index
    %c0_191 = arith.constant 0 : index
    %c0_192 = arith.constant 0 : index
    %583 = vector.load %arg20[%582, %c0_191, %c0_192] : memref<8x16x512xbf16, #tpu.memory_space<vmem>>, vector<1x16x512xbf16>
    %584 = vector.shape_cast %583 : vector<1x16x512xbf16> to vector<16x512xbf16>
    %585 = arith.extf %584 : vector<16x512xbf16> to vector<16x512xf32>
    %586 = arith.addf %585, %581 : vector<16x512xf32>
    %587 = vector.extract_strided_slice %586 {offsets = [0, 0], sizes = [16, 128], strides = [1, 1]} : vector<16x512xf32> to vector<16x128xf32>
    %cst_193 = arith.constant 5.000000e-01 : f32
    %588 = vector.broadcast %cst_193 : f32 to vector<16x128xf32>
    %589 = arith.mulf %588, %587 : vector<16x128xf32>
    %590 = math.tanh %589 : vector<16x128xf32>
    %cst_194 = arith.constant 1.000000e+00 : f32
    %591 = vector.broadcast %cst_194 : f32 to vector<16x128xf32>
    %592 = arith.addf %590, %591 : vector<16x128xf32>
    %cst_195 = arith.constant 5.000000e-01 : f32
    %593 = vector.broadcast %cst_195 : f32 to vector<16x128xf32>
    %594 = arith.mulf %593, %592 : vector<16x128xf32>
    %595 = vector.extract_strided_slice %586 {offsets = [0, 128], sizes = [16, 128], strides = [1, 1]} : vector<16x512xf32> to vector<16x128xf32>
    %cst_196 = arith.constant 5.000000e-01 : f32
    %596 = vector.broadcast %cst_196 : f32 to vector<16x128xf32>
    %597 = arith.mulf %596, %595 : vector<16x128xf32>
    %598 = math.tanh %597 : vector<16x128xf32>
    %cst_197 = arith.constant 1.000000e+00 : f32
    %599 = vector.broadcast %cst_197 : f32 to vector<16x128xf32>
    %600 = arith.addf %598, %599 : vector<16x128xf32>
    %cst_198 = arith.constant 5.000000e-01 : f32
    %601 = vector.broadcast %cst_198 : f32 to vector<16x128xf32>
    %602 = arith.mulf %601, %600 : vector<16x128xf32>
    %603 = vector.extract_strided_slice %586 {offsets = [0, 256], sizes = [16, 128], strides = [1, 1]} : vector<16x512xf32> to vector<16x128xf32>
    %604 = math.tanh %603 : vector<16x128xf32>
    %605 = vector.extract_strided_slice %586 {offsets = [0, 384], sizes = [16, 128], strides = [1, 1]} : vector<16x512xf32> to vector<16x128xf32>
    %cst_199 = arith.constant 5.000000e-01 : f32
    %606 = vector.broadcast %cst_199 : f32 to vector<16x128xf32>
    %607 = arith.mulf %606, %605 : vector<16x128xf32>
    %608 = math.tanh %607 : vector<16x128xf32>
    %cst_200 = arith.constant 1.000000e+00 : f32
    %609 = vector.broadcast %cst_200 : f32 to vector<16x128xf32>
    %610 = arith.addf %608, %609 : vector<16x128xf32>
    %cst_201 = arith.constant 5.000000e-01 : f32
    %611 = vector.broadcast %cst_201 : f32 to vector<16x128xf32>
    %612 = arith.mulf %611, %610 : vector<16x128xf32>
    %613 = arith.mulf %602, %535 : vector<16x128xf32>
    %614 = arith.mulf %594, %604 : vector<16x128xf32>
    %615 = arith.addf %613, %614 : vector<16x128xf32>
    %616 = math.tanh %615 : vector<16x128xf32>
    %617 = arith.mulf %612, %616 : vector<16x128xf32>
    %618 = arith.truncf %617 : vector<16x128xf32> to vector<16x128xbf16>
    %cst_202 = arith.constant dense<0.000000e+00> : vector<16x1024xf32>
    %619 = tpu.matmul %618, %0, %cst_202 {dimension_numbers = #tpu.dot_dimension_numbers<[1], [0], [0], [1], [0, 0, 1, 1], [], []>} : vector<16x128xbf16>, vector<128x1024xbf16>, vector<16x1024xf32> -> vector<16x1024xf32>
    %620 = vector.extract_strided_slice %619 {offsets = [0, 512], sizes = [16, 512], strides = [1, 1]} : vector<16x1024xf32> to vector<16x512xf32>
    %621 = arith.truncf %575 : vector<16x128xf32> to vector<16x128xbf16>
    %cst_203 = arith.constant dense<0.000000e+00> : vector<16x512xf32>
    %622 = tpu.matmul %621, %1, %cst_203 {dimension_numbers = #tpu.dot_dimension_numbers<[1], [0], [0], [1], [0, 0, 1, 1], [], []>} : vector<16x128xbf16>, vector<128x512xbf16>, vector<16x512xf32> -> vector<16x512xf32>
    %623 = arith.addf %620, %622 : vector<16x512xf32>
    %624 = arith.addf %623, %6 : vector<16x512xf32>
    %625 = vector.extract_strided_slice %624 {offsets = [0, 0], sizes = [16, 128], strides = [1, 1]} : vector<16x512xf32> to vector<16x128xf32>
    %cst_204 = arith.constant 5.000000e-01 : f32
    %626 = vector.broadcast %cst_204 : f32 to vector<16x128xf32>
    %627 = arith.mulf %626, %625 : vector<16x128xf32>
    %628 = math.tanh %627 : vector<16x128xf32>
    %cst_205 = arith.constant 1.000000e+00 : f32
    %629 = vector.broadcast %cst_205 : f32 to vector<16x128xf32>
    %630 = arith.addf %628, %629 : vector<16x128xf32>
    %cst_206 = arith.constant 5.000000e-01 : f32
    %631 = vector.broadcast %cst_206 : f32 to vector<16x128xf32>
    %632 = arith.mulf %631, %630 : vector<16x128xf32>
    %633 = vector.extract_strided_slice %624 {offsets = [0, 128], sizes = [16, 128], strides = [1, 1]} : vector<16x512xf32> to vector<16x128xf32>
    %cst_207 = arith.constant 5.000000e-01 : f32
    %634 = vector.broadcast %cst_207 : f32 to vector<16x128xf32>
    %635 = arith.mulf %634, %633 : vector<16x128xf32>
    %636 = math.tanh %635 : vector<16x128xf32>
    %cst_208 = arith.constant 1.000000e+00 : f32
    %637 = vector.broadcast %cst_208 : f32 to vector<16x128xf32>
    %638 = arith.addf %636, %637 : vector<16x128xf32>
    %cst_209 = arith.constant 5.000000e-01 : f32
    %639 = vector.broadcast %cst_209 : f32 to vector<16x128xf32>
    %640 = arith.mulf %639, %638 : vector<16x128xf32>
    %641 = vector.extract_strided_slice %624 {offsets = [0, 256], sizes = [16, 128], strides = [1, 1]} : vector<16x512xf32> to vector<16x128xf32>
    %642 = math.tanh %641 : vector<16x128xf32>
    %643 = vector.extract_strided_slice %624 {offsets = [0, 384], sizes = [16, 128], strides = [1, 1]} : vector<16x512xf32> to vector<16x128xf32>
    %cst_210 = arith.constant 5.000000e-01 : f32
    %644 = vector.broadcast %cst_210 : f32 to vector<16x128xf32>
    %645 = arith.mulf %644, %643 : vector<16x128xf32>
    %646 = math.tanh %645 : vector<16x128xf32>
    %cst_211 = arith.constant 1.000000e+00 : f32
    %647 = vector.broadcast %cst_211 : f32 to vector<16x128xf32>
    %648 = arith.addf %646, %647 : vector<16x128xf32>
    %cst_212 = arith.constant 5.000000e-01 : f32
    %649 = vector.broadcast %cst_212 : f32 to vector<16x128xf32>
    %650 = arith.mulf %649, %648 : vector<16x128xf32>
    %651 = arith.mulf %640, %573 : vector<16x128xf32>
    %652 = arith.mulf %632, %642 : vector<16x128xf32>
    %653 = arith.addf %651, %652 : vector<16x128xf32>
    %654 = math.tanh %653 : vector<16x128xf32>
    %655 = arith.mulf %650, %654 : vector<16x128xf32>
    %656 = arith.truncf %655 : vector<16x128xf32> to vector<16x128xbf16>
    %657 = arith.index_cast %c7_i32 : i32 to index
    %c0_213 = arith.constant 0 : index
    %c0_214 = arith.constant 0 : index
    %658 = vector.load %arg22[%657, %c0_213, %c0_214] : memref<8x16x128xbf16, #tpu.memory_space<vmem>>, vector<1x16x128xbf16>
    %659 = vector.shape_cast %658 : vector<1x16x128xbf16> to vector<16x128xbf16>
    %660 = vector.shape_cast %656 : vector<16x128xbf16> to vector<1x16x128xbf16>
    tpu.vector_store %arg22[%657, %c0_213, %c0_214], %660 {strides = array<i32>} : memref<8x16x128xbf16, #tpu.memory_space<vmem>>, vector<1x16x128xbf16>,
    %661 = vector.extract_strided_slice %619 {offsets = [0, 0], sizes = [16, 512], strides = [1, 1]} : vector<16x1024xf32> to vector<16x512xf32>
    %c8_i32 = arith.constant 8 : i32
    %c0_215 = arith.constant 0 : index
    %c0_216 = arith.constant 0 : index
    %c0_217 = arith.constant 0 : index
    %662 = vector.load %arg3[%c0_215, %c0_216, %c0_217] : memref<8x16x1xf32, #tpu.memory_space<vmem>>, vector<8x16x1xf32>
    %c0_218 = arith.constant 0 : index
    %c0_219 = arith.constant 0 : index
    %c0_220 = arith.constant 0 : index
    %663 = vector.load %arg22[%c0_218, %c0_219, %c0_220] : memref<8x16x128xbf16, #tpu.memory_space<vmem>>, vector<8x16x128xbf16>
    %664 = arith.extf %663 : vector<8x16x128xbf16> to vector<8x16x128xf32>
    %665 = vector.broadcast %662 : vector<8x16x1xf32> to vector<8x16x128xf32>
    %666 = arith.mulf %665, %664 : vector<8x16x128xf32>
    %cst_221 = arith.constant dense<0.000000e+00> : vector<16x128xf32>
    %667 = vector.multi_reduction <add>, %666, %cst_221 [0] : vector<8x16x128xf32> to vector<16x128xf32>
    %668 = arith.truncf %667 : vector<16x128xf32> to vector<16x128xbf16>
    %c0_222 = arith.constant 0 : index
    %c0_223 = arith.constant 0 : index
    %669 = vector.load %arg11[%c0_222, %c0_223] : memref<128x512xbf16, #tpu.memory_space<vmem>>, vector<128x512xbf16>
    %cst_224 = arith.constant dense<0.000000e+00> : vector<16x512xf32>
    %670 = tpu.matmul %668, %669, %cst_224 {dimension_numbers = #tpu.dot_dimension_numbers<[1], [0], [0], [1], [0, 0, 1, 1], [], []>} : vector<16x128xbf16>, vector<128x512xbf16>, vector<16x512xf32> -> vector<16x512xf32>
    %c0_225 = arith.constant 0 : index
    %c0_226 = arith.constant 0 : index
    %671 = vector.load %arg15[%c0_225, %c0_226] : memref<1x512xf32, #tpu.memory_space<vmem>>, vector<1x512xf32>
    %672 = vector.broadcast %671 : vector<1x512xf32> to vector<16x512xf32>
    %673 = arith.addf %670, %672 : vector<16x512xf32>
    %c0_227 = arith.constant 0 : index
    %c0_228 = arith.constant 0 : index
    %c0_229 = arith.constant 0 : index
    %674 = vector.load %arg2[%c0_227, %c0_228, %c0_229] : memref<7x16x128xbf16, #tpu.memory_space<vmem>>, vector<7x16x128xbf16>
    %675 = vector.shape_cast %674 : vector<7x16x128xbf16> to vector<112x128xbf16>
    %c0_230 = arith.constant 0 : index
    %c0_231 = arith.constant 0 : index
    %676 = vector.load %arg12[%c0_230, %c0_231] : memref<128x512xbf16, #tpu.memory_space<vmem>>, vector<128x512xbf16>
    %cst_232 = arith.constant dense<0.000000e+00> : vector<112x512xf32>
    %677 = tpu.matmul %675, %676, %cst_232 {dimension_numbers = #tpu.dot_dimension_numbers<[1], [0], [0], [1], [0, 0, 1, 1], [], []>} : vector<112x128xbf16>, vector<128x512xbf16>, vector<112x512xf32> -> vector<112x512xf32>
    %678 = vector.shape_cast %677 : vector<112x512xf32> to vector<7x16x512xf32>
    %679 = vector.shape_cast %673 : vector<16x512xf32> to vector<1x16x512xf32>
    %680 = vector.broadcast %679 : vector<1x16x512xf32> to vector<7x16x512xf32>
    %681 = arith.addf %678, %680 : vector<7x16x512xf32>
    %682 = arith.truncf %681 : vector<7x16x512xf32> to vector<7x16x512xbf16>
    %c0_233 = arith.constant 0 : index
    %c0_234 = arith.constant 0 : index
    %c0_235 = arith.constant 0 : index
    %683 = vector.load %arg21[%c0_233, %c0_234, %c0_235] : memref<7x16x512xbf16, #tpu.memory_space<vmem>>, vector<7x16x512xbf16>
    tpu.vector_store %arg21[%c0_233, %c0_234, %c0_235], %682 {strides = array<i32>} : memref<7x16x512xbf16, #tpu.memory_space<vmem>>, vector<7x16x512xbf16>,
    %c0_i32_236 = arith.constant 0 : i32
    %684 = arith.index_cast %c0_i32_236 : i32 to index
    %c0_237 = arith.constant 0 : index
    %c0_238 = arith.constant 0 : index
    %685 = vector.load %arg21[%684, %c0_237, %c0_238] : memref<7x16x512xbf16, #tpu.memory_space<vmem>>, vector<1x16x512xbf16>
    %686 = vector.shape_cast %685 : vector<1x16x512xbf16> to vector<16x512xbf16>
    %687 = arith.extf %686 : vector<16x512xbf16> to vector<16x512xf32>
    %688 = arith.addf %687, %10 : vector<16x512xf32>
    %689 = vector.extract_strided_slice %688 {offsets = [0, 0], sizes = [16, 128], strides = [1, 1]} : vector<16x512xf32> to vector<16x128xf32>
    %cst_239 = arith.constant 5.000000e-01 : f32
    %690 = vector.broadcast %cst_239 : f32 to vector<16x128xf32>
    %691 = arith.mulf %690, %689 : vector<16x128xf32>
    %692 = math.tanh %691 : vector<16x128xf32>
    %cst_240 = arith.constant 1.000000e+00 : f32
    %693 = vector.broadcast %cst_240 : f32 to vector<16x128xf32>
    %694 = arith.addf %692, %693 : vector<16x128xf32>
    %cst_241 = arith.constant 5.000000e-01 : f32
    %695 = vector.broadcast %cst_241 : f32 to vector<16x128xf32>
    %696 = arith.mulf %695, %694 : vector<16x128xf32>
    %697 = vector.extract_strided_slice %688 {offsets = [0, 128], sizes = [16, 128], strides = [1, 1]} : vector<16x512xf32> to vector<16x128xf32>
    %cst_242 = arith.constant 5.000000e-01 : f32
    %698 = vector.broadcast %cst_242 : f32 to vector<16x128xf32>
    %699 = arith.mulf %698, %697 : vector<16x128xf32>
    %700 = math.tanh %699 : vector<16x128xf32>
    %cst_243 = arith.constant 1.000000e+00 : f32
    %701 = vector.broadcast %cst_243 : f32 to vector<16x128xf32>
    %702 = arith.addf %700, %701 : vector<16x128xf32>
    %cst_244 = arith.constant 5.000000e-01 : f32
    %703 = vector.broadcast %cst_244 : f32 to vector<16x128xf32>
    %704 = arith.mulf %703, %702 : vector<16x128xf32>
    %705 = vector.extract_strided_slice %688 {offsets = [0, 256], sizes = [16, 128], strides = [1, 1]} : vector<16x512xf32> to vector<16x128xf32>
    %706 = math.tanh %705 : vector<16x128xf32>
    %707 = vector.extract_strided_slice %688 {offsets = [0, 384], sizes = [16, 128], strides = [1, 1]} : vector<16x512xf32> to vector<16x128xf32>
    %cst_245 = arith.constant 5.000000e-01 : f32
    %708 = vector.broadcast %cst_245 : f32 to vector<16x128xf32>
    %709 = arith.mulf %708, %707 : vector<16x128xf32>
    %710 = math.tanh %709 : vector<16x128xf32>
    %cst_246 = arith.constant 1.000000e+00 : f32
    %711 = vector.broadcast %cst_246 : f32 to vector<16x128xf32>
    %712 = arith.addf %710, %711 : vector<16x128xf32>
    %cst_247 = arith.constant 5.000000e-01 : f32
    %713 = vector.broadcast %cst_247 : f32 to vector<16x128xf32>
    %714 = arith.mulf %713, %712 : vector<16x128xf32>
    %715 = arith.mulf %704, %11 : vector<16x128xf32>
    %716 = arith.mulf %696, %706 : vector<16x128xf32>
    %717 = arith.addf %715, %716 : vector<16x128xf32>
    %718 = math.tanh %717 : vector<16x128xf32>
    %719 = arith.mulf %714, %718 : vector<16x128xf32>
    %720 = arith.truncf %719 : vector<16x128xf32> to vector<16x128xbf16>
    %cst_248 = arith.constant dense<0.000000e+00> : vector<16x1024xf32>
    %721 = tpu.matmul %720, %2, %cst_248 {dimension_numbers = #tpu.dot_dimension_numbers<[1], [0], [0], [1], [0, 0, 1, 1], [], []>} : vector<16x128xbf16>, vector<128x1024xbf16>, vector<16x1024xf32> -> vector<16x1024xf32>
    %722 = vector.extract_strided_slice %721 {offsets = [0, 512], sizes = [16, 512], strides = [1, 1]} : vector<16x1024xf32> to vector<16x512xf32>
    %723 = arith.truncf %11 : vector<16x128xf32> to vector<16x128xbf16>
    %cst_249 = arith.constant dense<0.000000e+00> : vector<16x512xf32>
    %724 = tpu.matmul %723, %3, %cst_249 {dimension_numbers = #tpu.dot_dimension_numbers<[1], [0], [0], [1], [0, 0, 1, 1], [], []>} : vector<16x128xbf16>, vector<128x512xbf16>, vector<16x512xf32> -> vector<16x512xf32>
    %725 = arith.addf %722, %724 : vector<16x512xf32>
    %726 = arith.addf %725, %9 : vector<16x512xf32>
    %727 = vector.extract_strided_slice %726 {offsets = [0, 0], sizes = [16, 128], strides = [1, 1]} : vector<16x512xf32> to vector<16x128xf32>
    %cst_250 = arith.constant 5.000000e-01 : f32
    %728 = vector.broadcast %cst_250 : f32 to vector<16x128xf32>
    %729 = arith.mulf %728, %727 : vector<16x128xf32>
    %730 = math.tanh %729 : vector<16x128xf32>
    %cst_251 = arith.constant 1.000000e+00 : f32
    %731 = vector.broadcast %cst_251 : f32 to vector<16x128xf32>
    %732 = arith.addf %730, %731 : vector<16x128xf32>
    %cst_252 = arith.constant 5.000000e-01 : f32
    %733 = vector.broadcast %cst_252 : f32 to vector<16x128xf32>
    %734 = arith.mulf %733, %732 : vector<16x128xf32>
    %735 = vector.extract_strided_slice %726 {offsets = [0, 128], sizes = [16, 128], strides = [1, 1]} : vector<16x512xf32> to vector<16x128xf32>
    %cst_253 = arith.constant 5.000000e-01 : f32
    %736 = vector.broadcast %cst_253 : f32 to vector<16x128xf32>
    %737 = arith.mulf %736, %735 : vector<16x128xf32>
    %738 = math.tanh %737 : vector<16x128xf32>
    %cst_254 = arith.constant 1.000000e+00 : f32
    %739 = vector.broadcast %cst_254 : f32 to vector<16x128xf32>
    %740 = arith.addf %738, %739 : vector<16x128xf32>
    %cst_255 = arith.constant 5.000000e-01 : f32
    %741 = vector.broadcast %cst_255 : f32 to vector<16x128xf32>
    %742 = arith.mulf %741, %740 : vector<16x128xf32>
    %743 = vector.extract_strided_slice %726 {offsets = [0, 256], sizes = [16, 128], strides = [1, 1]} : vector<16x512xf32> to vector<16x128xf32>
    %744 = math.tanh %743 : vector<16x128xf32>
    %745 = vector.extract_strided_slice %726 {offsets = [0, 384], sizes = [16, 128], strides = [1, 1]} : vector<16x512xf32> to vector<16x128xf32>
    %cst_256 = arith.constant 5.000000e-01 : f32
    %746 = vector.broadcast %cst_256 : f32 to vector<16x128xf32>
    %747 = arith.mulf %746, %745 : vector<16x128xf32>
    %748 = math.tanh %747 : vector<16x128xf32>
    %cst_257 = arith.constant 1.000000e+00 : f32
    %749 = vector.broadcast %cst_257 : f32 to vector<16x128xf32>
    %750 = arith.addf %748, %749 : vector<16x128xf32>
    %cst_258 = arith.constant 5.000000e-01 : f32
    %751 = vector.broadcast %cst_258 : f32 to vector<16x128xf32>
    %752 = arith.mulf %751, %750 : vector<16x128xf32>
    %753 = arith.mulf %742, %11 : vector<16x128xf32>
    %754 = arith.mulf %734, %744 : vector<16x128xf32>
    %755 = arith.addf %753, %754 : vector<16x128xf32>
    %756 = math.tanh %755 : vector<16x128xf32>
    %757 = arith.mulf %752, %756 : vector<16x128xf32>
    %758 = arith.truncf %757 : vector<16x128xf32> to vector<16x128xbf16>
    %759 = arith.index_cast %c0_i32_236 : i32 to index
    %c0_259 = arith.constant 0 : index
    %c0_260 = arith.constant 0 : index
    %760 = vector.load %arg23[%759, %c0_259, %c0_260] : memref<7x16x128xbf16, #tpu.memory_space<vmem>>, vector<1x16x128xbf16>
    %761 = vector.shape_cast %760 : vector<1x16x128xbf16> to vector<16x128xbf16>
    %762 = vector.shape_cast %758 : vector<16x128xbf16> to vector<1x16x128xbf16>
    tpu.vector_store %arg23[%759, %c0_259, %c0_260], %762 {strides = array<i32>} : memref<7x16x128xbf16, #tpu.memory_space<vmem>>, vector<1x16x128xbf16>,
    %763 = vector.extract_strided_slice %721 {offsets = [0, 0], sizes = [16, 512], strides = [1, 1]} : vector<16x1024xf32> to vector<16x512xf32>
    %c1_i32_261 = arith.constant 1 : i32
    %764 = arith.index_cast %c1_i32_261 : i32 to index
    %c0_262 = arith.constant 0 : index
    %c0_263 = arith.constant 0 : index
    %765 = vector.load %arg21[%764, %c0_262, %c0_263] : memref<7x16x512xbf16, #tpu.memory_space<vmem>>, vector<1x16x512xbf16>
    %766 = vector.shape_cast %765 : vector<1x16x512xbf16> to vector<16x512xbf16>
    %767 = arith.extf %766 : vector<16x512xbf16> to vector<16x512xf32>
    %768 = arith.addf %767, %763 : vector<16x512xf32>
    %769 = vector.extract_strided_slice %768 {offsets = [0, 0], sizes = [16, 128], strides = [1, 1]} : vector<16x512xf32> to vector<16x128xf32>
    %cst_264 = arith.constant 5.000000e-01 : f32
    %770 = vector.broadcast %cst_264 : f32 to vector<16x128xf32>
    %771 = arith.mulf %770, %769 : vector<16x128xf32>
    %772 = math.tanh %771 : vector<16x128xf32>
    %cst_265 = arith.constant 1.000000e+00 : f32
    %773 = vector.broadcast %cst_265 : f32 to vector<16x128xf32>
    %774 = arith.addf %772, %773 : vector<16x128xf32>
    %cst_266 = arith.constant 5.000000e-01 : f32
    %775 = vector.broadcast %cst_266 : f32 to vector<16x128xf32>
    %776 = arith.mulf %775, %774 : vector<16x128xf32>
    %777 = vector.extract_strided_slice %768 {offsets = [0, 128], sizes = [16, 128], strides = [1, 1]} : vector<16x512xf32> to vector<16x128xf32>
    %cst_267 = arith.constant 5.000000e-01 : f32
    %778 = vector.broadcast %cst_267 : f32 to vector<16x128xf32>
    %779 = arith.mulf %778, %777 : vector<16x128xf32>
    %780 = math.tanh %779 : vector<16x128xf32>
    %cst_268 = arith.constant 1.000000e+00 : f32
    %781 = vector.broadcast %cst_268 : f32 to vector<16x128xf32>
    %782 = arith.addf %780, %781 : vector<16x128xf32>
    %cst_269 = arith.constant 5.000000e-01 : f32
    %783 = vector.broadcast %cst_269 : f32 to vector<16x128xf32>
    %784 = arith.mulf %783, %782 : vector<16x128xf32>
    %785 = vector.extract_strided_slice %768 {offsets = [0, 256], sizes = [16, 128], strides = [1, 1]} : vector<16x512xf32> to vector<16x128xf32>
    %786 = math.tanh %785 : vector<16x128xf32>
    %787 = vector.extract_strided_slice %768 {offsets = [0, 384], sizes = [16, 128], strides = [1, 1]} : vector<16x512xf32> to vector<16x128xf32>
    %cst_270 = arith.constant 5.000000e-01 : f32
    %788 = vector.broadcast %cst_270 : f32 to vector<16x128xf32>
    %789 = arith.mulf %788, %787 : vector<16x128xf32>
    %790 = math.tanh %789 : vector<16x128xf32>
    %cst_271 = arith.constant 1.000000e+00 : f32
    %791 = vector.broadcast %cst_271 : f32 to vector<16x128xf32>
    %792 = arith.addf %790, %791 : vector<16x128xf32>
    %cst_272 = arith.constant 5.000000e-01 : f32
    %793 = vector.broadcast %cst_272 : f32 to vector<16x128xf32>
    %794 = arith.mulf %793, %792 : vector<16x128xf32>
    %795 = arith.mulf %784, %717 : vector<16x128xf32>
    %796 = arith.mulf %776, %786 : vector<16x128xf32>
    %797 = arith.addf %795, %796 : vector<16x128xf32>
    %798 = math.tanh %797 : vector<16x128xf32>
    %799 = arith.mulf %794, %798 : vector<16x128xf32>
    %800 = arith.truncf %799 : vector<16x128xf32> to vector<16x128xbf16>
    %cst_273 = arith.constant dense<0.000000e+00> : vector<16x1024xf32>
    %801 = tpu.matmul %800, %2, %cst_273 {dimension_numbers = #tpu.dot_dimension_numbers<[1], [0], [0], [1], [0, 0, 1, 1], [], []>} : vector<16x128xbf16>, vector<128x1024xbf16>, vector<16x1024xf32> -> vector<16x1024xf32>
    %802 = vector.extract_strided_slice %801 {offsets = [0, 512], sizes = [16, 512], strides = [1, 1]} : vector<16x1024xf32> to vector<16x512xf32>
    %803 = arith.truncf %757 : vector<16x128xf32> to vector<16x128xbf16>
    %cst_274 = arith.constant dense<0.000000e+00> : vector<16x512xf32>
    %804 = tpu.matmul %803, %3, %cst_274 {dimension_numbers = #tpu.dot_dimension_numbers<[1], [0], [0], [1], [0, 0, 1, 1], [], []>} : vector<16x128xbf16>, vector<128x512xbf16>, vector<16x512xf32> -> vector<16x512xf32>
    %805 = arith.addf %802, %804 : vector<16x512xf32>
    %806 = arith.addf %805, %9 : vector<16x512xf32>
    %807 = vector.extract_strided_slice %806 {offsets = [0, 0], sizes = [16, 128], strides = [1, 1]} : vector<16x512xf32> to vector<16x128xf32>
    %cst_275 = arith.constant 5.000000e-01 : f32
    %808 = vector.broadcast %cst_275 : f32 to vector<16x128xf32>
    %809 = arith.mulf %808, %807 : vector<16x128xf32>
    %810 = math.tanh %809 : vector<16x128xf32>
    %cst_276 = arith.constant 1.000000e+00 : f32
    %811 = vector.broadcast %cst_276 : f32 to vector<16x128xf32>
    %812 = arith.addf %810, %811 : vector<16x128xf32>
    %cst_277 = arith.constant 5.000000e-01 : f32
    %813 = vector.broadcast %cst_277 : f32 to vector<16x128xf32>
    %814 = arith.mulf %813, %812 : vector<16x128xf32>
    %815 = vector.extract_strided_slice %806 {offsets = [0, 128], sizes = [16, 128], strides = [1, 1]} : vector<16x512xf32> to vector<16x128xf32>
    %cst_278 = arith.constant 5.000000e-01 : f32
    %816 = vector.broadcast %cst_278 : f32 to vector<16x128xf32>
    %817 = arith.mulf %816, %815 : vector<16x128xf32>
    %818 = math.tanh %817 : vector<16x128xf32>
    %cst_279 = arith.constant 1.000000e+00 : f32
    %819 = vector.broadcast %cst_279 : f32 to vector<16x128xf32>
    %820 = arith.addf %818, %819 : vector<16x128xf32>
    %cst_280 = arith.constant 5.000000e-01 : f32
    %821 = vector.broadcast %cst_280 : f32 to vector<16x128xf32>
    %822 = arith.mulf %821, %820 : vector<16x128xf32>
    %823 = vector.extract_strided_slice %806 {offsets = [0, 256], sizes = [16, 128], strides = [1, 1]} : vector<16x512xf32> to vector<16x128xf32>
    %824 = math.tanh %823 : vector<16x128xf32>
    %825 = vector.extract_strided_slice %806 {offsets = [0, 384], sizes = [16, 128], strides = [1, 1]} : vector<16x512xf32> to vector<16x128xf32>
    %cst_281 = arith.constant 5.000000e-01 : f32
    %826 = vector.broadcast %cst_281 : f32 to vector<16x128xf32>
    %827 = arith.mulf %826, %825 : vector<16x128xf32>
    %828 = math.tanh %827 : vector<16x128xf32>
    %cst_282 = arith.constant 1.000000e+00 : f32
    %829 = vector.broadcast %cst_282 : f32 to vector<16x128xf32>
    %830 = arith.addf %828, %829 : vector<16x128xf32>
    %cst_283 = arith.constant 5.000000e-01 : f32
    %831 = vector.broadcast %cst_283 : f32 to vector<16x128xf32>
    %832 = arith.mulf %831, %830 : vector<16x128xf32>
    %833 = arith.mulf %822, %755 : vector<16x128xf32>
    %834 = arith.mulf %814, %824 : vector<16x128xf32>
    %835 = arith.addf %833, %834 : vector<16x128xf32>
    %836 = math.tanh %835 : vector<16x128xf32>
    %837 = arith.mulf %832, %836 : vector<16x128xf32>
    %838 = arith.truncf %837 : vector<16x128xf32> to vector<16x128xbf16>
    %839 = arith.index_cast %c1_i32_261 : i32 to index
    %c0_284 = arith.constant 0 : index
    %c0_285 = arith.constant 0 : index
    %840 = vector.load %arg23[%839, %c0_284, %c0_285] : memref<7x16x128xbf16, #tpu.memory_space<vmem>>, vector<1x16x128xbf16>
    %841 = vector.shape_cast %840 : vector<1x16x128xbf16> to vector<16x128xbf16>
    %842 = vector.shape_cast %838 : vector<16x128xbf16> to vector<1x16x128xbf16>
    tpu.vector_store %arg23[%839, %c0_284, %c0_285], %842 {strides = array<i32>} : memref<7x16x128xbf16, #tpu.memory_space<vmem>>, vector<1x16x128xbf16>,
    %843 = vector.extract_strided_slice %801 {offsets = [0, 0], sizes = [16, 512], strides = [1, 1]} : vector<16x1024xf32> to vector<16x512xf32>
    %c2_i32_286 = arith.constant 2 : i32
    %844 = arith.index_cast %c2_i32_286 : i32 to index
    %c0_287 = arith.constant 0 : index
    %c0_288 = arith.constant 0 : index
    %845 = vector.load %arg21[%844, %c0_287, %c0_288] : memref<7x16x512xbf16, #tpu.memory_space<vmem>>, vector<1x16x512xbf16>
    %846 = vector.shape_cast %845 : vector<1x16x512xbf16> to vector<16x512xbf16>
    %847 = arith.extf %846 : vector<16x512xbf16> to vector<16x512xf32>
    %848 = arith.addf %847, %843 : vector<16x512xf32>
    %849 = vector.extract_strided_slice %848 {offsets = [0, 0], sizes = [16, 128], strides = [1, 1]} : vector<16x512xf32> to vector<16x128xf32>
    %cst_289 = arith.constant 5.000000e-01 : f32
    %850 = vector.broadcast %cst_289 : f32 to vector<16x128xf32>
    %851 = arith.mulf %850, %849 : vector<16x128xf32>
    %852 = math.tanh %851 : vector<16x128xf32>
    %cst_290 = arith.constant 1.000000e+00 : f32
    %853 = vector.broadcast %cst_290 : f32 to vector<16x128xf32>
    %854 = arith.addf %852, %853 : vector<16x128xf32>
    %cst_291 = arith.constant 5.000000e-01 : f32
    %855 = vector.broadcast %cst_291 : f32 to vector<16x128xf32>
    %856 = arith.mulf %855, %854 : vector<16x128xf32>
    %857 = vector.extract_strided_slice %848 {offsets = [0, 128], sizes = [16, 128], strides = [1, 1]} : vector<16x512xf32> to vector<16x128xf32>
    %cst_292 = arith.constant 5.000000e-01 : f32
    %858 = vector.broadcast %cst_292 : f32 to vector<16x128xf32>
    %859 = arith.mulf %858, %857 : vector<16x128xf32>
    %860 = math.tanh %859 : vector<16x128xf32>
    %cst_293 = arith.constant 1.000000e+00 : f32
    %861 = vector.broadcast %cst_293 : f32 to vector<16x128xf32>
    %862 = arith.addf %860, %861 : vector<16x128xf32>
    %cst_294 = arith.constant 5.000000e-01 : f32
    %863 = vector.broadcast %cst_294 : f32 to vector<16x128xf32>
    %864 = arith.mulf %863, %862 : vector<16x128xf32>
    %865 = vector.extract_strided_slice %848 {offsets = [0, 256], sizes = [16, 128], strides = [1, 1]} : vector<16x512xf32> to vector<16x128xf32>
    %866 = math.tanh %865 : vector<16x128xf32>
    %867 = vector.extract_strided_slice %848 {offsets = [0, 384], sizes = [16, 128], strides = [1, 1]} : vector<16x512xf32> to vector<16x128xf32>
    %cst_295 = arith.constant 5.000000e-01 : f32
    %868 = vector.broadcast %cst_295 : f32 to vector<16x128xf32>
    %869 = arith.mulf %868, %867 : vector<16x128xf32>
    %870 = math.tanh %869 : vector<16x128xf32>
    %cst_296 = arith.constant 1.000000e+00 : f32
    %871 = vector.broadcast %cst_296 : f32 to vector<16x128xf32>
    %872 = arith.addf %870, %871 : vector<16x128xf32>
    %cst_297 = arith.constant 5.000000e-01 : f32
    %873 = vector.broadcast %cst_297 : f32 to vector<16x128xf32>
    %874 = arith.mulf %873, %872 : vector<16x128xf32>
    %875 = arith.mulf %864, %797 : vector<16x128xf32>
    %876 = arith.mulf %856, %866 : vector<16x128xf32>
    %877 = arith.addf %875, %876 : vector<16x128xf32>
    %878 = math.tanh %877 : vector<16x128xf32>
    %879 = arith.mulf %874, %878 : vector<16x128xf32>
    %880 = arith.truncf %879 : vector<16x128xf32> to vector<16x128xbf16>
    %cst_298 = arith.constant dense<0.000000e+00> : vector<16x1024xf32>
    %881 = tpu.matmul %880, %2, %cst_298 {dimension_numbers = #tpu.dot_dimension_numbers<[1], [0], [0], [1], [0, 0, 1, 1], [], []>} : vector<16x128xbf16>, vector<128x1024xbf16>, vector<16x1024xf32> -> vector<16x1024xf32>
    %882 = vector.extract_strided_slice %881 {offsets = [0, 512], sizes = [16, 512], strides = [1, 1]} : vector<16x1024xf32> to vector<16x512xf32>
    %883 = arith.truncf %837 : vector<16x128xf32> to vector<16x128xbf16>
    %cst_299 = arith.constant dense<0.000000e+00> : vector<16x512xf32>
    %884 = tpu.matmul %883, %3, %cst_299 {dimension_numbers = #tpu.dot_dimension_numbers<[1], [0], [0], [1], [0, 0, 1, 1], [], []>} : vector<16x128xbf16>, vector<128x512xbf16>, vector<16x512xf32> -> vector<16x512xf32>
    %885 = arith.addf %882, %884 : vector<16x512xf32>
    %886 = arith.addf %885, %9 : vector<16x512xf32>
    %887 = vector.extract_strided_slice %886 {offsets = [0, 0], sizes = [16, 128], strides = [1, 1]} : vector<16x512xf32> to vector<16x128xf32>
    %cst_300 = arith.constant 5.000000e-01 : f32
    %888 = vector.broadcast %cst_300 : f32 to vector<16x128xf32>
    %889 = arith.mulf %888, %887 : vector<16x128xf32>
    %890 = math.tanh %889 : vector<16x128xf32>
    %cst_301 = arith.constant 1.000000e+00 : f32
    %891 = vector.broadcast %cst_301 : f32 to vector<16x128xf32>
    %892 = arith.addf %890, %891 : vector<16x128xf32>
    %cst_302 = arith.constant 5.000000e-01 : f32
    %893 = vector.broadcast %cst_302 : f32 to vector<16x128xf32>
    %894 = arith.mulf %893, %892 : vector<16x128xf32>
    %895 = vector.extract_strided_slice %886 {offsets = [0, 128], sizes = [16, 128], strides = [1, 1]} : vector<16x512xf32> to vector<16x128xf32>
    %cst_303 = arith.constant 5.000000e-01 : f32
    %896 = vector.broadcast %cst_303 : f32 to vector<16x128xf32>
    %897 = arith.mulf %896, %895 : vector<16x128xf32>
    %898 = math.tanh %897 : vector<16x128xf32>
    %cst_304 = arith.constant 1.000000e+00 : f32
    %899 = vector.broadcast %cst_304 : f32 to vector<16x128xf32>
    %900 = arith.addf %898, %899 : vector<16x128xf32>
    %cst_305 = arith.constant 5.000000e-01 : f32
    %901 = vector.broadcast %cst_305 : f32 to vector<16x128xf32>
    %902 = arith.mulf %901, %900 : vector<16x128xf32>
    %903 = vector.extract_strided_slice %886 {offsets = [0, 256], sizes = [16, 128], strides = [1, 1]} : vector<16x512xf32> to vector<16x128xf32>
    %904 = math.tanh %903 : vector<16x128xf32>
    %905 = vector.extract_strided_slice %886 {offsets = [0, 384], sizes = [16, 128], strides = [1, 1]} : vector<16x512xf32> to vector<16x128xf32>
    %cst_306 = arith.constant 5.000000e-01 : f32
    %906 = vector.broadcast %cst_306 : f32 to vector<16x128xf32>
    %907 = arith.mulf %906, %905 : vector<16x128xf32>
    %908 = math.tanh %907 : vector<16x128xf32>
    %cst_307 = arith.constant 1.000000e+00 : f32
    %909 = vector.broadcast %cst_307 : f32 to vector<16x128xf32>
    %910 = arith.addf %908, %909 : vector<16x128xf32>
    %cst_308 = arith.constant 5.000000e-01 : f32
    %911 = vector.broadcast %cst_308 : f32 to vector<16x128xf32>
    %912 = arith.mulf %911, %910 : vector<16x128xf32>
    %913 = arith.mulf %902, %835 : vector<16x128xf32>
    %914 = arith.mulf %894, %904 : vector<16x128xf32>
    %915 = arith.addf %913, %914 : vector<16x128xf32>
    %916 = math.tanh %915 : vector<16x128xf32>
    %917 = arith.mulf %912, %916 : vector<16x128xf32>
    %918 = arith.truncf %917 : vector<16x128xf32> to vector<16x128xbf16>
    %919 = arith.index_cast %c2_i32_286 : i32 to index
    %c0_309 = arith.constant 0 : index
    %c0_310 = arith.constant 0 : index
    %920 = vector.load %arg23[%919, %c0_309, %c0_310] : memref<7x16x128xbf16, #tpu.memory_space<vmem>>, vector<1x16x128xbf16>
    %921 = vector.shape_cast %920 : vector<1x16x128xbf16> to vector<16x128xbf16>
    %922 = vector.shape_cast %918 : vector<16x128xbf16> to vector<1x16x128xbf16>
    tpu.vector_store %arg23[%919, %c0_309, %c0_310], %922 {strides = array<i32>} : memref<7x16x128xbf16, #tpu.memory_space<vmem>>, vector<1x16x128xbf16>,
    %923 = vector.extract_strided_slice %881 {offsets = [0, 0], sizes = [16, 512], strides = [1, 1]} : vector<16x1024xf32> to vector<16x512xf32>
    %c3_i32_311 = arith.constant 3 : i32
    %924 = arith.index_cast %c3_i32_311 : i32 to index
    %c0_312 = arith.constant 0 : index
    %c0_313 = arith.constant 0 : index
    %925 = vector.load %arg21[%924, %c0_312, %c0_313] : memref<7x16x512xbf16, #tpu.memory_space<vmem>>, vector<1x16x512xbf16>
    %926 = vector.shape_cast %925 : vector<1x16x512xbf16> to vector<16x512xbf16>
    %927 = arith.extf %926 : vector<16x512xbf16> to vector<16x512xf32>
    %928 = arith.addf %927, %923 : vector<16x512xf32>
    %929 = vector.extract_strided_slice %928 {offsets = [0, 0], sizes = [16, 128], strides = [1, 1]} : vector<16x512xf32> to vector<16x128xf32>
    %cst_314 = arith.constant 5.000000e-01 : f32
    %930 = vector.broadcast %cst_314 : f32 to vector<16x128xf32>
    %931 = arith.mulf %930, %929 : vector<16x128xf32>
    %932 = math.tanh %931 : vector<16x128xf32>
    %cst_315 = arith.constant 1.000000e+00 : f32
    %933 = vector.broadcast %cst_315 : f32 to vector<16x128xf32>
    %934 = arith.addf %932, %933 : vector<16x128xf32>
    %cst_316 = arith.constant 5.000000e-01 : f32
    %935 = vector.broadcast %cst_316 : f32 to vector<16x128xf32>
    %936 = arith.mulf %935, %934 : vector<16x128xf32>
    %937 = vector.extract_strided_slice %928 {offsets = [0, 128], sizes = [16, 128], strides = [1, 1]} : vector<16x512xf32> to vector<16x128xf32>
    %cst_317 = arith.constant 5.000000e-01 : f32
    %938 = vector.broadcast %cst_317 : f32 to vector<16x128xf32>
    %939 = arith.mulf %938, %937 : vector<16x128xf32>
    %940 = math.tanh %939 : vector<16x128xf32>
    %cst_318 = arith.constant 1.000000e+00 : f32
    %941 = vector.broadcast %cst_318 : f32 to vector<16x128xf32>
    %942 = arith.addf %940, %941 : vector<16x128xf32>
    %cst_319 = arith.constant 5.000000e-01 : f32
    %943 = vector.broadcast %cst_319 : f32 to vector<16x128xf32>
    %944 = arith.mulf %943, %942 : vector<16x128xf32>
    %945 = vector.extract_strided_slice %928 {offsets = [0, 256], sizes = [16, 128], strides = [1, 1]} : vector<16x512xf32> to vector<16x128xf32>
    %946 = math.tanh %945 : vector<16x128xf32>
    %947 = vector.extract_strided_slice %928 {offsets = [0, 384], sizes = [16, 128], strides = [1, 1]} : vector<16x512xf32> to vector<16x128xf32>
    %cst_320 = arith.constant 5.000000e-01 : f32
    %948 = vector.broadcast %cst_320 : f32 to vector<16x128xf32>
    %949 = arith.mulf %948, %947 : vector<16x128xf32>
    %950 = math.tanh %949 : vector<16x128xf32>
    %cst_321 = arith.constant 1.000000e+00 : f32
    %951 = vector.broadcast %cst_321 : f32 to vector<16x128xf32>
    %952 = arith.addf %950, %951 : vector<16x128xf32>
    %cst_322 = arith.constant 5.000000e-01 : f32
    %953 = vector.broadcast %cst_322 : f32 to vector<16x128xf32>
    %954 = arith.mulf %953, %952 : vector<16x128xf32>
    %955 = arith.mulf %944, %877 : vector<16x128xf32>
    %956 = arith.mulf %936, %946 : vector<16x128xf32>
    %957 = arith.addf %955, %956 : vector<16x128xf32>
    %958 = math.tanh %957 : vector<16x128xf32>
    %959 = arith.mulf %954, %958 : vector<16x128xf32>
    %960 = arith.truncf %959 : vector<16x128xf32> to vector<16x128xbf16>
    %cst_323 = arith.constant dense<0.000000e+00> : vector<16x1024xf32>
    %961 = tpu.matmul %960, %2, %cst_323 {dimension_numbers = #tpu.dot_dimension_numbers<[1], [0], [0], [1], [0, 0, 1, 1], [], []>} : vector<16x128xbf16>, vector<128x1024xbf16>, vector<16x1024xf32> -> vector<16x1024xf32>
    %962 = vector.extract_strided_slice %961 {offsets = [0, 512], sizes = [16, 512], strides = [1, 1]} : vector<16x1024xf32> to vector<16x512xf32>
    %963 = arith.truncf %917 : vector<16x128xf32> to vector<16x128xbf16>
    %cst_324 = arith.constant dense<0.000000e+00> : vector<16x512xf32>
    %964 = tpu.matmul %963, %3, %cst_324 {dimension_numbers = #tpu.dot_dimension_numbers<[1], [0], [0], [1], [0, 0, 1, 1], [], []>} : vector<16x128xbf16>, vector<128x512xbf16>, vector<16x512xf32> -> vector<16x512xf32>
    %965 = arith.addf %962, %964 : vector<16x512xf32>
    %966 = arith.addf %965, %9 : vector<16x512xf32>
    %967 = vector.extract_strided_slice %966 {offsets = [0, 0], sizes = [16, 128], strides = [1, 1]} : vector<16x512xf32> to vector<16x128xf32>
    %cst_325 = arith.constant 5.000000e-01 : f32
    %968 = vector.broadcast %cst_325 : f32 to vector<16x128xf32>
    %969 = arith.mulf %968, %967 : vector<16x128xf32>
    %970 = math.tanh %969 : vector<16x128xf32>
    %cst_326 = arith.constant 1.000000e+00 : f32
    %971 = vector.broadcast %cst_326 : f32 to vector<16x128xf32>
    %972 = arith.addf %970, %971 : vector<16x128xf32>
    %cst_327 = arith.constant 5.000000e-01 : f32
    %973 = vector.broadcast %cst_327 : f32 to vector<16x128xf32>
    %974 = arith.mulf %973, %972 : vector<16x128xf32>
    %975 = vector.extract_strided_slice %966 {offsets = [0, 128], sizes = [16, 128], strides = [1, 1]} : vector<16x512xf32> to vector<16x128xf32>
    %cst_328 = arith.constant 5.000000e-01 : f32
    %976 = vector.broadcast %cst_328 : f32 to vector<16x128xf32>
    %977 = arith.mulf %976, %975 : vector<16x128xf32>
    %978 = math.tanh %977 : vector<16x128xf32>
    %cst_329 = arith.constant 1.000000e+00 : f32
    %979 = vector.broadcast %cst_329 : f32 to vector<16x128xf32>
    %980 = arith.addf %978, %979 : vector<16x128xf32>
    %cst_330 = arith.constant 5.000000e-01 : f32
    %981 = vector.broadcast %cst_330 : f32 to vector<16x128xf32>
    %982 = arith.mulf %981, %980 : vector<16x128xf32>
    %983 = vector.extract_strided_slice %966 {offsets = [0, 256], sizes = [16, 128], strides = [1, 1]} : vector<16x512xf32> to vector<16x128xf32>
    %984 = math.tanh %983 : vector<16x128xf32>
    %985 = vector.extract_strided_slice %966 {offsets = [0, 384], sizes = [16, 128], strides = [1, 1]} : vector<16x512xf32> to vector<16x128xf32>
    %cst_331 = arith.constant 5.000000e-01 : f32
    %986 = vector.broadcast %cst_331 : f32 to vector<16x128xf32>
    %987 = arith.mulf %986, %985 : vector<16x128xf32>
    %988 = math.tanh %987 : vector<16x128xf32>
    %cst_332 = arith.constant 1.000000e+00 : f32
    %989 = vector.broadcast %cst_332 : f32 to vector<16x128xf32>
    %990 = arith.addf %988, %989 : vector<16x128xf32>
    %cst_333 = arith.constant 5.000000e-01 : f32
    %991 = vector.broadcast %cst_333 : f32 to vector<16x128xf32>
    %992 = arith.mulf %991, %990 : vector<16x128xf32>
    %993 = arith.mulf %982, %915 : vector<16x128xf32>
    %994 = arith.mulf %974, %984 : vector<16x128xf32>
    %995 = arith.addf %993, %994 : vector<16x128xf32>
    %996 = math.tanh %995 : vector<16x128xf32>
    %997 = arith.mulf %992, %996 : vector<16x128xf32>
    %998 = arith.truncf %997 : vector<16x128xf32> to vector<16x128xbf16>
    %999 = arith.index_cast %c3_i32_311 : i32 to index
    %c0_334 = arith.constant 0 : index
    %c0_335 = arith.constant 0 : index
    %1000 = vector.load %arg23[%999, %c0_334, %c0_335] : memref<7x16x128xbf16, #tpu.memory_space<vmem>>, vector<1x16x128xbf16>
    %1001 = vector.shape_cast %1000 : vector<1x16x128xbf16> to vector<16x128xbf16>
    %1002 = vector.shape_cast %998 : vector<16x128xbf16> to vector<1x16x128xbf16>
    tpu.vector_store %arg23[%999, %c0_334, %c0_335], %1002 {strides = array<i32>} : memref<7x16x128xbf16, #tpu.memory_space<vmem>>, vector<1x16x128xbf16>,
    %1003 = vector.extract_strided_slice %961 {offsets = [0, 0], sizes = [16, 512], strides = [1, 1]} : vector<16x1024xf32> to vector<16x512xf32>
    %c4_i32_336 = arith.constant 4 : i32
    %1004 = arith.index_cast %c4_i32_336 : i32 to index
    %c0_337 = arith.constant 0 : index
    %c0_338 = arith.constant 0 : index
    %1005 = vector.load %arg21[%1004, %c0_337, %c0_338] : memref<7x16x512xbf16, #tpu.memory_space<vmem>>, vector<1x16x512xbf16>
    %1006 = vector.shape_cast %1005 : vector<1x16x512xbf16> to vector<16x512xbf16>
    %1007 = arith.extf %1006 : vector<16x512xbf16> to vector<16x512xf32>
    %1008 = arith.addf %1007, %1003 : vector<16x512xf32>
    %1009 = vector.extract_strided_slice %1008 {offsets = [0, 0], sizes = [16, 128], strides = [1, 1]} : vector<16x512xf32> to vector<16x128xf32>
    %cst_339 = arith.constant 5.000000e-01 : f32
    %1010 = vector.broadcast %cst_339 : f32 to vector<16x128xf32>
    %1011 = arith.mulf %1010, %1009 : vector<16x128xf32>
    %1012 = math.tanh %1011 : vector<16x128xf32>
    %cst_340 = arith.constant 1.000000e+00 : f32
    %1013 = vector.broadcast %cst_340 : f32 to vector<16x128xf32>
    %1014 = arith.addf %1012, %1013 : vector<16x128xf32>
    %cst_341 = arith.constant 5.000000e-01 : f32
    %1015 = vector.broadcast %cst_341 : f32 to vector<16x128xf32>
    %1016 = arith.mulf %1015, %1014 : vector<16x128xf32>
    %1017 = vector.extract_strided_slice %1008 {offsets = [0, 128], sizes = [16, 128], strides = [1, 1]} : vector<16x512xf32> to vector<16x128xf32>
    %cst_342 = arith.constant 5.000000e-01 : f32
    %1018 = vector.broadcast %cst_342 : f32 to vector<16x128xf32>
    %1019 = arith.mulf %1018, %1017 : vector<16x128xf32>
    %1020 = math.tanh %1019 : vector<16x128xf32>
    %cst_343 = arith.constant 1.000000e+00 : f32
    %1021 = vector.broadcast %cst_343 : f32 to vector<16x128xf32>
    %1022 = arith.addf %1020, %1021 : vector<16x128xf32>
    %cst_344 = arith.constant 5.000000e-01 : f32
    %1023 = vector.broadcast %cst_344 : f32 to vector<16x128xf32>
    %1024 = arith.mulf %1023, %1022 : vector<16x128xf32>
    %1025 = vector.extract_strided_slice %1008 {offsets = [0, 256], sizes = [16, 128], strides = [1, 1]} : vector<16x512xf32> to vector<16x128xf32>
    %1026 = math.tanh %1025 : vector<16x128xf32>
    %1027 = vector.extract_strided_slice %1008 {offsets = [0, 384], sizes = [16, 128], strides = [1, 1]} : vector<16x512xf32> to vector<16x128xf32>
    %cst_345 = arith.constant 5.000000e-01 : f32
    %1028 = vector.broadcast %cst_345 : f32 to vector<16x128xf32>
    %1029 = arith.mulf %1028, %1027 : vector<16x128xf32>
    %1030 = math.tanh %1029 : vector<16x128xf32>
    %cst_346 = arith.constant 1.000000e+00 : f32
    %1031 = vector.broadcast %cst_346 : f32 to vector<16x128xf32>
    %1032 = arith.addf %1030, %1031 : vector<16x128xf32>
    %cst_347 = arith.constant 5.000000e-01 : f32
    %1033 = vector.broadcast %cst_347 : f32 to vector<16x128xf32>
    %1034 = arith.mulf %1033, %1032 : vector<16x128xf32>
    %1035 = arith.mulf %1024, %957 : vector<16x128xf32>
    %1036 = arith.mulf %1016, %1026 : vector<16x128xf32>
    %1037 = arith.addf %1035, %1036 : vector<16x128xf32>
    %1038 = math.tanh %1037 : vector<16x128xf32>
    %1039 = arith.mulf %1034, %1038 : vector<16x128xf32>
    %1040 = arith.truncf %1039 : vector<16x128xf32> to vector<16x128xbf16>
    %cst_348 = arith.constant dense<0.000000e+00> : vector<16x1024xf32>
    %1041 = tpu.matmul %1040, %2, %cst_348 {dimension_numbers = #tpu.dot_dimension_numbers<[1], [0], [0], [1], [0, 0, 1, 1], [], []>} : vector<16x128xbf16>, vector<128x1024xbf16>, vector<16x1024xf32> -> vector<16x1024xf32>
    %1042 = vector.extract_strided_slice %1041 {offsets = [0, 512], sizes = [16, 512], strides = [1, 1]} : vector<16x1024xf32> to vector<16x512xf32>
    %1043 = arith.truncf %997 : vector<16x128xf32> to vector<16x128xbf16>
    %cst_349 = arith.constant dense<0.000000e+00> : vector<16x512xf32>
    %1044 = tpu.matmul %1043, %3, %cst_349 {dimension_numbers = #tpu.dot_dimension_numbers<[1], [0], [0], [1], [0, 0, 1, 1], [], []>} : vector<16x128xbf16>, vector<128x512xbf16>, vector<16x512xf32> -> vector<16x512xf32>
    %1045 = arith.addf %1042, %1044 : vector<16x512xf32>
    %1046 = arith.addf %1045, %9 : vector<16x512xf32>
    %1047 = vector.extract_strided_slice %1046 {offsets = [0, 0], sizes = [16, 128], strides = [1, 1]} : vector<16x512xf32> to vector<16x128xf32>
    %cst_350 = arith.constant 5.000000e-01 : f32
    %1048 = vector.broadcast %cst_350 : f32 to vector<16x128xf32>
    %1049 = arith.mulf %1048, %1047 : vector<16x128xf32>
    %1050 = math.tanh %1049 : vector<16x128xf32>
    %cst_351 = arith.constant 1.000000e+00 : f32
    %1051 = vector.broadcast %cst_351 : f32 to vector<16x128xf32>
    %1052 = arith.addf %1050, %1051 : vector<16x128xf32>
    %cst_352 = arith.constant 5.000000e-01 : f32
    %1053 = vector.broadcast %cst_352 : f32 to vector<16x128xf32>
    %1054 = arith.mulf %1053, %1052 : vector<16x128xf32>
    %1055 = vector.extract_strided_slice %1046 {offsets = [0, 128], sizes = [16, 128], strides = [1, 1]} : vector<16x512xf32> to vector<16x128xf32>
    %cst_353 = arith.constant 5.000000e-01 : f32
    %1056 = vector.broadcast %cst_353 : f32 to vector<16x128xf32>
    %1057 = arith.mulf %1056, %1055 : vector<16x128xf32>
    %1058 = math.tanh %1057 : vector<16x128xf32>
    %cst_354 = arith.constant 1.000000e+00 : f32
    %1059 = vector.broadcast %cst_354 : f32 to vector<16x128xf32>
    %1060 = arith.addf %1058, %1059 : vector<16x128xf32>
    %cst_355 = arith.constant 5.000000e-01 : f32
    %1061 = vector.broadcast %cst_355 : f32 to vector<16x128xf32>
    %1062 = arith.mulf %1061, %1060 : vector<16x128xf32>
    %1063 = vector.extract_strided_slice %1046 {offsets = [0, 256], sizes = [16, 128], strides = [1, 1]} : vector<16x512xf32> to vector<16x128xf32>
    %1064 = math.tanh %1063 : vector<16x128xf32>
    %1065 = vector.extract_strided_slice %1046 {offsets = [0, 384], sizes = [16, 128], strides = [1, 1]} : vector<16x512xf32> to vector<16x128xf32>
    %cst_356 = arith.constant 5.000000e-01 : f32
    %1066 = vector.broadcast %cst_356 : f32 to vector<16x128xf32>
    %1067 = arith.mulf %1066, %1065 : vector<16x128xf32>
    %1068 = math.tanh %1067 : vector<16x128xf32>
    %cst_357 = arith.constant 1.000000e+00 : f32
    %1069 = vector.broadcast %cst_357 : f32 to vector<16x128xf32>
    %1070 = arith.addf %1068, %1069 : vector<16x128xf32>
    %cst_358 = arith.constant 5.000000e-01 : f32
    %1071 = vector.broadcast %cst_358 : f32 to vector<16x128xf32>
    %1072 = arith.mulf %1071, %1070 : vector<16x128xf32>
    %1073 = arith.mulf %1062, %995 : vector<16x128xf32>
    %1074 = arith.mulf %1054, %1064 : vector<16x128xf32>
    %1075 = arith.addf %1073, %1074 : vector<16x128xf32>
    %1076 = math.tanh %1075 : vector<16x128xf32>
    %1077 = arith.mulf %1072, %1076 : vector<16x128xf32>
    %1078 = arith.truncf %1077 : vector<16x128xf32> to vector<16x128xbf16>
    %1079 = arith.index_cast %c4_i32_336 : i32 to index
    %c0_359 = arith.constant 0 : index
    %c0_360 = arith.constant 0 : index
    %1080 = vector.load %arg23[%1079, %c0_359, %c0_360] : memref<7x16x128xbf16, #tpu.memory_space<vmem>>, vector<1x16x128xbf16>
    %1081 = vector.shape_cast %1080 : vector<1x16x128xbf16> to vector<16x128xbf16>
    %1082 = vector.shape_cast %1078 : vector<16x128xbf16> to vector<1x16x128xbf16>
    tpu.vector_store %arg23[%1079, %c0_359, %c0_360], %1082 {strides = array<i32>} : memref<7x16x128xbf16, #tpu.memory_space<vmem>>, vector<1x16x128xbf16>,
    %1083 = vector.extract_strided_slice %1041 {offsets = [0, 0], sizes = [16, 512], strides = [1, 1]} : vector<16x1024xf32> to vector<16x512xf32>
    %c5_i32_361 = arith.constant 5 : i32
    %1084 = arith.index_cast %c5_i32_361 : i32 to index
    %c0_362 = arith.constant 0 : index
    %c0_363 = arith.constant 0 : index
    %1085 = vector.load %arg21[%1084, %c0_362, %c0_363] : memref<7x16x512xbf16, #tpu.memory_space<vmem>>, vector<1x16x512xbf16>
    %1086 = vector.shape_cast %1085 : vector<1x16x512xbf16> to vector<16x512xbf16>
    %1087 = arith.extf %1086 : vector<16x512xbf16> to vector<16x512xf32>
    %1088 = arith.addf %1087, %1083 : vector<16x512xf32>
    %1089 = vector.extract_strided_slice %1088 {offsets = [0, 0], sizes = [16, 128], strides = [1, 1]} : vector<16x512xf32> to vector<16x128xf32>
    %cst_364 = arith.constant 5.000000e-01 : f32
    %1090 = vector.broadcast %cst_364 : f32 to vector<16x128xf32>
    %1091 = arith.mulf %1090, %1089 : vector<16x128xf32>
    %1092 = math.tanh %1091 : vector<16x128xf32>
    %cst_365 = arith.constant 1.000000e+00 : f32
    %1093 = vector.broadcast %cst_365 : f32 to vector<16x128xf32>
    %1094 = arith.addf %1092, %1093 : vector<16x128xf32>
    %cst_366 = arith.constant 5.000000e-01 : f32
    %1095 = vector.broadcast %cst_366 : f32 to vector<16x128xf32>
    %1096 = arith.mulf %1095, %1094 : vector<16x128xf32>
    %1097 = vector.extract_strided_slice %1088 {offsets = [0, 128], sizes = [16, 128], strides = [1, 1]} : vector<16x512xf32> to vector<16x128xf32>
    %cst_367 = arith.constant 5.000000e-01 : f32
    %1098 = vector.broadcast %cst_367 : f32 to vector<16x128xf32>
    %1099 = arith.mulf %1098, %1097 : vector<16x128xf32>
    %1100 = math.tanh %1099 : vector<16x128xf32>
    %cst_368 = arith.constant 1.000000e+00 : f32
    %1101 = vector.broadcast %cst_368 : f32 to vector<16x128xf32>
    %1102 = arith.addf %1100, %1101 : vector<16x128xf32>
    %cst_369 = arith.constant 5.000000e-01 : f32
    %1103 = vector.broadcast %cst_369 : f32 to vector<16x128xf32>
    %1104 = arith.mulf %1103, %1102 : vector<16x128xf32>
    %1105 = vector.extract_strided_slice %1088 {offsets = [0, 256], sizes = [16, 128], strides = [1, 1]} : vector<16x512xf32> to vector<16x128xf32>
    %1106 = math.tanh %1105 : vector<16x128xf32>
    %1107 = vector.extract_strided_slice %1088 {offsets = [0, 384], sizes = [16, 128], strides = [1, 1]} : vector<16x512xf32> to vector<16x128xf32>
    %cst_370 = arith.constant 5.000000e-01 : f32
    %1108 = vector.broadcast %cst_370 : f32 to vector<16x128xf32>
    %1109 = arith.mulf %1108, %1107 : vector<16x128xf32>
    %1110 = math.tanh %1109 : vector<16x128xf32>
    %cst_371 = arith.constant 1.000000e+00 : f32
    %1111 = vector.broadcast %cst_371 : f32 to vector<16x128xf32>
    %1112 = arith.addf %1110, %1111 : vector<16x128xf32>
    %cst_372 = arith.constant 5.000000e-01 : f32
    %1113 = vector.broadcast %cst_372 : f32 to vector<16x128xf32>
    %1114 = arith.mulf %1113, %1112 : vector<16x128xf32>
    %1115 = arith.mulf %1104, %1037 : vector<16x128xf32>
    %1116 = arith.mulf %1096, %1106 : vector<16x128xf32>
    %1117 = arith.addf %1115, %1116 : vector<16x128xf32>
    %1118 = math.tanh %1117 : vector<16x128xf32>
    %1119 = arith.mulf %1114, %1118 : vector<16x128xf32>
    %1120 = arith.truncf %1119 : vector<16x128xf32> to vector<16x128xbf16>
    %cst_373 = arith.constant dense<0.000000e+00> : vector<16x1024xf32>
    %1121 = tpu.matmul %1120, %2, %cst_373 {dimension_numbers = #tpu.dot_dimension_numbers<[1], [0], [0], [1], [0, 0, 1, 1], [], []>} : vector<16x128xbf16>, vector<128x1024xbf16>, vector<16x1024xf32> -> vector<16x1024xf32>
    %1122 = vector.extract_strided_slice %1121 {offsets = [0, 512], sizes = [16, 512], strides = [1, 1]} : vector<16x1024xf32> to vector<16x512xf32>
    %1123 = arith.truncf %1077 : vector<16x128xf32> to vector<16x128xbf16>
    %cst_374 = arith.constant dense<0.000000e+00> : vector<16x512xf32>
    %1124 = tpu.matmul %1123, %3, %cst_374 {dimension_numbers = #tpu.dot_dimension_numbers<[1], [0], [0], [1], [0, 0, 1, 1], [], []>} : vector<16x128xbf16>, vector<128x512xbf16>, vector<16x512xf32> -> vector<16x512xf32>
    %1125 = arith.addf %1122, %1124 : vector<16x512xf32>
    %1126 = arith.addf %1125, %9 : vector<16x512xf32>
    %1127 = vector.extract_strided_slice %1126 {offsets = [0, 0], sizes = [16, 128], strides = [1, 1]} : vector<16x512xf32> to vector<16x128xf32>
    %cst_375 = arith.constant 5.000000e-01 : f32
    %1128 = vector.broadcast %cst_375 : f32 to vector<16x128xf32>
    %1129 = arith.mulf %1128, %1127 : vector<16x128xf32>
    %1130 = math.tanh %1129 : vector<16x128xf32>
    %cst_376 = arith.constant 1.000000e+00 : f32
    %1131 = vector.broadcast %cst_376 : f32 to vector<16x128xf32>
    %1132 = arith.addf %1130, %1131 : vector<16x128xf32>
    %cst_377 = arith.constant 5.000000e-01 : f32
    %1133 = vector.broadcast %cst_377 : f32 to vector<16x128xf32>
    %1134 = arith.mulf %1133, %1132 : vector<16x128xf32>
    %1135 = vector.extract_strided_slice %1126 {offsets = [0, 128], sizes = [16, 128], strides = [1, 1]} : vector<16x512xf32> to vector<16x128xf32>
    %cst_378 = arith.constant 5.000000e-01 : f32
    %1136 = vector.broadcast %cst_378 : f32 to vector<16x128xf32>
    %1137 = arith.mulf %1136, %1135 : vector<16x128xf32>
    %1138 = math.tanh %1137 : vector<16x128xf32>
    %cst_379 = arith.constant 1.000000e+00 : f32
    %1139 = vector.broadcast %cst_379 : f32 to vector<16x128xf32>
    %1140 = arith.addf %1138, %1139 : vector<16x128xf32>
    %cst_380 = arith.constant 5.000000e-01 : f32
    %1141 = vector.broadcast %cst_380 : f32 to vector<16x128xf32>
    %1142 = arith.mulf %1141, %1140 : vector<16x128xf32>
    %1143 = vector.extract_strided_slice %1126 {offsets = [0, 256], sizes = [16, 128], strides = [1, 1]} : vector<16x512xf32> to vector<16x128xf32>
    %1144 = math.tanh %1143 : vector<16x128xf32>
    %1145 = vector.extract_strided_slice %1126 {offsets = [0, 384], sizes = [16, 128], strides = [1, 1]} : vector<16x512xf32> to vector<16x128xf32>
    %cst_381 = arith.constant 5.000000e-01 : f32
    %1146 = vector.broadcast %cst_381 : f32 to vector<16x128xf32>
    %1147 = arith.mulf %1146, %1145 : vector<16x128xf32>
    %1148 = math.tanh %1147 : vector<16x128xf32>
    %cst_382 = arith.constant 1.000000e+00 : f32
    %1149 = vector.broadcast %cst_382 : f32 to vector<16x128xf32>
    %1150 = arith.addf %1148, %1149 : vector<16x128xf32>
    %cst_383 = arith.constant 5.000000e-01 : f32
    %1151 = vector.broadcast %cst_383 : f32 to vector<16x128xf32>
    %1152 = arith.mulf %1151, %1150 : vector<16x128xf32>
    %1153 = arith.mulf %1142, %1075 : vector<16x128xf32>
    %1154 = arith.mulf %1134, %1144 : vector<16x128xf32>
    %1155 = arith.addf %1153, %1154 : vector<16x128xf32>
    %1156 = math.tanh %1155 : vector<16x128xf32>
    %1157 = arith.mulf %1152, %1156 : vector<16x128xf32>
    %1158 = arith.truncf %1157 : vector<16x128xf32> to vector<16x128xbf16>
    %1159 = arith.index_cast %c5_i32_361 : i32 to index
    %c0_384 = arith.constant 0 : index
    %c0_385 = arith.constant 0 : index
    %1160 = vector.load %arg23[%1159, %c0_384, %c0_385] : memref<7x16x128xbf16, #tpu.memory_space<vmem>>, vector<1x16x128xbf16>
    %1161 = vector.shape_cast %1160 : vector<1x16x128xbf16> to vector<16x128xbf16>
    %1162 = vector.shape_cast %1158 : vector<16x128xbf16> to vector<1x16x128xbf16>
    tpu.vector_store %arg23[%1159, %c0_384, %c0_385], %1162 {strides = array<i32>} : memref<7x16x128xbf16, #tpu.memory_space<vmem>>, vector<1x16x128xbf16>,
    %1163 = vector.extract_strided_slice %1121 {offsets = [0, 0], sizes = [16, 512], strides = [1, 1]} : vector<16x1024xf32> to vector<16x512xf32>
    %c6_i32_386 = arith.constant 6 : i32
    %1164 = arith.index_cast %c6_i32_386 : i32 to index
    %c0_387 = arith.constant 0 : index
    %c0_388 = arith.constant 0 : index
    %1165 = vector.load %arg21[%1164, %c0_387, %c0_388] : memref<7x16x512xbf16, #tpu.memory_space<vmem>>, vector<1x16x512xbf16>
    %1166 = vector.shape_cast %1165 : vector<1x16x512xbf16> to vector<16x512xbf16>
    %1167 = arith.extf %1166 : vector<16x512xbf16> to vector<16x512xf32>
    %1168 = arith.addf %1167, %1163 : vector<16x512xf32>
    %1169 = vector.extract_strided_slice %1168 {offsets = [0, 0], sizes = [16, 128], strides = [1, 1]} : vector<16x512xf32> to vector<16x128xf32>
    %cst_389 = arith.constant 5.000000e-01 : f32
    %1170 = vector.broadcast %cst_389 : f32 to vector<16x128xf32>
    %1171 = arith.mulf %1170, %1169 : vector<16x128xf32>
    %1172 = math.tanh %1171 : vector<16x128xf32>
    %cst_390 = arith.constant 1.000000e+00 : f32
    %1173 = vector.broadcast %cst_390 : f32 to vector<16x128xf32>
    %1174 = arith.addf %1172, %1173 : vector<16x128xf32>
    %cst_391 = arith.constant 5.000000e-01 : f32
    %1175 = vector.broadcast %cst_391 : f32 to vector<16x128xf32>
    %1176 = arith.mulf %1175, %1174 : vector<16x128xf32>
    %1177 = vector.extract_strided_slice %1168 {offsets = [0, 128], sizes = [16, 128], strides = [1, 1]} : vector<16x512xf32> to vector<16x128xf32>
    %cst_392 = arith.constant 5.000000e-01 : f32
    %1178 = vector.broadcast %cst_392 : f32 to vector<16x128xf32>
    %1179 = arith.mulf %1178, %1177 : vector<16x128xf32>
    %1180 = math.tanh %1179 : vector<16x128xf32>
    %cst_393 = arith.constant 1.000000e+00 : f32
    %1181 = vector.broadcast %cst_393 : f32 to vector<16x128xf32>
    %1182 = arith.addf %1180, %1181 : vector<16x128xf32>
    %cst_394 = arith.constant 5.000000e-01 : f32
    %1183 = vector.broadcast %cst_394 : f32 to vector<16x128xf32>
    %1184 = arith.mulf %1183, %1182 : vector<16x128xf32>
    %1185 = vector.extract_strided_slice %1168 {offsets = [0, 256], sizes = [16, 128], strides = [1, 1]} : vector<16x512xf32> to vector<16x128xf32>
    %1186 = math.tanh %1185 : vector<16x128xf32>
    %1187 = vector.extract_strided_slice %1168 {offsets = [0, 384], sizes = [16, 128], strides = [1, 1]} : vector<16x512xf32> to vector<16x128xf32>
    %cst_395 = arith.constant 5.000000e-01 : f32
    %1188 = vector.broadcast %cst_395 : f32 to vector<16x128xf32>
    %1189 = arith.mulf %1188, %1187 : vector<16x128xf32>
    %1190 = math.tanh %1189 : vector<16x128xf32>
    %cst_396 = arith.constant 1.000000e+00 : f32
    %1191 = vector.broadcast %cst_396 : f32 to vector<16x128xf32>
    %1192 = arith.addf %1190, %1191 : vector<16x128xf32>
    %cst_397 = arith.constant 5.000000e-01 : f32
    %1193 = vector.broadcast %cst_397 : f32 to vector<16x128xf32>
    %1194 = arith.mulf %1193, %1192 : vector<16x128xf32>
    %1195 = arith.mulf %1184, %1117 : vector<16x128xf32>
    %1196 = arith.mulf %1176, %1186 : vector<16x128xf32>
    %1197 = arith.addf %1195, %1196 : vector<16x128xf32>
    %1198 = math.tanh %1197 : vector<16x128xf32>
    %1199 = arith.mulf %1194, %1198 : vector<16x128xf32>
    %1200 = arith.truncf %1199 : vector<16x128xf32> to vector<16x128xbf16>
    %cst_398 = arith.constant dense<0.000000e+00> : vector<16x1024xf32>
    %1201 = tpu.matmul %1200, %2, %cst_398 {dimension_numbers = #tpu.dot_dimension_numbers<[1], [0], [0], [1], [0, 0, 1, 1], [], []>} : vector<16x128xbf16>, vector<128x1024xbf16>, vector<16x1024xf32> -> vector<16x1024xf32>
    %1202 = vector.extract_strided_slice %1201 {offsets = [0, 512], sizes = [16, 512], strides = [1, 1]} : vector<16x1024xf32> to vector<16x512xf32>
    %1203 = arith.truncf %1157 : vector<16x128xf32> to vector<16x128xbf16>
    %cst_399 = arith.constant dense<0.000000e+00> : vector<16x512xf32>
    %1204 = tpu.matmul %1203, %3, %cst_399 {dimension_numbers = #tpu.dot_dimension_numbers<[1], [0], [0], [1], [0, 0, 1, 1], [], []>} : vector<16x128xbf16>, vector<128x512xbf16>, vector<16x512xf32> -> vector<16x512xf32>
    %1205 = arith.addf %1202, %1204 : vector<16x512xf32>
    %1206 = arith.addf %1205, %9 : vector<16x512xf32>
    %1207 = vector.extract_strided_slice %1206 {offsets = [0, 0], sizes = [16, 128], strides = [1, 1]} : vector<16x512xf32> to vector<16x128xf32>
    %cst_400 = arith.constant 5.000000e-01 : f32
    %1208 = vector.broadcast %cst_400 : f32 to vector<16x128xf32>
    %1209 = arith.mulf %1208, %1207 : vector<16x128xf32>
    %1210 = math.tanh %1209 : vector<16x128xf32>
    %cst_401 = arith.constant 1.000000e+00 : f32
    %1211 = vector.broadcast %cst_401 : f32 to vector<16x128xf32>
    %1212 = arith.addf %1210, %1211 : vector<16x128xf32>
    %cst_402 = arith.constant 5.000000e-01 : f32
    %1213 = vector.broadcast %cst_402 : f32 to vector<16x128xf32>
    %1214 = arith.mulf %1213, %1212 : vector<16x128xf32>
    %1215 = vector.extract_strided_slice %1206 {offsets = [0, 128], sizes = [16, 128], strides = [1, 1]} : vector<16x512xf32> to vector<16x128xf32>
    %cst_403 = arith.constant 5.000000e-01 : f32
    %1216 = vector.broadcast %cst_403 : f32 to vector<16x128xf32>
    %1217 = arith.mulf %1216, %1215 : vector<16x128xf32>
    %1218 = math.tanh %1217 : vector<16x128xf32>
    %cst_404 = arith.constant 1.000000e+00 : f32
    %1219 = vector.broadcast %cst_404 : f32 to vector<16x128xf32>
    %1220 = arith.addf %1218, %1219 : vector<16x128xf32>
    %cst_405 = arith.constant 5.000000e-01 : f32
    %1221 = vector.broadcast %cst_405 : f32 to vector<16x128xf32>
    %1222 = arith.mulf %1221, %1220 : vector<16x128xf32>
    %1223 = vector.extract_strided_slice %1206 {offsets = [0, 256], sizes = [16, 128], strides = [1, 1]} : vector<16x512xf32> to vector<16x128xf32>
    %1224 = math.tanh %1223 : vector<16x128xf32>
    %1225 = vector.extract_strided_slice %1206 {offsets = [0, 384], sizes = [16, 128], strides = [1, 1]} : vector<16x512xf32> to vector<16x128xf32>
    %cst_406 = arith.constant 5.000000e-01 : f32
    %1226 = vector.broadcast %cst_406 : f32 to vector<16x128xf32>
    %1227 = arith.mulf %1226, %1225 : vector<16x128xf32>
    %1228 = math.tanh %1227 : vector<16x128xf32>
    %cst_407 = arith.constant 1.000000e+00 : f32
    %1229 = vector.broadcast %cst_407 : f32 to vector<16x128xf32>
    %1230 = arith.addf %1228, %1229 : vector<16x128xf32>
    %cst_408 = arith.constant 5.000000e-01 : f32
    %1231 = vector.broadcast %cst_408 : f32 to vector<16x128xf32>
    %1232 = arith.mulf %1231, %1230 : vector<16x128xf32>
    %1233 = arith.mulf %1222, %1155 : vector<16x128xf32>
    %1234 = arith.mulf %1214, %1224 : vector<16x128xf32>
    %1235 = arith.addf %1233, %1234 : vector<16x128xf32>
    %1236 = math.tanh %1235 : vector<16x128xf32>
    %1237 = arith.mulf %1232, %1236 : vector<16x128xf32>
    %1238 = arith.truncf %1237 : vector<16x128xf32> to vector<16x128xbf16>
    %1239 = arith.index_cast %c6_i32_386 : i32 to index
    %c0_409 = arith.constant 0 : index
    %c0_410 = arith.constant 0 : index
    %1240 = vector.load %arg23[%1239, %c0_409, %c0_410] : memref<7x16x128xbf16, #tpu.memory_space<vmem>>, vector<1x16x128xbf16>
    %1241 = vector.shape_cast %1240 : vector<1x16x128xbf16> to vector<16x128xbf16>
    %1242 = vector.shape_cast %1238 : vector<16x128xbf16> to vector<1x16x128xbf16>
    tpu.vector_store %arg23[%1239, %c0_409, %c0_410], %1242 {strides = array<i32>} : memref<7x16x128xbf16, #tpu.memory_space<vmem>>, vector<1x16x128xbf16>,
    %1243 = vector.extract_strided_slice %1201 {offsets = [0, 0], sizes = [16, 512], strides = [1, 1]} : vector<16x1024xf32> to vector<16x512xf32>
    %c7_i32_411 = arith.constant 7 : i32
    tpu.wait_dma2 semaphore(%arg25 : memref<!tpu.dma_semaphore, #tpu.memory_space<semaphore_mem>>) src(%arg18 : memref<128x128xbf16, #tpu.memory_space<any>>) dst(%arg24 : memref<128x128xbf16, #tpu.memory_space<vmem>>)
    %c0_412 = arith.constant 0 : index
    %c0_413 = arith.constant 0 : index
    %c0_414 = arith.constant 0 : index
    %1244 = vector.load %arg23[%c0_412, %c0_413, %c0_414] : memref<7x16x128xbf16, #tpu.memory_space<vmem>>, vector<7x16x128xbf16>
    %1245 = vector.shape_cast %1244 : vector<7x16x128xbf16> to vector<112x128xbf16>
    %c0_415 = arith.constant 0 : index
    %c0_416 = arith.constant 0 : index
    %1246 = vector.load %arg24[%c0_415, %c0_416] : memref<128x128xbf16, #tpu.memory_space<vmem>>, vector<128x128xbf16>
    %cst_417 = arith.constant dense<0.000000e+00> : vector<112x128xf32>
    %1247 = tpu.matmul %1245, %1246, %cst_417 {dimension_numbers = #tpu.dot_dimension_numbers<[1], [0], [0], [1], [0, 0, 1, 1], [], []>} : vector<112x128xbf16>, vector<128x128xbf16>, vector<112x128xf32> -> vector<112x128xf32>
    %c0_418 = arith.constant 0 : index
    %c0_419 = arith.constant 0 : index
    %1248 = vector.load %arg17[%c0_418, %c0_419] : memref<1x128xf32, #tpu.memory_space<vmem>>, vector<1x128xf32>
    %1249 = vector.broadcast %1248 : vector<1x128xf32> to vector<112x128xf32>
    %1250 = arith.addf %1247, %1249 : vector<112x128xf32>
    %cst_420 = arith.constant dense<0xFF800000> : vector<112xf32>
    %1251 = vector.multi_reduction <maximumf>, %1250, %cst_420 [1] : vector<112x128xf32> to vector<112xf32>
    %1252 = vector.shape_cast %1251 : vector<112xf32> to vector<112x1xf32>
    %1253 = vector.broadcast %1252 : vector<112x1xf32> to vector<112x128xf32>
    %1254 = arith.subf %1250, %1253 : vector<112x128xf32>
    %1255 = math.exp %1254 : vector<112x128xf32>
    %cst_421 = arith.constant dense<0.000000e+00> : vector<112xf32>
    %1256 = vector.multi_reduction <add>, %1255, %cst_421 [1] : vector<112x128xf32> to vector<112xf32>
    %1257 = vector.shape_cast %1256 : vector<112xf32> to vector<112x1xf32>
    %1258 = math.log %1257 : vector<112x1xf32>
    %1259 = arith.addf %1252, %1258 : vector<112x1xf32>
    %c0_422 = arith.constant 0 : index
    %c0_423 = arith.constant 0 : index
    %c0_424 = arith.constant 0 : index
    %1260 = vector.load %arg5[%c0_422, %c0_423, %c0_424] : memref<7x16x1xi32, #tpu.memory_space<vmem>>, vector<7x16x1xi32>
    %1261 = vector.shape_cast %1260 : vector<7x16x1xi32> to vector<112x1xi32>
    %1262 = tpu.iota {dimensions = array<i32: 1>} : vector<112x128xi32>
    %1263 = vector.broadcast %1261 : vector<112x1xi32> to vector<112x128xi32>
    %1264 = arith.cmpi eq, %1262, %1263 : vector<112x128xi32>
    %cst_425 = arith.constant 0.000000e+00 : f32
    %1265 = vector.broadcast %cst_425 : f32 to vector<112x128xf32>
    %1266 = arith.select %1264, %1250, %1265 : vector<112x128xi1>, vector<112x128xf32>
    %cst_426 = arith.constant dense<0.000000e+00> : vector<112xf32>
    %1267 = vector.multi_reduction <add>, %1266, %cst_426 [1] : vector<112x128xf32> to vector<112xf32>
    %1268 = vector.shape_cast %1267 : vector<112xf32> to vector<112x1xf32>
    %1269 = arith.subf %1259, %1268 : vector<112x1xf32>
    %c0_427 = arith.constant 0 : index
    %c0_428 = arith.constant 0 : index
    %c0_429 = arith.constant 0 : index
    %1270 = vector.load %arg4[%c0_427, %c0_428, %c0_429] : memref<7x16x1xf32, #tpu.memory_space<vmem>>, vector<7x16x1xf32>
    %1271 = vector.shape_cast %1270 : vector<7x16x1xf32> to vector<112x1xf32>
    %1272 = arith.mulf %1269, %1271 : vector<112x1xf32>
    %1273 = vector.shape_cast %1272 : vector<112x1xf32> to vector<1x112x1xf32>
    %cst_430 = arith.constant dense<0.000000e+00> : vector<1xf32>
    %1274 = vector.multi_reduction <add>, %1273, %cst_430 [1, 2] : vector<1x112x1xf32> to vector<1xf32>
    %1275 = vector.shape_cast %1274 : vector<1xf32> to vector<1x1x1xf32>
    %1276 = vector.extract %1275[0, 0, 0] : f32 from vector<1x1x1xf32>
    %1277 = vector.broadcast %1276 : f32 to vector<1x1xf32>
    %1278 = vector.shape_cast %1271 : vector<112x1xf32> to vector<1x112x1xf32>
    %cst_431 = arith.constant dense<0.000000e+00> : vector<1xf32>
    %1279 = vector.multi_reduction <add>, %1278, %cst_431 [1, 2] : vector<1x112x1xf32> to vector<1xf32>
    %1280 = vector.shape_cast %1279 : vector<1xf32> to vector<1x1x1xf32>
    %1281 = vector.extract %1280[0, 0, 0] : f32 from vector<1x1x1xf32>
    %1282 = vector.broadcast %1281 : f32 to vector<1x1xf32>
    %1283 = tpu.iota {dimensions = array<i32: 1>} : vector<8x128xi32>
    %cst_432 = arith.constant 0.000000e+00 : f32
    %1284 = vector.broadcast %cst_432 : f32 to vector<8x128xf32>
    %c0_i32_433 = arith.constant 0 : i32
    %1285 = vector.broadcast %c0_i32_433 : i32 to vector<8x128xi32>
    %1286 = arith.cmpi eq, %1283, %1285 : vector<8x128xi32>
    %c1_i32_434 = arith.constant 1 : i32
    %1287 = vector.broadcast %c1_i32_434 : i32 to vector<8x128xi32>
    %1288 = arith.cmpi eq, %1283, %1287 : vector<8x128xi32>
    %1289 = vector.shape_cast %1282 : vector<1x1xf32> to vector<1x1xf32>
    %1290 = vector.broadcast %1289 : vector<1x1xf32> to vector<8x128xf32>
    %1291 = arith.select %1288, %1290, %1284 : vector<8x128xi1>, vector<8x128xf32>
    %1292 = vector.shape_cast %1277 : vector<1x1xf32> to vector<1x1xf32>
    %1293 = vector.broadcast %1292 : vector<1x1xf32> to vector<8x128xf32>
    %1294 = arith.select %1286, %1293, %1291 : vector<8x128xi1>, vector<8x128xf32>
    %c0_435 = arith.constant 0 : index
    %c0_436 = arith.constant 0 : index
    %1295 = vector.load %arg19[%c0_435, %c0_436] : memref<8x128xf32, #tpu.memory_space<vmem>>, vector<8x128xf32>
    tpu.vector_store %arg19[%c0_435, %c0_436], %1294 {strides = array<i32>} : memref<8x128xf32, #tpu.memory_space<vmem>>, vector<8x128xf32>,
    return
  }
  func.func @transform_0(%arg0: i32) -> (i32, i32, i32) {
    %c0_i32 = arith.constant 0 : i32
    %c0_i32_0 = arith.constant 0 : i32
    %c0_i32_1 = arith.constant 0 : i32
    return %c0_i32, %arg0, %c0_i32_0 : i32, i32, i32
  }
  func.func @transform_1(%arg0: i32) -> (i32, i32, i32) {
    %c0_i32 = arith.constant 0 : i32
    %c0_i32_0 = arith.constant 0 : i32
    %c0_i32_1 = arith.constant 0 : i32
    return %c0_i32, %arg0, %c0_i32_0 : i32, i32, i32
  }
  func.func @transform_2(%arg0: i32) -> (i32, i32, i32) {
    %c0_i32 = arith.constant 0 : i32
    %c0_i32_0 = arith.constant 0 : i32
    %c0_i32_1 = arith.constant 0 : i32
    return %c0_i32, %arg0, %c0_i32_0 : i32, i32, i32
  }
  func.func @transform_3(%arg0: i32) -> (i32, i32, i32) {
    %c0_i32 = arith.constant 0 : i32
    %c0_i32_0 = arith.constant 0 : i32
    %c0_i32_1 = arith.constant 0 : i32
    return %c0_i32, %arg0, %c0_i32_0 : i32, i32, i32
  }
  func.func @transform_4(%arg0: i32) -> (i32, i32, i32) {
    %c0_i32 = arith.constant 0 : i32
    %c0_i32_0 = arith.constant 0 : i32
    %c0_i32_1 = arith.constant 0 : i32
    return %c0_i32, %arg0, %c0_i32_0 : i32, i32, i32
  }
  func.func @transform_5(%arg0: i32) -> (i32, i32) {
    %c0_i32 = arith.constant 0 : i32
    %c0_i32_0 = arith.constant 0 : i32
    %c0_i32_1 = arith.constant 0 : i32
    return %c0_i32, %c0_i32_0 : i32, i32
  }
  func.func @transform_6(%arg0: i32) -> (i32, i32) {
    %c0_i32 = arith.constant 0 : i32
    %c0_i32_0 = arith.constant 0 : i32
    %c0_i32_1 = arith.constant 0 : i32
    return %c0_i32, %c0_i32_0 : i32, i32
  }
  func.func @transform_7(%arg0: i32) -> (i32, i32) {
    %c0_i32 = arith.constant 0 : i32
    %c0_i32_0 = arith.constant 0 : i32
    %c0_i32_1 = arith.constant 0 : i32
    return %c0_i32, %c0_i32_0 : i32, i32
  }
  func.func @transform_8(%arg0: i32) -> (i32, i32) {
    %c0_i32 = arith.constant 0 : i32
    %c0_i32_0 = arith.constant 0 : i32
    %c0_i32_1 = arith.constant 0 : i32
    return %c0_i32, %c0_i32_0 : i32, i32
  }
  func.func @transform_9(%arg0: i32) -> (i32, i32) {
    %c0_i32 = arith.constant 0 : i32
    %c0_i32_0 = arith.constant 0 : i32
    %c0_i32_1 = arith.constant 0 : i32
    return %c0_i32, %c0_i32_0 : i32, i32
  }
  func.func @transform_10(%arg0: i32) -> (i32, i32) {
    %c0_i32 = arith.constant 0 : i32
    %c0_i32_0 = arith.constant 0 : i32
    %c0_i32_1 = arith.constant 0 : i32
    return %c0_i32, %c0_i32_0 : i32, i32
  }
  func.func @transform_11(%arg0: i32) -> (i32, i32) {
    %c0_i32 = arith.constant 0 : i32
    %c0_i32_0 = arith.constant 0 : i32
    %c0_i32_1 = arith.constant 0 : i32
    return %c0_i32, %c0_i32_0 : i32, i32
  }
  func.func @transform_12(%arg0: i32) -> (i32, i32) {
    %c0_i32 = arith.constant 0 : i32
    %c0_i32_0 = arith.constant 0 : i32
    %c0_i32_1 = arith.constant 0 : i32
    return %c0_i32, %c0_i32_0 : i32, i32
  }
  func.func @transform_13(%arg0: i32) -> (i32, i32) {
    %c0_i32 = arith.constant 0 : i32
    %c0_i32_0 = arith.constant 0 : i32
    %c0_i32_1 = arith.constant 0 : i32
    return %c0_i32, %c0_i32_0 : i32, i32
  }
  func.func @transform_14(%arg0: i32) -> (i32, i32) {
    %c0_i32 = arith.constant 0 : i32
    %c0_i32_0 = arith.constant 0 : i32
    %c0_i32_1 = arith.constant 0 : i32
    return %c0_i32, %c0_i32_0 : i32, i32
  }
  func.func @transform_15(%arg0: i32) -> (i32, i32) {
    %c0_i32 = arith.constant 0 : i32
    %c0_i32_0 = arith.constant 0 : i32
    %c0_i32_1 = arith.constant 0 : i32
    return %c0_i32, %c0_i32_0 : i32, i32
  }
  func.func @transform_16(%arg0: i32) -> (i32, i32) {
    %c0_i32 = arith.constant 0 : i32
    %c0_i32_0 = arith.constant 0 : i32
    %c0_i32_1 = arith.constant 0 : i32
    return %c0_i32, %c0_i32_0 : i32, i32
  }
  func.func @transform_18(%arg0: i32) -> (i32, i32) {
    %c0_i32 = arith.constant 0 : i32
    %c0_i32_0 = arith.constant 0 : i32
    return %arg0, %c0_i32 : i32, i32
  }
}

</mosaic_0001>

<llo_original>
// kernel: seq2seq_forward.1
$region0: #{seq2seq_forward.1}
  #allocation0 [shape = 'u32[]', space=smem, size = 0x4, offset = 0x4, fixed_abs, tag = 'smem constant byte address 0x4 - core index']
  #allocation1 [shape = 'u32[144,128]{1,0:T(1,128)}', space=vmem, size = 0x12000, scoped, tag = 'internal scratch']
  #allocation2 [shape = 'bf16[8,16,512]{2,1,0:T(8,128)(2,1)}', space=vmem, size = 0x20000, scoped, tag = 'scratch operand']
  #allocation3 [shape = 'bf16[7,16,512]{2,1,0:T(8,128)(2,1)}', space=vmem, size = 0x1c000, scoped, tag = 'scratch operand']
  #allocation4 [shape = 'bf16[8,16,128]{2,1,0:T(8,128)(2,1)}', space=vmem, size = 0x8000, scoped, tag = 'scratch operand']
  #allocation5 [shape = 'bf16[7,16,128]{2,1,0:T(8,128)(2,1)}', space=vmem, size = 0x7000, scoped, tag = 'scratch operand']
  #allocation6 [shape = 'bf16[128,128]{1,0:T(8,128)(2,1)}', space=vmem, size = 0x8000, scoped, tag = 'scratch operand']
  #allocation7 [shape = 's32[1]{0}', space=sflag, size = 0x4, scoped, tag = 'scratch operand']
  #allocation8 [shape = 's32[]', space=sflag, size = 0x4, offset = 0, fixed_abs, tag = 'sflag constant byte address 0x0 - dummy sync flag']
  %s0 = inlined_call_operand.vmem [shape: bf16[8,16,128], index: 0, kind: input, shape index: {}]
  %s1 = inlined_call_operand.vmem [shape: bf16[7,16,128], index: 1, kind: input, shape index: {}]
  %s2 = inlined_call_operand.vmem [shape: f32[8,16,1], index: 2, kind: input, shape index: {}]
  %s3 = inlined_call_operand.vmem [shape: f32[7,16,1], index: 3, kind: input, shape index: {}]
  %s4 = inlined_call_operand.vmem [shape: s32[7,16,1], index: 4, kind: input, shape index: {}]
  %s5 = inlined_call_operand.vmem [shape: bf16[128,512], index: 5, kind: input, shape index: {}]
  %s6 = inlined_call_operand.vmem [shape: bf16[128,1024], index: 6, kind: input, shape index: {}]
  %s7 = inlined_call_operand.vmem [shape: bf16[128,512], index: 7, kind: input, shape index: {}]
  %s8 = inlined_call_operand.vmem [shape: f32[1,512], index: 8, kind: input, shape index: {}]
  %s9 = inlined_call_operand.vmem [shape: f32[1,512], index: 9, kind: input, shape index: {}]
  %s10 = inlined_call_operand.vmem [shape: bf16[128,512], index: 10, kind: input, shape index: {}]
  %s11 = inlined_call_operand.vmem [shape: bf16[128,512], index: 11, kind: input, shape index: {}]
  %s12 = inlined_call_operand.vmem [shape: bf16[128,1024], index: 12, kind: input, shape index: {}]
  %s13 = inlined_call_operand.vmem [shape: bf16[128,512], index: 13, kind: input, shape index: {}]
  %s14 = inlined_call_operand.vmem [shape: f32[1,512], index: 14, kind: input, shape index: {}]
  %s15 = inlined_call_operand.vmem [shape: f32[1,512], index: 15, kind: input, shape index: {}]
  %s16 = inlined_call_operand.vmem [shape: f32[1,128], index: 16, kind: input, shape index: {}]
  %s17 = inlined_call_operand.vmem [shape: bf16[128,128], index: 17, kind: input, shape index: {}]
  %s18 = inlined_call_operand.vmem [shape: f32[8,128], index: 18, kind: output, shape index: {}]
  %s19 = sld [smem:[#allocation0]]
  $region112: #{seq2seq_forward.1} parent=0
    _
  %s21 = ssub.s32 1, %s19
  %s22 = scalar_select 0, %s21, %s19
  // Predicated region
  $region2: #{seq2seq_forward.1} parent=0 // pred_check
    _
  $region3: #{seq2seq_forward.1} parent=0 // pred_check_branch
    %24 = sbr.rel (0) target = $region5
  $region4: #{seq2seq_forward.1} parent=0 // pred_region
    _
  $region5: #{seq2seq_forward.1} parent=0 // pred_fallthru
    _
  // Predicated region
  $region6: #{seq2seq_forward.1} parent=0 // pred_check
    _
  $region7: #{seq2seq_forward.1} parent=0 // pred_check_branch
    %26 = sbr.rel (0) target = $region9
  $region8: #{seq2seq_forward.1} parent=0 // pred_region
    _
  $region9: #{seq2seq_forward.1} parent=0 // pred_fallthru
    _
  // Predicated region
  $region10: #{seq2seq_forward.1} parent=0 // pred_check
    _
  $region11: #{seq2seq_forward.1} parent=0 // pred_check_branch
    %28 = sbr.rel (0) target = $region13
  $region12: #{seq2seq_forward.1} parent=0 // pred_region
    _
  $region13: #{seq2seq_forward.1} parent=0 // pred_fallthru
    _
  // Predicated region
  $region14: #{seq2seq_forward.1} parent=0 // pred_check
    _
  $region15: #{seq2seq_forward.1} parent=0 // pred_check_branch
    %30 = sbr.rel (0) target = $region17
  $region16: #{seq2seq_forward.1} parent=0 // pred_region
    _
  $region17: #{seq2seq_forward.1} parent=0 // pred_fallthru
    _
  // Predicated region
  $region18: #{seq2seq_forward.1} parent=0 // pred_check
    _
  $region19: #{seq2seq_forward.1} parent=0 // pred_check_branch
    %32 = sbr.rel (0) target = $region21
  $region20: #{seq2seq_forward.1} parent=0 // pred_region
    _
  $region21: #{seq2seq_forward.1} parent=0 // pred_fallthru
    _
  // Predicated region
  $region22: #{seq2seq_forward.1} parent=0 // pred_check
    _
  $region23: #{seq2seq_forward.1} parent=0 // pred_check_branch
    %34 = sbr.rel (0) target = $region25
  $region24: #{seq2seq_forward.1} parent=0 // pred_region
    _
  $region25: #{seq2seq_forward.1} parent=0 // pred_fallthru
    _
  // Predicated region
  $region26: #{seq2seq_forward.1} parent=0 // pred_check
    _
  $region27: #{seq2seq_forward.1} parent=0 // pred_check_branch
    %36 = sbr.rel (0) target = $region29
  $region28: #{seq2seq_forward.1} parent=0 // pred_region
    _
  $region29: #{seq2seq_forward.1} parent=0 // pred_fallthru
    _
  // Predicated region
  $region30: #{seq2seq_forward.1} parent=0 // pred_check
    _
  $region31: #{seq2seq_forward.1} parent=0 // pred_check_branch
    %38 = sbr.rel (0) target = $region33
  $region32: #{seq2seq_forward.1} parent=0 // pred_region
    _
  $region33: #{seq2seq_forward.1} parent=0 // pred_fallthru
    _
  // Predicated region
  $region34: #{seq2seq_forward.1} parent=0 // pred_check
    _
  $region35: #{seq2seq_forward.1} parent=0 // pred_check_branch
    %40 = sbr.rel (0) target = $region37
  $region36: #{seq2seq_forward.1} parent=0 // pred_region
    _
  $region37: #{seq2seq_forward.1} parent=0 // pred_fallthru
    _
  // Predicated region
  $region38: #{seq2seq_forward.1} parent=0 // pred_check
    _
  $region39: #{seq2seq_forward.1} parent=0 // pred_check_branch
    %42 = sbr.rel (0) target = $region41
  $region40: #{seq2seq_forward.1} parent=0 // pred_region
    _
  $region41: #{seq2seq_forward.1} parent=0 // pred_fallthru
    _
  // Predicated region
  $region42: #{seq2seq_forward.1} parent=0 // pred_check
    _
  $region43: #{seq2seq_forward.1} parent=0 // pred_check_branch
    %44 = sbr.rel (0) target = $region45
  $region44: #{seq2seq_forward.1} parent=0 // pred_region
    _
  $region45: #{seq2seq_forward.1} parent=0 // pred_fallthru
    _
  // Predicated region
  $region46: #{seq2seq_forward.1} parent=0 // pred_check
    _
  $region47: #{seq2seq_forward.1} parent=0 // pred_check_branch
    %46 = sbr.rel (0) target = $region49
  $region48: #{seq2seq_forward.1} parent=0 // pred_region
    _
  $region49: #{seq2seq_forward.1} parent=0 // pred_fallthru
    _
  // Predicated region
  $region50: #{seq2seq_forward.1} parent=0 // pred_check
    _
  $region51: #{seq2seq_forward.1} parent=0 // pred_check_branch
    %48 = sbr.rel (0) target = $region53
  $region52: #{seq2seq_forward.1} parent=0 // pred_region
    _
  $region53: #{seq2seq_forward.1} parent=0 // pred_fallthru
    _
  // Predicated region
  $region54: #{seq2seq_forward.1} parent=0 // pred_check
    _
  $region55: #{seq2seq_forward.1} parent=0 // pred_check_branch
    %50 = sbr.rel (0) target = $region57
  $region56: #{seq2seq_forward.1} parent=0 // pred_region
    _
  $region57: #{seq2seq_forward.1} parent=0 // pred_fallthru
    _
  // Predicated region
  $region58: #{seq2seq_forward.1} parent=0 // pred_check
    _
  $region59: #{seq2seq_forward.1} parent=0 // pred_check_branch
    %52 = sbr.rel (0) target = $region61
  $region60: #{seq2seq_forward.1} parent=0 // pred_region
    _
  $region61: #{seq2seq_forward.1} parent=0 // pred_fallthru
    _
  // Predicated region
  $region62: #{seq2seq_forward.1} parent=0 // pred_check
    _
  $region63: #{seq2seq_forward.1} parent=0 // pred_check_branch
    %54 = sbr.rel (0) target = $region65
  $region64: #{seq2seq_forward.1} parent=0 // pred_region
    _
  $region65: #{seq2seq_forward.1} parent=0 // pred_fallthru
    _
  // Predicated region
  $region66: #{seq2seq_forward.1} parent=0 // pred_check
    _
  $region67: #{seq2seq_forward.1} parent=0 // pred_check_branch
    %56 = sbr.rel (0) target = $region69
  $region68: #{seq2seq_forward.1} parent=0 // pred_region
    _
  $region69: #{seq2seq_forward.1} parent=0 // pred_fallthru
    _
  %p59 = scmp.lt.u32.totalorder 64, 8
  %p60 = pneg %p59
  // Predicated region
  $region70: #{seq2seq_forward.1} parent=0 // pred_check
    _
  $region71: #{seq2seq_forward.1} parent=0 // pred_check_branch
    %62 = sbr.rel (%p59) target = $region73
  $region72: #{seq2seq_forward.1} parent=0 // pred_region
    %s78 = sand.u32 64, 7
    %p79 = scmp.eq.s32.totalorder %s78, 0
    // Predicated region
    $region85: #{seq2seq_forward.1} parent=72 // pred_check
      %p80 = pneg %p79
    $region86: #{seq2seq_forward.1} parent=72 // pred_check_branch
      %82 = sbr.rel (%p80) target = $region88
    $region87: #{seq2seq_forward.1} parent=72 // pred_region
      loop: start=0, step=1, limit=1
      $region89: #{seq2seq_forward.1} parent=87 // loop_pre_header
        _
      $region90: #{seq2seq_forward.1} parent=87 // loop_header
        %s84 = sphi 0, %s88
        %p85 = scmp.ge.s32.totalorder %s84, 1
        %s89 = sphi %s17, %s17
        %s90 = sphi [#allocation6], [#allocation6]
      $region91: #{seq2seq_forward.1} parent=87 // loop_header_branch
        %87 = sbr.rel (%p85) target = $region95
      $region92: #{seq2seq_forward.1} parent=87 // loop_body
        %v91 = vld [vmem:[%s89] sm:$0xff]
        %92 = vst [vmem:[%s90] sm:$0xff] %v91
        %v93 = vld [vmem:[%s89 + $0x8] sm:$0xff]
        %94 = vst [vmem:[%s90 + $0x8] sm:$0xff] %v93
        %v95 = vld [vmem:[%s89 + $0x10] sm:$0xff]
        %96 = vst [vmem:[%s90 + $0x10] sm:$0xff] %v95
        %v97 = vld [vmem:[%s89 + $0x18] sm:$0xff]
        %98 = vst [vmem:[%s90 + $0x18] sm:$0xff] %v97
        %v99 = vld [vmem:[%s89 + $0x20] sm:$0xff]
        %100 = vst [vmem:[%s90 + $0x20] sm:$0xff] %v99
        %v101 = vld [vmem:[%s89 + $0x28] sm:$0xff]
        %102 = vst [vmem:[%s90 + $0x28] sm:$0xff] %v101
        %v103 = vld [vmem:[%s89 + $0x30] sm:$0xff]
        %104 = vst [vmem:[%s90 + $0x30] sm:$0xff] %v103
        %v105 = vld [vmem:[%s89 + $0x38] sm:$0xff]
        %106 = vst [vmem:[%s90 + $0x38] sm:$0xff] %v105
      $region93: #{seq2seq_forward.1} parent=87 // loop_footer
        %s88 = sadd.s32 1, %s84
      $region94: #{seq2seq_forward.1} parent=87 // loop_footer_branch
        %83 = sbr.rel target = $region90
      $region95: #{seq2seq_forward.1} parent=87 // loop_exit
        _
    $region88: #{seq2seq_forward.1} parent=72 // pred_fallthru
      _
    %p107 = pneg %p79
    // Predicated region
    $region96: #{seq2seq_forward.1} parent=72 // pred_check
      _
    $region97: #{seq2seq_forward.1} parent=72 // pred_check_branch
      %109 = sbr.rel (%p79) target = $region99
    $region98: #{seq2seq_forward.1} parent=72 // pred_region
      %s110 = sand.u32 64, 7
    $region99: #{seq2seq_forward.1} parent=72 // pred_fallthru
      _
  $region73: #{seq2seq_forward.1} parent=0 // pred_fallthru
    _
  // Predicated region
  $region74: #{seq2seq_forward.1} parent=0 // pred_check
    %p63 = pneg %p59
  $region75: #{seq2seq_forward.1} parent=0 // pred_check_branch
    %65 = sbr.rel (%p63) target = $region77
  $region76: #{seq2seq_forward.1} parent=0 // pred_region
    %s66 = sshll.u32 1, 64
    %s67 = ssub.s32 %s66, 1
    loop: start=0, step=1, limit=1
    $region78: #{seq2seq_forward.1} parent=76 // loop_pre_header
      _
    $region79: #{seq2seq_forward.1} parent=76 // loop_header
      %s69 = sphi 0, %s73
      %p70 = scmp.ge.s32.totalorder %s69, 1
      %s74 = sphi %s17, %s17
      %s75 = sphi [#allocation6], [#allocation6]
    $region80: #{seq2seq_forward.1} parent=76 // loop_header_branch
      %72 = sbr.rel (%p70) target = $region84
    $region81: #{seq2seq_forward.1} parent=76 // loop_body
      %v76 = vld [vmem:[%s74] sm:%s67]
      %77 = vst [vmem:[%s75] sm:%s67] %v76
    $region82: #{seq2seq_forward.1} parent=76 // loop_footer
      %s73 = sadd.s32 1, %s69
    $region83: #{seq2seq_forward.1} parent=76 // loop_footer_branch
      %68 = sbr.rel target = $region79
    $region84: #{seq2seq_forward.1} parent=76 // loop_exit
      _
  $region77: #{seq2seq_forward.1} parent=0 // pred_fallthru
    _
  // Predicated region
  $region100: #{seq2seq_forward.1} parent=0 // pred_check
    _
  $region101: #{seq2seq_forward.1} parent=0 // pred_check_branch
    %113 = sbr.rel (0) target = $region103
  $region102: #{seq2seq_forward.1} parent=0 // pred_region
    %114 = vsyncadd [#allocation7], 1024
  $region103: #{seq2seq_forward.1} parent=0 // pred_fallthru
    _
  %v115 = vld [vmem:[%s6] sm:$0xff]
  %v116 = vld [vmem:[%s6 + $0x8] sm:$0xff]
  %v117 = vld [vmem:[%s6 + $0x10] sm:$0xff]
  %v118 = vld [vmem:[%s6 + $0x18] sm:$0xff]
  %v119 = vld [vmem:[%s6 + $0x20] sm:$0xff]
  %v120 = vld [vmem:[%s6 + $0x28] sm:$0xff]
  %v121 = vld [vmem:[%s6 + $0x30] sm:$0xff]
  %v122 = vld [vmem:[%s6 + $0x38] sm:$0xff]
  %v123 = vld [vmem:[%s6 + $0x40] sm:$0xff]
  %v124 = vld [vmem:[%s6 + $0x48] sm:$0xff]
  %v125 = vld [vmem:[%s6 + $0x50] sm:$0xff]
  %v126 = vld [vmem:[%s6 + $0x58] sm:$0xff]
  %v127 = vld [vmem:[%s6 + $0x60] sm:$0xff]
  %v128 = vld [vmem:[%s6 + $0x68] sm:$0xff]
  %v129 = vld [vmem:[%s6 + $0x70] sm:$0xff]
  %v130 = vld [vmem:[%s6 + $0x78] sm:$0xff]
  %v131 = vld [vmem:[%s6 + $0x80] sm:$0xff]
  %v132 = vld [vmem:[%s6 + $0x88] sm:$0xff]
  %v133 = vld [vmem:[%s6 + $0x90] sm:$0xff]
  %v134 = vld [vmem:[%s6 + $0x98] sm:$0xff]
  %v135 = vld [vmem:[%s6 + $0xa0] sm:$0xff]
  %v136 = vld [vmem:[%s6 + $0xa8] sm:$0xff]
  %v137 = vld [vmem:[%s6 + $0xb0] sm:$0xff]
  %v138 = vld [vmem:[%s6 + $0xb8] sm:$0xff]
  %v139 = vld [vmem:[%s6 + $0xc0] sm:$0xff]
  %v140 = vld [vmem:[%s6 + $0xc8] sm:$0xff]
  %v141 = vld [vmem:[%s6 + $0xd0] sm:$0xff]
  %v142 = vld [vmem:[%s6 + $0xd8] sm:$0xff]
  %v143 = vld [vmem:[%s6 + $0xe0] sm:$0xff]
  %v144 = vld [vmem:[%s6 + $0xe8] sm:$0xff]
  %v145 = vld [vmem:[%s6 + $0xf0] sm:$0xff]
  %v146 = vld [vmem:[%s6 + $0xf8] sm:$0xff]
  %v147 = vld [vmem:[%s6 + $0x100] sm:$0xff]
  %v148 = vld [vmem:[%s6 + $0x108] sm:$0xff]
  %v149 = vld [vmem:[%s6 + $0x110] sm:$0xff]
  %v150 = vld [vmem:[%s6 + $0x118] sm:$0xff]
  %v151 = vld [vmem:[%s6 + $0x120] sm:$0xff]
  %v152 = vld [vmem:[%s6 + $0x128] sm:$0xff]
  %v153 = vld [vmem:[%s6 + $0x130] sm:$0xff]
  %v154 = vld [vmem:[%s6 + $0x138] sm:$0xff]
  %v155 = vld [vmem:[%s6 + $0x140] sm:$0xff]
  %v156 = vld [vmem:[%s6 + $0x148] sm:$0xff]
  %v157 = vld [vmem:[%s6 + $0x150] sm:$0xff]
  %v158 = vld [vmem:[%s6 + $0x158] sm:$0xff]
  %v159 = vld [vmem:[%s6 + $0x160] sm:$0xff]
  %v160 = vld [vmem:[%s6 + $0x168] sm:$0xff]
  %v161 = vld [vmem:[%s6 + $0x170] sm:$0xff]
  %v162 = vld [vmem:[%s6 + $0x178] sm:$0xff]
  %v163 = vld [vmem:[%s6 + $0x180] sm:$0xff]
  %v164 = vld [vmem:[%s6 + $0x188] sm:$0xff]
  %v165 = vld [vmem:[%s6 + $0x190] sm:$0xff]
  %v166 = vld [vmem:[%s6 + $0x198] sm:$0xff]
  %v167 = vld [vmem:[%s6 + $0x1a0] sm:$0xff]
  %v168 = vld [vmem:[%s6 + $0x1a8] sm:$0xff]
  %v169 = vld [vmem:[%s6 + $0x1b0] sm:$0xff]
  %v170 = vld [vmem:[%s6 + $0x1b8] sm:$0xff]
  %v171 = vld [vmem:[%s6 + $0x1c0] sm:$0xff]
  %v172 = vld [vmem:[%s6 + $0x1c8] sm:$0xff]
  %v173 = vld [vmem:[%s6 + $0x1d0] sm:$0xff]
  %v174 = vld [vmem:[%s6 + $0x1d8] sm:$0xff]
  %v175 = vld [vmem:[%s6 + $0x1e0] sm:$0xff]
  %v176 = vld [vmem:[%s6 + $0x1e8] sm:$0xff]
  %v177 = vld [vmem:[%s6 + $0x1f0] sm:$0xff]
  %v178 = vld [vmem:[%s6 + $0x1f8] sm:$0xff]
  %v179 = vld [vmem:[%s7] sm:$0xff]
  %v180 = vld [vmem:[%s7 + $0x8] sm:$0xff]
  %v181 = vld [vmem:[%s7 + $0x10] sm:$0xff]
  %v182 = vld [vmem:[%s7 + $0x18] sm:$0xff]
  %v183 = vld [vmem:[%s7 + $0x20] sm:$0xff]
  %v184 = vld [vmem:[%s7 + $0x28] sm:$0xff]
  %v185 = vld [vmem:[%s7 + $0x30] sm:$0xff]
  %v186 = vld [vmem:[%s7 + $0x38] sm:$0xff]
  %v187 = vld [vmem:[%s7 + $0x40] sm:$0xff]
  %v188 = vld [vmem:[%s7 + $0x48] sm:$0xff]
  %v189 = vld [vmem:[%s7 + $0x50] sm:$0xff]
  %v190 = vld [vmem:[%s7 + $0x58] sm:$0xff]
  %v191 = vld [vmem:[%s7 + $0x60] sm:$0xff]
  %v192 = vld [vmem:[%s7 + $0x68] sm:$0xff]
  %v193 = vld [vmem:[%s7 + $0x70] sm:$0xff]
  %v194 = vld [vmem:[%s7 + $0x78] sm:$0xff]
  %v195 = vld [vmem:[%s7 + $0x80] sm:$0xff]
  %v196 = vld [vmem:[%s7 + $0x88] sm:$0xff]
  %v197 = vld [vmem:[%s7 + $0x90] sm:$0xff]
  %v198 = vld [vmem:[%s7 + $0x98] sm:$0xff]
  %v199 = vld [vmem:[%s7 + $0xa0] sm:$0xff]
  %v200 = vld [vmem:[%s7 + $0xa8] sm:$0xff]
  %v201 = vld [vmem:[%s7 + $0xb0] sm:$0xff]
  %v202 = vld [vmem:[%s7 + $0xb8] sm:$0xff]
  %v203 = vld [vmem:[%s7 + $0xc0] sm:$0xff]
  %v204 = vld [vmem:[%s7 + $0xc8] sm:$0xff]
  %v205 = vld [vmem:[%s7 + $0xd0] sm:$0xff]
  %v206 = vld [vmem:[%s7 + $0xd8] sm:$0xff]
  %v207 = vld [vmem:[%s7 + $0xe0] sm:$0xff]
  %v208 = vld [vmem:[%s7 + $0xe8] sm:$0xff]
  %v209 = vld [vmem:[%s7 + $0xf0] sm:$0xff]
  %v210 = vld [vmem:[%s7 + $0xf8] sm:$0xff]
  %v211 = vld [vmem:[%s12] sm:$0xff]
  %v212 = vld [vmem:[%s12 + $0x8] sm:$0xff]
  %v213 = vld [vmem:[%s12 + $0x10] sm:$0xff]
  %v214 = vld [vmem:[%s12 + $0x18] sm:$0xff]
  %v215 = vld [vmem:[%s12 + $0x20] sm:$0xff]
  %v216 = vld [vmem:[%s12 + $0x28] sm:$0xff]
  %v217 = vld [vmem:[%s12 + $0x30] sm:$0xff]
  %v218 = vld [vmem:[%s12 + $0x38] sm:$0xff]
  %v219 = vld [vmem:[%s12 + $0x40] sm:$0xff]
  %v220 = vld [vmem:[%s12 + $0x48] sm:$0xff]
  %v221 = vld [vmem:[%s12 + $0x50] sm:$0xff]
  %v222 = vld [vmem:[%s12 + $0x58] sm:$0xff]
  %v223 = vld [vmem:[%s12 + $0x60] sm:$0xff]
  %v224 = vld [vmem:[%s12 + $0x68] sm:$0xff]
  %v225 = vld [vmem:[%s12 + $0x70] sm:$0xff]
  %v226 = vld [vmem:[%s12 + $0x78] sm:$0xff]
  %v227 = vld [vmem:[%s12 + $0x80] sm:$0xff]
  %v228 = vld [vmem:[%s12 + $0x88] sm:$0xff]
  %v229 = vld [vmem:[%s12 + $0x90] sm:$0xff]
  %v230 = vld [vmem:[%s12 + $0x98] sm:$0xff]
  %v231 = vld [vmem:[%s12 + $0xa0] sm:$0xff]
  %v232 = vld [vmem:[%s12 + $0xa8] sm:$0xff]
  %v233 = vld [vmem:[%s12 + $0xb0] sm:$0xff]
  %v234 = vld [vmem:[%s12 + $0xb8] sm:$0xff]
  %v235 = vld [vmem:[%s12 + $0xc0] sm:$0xff]
  %v236 = vld [vmem:[%s12 + $0xc8] sm:$0xff]
  %v237 = vld [vmem:[%s12 + $0xd0] sm:$0xff]
  %v238 = vld [vmem:[%s12 + $0xd8] sm:$0xff]
  %v239 = vld [vmem:[%s12 + $0xe0] sm:$0xff]
  %v240 = vld [vmem:[%s12 + $0xe8] sm:$0xff]
  %v241 = vld [vmem:[%s12 + $0xf0] sm:$0xff]
  %v242 = vld [vmem:[%s12 + $0xf8] sm:$0xff]
  %v243 = vld [vmem:[%s12 + $0x100] sm:$0xff]
  %v244 = vld [vmem:[%s12 + $0x108] sm:$0xff]
  %v245 = vld [vmem:[%s12 + $0x110] sm:$0xff]
  %v246 = vld [vmem:[%s12 + $0x118] sm:$0xff]
  %v247 = vld [vmem:[%s12 + $0x120] sm:$0xff]
  %v248 = vld [vmem:[%s12 + $0x128] sm:$0xff]
  %v249 = vld [vmem:[%s12 + $0x130] sm:$0xff]
  %v250 = vld [vmem:[%s12 + $0x138] sm:$0xff]
  %v251 = vld [vmem:[%s12 + $0x140] sm:$0xff]
  %v252 = vld [vmem:[%s12 + $0x148] sm:$0xff]
  %v253 = vld [vmem:[%s12 + $0x150] sm:$0xff]
  %v254 = vld [vmem:[%s12 + $0x158] sm:$0xff]
  %v255 = vld [vmem:[%s12 + $0x160] sm:$0xff]
  %v256 = vld [vmem:[%s12 + $0x168] sm:$0xff]
  %v257 = vld [vmem:[%s12 + $0x170] sm:$0xff]
  %v258 = vld [vmem:[%s12 + $0x178] sm:$0xff]
  %v259 = vld [vmem:[%s12 + $0x180] sm:$0xff]
  %v260 = vld [vmem:[%s12 + $0x188] sm:$0xff]
  %v261 = vld [vmem:[%s12 + $0x190] sm:$0xff]
  %v262 = vld [vmem:[%s12 + $0x198] sm:$0xff]
  %v263 = vld [vmem:[%s12 + $0x1a0] sm:$0xff]
  %v264 = vld [vmem:[%s12 + $0x1a8] sm:$0xff]
  %v265 = vld [vmem:[%s12 + $0x1b0] sm:$0xff]
  %v266 = vld [vmem:[%s12 + $0x1b8] sm:$0xff]
  %v267 = vld [vmem:[%s12 + $0x1c0] sm:$0xff]
  %v268 = vld [vmem:[%s12 + $0x1c8] sm:$0xff]
  %v269 = vld [vmem:[%s12 + $0x1d0] sm:$0xff]
  %v270 = vld [vmem:[%s12 + $0x1d8] sm:$0xff]
  %v271 = vld [vmem:[%s12 + $0x1e0] sm:$0xff]
  %v272 = vld [vmem:[%s12 + $0x1e8] sm:$0xff]
  %v273 = vld [vmem:[%s12 + $0x1f0] sm:$0xff]
  %v274 = vld [vmem:[%s12 + $0x1f8] sm:$0xff]
  %v275 = vld [vmem:[%s13] sm:$0xff]
  %v276 = vld [vmem:[%s13 + $0x8] sm:$0xff]
  %v277 = vld [vmem:[%s13 + $0x10] sm:$0xff]
  %v278 = vld [vmem:[%s13 + $0x18] sm:$0xff]
  %v279 = vld [vmem:[%s13 + $0x20] sm:$0xff]
  %v280 = vld [vmem:[%s13 + $0x28] sm:$0xff]
  %v281 = vld [vmem:[%s13 + $0x30] sm:$0xff]
  %v282 = vld [vmem:[%s13 + $0x38] sm:$0xff]
  %v283 = vld [vmem:[%s13 + $0x40] sm:$0xff]
  %v284 = vld [vmem:[%s13 + $0x48] sm:$0xff]
  %v285 = vld [vmem:[%s13 + $0x50] sm:$0xff]
  %v286 = vld [vmem:[%s13 + $0x58] sm:$0xff]
  %v287 = vld [vmem:[%s13 + $0x60] sm:$0xff]
  %v288 = vld [vmem:[%s13 + $0x68] sm:$0xff]
  %v289 = vld [vmem:[%s13 + $0x70] sm:$0xff]
  %v290 = vld [vmem:[%s13 + $0x78] sm:$0xff]
  %v291 = vld [vmem:[%s13 + $0x80] sm:$0xff]
  %v292 = vld [vmem:[%s13 + $0x88] sm:$0xff]
  %v293 = vld [vmem:[%s13 + $0x90] sm:$0xff]
  %v294 = vld [vmem:[%s13 + $0x98] sm:$0xff]
  %v295 = vld [vmem:[%s13 + $0xa0] sm:$0xff]
  %v296 = vld [vmem:[%s13 + $0xa8] sm:$0xff]
  %v297 = vld [vmem:[%s13 + $0xb0] sm:$0xff]
  %v298 = vld [vmem:[%s13 + $0xb8] sm:$0xff]
  %v299 = vld [vmem:[%s13 + $0xc0] sm:$0xff]
  %v300 = vld [vmem:[%s13 + $0xc8] sm:$0xff]
  %v301 = vld [vmem:[%s13 + $0xd0] sm:$0xff]
  %v302 = vld [vmem:[%s13 + $0xd8] sm:$0xff]
  %v303 = vld [vmem:[%s13 + $0xe0] sm:$0xff]
  %v304 = vld [vmem:[%s13 + $0xe8] sm:$0xff]
  %v305 = vld [vmem:[%s13 + $0xf0] sm:$0xff]
  %v306 = vld [vmem:[%s13 + $0xf8] sm:$0xff]
  %v307 = vld [vmem:[%s9] sm:$0xf]
  %v309 = vlaneseq
  %v310 = vshrl.u32 %v309, 7
  %v311 = vsub.s32 0, %v310
  %v312 = vrot.slane %v307, %v311
  %v313 = vlaneseq
  %v314 = vshrl.u32 %v313, 7
  %v315 = vsub.s32 1, %v314
  %v316 = vrot.slane %v307, %v315
  %v317 = vlaneseq
  %v318 = vshrl.u32 %v317, 7
  %v319 = vsub.s32 2, %v318
  %v320 = vrot.slane %v307, %v319
  %v321 = vlaneseq
  %v322 = vshrl.u32 %v321, 7
  %v323 = vsub.s32 3, %v322
  %v324 = vrot.slane %v307, %v323
  %v329 = vld [vmem:[%s15] sm:$0xf]
  %v331 = vlaneseq
  %v332 = vshrl.u32 %v331, 7
  %v333 = vsub.s32 0, %v332
  %v334 = vrot.slane %v329, %v333
  %v335 = vlaneseq
  %v336 = vshrl.u32 %v335, 7
  %v337 = vsub.s32 1, %v336
  %v338 = vrot.slane %v329, %v337
  %v339 = vlaneseq
  %v340 = vshrl.u32 %v339, 7
  %v341 = vsub.s32 2, %v340
  %v342 = vrot.slane %v329, %v341
  %v343 = vlaneseq
  %v344 = vshrl.u32 %v343, 7
  %v345 = vsub.s32 3, %v344
  %v346 = vrot.slane %v329, %v345
  %v351 = vld [vmem:[%s0] sm:$0xf]
  %v352 = vld [vmem:[%s0 + $0x4] sm:$0xf]
  %v353 = vld [vmem:[%s0 + $0x8] sm:$0xf]
  %v354 = vld [vmem:[%s0 + $0xc] sm:$0xf]
  %v355 = vld [vmem:[%s0 + $0x10] sm:$0xf]
  %v356 = vld [vmem:[%s0 + $0x14] sm:$0xf]
  %v357 = vld [vmem:[%s0 + $0x18] sm:$0xf]
  %v358 = vld [vmem:[%s0 + $0x1c] sm:$0xf]
  %v359 = vld [vmem:[%s0 + $0x20] sm:$0xf]
  %v360 = vld [vmem:[%s0 + $0x24] sm:$0xf]
  %v361 = vld [vmem:[%s0 + $0x28] sm:$0xf]
  %v362 = vld [vmem:[%s0 + $0x2c] sm:$0xf]
  %v363 = vld [vmem:[%s0 + $0x30] sm:$0xf]
  %v364 = vld [vmem:[%s0 + $0x34] sm:$0xf]
  %v365 = vld [vmem:[%s0 + $0x38] sm:$0xf]
  %v366 = vld [vmem:[%s0 + $0x3c] sm:$0xf]
  %v367 = vld [vmem:[%s5] sm:$0xff]
  %v368 = vld [vmem:[%s5 + $0x8] sm:$0xff]
  %v369 = vld [vmem:[%s5 + $0x10] sm:$0xff]
  %v370 = vld [vmem:[%s5 + $0x18] sm:$0xff]
  %v371 = vld [vmem:[%s5 + $0x20] sm:$0xff]
  %v372 = vld [vmem:[%s5 + $0x28] sm:$0xff]
  %v373 = vld [vmem:[%s5 + $0x30] sm:$0xff]
  %v374 = vld [vmem:[%s5 + $0x38] sm:$0xff]
  %v375 = vld [vmem:[%s5 + $0x40] sm:$0xff]
  %v376 = vld [vmem:[%s5 + $0x48] sm:$0xff]
  %v377 = vld [vmem:[%s5 + $0x50] sm:$0xff]
  %v378 = vld [vmem:[%s5 + $0x58] sm:$0xff]
  %v379 = vld [vmem:[%s5 + $0x60] sm:$0xff]
  %v380 = vld [vmem:[%s5 + $0x68] sm:$0xff]
  %v381 = vld [vmem:[%s5 + $0x70] sm:$0xff]
  %v382 = vld [vmem:[%s5 + $0x78] sm:$0xff]
  %v383 = vld [vmem:[%s5 + $0x80] sm:$0xff]
  %v384 = vld [vmem:[%s5 + $0x88] sm:$0xff]
  %v385 = vld [vmem:[%s5 + $0x90] sm:$0xff]
  %v386 = vld [vmem:[%s5 + $0x98] sm:$0xff]
  %v387 = vld [vmem:[%s5 + $0xa0] sm:$0xff]
  %v388 = vld [vmem:[%s5 + $0xa8] sm:$0xff]
  %v389 = vld [vmem:[%s5 + $0xb0] sm:$0xff]
  %v390 = vld [vmem:[%s5 + $0xb8] sm:$0xff]
  %v391 = vld [vmem:[%s5 + $0xc0] sm:$0xff]
  %v392 = vld [vmem:[%s5 + $0xc8] sm:$0xff]
  %v393 = vld [vmem:[%s5 + $0xd0] sm:$0xff]
  %v394 = vld [vmem:[%s5 + $0xd8] sm:$0xff]
  %v395 = vld [vmem:[%s5 + $0xe0] sm:$0xff]
  %v396 = vld [vmem:[%s5 + $0xe8] sm:$0xff]
  %v397 = vld [vmem:[%s5 + $0xf0] sm:$0xff]
  %v398 = vld [vmem:[%s5 + $0xf8] sm:$0xff]
  %v399 = vld [vmem:[%s8] sm:$0xf]
  %v401 = vlaneseq
  %v402 = vshrl.u32 %v401, 7
  %v403 = vsub.s32 0, %v402
  %v404 = vrot.slane %v399, %v403
  %v405 = vlaneseq
  %v406 = vshrl.u32 %v405, 7
  %v407 = vsub.s32 1, %v406
  %v408 = vrot.slane %v399, %v407
  %v409 = vlaneseq
  %v410 = vshrl.u32 %v409, 7
  %v411 = vsub.s32 2, %v410
  %v412 = vrot.slane %v399, %v411
  %v413 = vlaneseq
  %v414 = vshrl.u32 %v413, 7
  %v415 = vsub.s32 3, %v414
  %v416 = vrot.slane %v399, %v415
  %v437 = vunpack.c.l.b16 %v351
  %v438 = vunpack.c.l.b16 %v352
  %v439 = vunpack.c.l.b16 %v353
  %v440 = vunpack.c.l.b16 %v354
  %v441 = vunpack.c.l.b16 %v355
  %v442 = vunpack.c.l.b16 %v356
  %v443 = vunpack.c.l.b16 %v357
  %v444 = vunpack.c.l.b16 %v358
  %v445 = vunpack.c.l.b16 %v359
  %v446 = vunpack.c.l.b16 %v360
  %v447 = vunpack.c.l.b16 %v361
  %v448 = vunpack.c.l.b16 %v362
  %v449 = vunpack.c.l.b16 %v363
  %v450 = vunpack.c.l.b16 %v364
  %v451 = vunpack.c.l.b16 %v365
  %v452 = vunpack.c.l.b16 %v366
  %v453 = vpack.c.b16 %v438, %v437
  %v454 = vpack.c.b16 %v440, %v439
  %v455 = vpack.c.b16 %v442, %v441
  %v456 = vpack.c.b16 %v444, %v443
  %v457 = vpack.c.b16 %v446, %v445
  %v458 = vpack.c.b16 %v448, %v447
  %v459 = vpack.c.b16 %v450, %v449
  %v460 = vpack.c.b16 %v452, %v451
  %v501 = vunpack.c.l.b16 %v367
  %v502 = vunpack.c.h.b16 %v367
  %v503 = vunpack.c.l.b16 %v368
  %v504 = vunpack.c.h.b16 %v368
  %v505 = vunpack.c.l.b16 %v369
  %v506 = vunpack.c.h.b16 %v369
  %v507 = vunpack.c.l.b16 %v370
  %v508 = vunpack.c.h.b16 %v370
  %v509 = vunpack.c.l.b16 %v371
  %v510 = vunpack.c.h.b16 %v371
  %v511 = vunpack.c.l.b16 %v372
  %v512 = vunpack.c.h.b16 %v372
  %v513 = vunpack.c.l.b16 %v373
  %v514 = vunpack.c.h.b16 %v373
  %v515 = vunpack.c.l.b16 %v374
  %v516 = vunpack.c.h.b16 %v374
  %v517 = vunpack.c.l.b16 %v375
  %v518 = vunpack.c.h.b16 %v375
  %v519 = vunpack.c.l.b16 %v376
  %v520 = vunpack.c.h.b16 %v376
  %v521 = vunpack.c.l.b16 %v377
  %v522 = vunpack.c.h.b16 %v377
  %v523 = vunpack.c.l.b16 %v378
  %v524 = vunpack.c.h.b16 %v378
  %v525 = vunpack.c.l.b16 %v379
  %v526 = vunpack.c.h.b16 %v379
  %v527 = vunpack.c.l.b16 %v380
  %v528 = vunpack.c.h.b16 %v380
  %v529 = vunpack.c.l.b16 %v381
  %v530 = vunpack.c.h.b16 %v381
  %v531 = vunpack.c.l.b16 %v382
  %v532 = vunpack.c.h.b16 %v382
  %v533 = vunpack.c.l.b16 %v383
  %v534 = vunpack.c.h.b16 %v383
  %v535 = vunpack.c.l.b16 %v384
  %v536 = vunpack.c.h.b16 %v384
  %v537 = vunpack.c.l.b16 %v385
  %v538 = vunpack.c.h.b16 %v385
  %v539 = vunpack.c.l.b16 %v386
  %v540 = vunpack.c.h.b16 %v386
  %v541 = vunpack.c.l.b16 %v387
  %v542 = vunpack.c.h.b16 %v387
  %v543 = vunpack.c.l.b16 %v388
  %v544 = vunpack.c.h.b16 %v388
  %v545 = vunpack.c.l.b16 %v389
  %v546 = vunpack.c.h.b16 %v389
  %v547 = vunpack.c.l.b16 %v390
  %v548 = vunpack.c.h.b16 %v390
  %v549 = vunpack.c.l.b16 %v391
  %v550 = vunpack.c.h.b16 %v391
  %v551 = vunpack.c.l.b16 %v392
  %v552 = vunpack.c.h.b16 %v392
  %v553 = vunpack.c.l.b16 %v393
  %v554 = vunpack.c.h.b16 %v393
  %v555 = vunpack.c.l.b16 %v394
  %v556 = vunpack.c.h.b16 %v394
  %v557 = vunpack.c.l.b16 %v395
  %v558 = vunpack.c.h.b16 %v395
  %v559 = vunpack.c.l.b16 %v396
  %v560 = vunpack.c.h.b16 %v396
  %v561 = vunpack.c.l.b16 %v397
  %v562 = vunpack.c.h.b16 %v397
  %v563 = vunpack.c.l.b16 %v398
  %v564 = vunpack.c.h.b16 %v398
  %v565 = vpack.c.b16 %v505, %v501
  %v566 = vpack.c.b16 %v506, %v502
  %v567 = vpack.c.b16 %v507, %v503
  %v568 = vpack.c.b16 %v508, %v504
  %v569 = vpack.c.b16 %v513, %v509
  %v570 = vpack.c.b16 %v514, %v510
  %v571 = vpack.c.b16 %v515, %v511
  %v572 = vpack.c.b16 %v516, %v512
  %v573 = vpack.c.b16 %v521, %v517
  %v574 = vpack.c.b16 %v522, %v518
  %v575 = vpack.c.b16 %v523, %v519
  %v576 = vpack.c.b16 %v524, %v520
  %v577 = vpack.c.b16 %v529, %v525
  %v578 = vpack.c.b16 %v530, %v526
  %v579 = vpack.c.b16 %v531, %v527
  %v580 = vpack.c.b16 %v532, %v528
  %v581 = vpack.c.b16 %v537, %v533
  %v582 = vpack.c.b16 %v538, %v534
  %v583 = vpack.c.b16 %v539, %v535
  %v584 = vpack.c.b16 %v540, %v536
  %v585 = vpack.c.b16 %v545, %v541
  %v586 = vpack.c.b16 %v546, %v542
  %v587 = vpack.c.b16 %v547, %v543
  %v588 = vpack.c.b16 %v548, %v544
  %v589 = vpack.c.b16 %v553, %v549
  %v590 = vpack.c.b16 %v554, %v550
  %v591 = vpack.c.b16 %v555, %v551
  %v592 = vpack.c.b16 %v556, %v552
  %v593 = vpack.c.b16 %v561, %v557
  %v594 = vpack.c.b16 %v562, %v558
  %v595 = vpack.c.b16 %v563, %v559
  %v596 = vpack.c.b16 %v564, %v560
  %629 = vmatprep.subr.bf16.mxu0 %v594
  %630 = vmatpush1.bf16.msra.mxu0 %v593
  %631 = vmatprep.subr.bf16.mxu0 %v590
  %632 = vmatpush1.bf16.msra.mxu0 %v589
  %633 = vmatprep.subr.bf16.mxu0 %v586
  %634 = vmatpush1.bf16.msra.mxu0 %v585
  %635 = vmatprep.subr.bf16.mxu0 %v582
  %636 = vmatpush1.bf16.msra.mxu0 %v581
  %637 = vmatprep.subr.bf16.mxu0 %v578
  %638 = vmatpush1.bf16.msra.mxu0 %v577
  %639 = vmatprep.subr.bf16.mxu0 %v574
  %640 = vmatpush1.bf16.msra.mxu0 %v573
  %641 = vmatprep.subr.bf16.mxu0 %v570
  %642 = vmatpush1.bf16.msra.mxu0 %v569
  %643 = vmatprep.subr.bf16.mxu0 %v566
  %644 = vmatpush1.bf16.msra.mxu0 %v565
  %645 = vmatprep.subr.bf16.mxu0 0
  %646 = vmatpush2.bf16.msra.mxu0 0
  %647 = vmatprep.subr.bf16.mxu0 0
  %648 = vmatpush2.bf16.msra.mxu0 0
  %649 = vmatprep.subr.bf16.mxu0 0
  %650 = vmatpush2.bf16.msra.mxu0 0
  %651 = vmatprep.subr.bf16.mxu0 0
  %652 = vmatpush2.bf16.msra.mxu0 0
  %653 = vmatprep.subr.bf16.mxu0 0
  %654 = vmatpush2.bf16.msra.mxu0 0
  %655 = vmatprep.subr.bf16.mxu0 0
  %656 = vmatpush2.bf16.msra.mxu0 0
  %657 = vmatprep.subr.bf16.mxu0 0
  %658 = vmatpush2.bf16.msra.mxu0 0
  %659 = vmatprep.subr.bf16.mxu0 0
  %660 = vmatpush2.bf16.msra.mxu0 0
  %661 = vmatprep.mubr.bf16.mxu0 0
  %662 = vmatmul.mubr.bf16.gmra.mxu0 %v453
  %v663 = vpop.f32.mrf.mxu0
  %v664 = vadd.f32 %v404, %v663
  %v665 = vpop.f32.mrf.mxu0
  %v666 = vadd.f32 %v408, %v665
  %v667 = vpop.f32.mrf.mxu0
  %v668 = vadd.f32 %v404, %v667
  %v669 = vpop.f32.mrf.mxu0
  %v670 = vadd.f32 %v408, %v669
  %671 = vmatprep.mubr.bf16.mxu0 0
  %672 = vmatmul.mubr.bf16.gmra.mxu0 %v454
  %v673 = vpop.f32.mrf.mxu0
  %v674 = vadd.f32 %v404, %v673
  %v675 = vpop.f32.mrf.mxu0
  %v676 = vadd.f32 %v408, %v675
  %v677 = vpop.f32.mrf.mxu0
  %v678 = vadd.f32 %v404, %v677
  %v679 = vpop.f32.mrf.mxu0
  %v680 = vadd.f32 %v408, %v679
  %681 = vmatprep.mubr.bf16.mxu0 0
  %682 = vmatmul.mubr.bf16.gmra.mxu0 %v455
  %v683 = vpop.f32.mrf.mxu0
  %v684 = vadd.f32 %v404, %v683
  %v685 = vpop.f32.mrf.mxu0
  %v686 = vadd.f32 %v408, %v685
  %v687 = vpop.f32.mrf.mxu0
  %v688 = vadd.f32 %v404, %v687
  %v689 = vpop.f32.mrf.mxu0
  %v690 = vadd.f32 %v408, %v689
  %691 = vmatprep.mubr.bf16.mxu0 0
  %692 = vmatmul.mubr.bf16.gmra.mxu0 %v456
  %v693 = vpop.f32.mrf.mxu0
  %v694 = vadd.f32 %v404, %v693
  %v695 = vpop.f32.mrf.mxu0
  %v696 = vadd.f32 %v408, %v695
  %v697 = vpop.f32.mrf.mxu0
  %v698 = vadd.f32 %v404, %v697
  %v699 = vpop.f32.mrf.mxu0
  %v700 = vadd.f32 %v408, %v699
  %701 = vmatprep.mubr.bf16.mxu0 0
  %702 = vmatmul.mubr.bf16.gmra.mxu0 %v457
  %v703 = vpop.f32.mrf.mxu0
  %v704 = vadd.f32 %v404, %v703
  %v705 = vpop.f32.mrf.mxu0
  %v706 = vadd.f32 %v408, %v705
  %v707 = vpop.f32.mrf.mxu0
  %v708 = vadd.f32 %v404, %v707
  %v709 = vpop.f32.mrf.mxu0
  %v710 = vadd.f32 %v408, %v709
  %711 = vmatprep.mubr.bf16.mxu0 0
  %712 = vmatmul.mubr.bf16.gmra.mxu0 %v458
  %v713 = vpop.f32.mrf.mxu0
  %v714 = vadd.f32 %v404, %v713
  %v715 = vpop.f32.mrf.mxu0
  %v716 = vadd.f32 %v408, %v715
  %v717 = vpop.f32.mrf.mxu0
  %v718 = vadd.f32 %v404, %v717
  %v719 = vpop.f32.mrf.mxu0
  %v720 = vadd.f32 %v408, %v719
  %721 = vmatprep.mubr.bf16.mxu0 0
  %722 = vmatmul.mubr.bf16.gmra.mxu0 %v459
  %v723 = vpop.f32.mrf.mxu0
  %v724 = vadd.f32 %v404, %v723
  %v725 = vpop.f32.mrf.mxu0
  %v726 = vadd.f32 %v408, %v725
  %v727 = vpop.f32.mrf.mxu0
  %v728 = vadd.f32 %v404, %v727
  %v729 = vpop.f32.mrf.mxu0
  %v730 = vadd.f32 %v408, %v729
  %731 = vmatprep.mubr.bf16.mxu0 0
  %732 = vmatmul.mubr.bf16.gmra.mxu0 %v460
  %v733 = vpop.f32.mrf.mxu0
  %v734 = vadd.f32 %v404, %v733
  %v735 = vpop.f32.mrf.mxu0
  %v736 = vadd.f32 %v408, %v735
  %v737 = vpop.f32.mrf.mxu0
  %v738 = vadd.f32 %v404, %v737
  %v739 = vpop.f32.mrf.mxu0
  %v740 = vadd.f32 %v408, %v739
  %741 = vdwg.mxu0
  %742 = vmatprep.subr.bf16.mxu0 %v596
  %743 = vmatpush1.bf16.msra.mxu0 %v595
  %744 = vmatprep.subr.bf16.mxu0 %v592
  %745 = vmatpush1.bf16.msra.mxu0 %v591
  %746 = vmatprep.subr.bf16.mxu0 %v588
  %747 = vmatpush1.bf16.msra.mxu0 %v587
  %748 = vmatprep.subr.bf16.mxu0 %v584
  %749 = vmatpush1.bf16.msra.mxu0 %v583
  %750 = vmatprep.subr.bf16.mxu0 %v580
  %751 = vmatpush1.bf16.msra.mxu0 %v579
  %752 = vmatprep.subr.bf16.mxu0 %v576
  %753 = vmatpush1.bf16.msra.mxu0 %v575
  %754 = vmatprep.subr.bf16.mxu0 %v572
  %755 = vmatpush1.bf16.msra.mxu0 %v571
  %756 = vmatprep.subr.bf16.mxu0 %v568
  %757 = vmatpush1.bf16.msra.mxu0 %v567
  %758 = vmatprep.subr.bf16.mxu0 0
  %759 = vmatpush2.bf16.msra.mxu0 0
  %760 = vmatprep.subr.bf16.mxu0 0
  %761 = vmatpush2.bf16.msra.mxu0 0
  %762 = vmatprep.subr.bf16.mxu0 0
  %763 = vmatpush2.bf16.msra.mxu0 0
  %764 = vmatprep.subr.bf16.mxu0 0
  %765 = vmatpush2.bf16.msra.mxu0 0
  %766 = vmatprep.subr.bf16.mxu0 0
  %767 = vmatpush2.bf16.msra.mxu0 0
  %768 = vmatprep.subr.bf16.mxu0 0
  %769 = vmatpush2.bf16.msra.mxu0 0
  %770 = vmatprep.subr.bf16.mxu0 0
  %771 = vmatpush2.bf16.msra.mxu0 0
  %772 = vmatprep.subr.bf16.mxu0 0
  %773 = vmatpush2.bf16.msra.mxu0 0
  %774 = vmatprep.mubr.bf16.mxu0 0
  %775 = vmatmul.mubr.bf16.gmra.mxu0 %v453
  %v776 = vpop.f32.mrf.mxu0
  %v777 = vadd.f32 %v412, %v776
  %v778 = vpop.f32.mrf.mxu0
  %v779 = vadd.f32 %v416, %v778
  %v780 = vpop.f32.mrf.mxu0
  %v781 = vadd.f32 %v412, %v780
  %v782 = vpop.f32.mrf.mxu0
  %v783 = vadd.f32 %v416, %v782
  %784 = vmatprep.mubr.bf16.mxu0 0
  %785 = vmatmul.mubr.bf16.gmra.mxu0 %v454
  %v786 = vpop.f32.mrf.mxu0
  %v787 = vadd.f32 %v412, %v786
  %v788 = vpop.f32.mrf.mxu0
  %v789 = vadd.f32 %v416, %v788
  %v790 = vpop.f32.mrf.mxu0
  %v791 = vadd.f32 %v412, %v790
  %v792 = vpop.f32.mrf.mxu0
  %v793 = vadd.f32 %v416, %v792
  %794 = vmatprep.mubr.bf16.mxu0 0
  %795 = vmatmul.mubr.bf16.gmra.mxu0 %v455
  %v796 = vpop.f32.mrf.mxu0
  %v797 = vadd.f32 %v412, %v796
  %v798 = vpop.f32.mrf.mxu0
  %v799 = vadd.f32 %v416, %v798
  %v800 = vpop.f32.mrf.mxu0
  %v801 = vadd.f32 %v412, %v800
  %v802 = vpop.f32.mrf.mxu0
  %v803 = vadd.f32 %v416, %v802
  %804 = vmatprep.mubr.bf16.mxu0 0
  %805 = vmatmul.mubr.bf16.gmra.mxu0 %v456
  %v806 = vpop.f32.mrf.mxu0
  %v807 = vadd.f32 %v412, %v806
  %v808 = vpop.f32.mrf.mxu0
  %v809 = vadd.f32 %v416, %v808
  %v810 = vpop.f32.mrf.mxu0
  %v811 = vadd.f32 %v412, %v810
  %v812 = vpop.f32.mrf.mxu0
  %v813 = vadd.f32 %v416, %v812
  %814 = vmatprep.mubr.bf16.mxu0 0
  %815 = vmatmul.mubr.bf16.gmra.mxu0 %v457
  %v816 = vpop.f32.mrf.mxu0
  %v817 = vadd.f32 %v412, %v816
  %v818 = vpop.f32.mrf.mxu0
  %v819 = vadd.f32 %v416, %v818
  %v820 = vpop.f32.mrf.mxu0
  %v821 = vadd.f32 %v412, %v820
  %v822 = vpop.f32.mrf.mxu0
  %v823 = vadd.f32 %v416, %v822
  %824 = vmatprep.mubr.bf16.mxu0 0
  %825 = vmatmul.mubr.bf16.gmra.mxu0 %v458
  %v826 = vpop.f32.mrf.mxu0
  %v827 = vadd.f32 %v412, %v826
  %v828 = vpop.f32.mrf.mxu0
  %v829 = vadd.f32 %v416, %v828
  %v830 = vpop.f32.mrf.mxu0
  %v831 = vadd.f32 %v412, %v830
  %v832 = vpop.f32.mrf.mxu0
  %v833 = vadd.f32 %v416, %v832
  %834 = vmatprep.mubr.bf16.mxu0 0
  %835 = vmatmul.mubr.bf16.gmra.mxu0 %v459
  %v836 = vpop.f32.mrf.mxu0
  %v837 = vadd.f32 %v412, %v836
  %v838 = vpop.f32.mrf.mxu0
  %v839 = vadd.f32 %v416, %v838
  %v840 = vpop.f32.mrf.mxu0
  %v841 = vadd.f32 %v412, %v840
  %v842 = vpop.f32.mrf.mxu0
  %v843 = vadd.f32 %v416, %v842
  %844 = vmatprep.mubr.bf16.mxu0 0
  %845 = vmatmul.mubr.bf16.gmra.mxu0 %v460
  %v846 = vpop.f32.mrf.mxu0
  %v847 = vadd.f32 %v412, %v846
  %v848 = vpop.f32.mrf.mxu0
  %v849 = vadd.f32 %v416, %v848
  %v850 = vpop.f32.mrf.mxu0
  %v851 = vadd.f32 %v412, %v850
  %v852 = vpop.f32.mrf.mxu0
  %v853 = vadd.f32 %v416, %v852
  %854 = vdwg.mxu0
  %v855 = vpack.c.bf16 %v668, %v664
  %v856 = vpack.c.bf16 %v670, %v666
  %v857 = vpack.c.bf16 %v781, %v777
  %v858 = vpack.c.bf16 %v783, %v779
  %v859 = vpack.c.bf16 %v678, %v674
  %v860 = vpack.c.bf16 %v680, %v676
  %v861 = vpack.c.bf16 %v791, %v787
  %v862 = vpack.c.bf16 %v793, %v789
  %v863 = vpack.c.bf16 %v688, %v684
  %v864 = vpack.c.bf16 %v690, %v686
  %v865 = vpack.c.bf16 %v801, %v797
  %v866 = vpack.c.bf16 %v803, %v799
  %v867 = vpack.c.bf16 %v698, %v694
  %v868 = vpack.c.bf16 %v700, %v696
  %v869 = vpack.c.bf16 %v811, %v807
  %v870 = vpack.c.bf16 %v813, %v809
  %v871 = vpack.c.bf16 %v708, %v704
  %v872 = vpack.c.bf16 %v710, %v706
  %v873 = vpack.c.bf16 %v821, %v817
  %v874 = vpack.c.bf16 %v823, %v819
  %v875 = vpack.c.bf16 %v718, %v714
  %v876 = vpack.c.bf16 %v720, %v716
  %v877 = vpack.c.bf16 %v831, %v827
  %v878 = vpack.c.bf16 %v833, %v829
  %v879 = vpack.c.bf16 %v728, %v724
  %v880 = vpack.c.bf16 %v730, %v726
  %v881 = vpack.c.bf16 %v841, %v837
  %v882 = vpack.c.bf16 %v843, %v839
  %v883 = vpack.c.bf16 %v738, %v734
  %v884 = vpack.c.bf16 %v740, %v736
  %v885 = vpack.c.bf16 %v851, %v847
  %v886 = vpack.c.bf16 %v853, %v849
  %v919 = vunpack.c.l.b16 %v855
  %v920 = vunpack.c.l.b16 %v856
  %v921 = vunpack.c.l.b16 %v857
  %v922 = vunpack.c.l.b16 %v858
  %v923 = vunpack.c.h.b16 %v855
  %v924 = vunpack.c.h.b16 %v856
  %v925 = vunpack.c.h.b16 %v857
  %v926 = vunpack.c.h.b16 %v858
  %v927 = vunpack.c.l.b16 %v859
  %v928 = vunpack.c.l.b16 %v860
  %v929 = vunpack.c.l.b16 %v861
  %v930 = vunpack.c.l.b16 %v862
  %v931 = vunpack.c.h.b16 %v859
  %v932 = vunpack.c.h.b16 %v860
  %v933 = vunpack.c.h.b16 %v861
  %v934 = vunpack.c.h.b16 %v862
  %v935 = vunpack.c.l.b16 %v863
  %v936 = vunpack.c.l.b16 %v864
  %v937 = vunpack.c.l.b16 %v865
  %v938 = vunpack.c.l.b16 %v866
  %v939 = vunpack.c.h.b16 %v863
  %v940 = vunpack.c.h.b16 %v864
  %v941 = vunpack.c.h.b16 %v865
  %v942 = vunpack.c.h.b16 %v866
  %v943 = vunpack.c.l.b16 %v867
  %v944 = vunpack.c.l.b16 %v868
  %v945 = vunpack.c.l.b16 %v869
  %v946 = vunpack.c.l.b16 %v870
  %v947 = vunpack.c.h.b16 %v867
  %v948 = vunpack.c.h.b16 %v868
  %v949 = vunpack.c.h.b16 %v869
  %v950 = vunpack.c.h.b16 %v870
  %v951 = vunpack.c.l.b16 %v871
  %v952 = vunpack.c.l.b16 %v872
  %v953 = vunpack.c.l.b16 %v873
  %v954 = vunpack.c.l.b16 %v874
  %v955 = vunpack.c.h.b16 %v871
  %v956 = vunpack.c.h.b16 %v872
  %v957 = vunpack.c.h.b16 %v873
  %v958 = vunpack.c.h.b16 %v874
  %v959 = vunpack.c.l.b16 %v875
  %v960 = vunpack.c.l.b16 %v876
  %v961 = vunpack.c.l.b16 %v877
  %v962 = vunpack.c.l.b16 %v878
  %v963 = vunpack.c.h.b16 %v875
  %v964 = vunpack.c.h.b16 %v876
  %v965 = vunpack.c.h.b16 %v877
  %v966 = vunpack.c.h.b16 %v878
  %v967 = vunpack.c.l.b16 %v879
  %v968 = vunpack.c.l.b16 %v880
  %v969 = vunpack.c.l.b16 %v881
  %v970 = vunpack.c.l.b16 %v882
  %v971 = vunpack.c.h.b16 %v879
  %v972 = vunpack.c.h.b16 %v880
  %v973 = vunpack.c.h.b16 %v881
  %v974 = vunpack.c.h.b16 %v882
  %v975 = vunpack.c.l.b16 %v883
  %v976 = vunpack.c.l.b16 %v884
  %v977 = vunpack.c.l.b16 %v885
  %v978 = vunpack.c.l.b16 %v886
  %v979 = vunpack.c.h.b16 %v883
  %v980 = vunpack.c.h.b16 %v884
  %v981 = vunpack.c.h.b16 %v885
  %v982 = vunpack.c.h.b16 %v886
  %v983 = vpack.c.b16 %v920, %v919
  %v984 = vpack.c.b16 %v922, %v921
  %v985 = vpack.c.b16 %v924, %v923
  %v986 = vpack.c.b16 %v926, %v925
  %v987 = vpack.c.b16 %v928, %v927
  %v988 = vpack.c.b16 %v930, %v929
  %v989 = vpack.c.b16 %v932, %v931
  %v990 = vpack.c.b16 %v934, %v933
  %v991 = vpack.c.b16 %v936, %v935
  %v992 = vpack.c.b16 %v938, %v937
  %v993 = vpack.c.b16 %v940, %v939
  %v994 = vpack.c.b16 %v942, %v941
  %v995 = vpack.c.b16 %v944, %v943
  %v996 = vpack.c.b16 %v946, %v945
  %v997 = vpack.c.b16 %v948, %v947
  %v998 = vpack.c.b16 %v950, %v949
  %v999 = vpack.c.b16 %v952, %v951
  %v1000 = vpack.c.b16 %v954, %v953
  %v1001 = vpack.c.b16 %v956, %v955
  %v1002 = vpack.c.b16 %v958, %v957
  %v1003 = vpack.c.b16 %v960, %v959
  %v1004 = vpack.c.b16 %v962, %v961
  %v1005 = vpack.c.b16 %v964, %v963
  %v1006 = vpack.c.b16 %v966, %v965
  %v1007 = vpack.c.b16 %v968, %v967
  %v1008 = vpack.c.b16 %v970, %v969
  %v1009 = vpack.c.b16 %v972, %v971
  %v1010 = vpack.c.b16 %v974, %v973
  %v1011 = vpack.c.b16 %v976, %v975
  %v1012 = vpack.c.b16 %v978, %v977
  %v1013 = vpack.c.b16 %v980, %v979
  %v1014 = vpack.c.b16 %v982, %v981
  %1047 = vst [vmem:[#allocation2] sm:$0xff] %v983
  %1048 = vst [vmem:[#allocation2 + $0x8] sm:$0xff] %v984
  %1049 = vst [vmem:[#allocation2 + $0x10] sm:$0xff] %v985
  %1050 = vst [vmem:[#allocation2 + $0x18] sm:$0xff] %v986
  %1051 = vst [vmem:[#allocation2 + $0x20] sm:$0xff] %v987
  %1052 = vst [vmem:[#allocation2 + $0x28] sm:$0xff] %v988
  %1053 = vst [vmem:[#allocation2 + $0x30] sm:$0xff] %v989
  %1054 = vst [vmem:[#allocation2 + $0x38] sm:$0xff] %v990
  %1055 = vst [vmem:[#allocation2 + $0x40] sm:$0xff] %v991
  %1056 = vst [vmem:[#allocation2 + $0x48] sm:$0xff] %v992
  %1057 = vst [vmem:[#allocation2 + $0x50] sm:$0xff] %v993
  %1058 = vst [vmem:[#allocation2 + $0x58] sm:$0xff] %v994
  %1059 = vst [vmem:[#allocation2 + $0x60] sm:$0xff] %v995
  %1060 = vst [vmem:[#allocation2 + $0x68] sm:$0xff] %v996
  %1061 = vst [vmem:[#allocation2 + $0x70] sm:$0xff] %v997
  %1062 = vst [vmem:[#allocation2 + $0x78] sm:$0xff] %v998
  %1063 = vst [vmem:[#allocation2 + $0x80] sm:$0xff] %v999
  %1064 = vst [vmem:[#allocation2 + $0x88] sm:$0xff] %v1000
  %1065 = vst [vmem:[#allocation2 + $0x90] sm:$0xff] %v1001
  %1066 = vst [vmem:[#allocation2 + $0x98] sm:$0xff] %v1002
  %1067 = vst [vmem:[#allocation2 + $0xa0] sm:$0xff] %v1003
  %1068 = vst [vmem:[#allocation2 + $0xa8] sm:$0xff] %v1004
  %1069 = vst [vmem:[#allocation2 + $0xb0] sm:$0xff] %v1005
  %1070 = vst [vmem:[#allocation2 + $0xb8] sm:$0xff] %v1006
  %1071 = vst [vmem:[#allocation2 + $0xc0] sm:$0xff] %v1007
  %1072 = vst [vmem:[#allocation2 + $0xc8] sm:$0xff] %v1008
  %1073 = vst [vmem:[#allocation2 + $0xd0] sm:$0xff] %v1009
  %1074 = vst [vmem:[#allocation2 + $0xd8] sm:$0xff] %v1010
  %1075 = vst [vmem:[#allocation2 + $0xe0] sm:$0xff] %v1011
  %1076 = vst [vmem:[#allocation2 + $0xe8] sm:$0xff] %v1012
  %1077 = vst [vmem:[#allocation2 + $0xf0] sm:$0xff] %v1013
  %1078 = vst [vmem:[#allocation2 + $0xf8] sm:$0xff] %v1014
  %v1079 = vld [vmem:[#allocation2] sm:$0xff]
  %v1080 = vld [vmem:[#allocation2 + $0x8] sm:$0xff]
  %v1081 = vld [vmem:[#allocation2 + $0x10] sm:$0xff]
  %v1082 = vld [vmem:[#allocation2 + $0x18] sm:$0xff]
  %v1083 = vunpack.c.l.bf16 %v1079
  %v1084 = vunpack.c.h.bf16 %v1079
  %v1085 = vunpack.c.l.bf16 %v1080
  %v1086 = vunpack.c.h.bf16 %v1080
  %v1087 = vunpack.c.l.bf16 %v1081
  %v1088 = vunpack.c.h.bf16 %v1081
  %v1089 = vunpack.c.l.bf16 %v1082
  %v1090 = vunpack.c.h.bf16 %v1082
  %v1091 = vadd.f32 %v1083, 0.0
  %v1092 = vadd.f32 %v1084, 0.0
  %v1093 = vadd.f32 %v1085, 0.0
  %v1094 = vadd.f32 %v1086, 0.0
  %v1095 = vadd.f32 %v1087, 0.0
  %v1096 = vadd.f32 %v1088, 0.0
  %v1097 = vadd.f32 %v1089, 0.0
  %v1098 = vadd.f32 %v1090, 0.0
  %v1099 = vmul.f32 %v1091, 0.5
  %v1100 = vmul.f32 %v1095, 0.5
  %v1101 = vtanh.pop %v1099
  %v1102 = vtanh.pop %v1100
  %v1103 = vadd.f32 %v1101, 1.0
  %v1104 = vadd.f32 %v1102, 1.0
  %v1105 = vmul.f32 %v1103, 0.5
  %v1106 = vmul.f32 %v1104, 0.5
  %v1107 = vmul.f32 %v1092, 0.5
  %v1108 = vmul.f32 %v1096, 0.5
  %v1109 = vtanh.pop %v1107
  %v1110 = vtanh.pop %v1108
  %v1111 = vadd.f32 %v1109, 1.0
  %v1112 = vadd.f32 %v1110, 1.0
  %v1113 = vmul.f32 %v1111, 0.5
  %v1114 = vmul.f32 %v1112, 0.5
  %v1115 = vtanh.pop %v1093
  %v1116 = vtanh.pop %v1097
  %v1117 = vmul.f32 %v1094, 0.5
  %v1118 = vmul.f32 %v1098, 0.5
  %v1119 = vtanh.pop %v1117
  %v1120 = vtanh.pop %v1118
  %v1121 = vadd.f32 %v1119, 1.0
  %v1122 = vadd.f32 %v1120, 1.0
  %v1123 = vmul.f32 %v1121, 0.5
  %v1124 = vmul.f32 %v1122, 0.5
  %v1125 = vmul.f32 %v1113, 0.0
  %v1126 = vmul.f32 %v1114, 0.0
  %v1127 = vmul.f32 %v1105, %v1115
  %v1128 = vmul.f32 %v1106, %v1116
  %v1129 = vadd.f32 %v1125, %v1127
  %v1130 = vadd.f32 %v1126, %v1128
  %v1131 = vtanh.pop %v1129
  %v1132 = vtanh.pop %v1130
  %v1133 = vmul.f32 %v1123, %v1131
  %v1134 = vmul.f32 %v1124, %v1132
  %v1135 = vpack.c.bf16 %v1134, %v1133
  %v1200 = vunpack.c.l.b16 %v115
  %v1201 = vunpack.c.h.b16 %v115
  %v1202 = vunpack.c.l.b16 %v116
  %v1203 = vunpack.c.h.b16 %v116
  %v1204 = vunpack.c.l.b16 %v117
  %v1205 = vunpack.c.h.b16 %v117
  %v1206 = vunpack.c.l.b16 %v118
  %v1207 = vunpack.c.h.b16 %v118
  %v1208 = vunpack.c.l.b16 %v119
  %v1209 = vunpack.c.h.b16 %v119
  %v1210 = vunpack.c.l.b16 %v120
  %v1211 = vunpack.c.h.b16 %v120
  %v1212 = vunpack.c.l.b16 %v121
  %v1213 = vunpack.c.h.b16 %v121
  %v1214 = vunpack.c.l.b16 %v122
  %v1215 = vunpack.c.h.b16 %v122
  %v1216 = vunpack.c.l.b16 %v123
  %v1217 = vunpack.c.h.b16 %v123
  %v1218 = vunpack.c.l.b16 %v124
  %v1219 = vunpack.c.h.b16 %v124
  %v1220 = vunpack.c.l.b16 %v125
  %v1221 = vunpack.c.h.b16 %v125
  %v1222 = vunpack.c.l.b16 %v126
  %v1223 = vunpack.c.h.b16 %v126
  %v1224 = vunpack.c.l.b16 %v127
  %v1225 = vunpack.c.h.b16 %v127
  %v1226 = vunpack.c.l.b16 %v128
  %v1227 = vunpack.c.h.b16 %v128
  %v1228 = vunpack.c.l.b16 %v129
  %v1229 = vunpack.c.h.b16 %v129
  %v1230 = vunpack.c.l.b16 %v130
  %v1231 = vunpack.c.h.b16 %v130
  %v1232 = vunpack.c.l.b16 %v131
  %v1233 = vunpack.c.h.b16 %v131
  %v1234 = vunpack.c.l.b16 %v132
  %v1235 = vunpack.c.h.b16 %v132
  %v1236 = vunpack.c.l.b16 %v133
  %v1237 = vunpack.c.h.b16 %v133
  %v1238 = vunpack.c.l.b16 %v134
  %v1239 = vunpack.c.h.b16 %v134
  %v1240 = vunpack.c.l.b16 %v135
  %v1241 = vunpack.c.h.b16 %v135
  %v1242 = vunpack.c.l.b16 %v136
  %v1243 = vunpack.c.h.b16 %v136
  %v1244 = vunpack.c.l.b16 %v137
  %v1245 = vunpack.c.h.b16 %v137
  %v1246 = vunpack.c.l.b16 %v138
  %v1247 = vunpack.c.h.b16 %v138
  %v1248 = vunpack.c.l.b16 %v139
  %v1249 = vunpack.c.h.b16 %v139
  %v1250 = vunpack.c.l.b16 %v140
  %v1251 = vunpack.c.h.b16 %v140
  %v1252 = vunpack.c.l.b16 %v141
  %v1253 = vunpack.c.h.b16 %v141
  %v1254 = vunpack.c.l.b16 %v142
  %v1255 = vunpack.c.h.b16 %v142
  %v1256 = vunpack.c.l.b16 %v143
  %v1257 = vunpack.c.h.b16 %v143
  %v1258 = vunpack.c.l.b16 %v144
  %v1259 = vunpack.c.h.b16 %v144
  %v1260 = vunpack.c.l.b16 %v145
  %v1261 = vunpack.c.h.b16 %v145
  %v1262 = vunpack.c.l.b16 %v146
  %v1263 = vunpack.c.h.b16 %v146
  %v1264 = vunpack.c.l.b16 %v147
  %v1265 = vunpack.c.h.b16 %v147
  %v1266 = vunpack.c.l.b16 %v148
  %v1267 = vunpack.c.h.b16 %v148
  %v1268 = vunpack.c.l.b16 %v149
  %v1269 = vunpack.c.h.b16 %v149
  %v1270 = vunpack.c.l.b16 %v150
  %v1271 = vunpack.c.h.b16 %v150
  %v1272 = vunpack.c.l.b16 %v151
  %v1273 = vunpack.c.h.b16 %v151
  %v1274 = vunpack.c.l.b16 %v152
  %v1275 = vunpack.c.h.b16 %v152
  %v1276 = vunpack.c.l.b16 %v153
  %v1277 = vunpack.c.h.b16 %v153
  %v1278 = vunpack.c.l.b16 %v154
  %v1279 = vunpack.c.h.b16 %v154
  %v1280 = vunpack.c.l.b16 %v155
  %v1281 = vunpack.c.h.b16 %v155
  %v1282 = vunpack.c.l.b16 %v156
  %v1283 = vunpack.c.h.b16 %v156
  %v1284 = vunpack.c.l.b16 %v157
  %v1285 = vunpack.c.h.b16 %v157
  %v1286 = vunpack.c.l.b16 %v158
  %v1287 = vunpack.c.h.b16 %v158
  %v1288 = vunpack.c.l.b16 %v159
  %v1289 = vunpack.c.h.b16 %v159
  %v1290 = vunpack.c.l.b16 %v160
  %v1291 = vunpack.c.h.b16 %v160
  %v1292 = vunpack.c.l.b16 %v161
  %v1293 = vunpack.c.h.b16 %v161
  %v1294 = vunpack.c.l.b16 %v162
  %v1295 = vunpack.c.h.b16 %v162
  %v1296 = vunpack.c.l.b16 %v163
  %v1297 = vunpack.c.h.b16 %v163
  %v1298 = vunpack.c.l.b16 %v164
  %v1299 = vunpack.c.h.b16 %v164
  %v1300 = vunpack.c.l.b16 %v165
  %v1301 = vunpack.c.h.b16 %v165
  %v1302 = vunpack.c.l.b16 %v166
  %v1303 = vunpack.c.h.b16 %v166
  %v1304 = vunpack.c.l.b16 %v167
  %v1305 = vunpack.c.h.b16 %v167
  %v1306 = vunpack.c.l.b16 %v168
  %v1307 = vunpack.c.h.b16 %v168
  %v1308 = vunpack.c.l.b16 %v169
  %v1309 = vunpack.c.h.b16 %v169
  %v1310 = vunpack.c.l.b16 %v170
  %v1311 = vunpack.c.h.b16 %v170
  %v1312 = vunpack.c.l.b16 %v171
  %v1313 = vunpack.c.h.b16 %v171
  %v1314 = vunpack.c.l.b16 %v172
  %v1315 = vunpack.c.h.b16 %v172
  %v1316 = vunpack.c.l.b16 %v173
  %v1317 = vunpack.c.h.b16 %v173
  %v1318 = vunpack.c.l.b16 %v174
  %v1319 = vunpack.c.h.b16 %v174
  %v1320 = vunpack.c.l.b16 %v175
  %v1321 = vunpack.c.h.b16 %v175
  %v1322 = vunpack.c.l.b16 %v176
  %v1323 = vunpack.c.h.b16 %v176
  %v1324 = vunpack.c.l.b16 %v177
  %v1325 = vunpack.c.h.b16 %v177
  %v1326 = vunpack.c.l.b16 %v178
  %v1327 = vunpack.c.h.b16 %v178
  %v1328 = vpack.c.b16 %v1208, %v1200
  %v1329 = vpack.c.b16 %v1209, %v1201
  %v1330 = vpack.c.b16 %v1210, %v1202
  %v1331 = vpack.c.b16 %v1211, %v1203
  %v1332 = vpack.c.b16 %v1212, %v1204
  %v1333 = vpack.c.b16 %v1213, %v1205
  %v1334 = vpack.c.b16 %v1214, %v1206
  %v1335 = vpack.c.b16 %v1215, %v1207
  %v1336 = vpack.c.b16 %v1224, %v1216
  %v1337 = vpack.c.b16 %v1225, %v1217
  %v1338 = vpack.c.b16 %v1226, %v1218
  %v1339 = vpack.c.b16 %v1227, %v1219
  %v1340 = vpack.c.b16 %v1228, %v1220
  %v1341 = vpack.c.b16 %v1229, %v1221
  %v1342 = vpack.c.b16 %v1230, %v1222
  %v1343 = vpack.c.b16 %v1231, %v1223
  %v1344 = vpack.c.b16 %v1240, %v1232
  %v1345 = vpack.c.b16 %v1241, %v1233
  %v1346 = vpack.c.b16 %v1242, %v1234
  %v1347 = vpack.c.b16 %v1243, %v1235
  %v1348 = vpack.c.b16 %v1244, %v1236
  %v1349 = vpack.c.b16 %v1245, %v1237
  %v1350 = vpack.c.b16 %v1246, %v1238
  %v1351 = vpack.c.b16 %v1247, %v1239
  %v1352 = vpack.c.b16 %v1256, %v1248
  %v1353 = vpack.c.b16 %v1257, %v1249
  %v1354 = vpack.c.b16 %v1258, %v1250
  %v1355 = vpack.c.b16 %v1259, %v1251
  %v1356 = vpack.c.b16 %v1260, %v1252
  %v1357 = vpack.c.b16 %v1261, %v1253
  %v1358 = vpack.c.b16 %v1262, %v1254
  %v1359 = vpack.c.b16 %v1263, %v1255
  %v1360 = vpack.c.b16 %v1272, %v1264
  %v1361 = vpack.c.b16 %v1273, %v1265
  %v1362 = vpack.c.b16 %v1274, %v1266
  %v1363 = vpack.c.b16 %v1275, %v1267
  %v1364 = vpack.c.b16 %v1276, %v1268
  %v1365 = vpack.c.b16 %v1277, %v1269
  %v1366 = vpack.c.b16 %v1278, %v1270
  %v1367 = vpack.c.b16 %v1279, %v1271
  %v1368 = vpack.c.b16 %v1288, %v1280
  %v1369 = vpack.c.b16 %v1289, %v1281
  %v1370 = vpack.c.b16 %v1290, %v1282
  %v1371 = vpack.c.b16 %v1291, %v1283
  %v1372 = vpack.c.b16 %v1292, %v1284
  %v1373 = vpack.c.b16 %v1293, %v1285
  %v1374 = vpack.c.b16 %v1294, %v1286
  %v1375 = vpack.c.b16 %v1295, %v1287
  %v1376 = vpack.c.b16 %v1304, %v1296
  %v1377 = vpack.c.b16 %v1305, %v1297
  %v1378 = vpack.c.b16 %v1306, %v1298
  %v1379 = vpack.c.b16 %v1307, %v1299
  %v1380 = vpack.c.b16 %v1308, %v1300
  %v1381 = vpack.c.b16 %v1309, %v1301
  %v1382 = vpack.c.b16 %v1310, %v1302
  %v1383 = vpack.c.b16 %v1311, %v1303
  %v1384 = vpack.c.b16 %v1320, %v1312
  %v1385 = vpack.c.b16 %v1321, %v1313
  %v1386 = vpack.c.b16 %v1322, %v1314
  %v1387 = vpack.c.b16 %v1323, %v1315
  %v1388 = vpack.c.b16 %v1324, %v1316
  %v1389 = vpack.c.b16 %v1325, %v1317
  %v1390 = vpack.c.b16 %v1326, %v1318
  %v1391 = vpack.c.b16 %v1327, %v1319
  %1456 = vmatprep.subr.bf16.mxu0 %v1385
  %1457 = vmatpush1.bf16.msra.mxu0 %v1384
  %1458 = vmatprep.subr.bf16.mxu0 %v1377
  %1459 = vmatpush1.bf16.msra.mxu0 %v1376
  %1460 = vmatprep.subr.bf16.mxu0 %v1369
  %1461 = vmatpush1.bf16.msra.mxu0 %v1368
  %1462 = vmatprep.subr.bf16.mxu0 %v1361
  %1463 = vmatpush1.bf16.msra.mxu0 %v1360
  %1464 = vmatprep.subr.bf16.mxu0 %v1353
  %1465 = vmatpush1.bf16.msra.mxu0 %v1352
  %1466 = vmatprep.subr.bf16.mxu0 %v1345
  %1467 = vmatpush1.bf16.msra.mxu0 %v1344
  %1468 = vmatprep.subr.bf16.mxu0 %v1337
  %1469 = vmatpush1.bf16.msra.mxu0 %v1336
  %1470 = vmatprep.subr.bf16.mxu0 %v1329
  %1471 = vmatpush1.bf16.msra.mxu0 %v1328
  %1472 = vmatprep.subr.bf16.mxu0 0
  %1473 = vmatpush2.bf16.msra.mxu0 0
  %1474 = vmatprep.subr.bf16.mxu0 0
  %1475 = vmatpush2.bf16.msra.mxu0 0
  %1476 = vmatprep.subr.bf16.mxu0 0
  %1477 = vmatpush2.bf16.msra.mxu0 0
  %1478 = vmatprep.subr.bf16.mxu0 0
  %1479 = vmatpush2.bf16.msra.mxu0 0
  %1480 = vmatprep.subr.bf16.mxu0 0
  %1481 = vmatpush2.bf16.msra.mxu0 0
  %1482 = vmatprep.subr.bf16.mxu0 0
  %1483 = vmatpush2.bf16.msra.mxu0 0
  %1484 = vmatprep.subr.bf16.mxu0 0
  %1485 = vmatpush2.bf16.msra.mxu0 0
  %1486 = vmatprep.subr.bf16.mxu0 0
  %1487 = vmatpush2.bf16.msra.mxu0 0
  %1488 = vmatprep.mubr.bf16.mxu0 0
  %1489 = vmatmul.mubr.bf16.gmra.mxu0 %v1135
  %v1490 = vpop.f32.mrf.mxu0
  %v1491 = vadd.f32 0.0, %v1490
  %v1492 = vpop.f32.mrf.mxu0
  %v1493 = vadd.f32 0.0, %v1492
  %v1494 = vpop.f32.mrf.mxu0
  %v1495 = vadd.f32 0.0, %v1494
  %v1496 = vpop.f32.mrf.mxu0
  %v1497 = vadd.f32 0.0, %v1496
  %1498 = vdwg.mxu0
  %1499 = vmatprep.subr.bf16.mxu0 %v1387
  %1500 = vmatpush1.bf16.msra.mxu0 %v1386
  %1501 = vmatprep.subr.bf16.mxu0 %v1379
  %1502 = vmatpush1.bf16.msra.mxu0 %v1378
  %1503 = vmatprep.subr.bf16.mxu0 %v1371
  %1504 = vmatpush1.bf16.msra.mxu0 %v1370
  %1505 = vmatprep.subr.bf16.mxu0 %v1363
  %1506 = vmatpush1.bf16.msra.mxu0 %v1362
  %1507 = vmatprep.subr.bf16.mxu0 %v1355
  %1508 = vmatpush1.bf16.msra.mxu0 %v1354
  %1509 = vmatprep.subr.bf16.mxu0 %v1347
  %1510 = vmatpush1.bf16.msra.mxu0 %v1346
  %1511 = vmatprep.subr.bf16.mxu0 %v1339
  %1512 = vmatpush1.bf16.msra.mxu0 %v1338
  %1513 = vmatprep.subr.bf16.mxu0 %v1331
  %1514 = vmatpush1.bf16.msra.mxu0 %v1330
  %1515 = vmatprep.subr.bf16.mxu0 0
  %1516 = vmatpush2.bf16.msra.mxu0 0
  %1517 = vmatprep.subr.bf16.mxu0 0
  %1518 = vmatpush2.bf16.msra.mxu0 0
  %1519 = vmatprep.subr.bf16.mxu0 0
  %1520 = vmatpush2.bf16.msra.mxu0 0
  %1521 = vmatprep.subr.bf16.mxu0 0
  %1522 = vmatpush2.bf16.msra.mxu0 0
  %1523 = vmatprep.subr.bf16.mxu0 0
  %1524 = vmatpush2.bf16.msra.mxu0 0
  %1525 = vmatprep.subr.bf16.mxu0 0
  %1526 = vmatpush2.bf16.msra.mxu0 0
  %1527 = vmatprep.subr.bf16.mxu0 0
  %1528 = vmatpush2.bf16.msra.mxu0 0
  %1529 = vmatprep.subr.bf16.mxu0 0
  %1530 = vmatpush2.bf16.msra.mxu0 0
  %1531 = vmatprep.mubr.bf16.mxu0 0
  %1532 = vmatmul.mubr.bf16.gmra.mxu0 %v1135
  %v1533 = vpop.f32.mrf.mxu0
  %v1534 = vadd.f32 0.0, %v1533
  %v1535 = vpop.f32.mrf.mxu0
  %v1536 = vadd.f32 0.0, %v1535
  %v1537 = vpop.f32.mrf.mxu0
  %v1538 = vadd.f32 0.0, %v1537
  %v1539 = vpop.f32.mrf.mxu0
  %v1540 = vadd.f32 0.0, %v1539
  %1541 = vdwg.mxu0
  %1542 = vmatprep.subr.bf16.mxu0 %v1389
  %1543 = vmatpush1.bf16.msra.mxu0 %v1388
  %1544 = vmatprep.subr.bf16.mxu0 %v1381
  %1545 = vmatpush1.bf16.msra.mxu0 %v1380
  %1546 = vmatprep.subr.bf16.mxu0 %v1373
  %1547 = vmatpush1.bf16.msra.mxu0 %v1372
  %1548 = vmatprep.subr.bf16.mxu0 %v1365
  %1549 = vmatpush1.bf16.msra.mxu0 %v1364
  %1550 = vmatprep.subr.bf16.mxu0 %v1357
  %1551 = vmatpush1.bf16.msra.mxu0 %v1356
  %1552 = vmatprep.subr.bf16.mxu0 %v1349
  %1553 = vmatpush1.bf16.msra.mxu0 %v1348
  %1554 = vmatprep.subr.bf16.mxu0 %v1341
  %1555 = vmatpush1.bf16.msra.mxu0 %v1340
  %1556 = vmatprep.subr.bf16.mxu0 %v1333
  %1557 = vmatpush1.bf16.msra.mxu0 %v1332
  %1558 = vmatprep.subr.bf16.mxu0 0
  %1559 = vmatpush2.bf16.msra.mxu0 0
  %1560 = vmatprep.subr.bf16.mxu0 0
  %1561 = vmatpush2.bf16.msra.mxu0 0
  %1562 = vmatprep.subr.bf16.mxu0 0
  %1563 = vmatpush2.bf16.msra.mxu0 0
  %1564 = vmatprep.subr.bf16.mxu0 0
  %1565 = vmatpush2.bf16.msra.mxu0 0
  %1566 = vmatprep.subr.bf16.mxu0 0
  %1567 = vmatpush2.bf16.msra.mxu0 0
  %1568 = vmatprep.subr.bf16.mxu0 0
  %1569 = vmatpush2.bf16.msra.mxu0 0
  %1570 = vmatprep.subr.bf16.mxu0 0
  %1571 = vmatpush2.bf16.msra.mxu0 0
  %1572 = vmatprep.subr.bf16.mxu0 0
  %1573 = vmatpush2.bf16.msra.mxu0 0
  %1574 = vmatprep.mubr.bf16.mxu0 0
  %1575 = vmatmul.mubr.bf16.gmra.mxu0 %v1135
  %v1576 = vpop.f32.mrf.mxu0
  %v1577 = vadd.f32 0.0, %v1576
  %v1578 = vpop.f32.mrf.mxu0
  %v1579 = vadd.f32 0.0, %v1578
  %v1580 = vpop.f32.mrf.mxu0
  %v1581 = vadd.f32 0.0, %v1580
  %v1582 = vpop.f32.mrf.mxu0
  %v1583 = vadd.f32 0.0, %v1582
  %1584 = vdwg.mxu0
  %1585 = vmatprep.subr.bf16.mxu0 %v1391
  %1586 = vmatpush1.bf16.msra.mxu0 %v1390
  %1587 = vmatprep.subr.bf16.mxu0 %v1383
  %1588 = vmatpush1.bf16.msra.mxu0 %v1382
  %1589 = vmatprep.subr.bf16.mxu0 %v1375
  %1590 = vmatpush1.bf16.msra.mxu0 %v1374
  %1591 = vmatprep.subr.bf16.mxu0 %v1367
  %1592 = vmatpush1.bf16.msra.mxu0 %v1366
  %1593 = vmatprep.subr.bf16.mxu0 %v1359
  %1594 = vmatpush1.bf16.msra.mxu0 %v1358
  %1595 = vmatprep.subr.bf16.mxu0 %v1351
  %1596 = vmatpush1.bf16.msra.mxu0 %v1350
  %1597 = vmatprep.subr.bf16.mxu0 %v1343
  %1598 = vmatpush1.bf16.msra.mxu0 %v1342
  %1599 = vmatprep.subr.bf16.mxu0 %v1335
  %1600 = vmatpush1.bf16.msra.mxu0 %v1334
  %1601 = vmatprep.subr.bf16.mxu0 0
  %1602 = vmatpush2.bf16.msra.mxu0 0
  %1603 = vmatprep.subr.bf16.mxu0 0
  %1604 = vmatpush2.bf16.msra.mxu0 0
  %1605 = vmatprep.subr.bf16.mxu0 0
  %1606 = vmatpush2.bf16.msra.mxu0 0
  %1607 = vmatprep.subr.bf16.mxu0 0
  %1608 = vmatpush2.bf16.msra.mxu0 0
  %1609 = vmatprep.subr.bf16.mxu0 0
  %1610 = vmatpush2.bf16.msra.mxu0 0
  %1611 = vmatprep.subr.bf16.mxu0 0
  %1612 = vmatpush2.bf16.msra.mxu0 0
  %1613 = vmatprep.subr.bf16.mxu0 0
  %1614 = vmatpush2.bf16.msra.mxu0 0
  %1615 = vmatprep.subr.bf16.mxu0 0
  %1616 = vmatpush2.bf16.msra.mxu0 0
  %1617 = vmatprep.mubr.bf16.mxu0 0
  %1618 = vmatmul.mubr.bf16.gmra.mxu0 %v1135
  %v1619 = vpop.f32.mrf.mxu0
  %v1620 = vadd.f32 0.0, %v1619
  %v1621 = vpop.f32.mrf.mxu0
  %v1622 = vadd.f32 0.0, %v1621
  %v1623 = vpop.f32.mrf.mxu0
  %v1624 = vadd.f32 0.0, %v1623
  %v1625 = vpop.f32.mrf.mxu0
  %v1626 = vadd.f32 0.0, %v1625
  %1627 = vdwg.mxu0
  %v1660 = vunpack.c.l.b16 %v179
  %v1661 = vunpack.c.h.b16 %v179
  %v1662 = vunpack.c.l.b16 %v180
  %v1663 = vunpack.c.h.b16 %v180
  %v1664 = vunpack.c.l.b16 %v181
  %v1665 = vunpack.c.h.b16 %v181
  %v1666 = vunpack.c.l.b16 %v182
  %v1667 = vunpack.c.h.b16 %v182
  %v1668 = vunpack.c.l.b16 %v183
  %v1669 = vunpack.c.h.b16 %v183
  %v1670 = vunpack.c.l.b16 %v184
  %v1671 = vunpack.c.h.b16 %v184
  %v1672 = vunpack.c.l.b16 %v185
  %v1673 = vunpack.c.h.b16 %v185
  %v1674 = vunpack.c.l.b16 %v186
  %v1675 = vunpack.c.h.b16 %v186
  %v1676 = vunpack.c.l.b16 %v187
  %v1677 = vunpack.c.h.b16 %v187
  %v1678 = vunpack.c.l.b16 %v188
  %v1679 = vunpack.c.h.b16 %v188
  %v1680 = vunpack.c.l.b16 %v189
  %v1681 = vunpack.c.h.b16 %v189
  %v1682 = vunpack.c.l.b16 %v190
  %v1683 = vunpack.c.h.b16 %v190
  %v1684 = vunpack.c.l.b16 %v191
  %v1685 = vunpack.c.h.b16 %v191
  %v1686 = vunpack.c.l.b16 %v192
  %v1687 = vunpack.c.h.b16 %v192
  %v1688 = vunpack.c.l.b16 %v193
  %v1689 = vunpack.c.h.b16 %v193
  %v1690 = vunpack.c.l.b16 %v194
  %v1691 = vunpack.c.h.b16 %v194
  %v1692 = vunpack.c.l.b16 %v195
  %v1693 = vunpack.c.h.b16 %v195
  %v1694 = vunpack.c.l.b16 %v196
  %v1695 = vunpack.c.h.b16 %v196
  %v1696 = vunpack.c.l.b16 %v197
  %v1697 = vunpack.c.h.b16 %v197
  %v1698 = vunpack.c.l.b16 %v198
  %v1699 = vunpack.c.h.b16 %v198
  %v1700 = vunpack.c.l.b16 %v199
  %v1701 = vunpack.c.h.b16 %v199
  %v1702 = vunpack.c.l.b16 %v200
  %v1703 = vunpack.c.h.b16 %v200
  %v1704 = vunpack.c.l.b16 %v201
  %v1705 = vunpack.c.h.b16 %v201
  %v1706 = vunpack.c.l.b16 %v202
  %v1707 = vunpack.c.h.b16 %v202
  %v1708 = vunpack.c.l.b16 %v203
  %v1709 = vunpack.c.h.b16 %v203
  %v1710 = vunpack.c.l.b16 %v204
  %v1711 = vunpack.c.h.b16 %v204
  %v1712 = vunpack.c.l.b16 %v205
  %v1713 = vunpack.c.h.b16 %v205
  %v1714 = vunpack.c.l.b16 %v206
  %v1715 = vunpack.c.h.b16 %v206
  %v1716 = vunpack.c.l.b16 %v207
  %v1717 = vunpack.c.h.b16 %v207
  %v1718 = vunpack.c.l.b16 %v208
  %v1719 = vunpack.c.h.b16 %v208
  %v1720 = vunpack.c.l.b16 %v209
  %v1721 = vunpack.c.h.b16 %v209
  %v1722 = vunpack.c.l.b16 %v210
  %v1723 = vunpack.c.h.b16 %v210
  %v1724 = vpack.c.b16 %v1664, %v1660
  %v1725 = vpack.c.b16 %v1665, %v1661
  %v1726 = vpack.c.b16 %v1666, %v1662
  %v1727 = vpack.c.b16 %v1667, %v1663
  %v1728 = vpack.c.b16 %v1672, %v1668
  %v1729 = vpack.c.b16 %v1673, %v1669
  %v1730 = vpack.c.b16 %v1674, %v1670
  %v1731 = vpack.c.b16 %v1675, %v1671
  %v1732 = vpack.c.b16 %v1680, %v1676
  %v1733 = vpack.c.b16 %v1681, %v1677
  %v1734 = vpack.c.b16 %v1682, %v1678
  %v1735 = vpack.c.b16 %v1683, %v1679
  %v1736 = vpack.c.b16 %v1688, %v1684
  %v1737 = vpack.c.b16 %v1689, %v1685
  %v1738 = vpack.c.b16 %v1690, %v1686
  %v1739 = vpack.c.b16 %v1691, %v1687
  %v1740 = vpack.c.b16 %v1696, %v1692
  %v1741 = vpack.c.b16 %v1697, %v1693
  %v1742 = vpack.c.b16 %v1698, %v1694
  %v1743 = vpack.c.b16 %v1699, %v1695
  %v1744 = vpack.c.b16 %v1704, %v1700
  %v1745 = vpack.c.b16 %v1705, %v1701
  %v1746 = vpack.c.b16 %v1706, %v1702
  %v1747 = vpack.c.b16 %v1707, %v1703
  %v1748 = vpack.c.b16 %v1712, %v1708
  %v1749 = vpack.c.b16 %v1713, %v1709
  %v1750 = vpack.c.b16 %v1714, %v1710
  %v1751 = vpack.c.b16 %v1715, %v1711
  %v1752 = vpack.c.b16 %v1720, %v1716
  %v1753 = vpack.c.b16 %v1721, %v1717
  %v1754 = vpack.c.b16 %v1722, %v1718
  %v1755 = vpack.c.b16 %v1723, %v1719
  %1788 = vmatprep.subr.bf16.mxu0 %v1753
  %1789 = vmatpush1.bf16.msra.mxu0 %v1752
  %1790 = vmatprep.subr.bf16.mxu0 %v1749
  %1791 = vmatpush1.bf16.msra.mxu0 %v1748
  %1792 = vmatprep.subr.bf16.mxu0 %v1745
  %1793 = vmatpush1.bf16.msra.mxu0 %v1744
  %1794 = vmatprep.subr.bf16.mxu0 %v1741
  %1795 = vmatpush1.bf16.msra.mxu0 %v1740
  %1796 = vmatprep.subr.bf16.mxu0 %v1737
  %1797 = vmatpush1.bf16.msra.mxu0 %v1736
  %1798 = vmatprep.subr.bf16.mxu0 %v1733
  %1799 = vmatpush1.bf16.msra.mxu0 %v1732
  %1800 = vmatprep.subr.bf16.mxu0 %v1729
  %1801 = vmatpush1.bf16.msra.mxu0 %v1728
  %1802 = vmatprep.subr.bf16.mxu0 %v1725
  %1803 = vmatpush1.bf16.msra.mxu0 %v1724
  %1804 = vmatprep.subr.bf16.mxu0 0
  %1805 = vmatpush2.bf16.msra.mxu0 0
  %1806 = vmatprep.subr.bf16.mxu0 0
  %1807 = vmatpush2.bf16.msra.mxu0 0
  %1808 = vmatprep.subr.bf16.mxu0 0
  %1809 = vmatpush2.bf16.msra.mxu0 0
  %1810 = vmatprep.subr.bf16.mxu0 0
  %1811 = vmatpush2.bf16.msra.mxu0 0
  %1812 = vmatprep.subr.bf16.mxu0 0
  %1813 = vmatpush2.bf16.msra.mxu0 0
  %1814 = vmatprep.subr.bf16.mxu0 0
  %1815 = vmatpush2.bf16.msra.mxu0 0
  %1816 = vmatprep.subr.bf16.mxu0 0
  %1817 = vmatpush2.bf16.msra.mxu0 0
  %1818 = vmatprep.subr.bf16.mxu0 0
  %1819 = vmatpush2.bf16.msra.mxu0 0
  %1820 = vmatprep.mubr.bf16.mxu0 0
  %1821 = vmatmul.mubr.bf16.gmra.mxu0 0
  %v1822 = vpop.f32.mrf.mxu0
  %v1823 = vadd.f32 0.0, %v1822
  %v1824 = vpop.f32.mrf.mxu0
  %v1825 = vadd.f32 0.0, %v1824
  %v1826 = vpop.f32.mrf.mxu0
  %v1827 = vadd.f32 0.0, %v1826
  %v1828 = vpop.f32.mrf.mxu0
  %v1829 = vadd.f32 0.0, %v1828
  %1830 = vdwg.mxu0
  %1831 = vmatprep.subr.bf16.mxu0 %v1755
  %1832 = vmatpush1.bf16.msra.mxu0 %v1754
  %1833 = vmatprep.subr.bf16.mxu0 %v1751
  %1834 = vmatpush1.bf16.msra.mxu0 %v1750
  %1835 = vmatprep.subr.bf16.mxu0 %v1747
  %1836 = vmatpush1.bf16.msra.mxu0 %v1746
  %1837 = vmatprep.subr.bf16.mxu0 %v1743
  %1838 = vmatpush1.bf16.msra.mxu0 %v1742
  %1839 = vmatprep.subr.bf16.mxu0 %v1739
  %1840 = vmatpush1.bf16.msra.mxu0 %v1738
  %1841 = vmatprep.subr.bf16.mxu0 %v1735
  %1842 = vmatpush1.bf16.msra.mxu0 %v1734
  %1843 = vmatprep.subr.bf16.mxu0 %v1731
  %1844 = vmatpush1.bf16.msra.mxu0 %v1730
  %1845 = vmatprep.subr.bf16.mxu0 %v1727
  %1846 = vmatpush1.bf16.msra.mxu0 %v1726
  %1847 = vmatprep.subr.bf16.mxu0 0
  %1848 = vmatpush2.bf16.msra.mxu0 0
  %1849 = vmatprep.subr.bf16.mxu0 0
  %1850 = vmatpush2.bf16.msra.mxu0 0
  %1851 = vmatprep.subr.bf16.mxu0 0
  %1852 = vmatpush2.bf16.msra.mxu0 0
  %1853 = vmatprep.subr.bf16.mxu0 0
  %1854 = vmatpush2.bf16.msra.mxu0 0
  %1855 = vmatprep.subr.bf16.mxu0 0
  %1856 = vmatpush2.bf16.msra.mxu0 0
  %1857 = vmatprep.subr.bf16.mxu0 0
  %1858 = vmatpush2.bf16.msra.mxu0 0
  %1859 = vmatprep.subr.bf16.mxu0 0
  %1860 = vmatpush2.bf16.msra.mxu0 0
  %1861 = vmatprep.subr.bf16.mxu0 0
  %1862 = vmatpush2.bf16.msra.mxu0 0
  %1863 = vmatprep.mubr.bf16.mxu0 0
  %1864 = vmatmul.mubr.bf16.gmra.mxu0 0
  %v1865 = vpop.f32.mrf.mxu0
  %v1866 = vadd.f32 0.0, %v1865
  %v1867 = vpop.f32.mrf.mxu0
  %v1868 = vadd.f32 0.0, %v1867
  %v1869 = vpop.f32.mrf.mxu0
  %v1870 = vadd.f32 0.0, %v1869
  %v1871 = vpop.f32.mrf.mxu0
  %v1872 = vadd.f32 0.0, %v1871
  %1873 = vdwg.mxu0
  %v1874 = vadd.f32 %v1577, %v1823
  %v1875 = vadd.f32 %v1579, %v1825
  %v1876 = vadd.f32 %v1620, %v1866
  %v1877 = vadd.f32 %v1622, %v1868
  %v1878 = vadd.f32 %v1581, %v1827
  %v1879 = vadd.f32 %v1583, %v1829
  %v1880 = vadd.f32 %v1624, %v1870
  %v1881 = vadd.f32 %v1626, %v1872
  %v1882 = vadd.f32 %v1874, %v312
  %v1883 = vadd.f32 %v1875, %v316
  %v1884 = vadd.f32 %v1876, %v320
  %v1885 = vadd.f32 %v1877, %v324
  %v1886 = vadd.f32 %v1878, %v312
  %v1887 = vadd.f32 %v1879, %v316
  %v1888 = vadd.f32 %v1880, %v320
  %v1889 = vadd.f32 %v1881, %v324
  %v1890 = vmul.f32 %v1882, 0.5
  %v1891 = vmul.f32 %v1886, 0.5
  %v1892 = vtanh.pop %v1890
  %v1893 = vtanh.pop %v1891
  %v1894 = vadd.f32 %v1892, 1.0
  %v1895 = vadd.f32 %v1893, 1.0
  %v1896 = vmul.f32 %v1894, 0.5
  %v1897 = vmul.f32 %v1895, 0.5
  %v1898 = vmul.f32 %v1883, 0.5
  %v1899 = vmul.f32 %v1887, 0.5
  %v1900 = vtanh.pop %v1898
  %v1901 = vtanh.pop %v1899
  %v1902 = vadd.f32 %v1900, 1.0
  %v1903 = vadd.f32 %v1901, 1.0
  %v1904 = vmul.f32 %v1902, 0.5
  %v1905 = vmul.f32 %v1903, 0.5
  %v1906 = vtanh.pop %v1884
  %v1907 = vtanh.pop %v1888
  %v1908 = vmul.f32 %v1885, 0.5
  %v1909 = vmul.f32 %v1889, 0.5
  %v1910 = vtanh.pop %v1908
  %v1911 = vtanh.pop %v1909
  %v1912 = vadd.f32 %v1910, 1.0
  %v1913 = vadd.f32 %v1911, 1.0
  %v1914 = vmul.f32 %v1912, 0.5
  %v1915 = vmul.f32 %v1913, 0.5
  %v1916 = vmul.f32 %v1904, 0.0
  %v1917 = vmul.f32 %v1905, 0.0
  %v1918 = vmul.f32 %v1896, %v1906
  %v1919 = vmul.f32 %v1897, %v1907
  %v1920 = vadd.f32 %v1916, %v1918
  %v1921 = vadd.f32 %v1917, %v1919
  %v1922 = vtanh.pop %v1920
  %v1923 = vtanh.pop %v1921
  %v1924 = vmul.f32 %v1914, %v1922
  %v1925 = vmul.f32 %v1915, %v1923
  %v1926 = vpack.c.bf16 %v1925, %v1924
  %v1928 = vunpack.c.l.b16 %v1926
  %v1929 = vunpack.c.h.b16 %v1926
  %v1930 = vpack.c.b16 %v1928, %v1928
  %v1931 = vpack.c.b16 %v1929, %v1929
  %1934 = vst [vmem:[#allocation4] sm:$0xf] %v1930
  %1935 = vst [vmem:[#allocation4 + $0x4] sm:$0xf] %v1931
  %s1936 = scalar_lea.vmem [#allocation2], 32
  %v1937 = vld [vmem:[%s1936] sm:$0xff]
  %v1938 = vld [vmem:[%s1936 + $0x8] sm:$0xff]
  %v1939 = vld [vmem:[%s1936 + $0x10] sm:$0xff]
  %v1940 = vld [vmem:[%s1936 + $0x18] sm:$0xff]
  %v1941 = vunpack.c.l.bf16 %v1937
  %v1942 = vunpack.c.h.bf16 %v1937
  %v1943 = vunpack.c.l.bf16 %v1938
  %v1944 = vunpack.c.h.bf16 %v1938
  %v1945 = vunpack.c.l.bf16 %v1939
  %v1946 = vunpack.c.h.bf16 %v1939
  %v1947 = vunpack.c.l.bf16 %v1940
  %v1948 = vunpack.c.h.bf16 %v1940
  %v1949 = vadd.f32 %v1941, %v1491
  %v1950 = vadd.f32 %v1942, %v1493
  %v1951 = vadd.f32 %v1943, %v1534
  %v1952 = vadd.f32 %v1944, %v1536
  %v1953 = vadd.f32 %v1945, %v1495
  %v1954 = vadd.f32 %v1946, %v1497
  %v1955 = vadd.f32 %v1947, %v1538
  %v1956 = vadd.f32 %v1948, %v1540
  %v1957 = vmul.f32 %v1949, 0.5
  %v1958 = vmul.f32 %v1953, 0.5
  %v1959 = vtanh.pop %v1957
  %v1960 = vtanh.pop %v1958
  %v1961 = vadd.f32 %v1959, 1.0
  %v1962 = vadd.f32 %v1960, 1.0
  %v1963 = vmul.f32 %v1961, 0.5
  %v1964 = vmul.f32 %v1962, 0.5
  %v1965 = vmul.f32 %v1950, 0.5
  %v1966 = vmul.f32 %v1954, 0.5
  %v1967 = vtanh.pop %v1965
  %v1968 = vtanh.pop %v1966
  %v1969 = vadd.f32 %v1967, 1.0
  %v1970 = vadd.f32 %v1968, 1.0
  %v1971 = vmul.f32 %v1969, 0.5
  %v1972 = vmul.f32 %v1970, 0.5
  %v1973 = vtanh.pop %v1951
  %v1974 = vtanh.pop %v1955
  %v1975 = vmul.f32 %v1952, 0.5
  %v1976 = vmul.f32 %v1956, 0.5
  %v1977 = vtanh.pop %v1975
  %v1978 = vtanh.pop %v1976
  %v1979 = vadd.f32 %v1977, 1.0
  %v1980 = vadd.f32 %v1978, 1.0
  %v1981 = vmul.f32 %v1979, 0.5
  %v1982 = vmul.f32 %v1980, 0.5
  %v1983 = vmul.f32 %v1971, %v1129
  %v1984 = vmul.f32 %v1972, %v1130
  %v1985 = vmul.f32 %v1963, %v1973
  %v1986 = vmul.f32 %v1964, %v1974
  %v1987 = vadd.f32 %v1983, %v1985
  %v1988 = vadd.f32 %v1984, %v1986
  %v1989 = vtanh.pop %v1987
  %v1990 = vtanh.pop %v1988
  %v1991 = vmul.f32 %v1981, %v1989
  %v1992 = vmul.f32 %v1982, %v1990
  %v1993 = vpack.c.bf16 %v1992, %v1991
  %1994 = vmatprep.subr.bf16.mxu0 %v1385
  %1995 = vmatpush1.bf16.msra.mxu0 %v1384
  %1996 = vmatprep.subr.bf16.mxu0 %v1377
  %1997 = vmatpush1.bf16.msra.mxu0 %v1376
  %1998 = vmatprep.subr.bf16.mxu0 %v1369
  %1999 = vmatpush1.bf16.msra.mxu0 %v1368
  %2000 = vmatprep.subr.bf16.mxu0 %v1361
  %2001 = vmatpush1.bf16.msra.mxu0 %v1360
  %2002 = vmatprep.subr.bf16.mxu0 %v1353
  %2003 = vmatpush1.bf16.msra.mxu0 %v1352
  %2004 = vmatprep.subr.bf16.mxu0 %v1345
  %2005 = vmatpush1.bf16.msra.mxu0 %v1344
  %2006 = vmatprep.subr.bf16.mxu0 %v1337
  %2007 = vmatpush1.bf16.msra.mxu0 %v1336
  %2008 = vmatprep.subr.bf16.mxu0 %v1329
  %2009 = vmatpush1.bf16.msra.mxu0 %v1328
  %2010 = vmatprep.subr.bf16.mxu0 0
  %2011 = vmatpush2.bf16.msra.mxu0 0
  %2012 = vmatprep.subr.bf16.mxu0 0
  %2013 = vmatpush2.bf16.msra.mxu0 0
  %2014 = vmatprep.subr.bf16.mxu0 0
  %2015 = vmatpush2.bf16.msra.mxu0 0
  %2016 = vmatprep.subr.bf16.mxu0 0
  %2017 = vmatpush2.bf16.msra.mxu0 0
  %2018 = vmatprep.subr.bf16.mxu0 0
  %2019 = vmatpush2.bf16.msra.mxu0 0
  %2020 = vmatprep.subr.bf16.mxu0 0
  %2021 = vmatpush2.bf16.msra.mxu0 0
  %2022 = vmatprep.subr.bf16.mxu0 0
  %2023 = vmatpush2.bf16.msra.mxu0 0
  %2024 = vmatprep.subr.bf16.mxu0 0
  %2025 = vmatpush2.bf16.msra.mxu0 0
  %2026 = vmatprep.mubr.bf16.mxu0 0
  %2027 = vmatmul.mubr.bf16.gmra.mxu0 %v1993
  %v2028 = vpop.f32.mrf.mxu0
  %v2029 = vadd.f32 0.0, %v2028
  %v2030 = vpop.f32.mrf.mxu0
  %v2031 = vadd.f32 0.0, %v2030
  %v2032 = vpop.f32.mrf.mxu0
  %v2033 = vadd.f32 0.0, %v2032
  %v2034 = vpop.f32.mrf.mxu0
  %v2035 = vadd.f32 0.0, %v2034
  %2036 = vdwg.mxu0
  %2037 = vmatprep.subr.bf16.mxu0 %v1387
  %2038 = vmatpush1.bf16.msra.mxu0 %v1386
  %2039 = vmatprep.subr.bf16.mxu0 %v1379
  %2040 = vmatpush1.bf16.msra.mxu0 %v1378
  %2041 = vmatprep.subr.bf16.mxu0 %v1371
  %2042 = vmatpush1.bf16.msra.mxu0 %v1370
  %2043 = vmatprep.subr.bf16.mxu0 %v1363
  %2044 = vmatpush1.bf16.msra.mxu0 %v1362
  %2045 = vmatprep.subr.bf16.mxu0 %v1355
  %2046 = vmatpush1.bf16.msra.mxu0 %v1354
  %2047 = vmatprep.subr.bf16.mxu0 %v1347
  %2048 = vmatpush1.bf16.msra.mxu0 %v1346
  %2049 = vmatprep.subr.bf16.mxu0 %v1339
  %2050 = vmatpush1.bf16.msra.mxu0 %v1338
  %2051 = vmatprep.subr.bf16.mxu0 %v1331
  %2052 = vmatpush1.bf16.msra.mxu0 %v1330
  %2053 = vmatprep.subr.bf16.mxu0 0
  %2054 = vmatpush2.bf16.msra.mxu0 0
  %2055 = vmatprep.subr.bf16.mxu0 0
  %2056 = vmatpush2.bf16.msra.mxu0 0
  %2057 = vmatprep.subr.bf16.mxu0 0
  %2058 = vmatpush2.bf16.msra.mxu0 0
  %2059 = vmatprep.subr.bf16.mxu0 0
  %2060 = vmatpush2.bf16.msra.mxu0 0
  %2061 = vmatprep.subr.bf16.mxu0 0
  %2062 = vmatpush2.bf16.msra.mxu0 0
  %2063 = vmatprep.subr.bf16.mxu0 0
  %2064 = vmatpush2.bf16.msra.mxu0 0
  %2065 = vmatprep.subr.bf16.mxu0 0
  %2066 = vmatpush2.bf16.msra.mxu0 0
  %2067 = vmatprep.subr.bf16.mxu0 0
  %2068 = vmatpush2.bf16.msra.mxu0 0
  %2069 = vmatprep.mubr.bf16.mxu0 0
  %2070 = vmatmul.mubr.bf16.gmra.mxu0 %v1993
  %v2071 = vpop.f32.mrf.mxu0
  %v2072 = vadd.f32 0.0, %v2071
  %v2073 = vpop.f32.mrf.mxu0
  %v2074 = vadd.f32 0.0, %v2073
  %v2075 = vpop.f32.mrf.mxu0
  %v2076 = vadd.f32 0.0, %v2075
  %v2077 = vpop.f32.mrf.mxu0
  %v2078 = vadd.f32 0.0, %v2077
  %2079 = vdwg.mxu0
  %2080 = vmatprep.subr.bf16.mxu0 %v1389
  %2081 = vmatpush1.bf16.msra.mxu0 %v1388
  %2082 = vmatprep.subr.bf16.mxu0 %v1381
  %2083 = vmatpush1.bf16.msra.mxu0 %v1380
  %2084 = vmatprep.subr.bf16.mxu0 %v1373
  %2085 = vmatpush1.bf16.msra.mxu0 %v1372
  %2086 = vmatprep.subr.bf16.mxu0 %v1365
  %2087 = vmatpush1.bf16.msra.mxu0 %v1364
  %2088 = vmatprep.subr.bf16.mxu0 %v1357
  %2089 = vmatpush1.bf16.msra.mxu0 %v1356
  %2090 = vmatprep.subr.bf16.mxu0 %v1349
  %2091 = vmatpush1.bf16.msra.mxu0 %v1348
  %2092 = vmatprep.subr.bf16.mxu0 %v1341
  %2093 = vmatpush1.bf16.msra.mxu0 %v1340
  %2094 = vmatprep.subr.bf16.mxu0 %v1333
  %2095 = vmatpush1.bf16.msra.mxu0 %v1332
  %2096 = vmatprep.subr.bf16.mxu0 0
  %2097 = vmatpush2.bf16.msra.mxu0 0
  %2098 = vmatprep.subr.bf16.mxu0 0
  %2099 = vmatpush2.bf16.msra.mxu0 0
  %2100 = vmatprep.subr.bf16.mxu0 0
  %2101 = vmatpush2.bf16.msra.mxu0 0
  %2102 = vmatprep.subr.bf16.mxu0 0
  %2103 = vmatpush2.bf16.msra.mxu0 0
  %2104 = vmatprep.subr.bf16.mxu0 0
  %2105 = vmatpush2.bf16.msra.mxu0 0
  %2106 = vmatprep.subr.bf16.mxu0 0
  %2107 = vmatpush2.bf16.msra.mxu0 0
  %2108 = vmatprep.subr.bf16.mxu0 0
  %2109 = vmatpush2.bf16.msra.mxu0 0
  %2110 = vmatprep.subr.bf16.mxu0 0
  %2111 = vmatpush2.bf16.msra.mxu0 0
  %2112 = vmatprep.mubr.bf16.mxu0 0
  %2113 = vmatmul.mubr.bf16.gmra.mxu0 %v1993
  %v2114 = vpop.f32.mrf.mxu0
  %v2115 = vadd.f32 0.0, %v2114
  %v2116 = vpop.f32.mrf.mxu0
  %v2117 = vadd.f32 0.0, %v2116
  %v2118 = vpop.f32.mrf.mxu0
  %v2119 = vadd.f32 0.0, %v2118
  %v2120 = vpop.f32.mrf.mxu0
  %v2121 = vadd.f32 0.0, %v2120
  %2122 = vdwg.mxu0
  %2123 = vmatprep.subr.bf16.mxu0 %v1391
  %2124 = vmatpush1.bf16.msra.mxu0 %v1390
  %2125 = vmatprep.subr.bf16.mxu0 %v1383
  %2126 = vmatpush1.bf16.msra.mxu0 %v1382
  %2127 = vmatprep.subr.bf16.mxu0 %v1375
  %2128 = vmatpush1.bf16.msra.mxu0 %v1374
  %2129 = vmatprep.subr.bf16.mxu0 %v1367
  %2130 = vmatpush1.bf16.msra.mxu0 %v1366
  %2131 = vmatprep.subr.bf16.mxu0 %v1359
  %2132 = vmatpush1.bf16.msra.mxu0 %v1358
  %2133 = vmatprep.subr.bf16.mxu0 %v1351
  %2134 = vmatpush1.bf16.msra.mxu0 %v1350
  %2135 = vmatprep.subr.bf16.mxu0 %v1343
  %2136 = vmatpush1.bf16.msra.mxu0 %v1342
  %2137 = vmatprep.subr.bf16.mxu0 %v1335
  %2138 = vmatpush1.bf16.msra.mxu0 %v1334
  %2139 = vmatprep.subr.bf16.mxu0 0
  %2140 = vmatpush2.bf16.msra.mxu0 0
  %2141 = vmatprep.subr.bf16.mxu0 0
  %2142 = vmatpush2.bf16.msra.mxu0 0
  %2143 = vmatprep.subr.bf16.mxu0 0
  %2144 = vmatpush2.bf16.msra.mxu0 0
  %2145 = vmatprep.subr.bf16.mxu0 0
  %2146 = vmatpush2.bf16.msra.mxu0 0
  %2147 = vmatprep.subr.bf16.mxu0 0
  %2148 = vmatpush2.bf16.msra.mxu0 0
  %2149 = vmatprep.subr.bf16.mxu0 0
  %2150 = vmatpush2.bf16.msra.mxu0 0
  %2151 = vmatprep.subr.bf16.mxu0 0
  %2152 = vmatpush2.bf16.msra.mxu0 0
  %2153 = vmatprep.subr.bf16.mxu0 0
  %2154 = vmatpush2.bf16.msra.mxu0 0
  %2155 = vmatprep.mubr.bf16.mxu0 0
  %2156 = vmatmul.mubr.bf16.gmra.mxu0 %v1993
  %v2157 = vpop.f32.mrf.mxu0
  %v2158 = vadd.f32 0.0, %v2157
  %v2159 = vpop.f32.mrf.mxu0
  %v2160 = vadd.f32 0.0, %v2159
  %v2161 = vpop.f32.mrf.mxu0
  %v2162 = vadd.f32 0.0, %v2161
  %v2163 = vpop.f32.mrf.mxu0
  %v2164 = vadd.f32 0.0, %v2163
  %2165 = vdwg.mxu0
  %2166 = vmatprep.subr.bf16.mxu0 %v1753
  %2167 = vmatpush1.bf16.msra.mxu0 %v1752
  %2168 = vmatprep.subr.bf16.mxu0 %v1749
  %2169 = vmatpush1.bf16.msra.mxu0 %v1748
  %2170 = vmatprep.subr.bf16.mxu0 %v1745
  %2171 = vmatpush1.bf16.msra.mxu0 %v1744
  %2172 = vmatprep.subr.bf16.mxu0 %v1741
  %2173 = vmatpush1.bf16.msra.mxu0 %v1740
  %2174 = vmatprep.subr.bf16.mxu0 %v1737
  %2175 = vmatpush1.bf16.msra.mxu0 %v1736
  %2176 = vmatprep.subr.bf16.mxu0 %v1733
  %2177 = vmatpush1.bf16.msra.mxu0 %v1732
  %2178 = vmatprep.subr.bf16.mxu0 %v1729
  %2179 = vmatpush1.bf16.msra.mxu0 %v1728
  %2180 = vmatprep.subr.bf16.mxu0 %v1725
  %2181 = vmatpush1.bf16.msra.mxu0 %v1724
  %2182 = vmatprep.subr.bf16.mxu0 0
  %2183 = vmatpush2.bf16.msra.mxu0 0
  %2184 = vmatprep.subr.bf16.mxu0 0
  %2185 = vmatpush2.bf16.msra.mxu0 0
  %2186 = vmatprep.subr.bf16.mxu0 0
  %2187 = vmatpush2.bf16.msra.mxu0 0
  %2188 = vmatprep.subr.bf16.mxu0 0
  %2189 = vmatpush2.bf16.msra.mxu0 0
  %2190 = vmatprep.subr.bf16.mxu0 0
  %2191 = vmatpush2.bf16.msra.mxu0 0
  %2192 = vmatprep.subr.bf16.mxu0 0
  %2193 = vmatpush2.bf16.msra.mxu0 0
  %2194 = vmatprep.subr.bf16.mxu0 0
  %2195 = vmatpush2.bf16.msra.mxu0 0
  %2196 = vmatprep.subr.bf16.mxu0 0
  %2197 = vmatpush2.bf16.msra.mxu0 0
  %2198 = vmatprep.mubr.bf16.mxu0 0
  %2199 = vmatmul.mubr.bf16.gmra.mxu0 %v1926
  %v2200 = vpop.f32.mrf.mxu0
  %v2201 = vadd.f32 0.0, %v2200
  %v2202 = vpop.f32.mrf.mxu0
  %v2203 = vadd.f32 0.0, %v2202
  %v2204 = vpop.f32.mrf.mxu0
  %v2205 = vadd.f32 0.0, %v2204
  %v2206 = vpop.f32.mrf.mxu0
  %v2207 = vadd.f32 0.0, %v2206
  %2208 = vdwg.mxu0
  %2209 = vmatprep.subr.bf16.mxu0 %v1755
  %2210 = vmatpush1.bf16.msra.mxu0 %v1754
  %2211 = vmatprep.subr.bf16.mxu0 %v1751
  %2212 = vmatpush1.bf16.msra.mxu0 %v1750
  %2213 = vmatprep.subr.bf16.mxu0 %v1747
  %2214 = vmatpush1.bf16.msra.mxu0 %v1746
  %2215 = vmatprep.subr.bf16.mxu0 %v1743
  %2216 = vmatpush1.bf16.msra.mxu0 %v1742
  %2217 = vmatprep.subr.bf16.mxu0 %v1739
  %2218 = vmatpush1.bf16.msra.mxu0 %v1738
  %2219 = vmatprep.subr.bf16.mxu0 %v1735
  %2220 = vmatpush1.bf16.msra.mxu0 %v1734
  %2221 = vmatprep.subr.bf16.mxu0 %v1731
  %2222 = vmatpush1.bf16.msra.mxu0 %v1730
  %2223 = vmatprep.subr.bf16.mxu0 %v1727
  %2224 = vmatpush1.bf16.msra.mxu0 %v1726
  %2225 = vmatprep.subr.bf16.mxu0 0
  %2226 = vmatpush2.bf16.msra.mxu0 0
  %2227 = vmatprep.subr.bf16.mxu0 0
  %2228 = vmatpush2.bf16.msra.mxu0 0
  %2229 = vmatprep.subr.bf16.mxu0 0
  %2230 = vmatpush2.bf16.msra.mxu0 0
  %2231 = vmatprep.subr.bf16.mxu0 0
  %2232 = vmatpush2.bf16.msra.mxu0 0
  %2233 = vmatprep.subr.bf16.mxu0 0
  %2234 = vmatpush2.bf16.msra.mxu0 0
  %2235 = vmatprep.subr.bf16.mxu0 0
  %2236 = vmatpush2.bf16.msra.mxu0 0
  %2237 = vmatprep.subr.bf16.mxu0 0
  %2238 = vmatpush2.bf16.msra.mxu0 0
  %2239 = vmatprep.subr.bf16.mxu0 0
  %2240 = vmatpush2.bf16.msra.mxu0 0
  %2241 = vmatprep.mubr.bf16.mxu0 0
  %2242 = vmatmul.mubr.bf16.gmra.mxu0 %v1926
  %v2243 = vpop.f32.mrf.mxu0
  %v2244 = vadd.f32 0.0, %v2243
  %v2245 = vpop.f32.mrf.mxu0
  %v2246 = vadd.f32 0.0, %v2245
  %v2247 = vpop.f32.mrf.mxu0
  %v2248 = vadd.f32 0.0, %v2247
  %v2249 = vpop.f32.mrf.mxu0
  %v2250 = vadd.f32 0.0, %v2249
  %2251 = vdwg.mxu0
  %v2252 = vadd.f32 %v2115, %v2201
  %v2253 = vadd.f32 %v2117, %v2203
  %v2254 = vadd.f32 %v2158, %v2244
  %v2255 = vadd.f32 %v2160, %v2246
  %v2256 = vadd.f32 %v2119, %v2205
  %v2257 = vadd.f32 %v2121, %v2207
  %v2258 = vadd.f32 %v2162, %v2248
  %v2259 = vadd.f32 %v2164, %v2250
  %v2260 = vadd.f32 %v2252, %v312
  %v2261 = vadd.f32 %v2253, %v316
  %v2262 = vadd.f32 %v2254, %v320
  %v2263 = vadd.f32 %v2255, %v324
  %v2264 = vadd.f32 %v2256, %v312
  %v2265 = vadd.f32 %v2257, %v316
  %v2266 = vadd.f32 %v2258, %v320
  %v2267 = vadd.f32 %v2259, %v324
  %v2268 = vmul.f32 %v2260, 0.5
  %v2269 = vmul.f32 %v2264, 0.5
  %v2270 = vtanh.pop %v2268
  %v2271 = vtanh.pop %v2269
  %v2272 = vadd.f32 %v2270, 1.0
  %v2273 = vadd.f32 %v2271, 1.0
  %v2274 = vmul.f32 %v2272, 0.5
  %v2275 = vmul.f32 %v2273, 0.5
  %v2276 = vmul.f32 %v2261, 0.5
  %v2277 = vmul.f32 %v2265, 0.5
  %v2278 = vtanh.pop %v2276
  %v2279 = vtanh.pop %v2277
  %v2280 = vadd.f32 %v2278, 1.0
  %v2281 = vadd.f32 %v2279, 1.0
  %v2282 = vmul.f32 %v2280, 0.5
  %v2283 = vmul.f32 %v2281, 0.5
  %v2284 = vtanh.pop %v2262
  %v2285 = vtanh.pop %v2266
  %v2286 = vmul.f32 %v2263, 0.5
  %v2287 = vmul.f32 %v2267, 0.5
  %v2288 = vtanh.pop %v2286
  %v2289 = vtanh.pop %v2287
  %v2290 = vadd.f32 %v2288, 1.0
  %v2291 = vadd.f32 %v2289, 1.0
  %v2292 = vmul.f32 %v2290, 0.5
  %v2293 = vmul.f32 %v2291, 0.5
  %v2294 = vmul.f32 %v2282, %v1920
  %v2295 = vmul.f32 %v2283, %v1921
  %v2296 = vmul.f32 %v2274, %v2284
  %v2297 = vmul.f32 %v2275, %v2285
  %v2298 = vadd.f32 %v2294, %v2296
  %v2299 = vadd.f32 %v2295, %v2297
  %v2300 = vtanh.pop %v2298
  %v2301 = vtanh.pop %v2299
  %v2302 = vmul.f32 %v2292, %v2300
  %v2303 = vmul.f32 %v2293, %v2301
  %v2304 = vpack.c.bf16 %v2303, %v2302
  %v2306 = vunpack.c.l.b16 %v2304
  %v2307 = vunpack.c.h.b16 %v2304
  %v2308 = vpack.c.b16 %v2306, %v2306
  %v2309 = vpack.c.b16 %v2307, %v2307
  %s2312 = scalar_lea.vmem [#allocation4], 8
  %2313 = vst [vmem:[%s2312] sm:$0xf] %v2308
  %2314 = vst [vmem:[%s2312 + $0x4] sm:$0xf] %v2309
  %s2315 = scalar_lea.vmem [#allocation2], 64
  %v2316 = vld [vmem:[%s2315] sm:$0xff]
  %v2317 = vld [vmem:[%s2315 + $0x8] sm:$0xff]
  %v2318 = vld [vmem:[%s2315 + $0x10] sm:$0xff]
  %v2319 = vld [vmem:[%s2315 + $0x18] sm:$0xff]
  %v2320 = vunpack.c.l.bf16 %v2316
  %v2321 = vunpack.c.h.bf16 %v2316
  %v2322 = vunpack.c.l.bf16 %v2317
  %v2323 = vunpack.c.h.bf16 %v2317
  %v2324 = vunpack.c.l.bf16 %v2318
  %v2325 = vunpack.c.h.bf16 %v2318
  %v2326 = vunpack.c.l.bf16 %v2319
  %v2327 = vunpack.c.h.bf16 %v2319
  %v2328 = vadd.f32 %v2320, %v2029
  %v2329 = vadd.f32 %v2321, %v2031
  %v2330 = vadd.f32 %v2322, %v2072
  %v2331 = vadd.f32 %v2323, %v2074
  %v2332 = vadd.f32 %v2324, %v2033
  %v2333 = vadd.f32 %v2325, %v2035
  %v2334 = vadd.f32 %v2326, %v2076
  %v2335 = vadd.f32 %v2327, %v2078
  %v2336 = vmul.f32 %v2328, 0.5
  %v2337 = vmul.f32 %v2332, 0.5
  %v2338 = vtanh.pop %v2336
  %v2339 = vtanh.pop %v2337
  %v2340 = vadd.f32 %v2338, 1.0
  %v2341 = vadd.f32 %v2339, 1.0
  %v2342 = vmul.f32 %v2340, 0.5
  %v2343 = vmul.f32 %v2341, 0.5
  %v2344 = vmul.f32 %v2329, 0.5
  %v2345 = vmul.f32 %v2333, 0.5
  %v2346 = vtanh.pop %v2344
  %v2347 = vtanh.pop %v2345
  %v2348 = vadd.f32 %v2346, 1.0
  %v2349 = vadd.f32 %v2347, 1.0
  %v2350 = vmul.f32 %v2348, 0.5
  %v2351 = vmul.f32 %v2349, 0.5
  %v2352 = vtanh.pop %v2330
  %v2353 = vtanh.pop %v2334
  %v2354 = vmul.f32 %v2331, 0.5
  %v2355 = vmul.f32 %v2335, 0.5
  %v2356 = vtanh.pop %v2354
  %v2357 = vtanh.pop %v2355
  %v2358 = vadd.f32 %v2356, 1.0
  %v2359 = vadd.f32 %v2357, 1.0
  %v2360 = vmul.f32 %v2358, 0.5
  %v2361 = vmul.f32 %v2359, 0.5
  %v2362 = vmul.f32 %v2350, %v1987
  %v2363 = vmul.f32 %v2351, %v1988
  %v2364 = vmul.f32 %v2342, %v2352
  %v2365 = vmul.f32 %v2343, %v2353
  %v2366 = vadd.f32 %v2362, %v2364
  %v2367 = vadd.f32 %v2363, %v2365
  %v2368 = vtanh.pop %v2366
  %v2369 = vtanh.pop %v2367
  %v2370 = vmul.f32 %v2360, %v2368
  %v2371 = vmul.f32 %v2361, %v2369
  %v2372 = vpack.c.bf16 %v2371, %v2370
  %2373 = vmatprep.subr.bf16.mxu0 %v1385
  %2374 = vmatpush1.bf16.msra.mxu0 %v1384
  %2375 = vmatprep.subr.bf16.mxu0 %v1377
  %2376 = vmatpush1.bf16.msra.mxu0 %v1376
  %2377 = vmatprep.subr.bf16.mxu0 %v1369
  %2378 = vmatpush1.bf16.msra.mxu0 %v1368
  %2379 = vmatprep.subr.bf16.mxu0 %v1361
  %2380 = vmatpush1.bf16.msra.mxu0 %v1360
  %2381 = vmatprep.subr.bf16.mxu0 %v1353
  %2382 = vmatpush1.bf16.msra.mxu0 %v1352
  %2383 = vmatprep.subr.bf16.mxu0 %v1345
  %2384 = vmatpush1.bf16.msra.mxu0 %v1344
  %2385 = vmatprep.subr.bf16.mxu0 %v1337
  %2386 = vmatpush1.bf16.msra.mxu0 %v1336
  %2387 = vmatprep.subr.bf16.mxu0 %v1329
  %2388 = vmatpush1.bf16.msra.mxu0 %v1328
  %2389 = vmatprep.subr.bf16.mxu0 0
  %2390 = vmatpush2.bf16.msra.mxu0 0
  %2391 = vmatprep.subr.bf16.mxu0 0
  %2392 = vmatpush2.bf16.msra.mxu0 0
  %2393 = vmatprep.subr.bf16.mxu0 0
  %2394 = vmatpush2.bf16.msra.mxu0 0
  %2395 = vmatprep.subr.bf16.mxu0 0
  %2396 = vmatpush2.bf16.msra.mxu0 0
  %2397 = vmatprep.subr.bf16.mxu0 0
  %2398 = vmatpush2.bf16.msra.mxu0 0
  %2399 = vmatprep.subr.bf16.mxu0 0
  %2400 = vmatpush2.bf16.msra.mxu0 0
  %2401 = vmatprep.subr.bf16.mxu0 0
  %2402 = vmatpush2.bf16.msra.mxu0 0
  %2403 = vmatprep.subr.bf16.mxu0 0
  %2404 = vmatpush2.bf16.msra.mxu0 0
  %2405 = vmatprep.mubr.bf16.mxu0 0
  %2406 = vmatmul.mubr.bf16.gmra.mxu0 %v2372
  %v2407 = vpop.f32.mrf.mxu0
  %v2408 = vadd.f32 0.0, %v2407
  %v2409 = vpop.f32.mrf.mxu0
  %v2410 = vadd.f32 0.0, %v2409
  %v2411 = vpop.f32.mrf.mxu0
  %v2412 = vadd.f32 0.0, %v2411
  %v2413 = vpop.f32.mrf.mxu0
  %v2414 = vadd.f32 0.0, %v2413
  %2415 = vdwg.mxu0
  %2416 = vmatprep.subr.bf16.mxu0 %v1387
  %2417 = vmatpush1.bf16.msra.mxu0 %v1386
  %2418 = vmatprep.subr.bf16.mxu0 %v1379
  %2419 = vmatpush1.bf16.msra.mxu0 %v1378
  %2420 = vmatprep.subr.bf16.mxu0 %v1371
  %2421 = vmatpush1.bf16.msra.mxu0 %v1370
  %2422 = vmatprep.subr.bf16.mxu0 %v1363
  %2423 = vmatpush1.bf16.msra.mxu0 %v1362
  %2424 = vmatprep.subr.bf16.mxu0 %v1355
  %2425 = vmatpush1.bf16.msra.mxu0 %v1354
  %2426 = vmatprep.subr.bf16.mxu0 %v1347
  %2427 = vmatpush1.bf16.msra.mxu0 %v1346
  %2428 = vmatprep.subr.bf16.mxu0 %v1339
  %2429 = vmatpush1.bf16.msra.mxu0 %v1338
  %2430 = vmatprep.subr.bf16.mxu0 %v1331
  %2431 = vmatpush1.bf16.msra.mxu0 %v1330
  %2432 = vmatprep.subr.bf16.mxu0 0
  %2433 = vmatpush2.bf16.msra.mxu0 0
  %2434 = vmatprep.subr.bf16.mxu0 0
  %2435 = vmatpush2.bf16.msra.mxu0 0
  %2436 = vmatprep.subr.bf16.mxu0 0
  %2437 = vmatpush2.bf16.msra.mxu0 0
  %2438 = vmatprep.subr.bf16.mxu0 0
  %2439 = vmatpush2.bf16.msra.mxu0 0
  %2440 = vmatprep.subr.bf16.mxu0 0
  %2441 = vmatpush2.bf16.msra.mxu0 0
  %2442 = vmatprep.subr.bf16.mxu0 0
  %2443 = vmatpush2.bf16.msra.mxu0 0
  %2444 = vmatprep.subr.bf16.mxu0 0
  %2445 = vmatpush2.bf16.msra.mxu0 0
  %2446 = vmatprep.subr.bf16.mxu0 0
  %2447 = vmatpush2.bf16.msra.mxu0 0
  %2448 = vmatprep.mubr.bf16.mxu0 0
  %2449 = vmatmul.mubr.bf16.gmra.mxu0 %v2372
  %v2450 = vpop.f32.mrf.mxu0
  %v2451 = vadd.f32 0.0, %v2450
  %v2452 = vpop.f32.mrf.mxu0
  %v2453 = vadd.f32 0.0, %v2452
  %v2454 = vpop.f32.mrf.mxu0
  %v2455 = vadd.f32 0.0, %v2454
  %v2456 = vpop.f32.mrf.mxu0
  %v2457 = vadd.f32 0.0, %v2456
  %2458 = vdwg.mxu0
  %2459 = vmatprep.subr.bf16.mxu0 %v1389
  %2460 = vmatpush1.bf16.msra.mxu0 %v1388
  %2461 = vmatprep.subr.bf16.mxu0 %v1381
  %2462 = vmatpush1.bf16.msra.mxu0 %v1380
  %2463 = vmatprep.subr.bf16.mxu0 %v1373
  %2464 = vmatpush1.bf16.msra.mxu0 %v1372
  %2465 = vmatprep.subr.bf16.mxu0 %v1365
  %2466 = vmatpush1.bf16.msra.mxu0 %v1364
  %2467 = vmatprep.subr.bf16.mxu0 %v1357
  %2468 = vmatpush1.bf16.msra.mxu0 %v1356
  %2469 = vmatprep.subr.bf16.mxu0 %v1349
  %2470 = vmatpush1.bf16.msra.mxu0 %v1348
  %2471 = vmatprep.subr.bf16.mxu0 %v1341
  %2472 = vmatpush1.bf16.msra.mxu0 %v1340
  %2473 = vmatprep.subr.bf16.mxu0 %v1333
  %2474 = vmatpush1.bf16.msra.mxu0 %v1332
  %2475 = vmatprep.subr.bf16.mxu0 0
  %2476 = vmatpush2.bf16.msra.mxu0 0
  %2477 = vmatprep.subr.bf16.mxu0 0
  %2478 = vmatpush2.bf16.msra.mxu0 0
  %2479 = vmatprep.subr.bf16.mxu0 0
  %2480 = vmatpush2.bf16.msra.mxu0 0
  %2481 = vmatprep.subr.bf16.mxu0 0
  %2482 = vmatpush2.bf16.msra.mxu0 0
  %2483 = vmatprep.subr.bf16.mxu0 0
  %2484 = vmatpush2.bf16.msra.mxu0 0
  %2485 = vmatprep.subr.bf16.mxu0 0
  %2486 = vmatpush2.bf16.msra.mxu0 0
  %2487 = vmatprep.subr.bf16.mxu0 0
  %2488 = vmatpush2.bf16.msra.mxu0 0
  %2489 = vmatprep.subr.bf16.mxu0 0
  %2490 = vmatpush2.bf16.msra.mxu0 0
  %2491 = vmatprep.mubr.bf16.mxu0 0
  %2492 = vmatmul.mubr.bf16.gmra.mxu0 %v2372
  %v2493 = vpop.f32.mrf.mxu0
  %v2494 = vadd.f32 0.0, %v2493
  %v2495 = vpop.f32.mrf.mxu0
  %v2496 = vadd.f32 0.0, %v2495
  %v2497 = vpop.f32.mrf.mxu0
  %v2498 = vadd.f32 0.0, %v2497
  %v2499 = vpop.f32.mrf.mxu0
  %v2500 = vadd.f32 0.0, %v2499
  %2501 = vdwg.mxu0
  %2502 = vmatprep.subr.bf16.mxu0 %v1391
  %2503 = vmatpush1.bf16.msra.mxu0 %v1390
  %2504 = vmatprep.subr.bf16.mxu0 %v1383
  %2505 = vmatpush1.bf16.msra.mxu0 %v1382
  %2506 = vmatprep.subr.bf16.mxu0 %v1375
  %2507 = vmatpush1.bf16.msra.mxu0 %v1374
  %2508 = vmatprep.subr.bf16.mxu0 %v1367
  %2509 = vmatpush1.bf16.msra.mxu0 %v1366
  %2510 = vmatprep.subr.bf16.mxu0 %v1359
  %2511 = vmatpush1.bf16.msra.mxu0 %v1358
  %2512 = vmatprep.subr.bf16.mxu0 %v1351
  %2513 = vmatpush1.bf16.msra.mxu0 %v1350
  %2514 = vmatprep.subr.bf16.mxu0 %v1343
  %2515 = vmatpush1.bf16.msra.mxu0 %v1342
  %2516 = vmatprep.subr.bf16.mxu0 %v1335
  %2517 = vmatpush1.bf16.msra.mxu0 %v1334
  %2518 = vmatprep.subr.bf16.mxu0 0
  %2519 = vmatpush2.bf16.msra.mxu0 0
  %2520 = vmatprep.subr.bf16.mxu0 0
  %2521 = vmatpush2.bf16.msra.mxu0 0
  %2522 = vmatprep.subr.bf16.mxu0 0
  %2523 = vmatpush2.bf16.msra.mxu0 0
  %2524 = vmatprep.subr.bf16.mxu0 0
  %2525 = vmatpush2.bf16.msra.mxu0 0
  %2526 = vmatprep.subr.bf16.mxu0 0
  %2527 = vmatpush2.bf16.msra.mxu0 0
  %2528 = vmatprep.subr.bf16.mxu0 0
  %2529 = vmatpush2.bf16.msra.mxu0 0
  %2530 = vmatprep.subr.bf16.mxu0 0
  %2531 = vmatpush2.bf16.msra.mxu0 0
  %2532 = vmatprep.subr.bf16.mxu0 0
  %2533 = vmatpush2.bf16.msra.mxu0 0
  %2534 = vmatprep.mubr.bf16.mxu0 0
  %2535 = vmatmul.mubr.bf16.gmra.mxu0 %v2372
  %v2536 = vpop.f32.mrf.mxu0
  %v2537 = vadd.f32 0.0, %v2536
  %v2538 = vpop.f32.mrf.mxu0
  %v2539 = vadd.f32 0.0, %v2538
  %v2540 = vpop.f32.mrf.mxu0
  %v2541 = vadd.f32 0.0, %v2540
  %v2542 = vpop.f32.mrf.mxu0
  %v2543 = vadd.f32 0.0, %v2542
  %2544 = vdwg.mxu0
  %2545 = vmatprep.subr.bf16.mxu0 %v1753
  %2546 = vmatpush1.bf16.msra.mxu0 %v1752
  %2547 = vmatprep.subr.bf16.mxu0 %v1749
  %2548 = vmatpush1.bf16.msra.mxu0 %v1748
  %2549 = vmatprep.subr.bf16.mxu0 %v1745
  %2550 = vmatpush1.bf16.msra.mxu0 %v1744
  %2551 = vmatprep.subr.bf16.mxu0 %v1741
  %2552 = vmatpush1.bf16.msra.mxu0 %v1740
  %2553 = vmatprep.subr.bf16.mxu0 %v1737
  %2554 = vmatpush1.bf16.msra.mxu0 %v1736
  %2555 = vmatprep.subr.bf16.mxu0 %v1733
  %2556 = vmatpush1.bf16.msra.mxu0 %v1732
  %2557 = vmatprep.subr.bf16.mxu0 %v1729
  %2558 = vmatpush1.bf16.msra.mxu0 %v1728
  %2559 = vmatprep.subr.bf16.mxu0 %v1725
  %2560 = vmatpush1.bf16.msra.mxu0 %v1724
  %2561 = vmatprep.subr.bf16.mxu0 0
  %2562 = vmatpush2.bf16.msra.mxu0 0
  %2563 = vmatprep.subr.bf16.mxu0 0
  %2564 = vmatpush2.bf16.msra.mxu0 0
  %2565 = vmatprep.subr.bf16.mxu0 0
  %2566 = vmatpush2.bf16.msra.mxu0 0
  %2567 = vmatprep.subr.bf16.mxu0 0
  %2568 = vmatpush2.bf16.msra.mxu0 0
  %2569 = vmatprep.subr.bf16.mxu0 0
  %2570 = vmatpush2.bf16.msra.mxu0 0
  %2571 = vmatprep.subr.bf16.mxu0 0
  %2572 = vmatpush2.bf16.msra.mxu0 0
  %2573 = vmatprep.subr.bf16.mxu0 0
  %2574 = vmatpush2.bf16.msra.mxu0 0
  %2575 = vmatprep.subr.bf16.mxu0 0
  %2576 = vmatpush2.bf16.msra.mxu0 0
  %2577 = vmatprep.mubr.bf16.mxu0 0
  %2578 = vmatmul.mubr.bf16.gmra.mxu0 %v2304
  %v2579 = vpop.f32.mrf.mxu0
  %v2580 = vadd.f32 0.0, %v2579
  %v2581 = vpop.f32.mrf.mxu0
  %v2582 = vadd.f32 0.0, %v2581
  %v2583 = vpop.f32.mrf.mxu0
  %v2584 = vadd.f32 0.0, %v2583
  %v2585 = vpop.f32.mrf.mxu0
  %v2586 = vadd.f32 0.0, %v2585
  %2587 = vdwg.mxu0
  %2588 = vmatprep.subr.bf16.mxu0 %v1755
  %2589 = vmatpush1.bf16.msra.mxu0 %v1754
  %2590 = vmatprep.subr.bf16.mxu0 %v1751
  %2591 = vmatpush1.bf16.msra.mxu0 %v1750
  %2592 = vmatprep.subr.bf16.mxu0 %v1747
  %2593 = vmatpush1.bf16.msra.mxu0 %v1746
  %2594 = vmatprep.subr.bf16.mxu0 %v1743
  %2595 = vmatpush1.bf16.msra.mxu0 %v1742
  %2596 = vmatprep.subr.bf16.mxu0 %v1739
  %2597 = vmatpush1.bf16.msra.mxu0 %v1738
  %2598 = vmatprep.subr.bf16.mxu0 %v1735
  %2599 = vmatpush1.bf16.msra.mxu0 %v1734
  %2600 = vmatprep.subr.bf16.mxu0 %v1731
  %2601 = vmatpush1.bf16.msra.mxu0 %v1730
  %2602 = vmatprep.subr.bf16.mxu0 %v1727
  %2603 = vmatpush1.bf16.msra.mxu0 %v1726
  %2604 = vmatprep.subr.bf16.mxu0 0
  %2605 = vmatpush2.bf16.msra.mxu0 0
  %2606 = vmatprep.subr.bf16.mxu0 0
  %2607 = vmatpush2.bf16.msra.mxu0 0
  %2608 = vmatprep.subr.bf16.mxu0 0
  %2609 = vmatpush2.bf16.msra.mxu0 0
  %2610 = vmatprep.subr.bf16.mxu0 0
  %2611 = vmatpush2.bf16.msra.mxu0 0
  %2612 = vmatprep.subr.bf16.mxu0 0
  %2613 = vmatpush2.bf16.msra.mxu0 0
  %2614 = vmatprep.subr.bf16.mxu0 0
  %2615 = vmatpush2.bf16.msra.mxu0 0
  %2616 = vmatprep.subr.bf16.mxu0 0
  %2617 = vmatpush2.bf16.msra.mxu0 0
  %2618 = vmatprep.subr.bf16.mxu0 0
  %2619 = vmatpush2.bf16.msra.mxu0 0
  %2620 = vmatprep.mubr.bf16.mxu0 0
  %2621 = vmatmul.mubr.bf16.gmra.mxu0 %v2304
  %v2622 = vpop.f32.mrf.mxu0
  %v2623 = vadd.f32 0.0, %v2622
  %v2624 = vpop.f32.mrf.mxu0
  %v2625 = vadd.f32 0.0, %v2624
  %v2626 = vpop.f32.mrf.mxu0
  %v2627 = vadd.f32 0.0, %v2626
  %v2628 = vpop.f32.mrf.mxu0
  %v2629 = vadd.f32 0.0, %v2628
  %2630 = vdwg.mxu0
  %v2631 = vadd.f32 %v2494, %v2580
  %v2632 = vadd.f32 %v2496, %v2582
  %v2633 = vadd.f32 %v2537, %v2623
  %v2634 = vadd.f32 %v2539, %v2625
  %v2635 = vadd.f32 %v2498, %v2584
  %v2636 = vadd.f32 %v2500, %v2586
  %v2637 = vadd.f32 %v2541, %v2627
  %v2638 = vadd.f32 %v2543, %v2629
  %v2639 = vadd.f32 %v2631, %v312
  %v2640 = vadd.f32 %v2632, %v316
  %v2641 = vadd.f32 %v2633, %v320
  %v2642 = vadd.f32 %v2634, %v324
  %v2643 = vadd.f32 %v2635, %v312
  %v2644 = vadd.f32 %v2636, %v316
  %v2645 = vadd.f32 %v2637, %v320
  %v2646 = vadd.f32 %v2638, %v324
  %v2647 = vmul.f32 %v2639, 0.5
  %v2648 = vmul.f32 %v2643, 0.5
  %v2649 = vtanh.pop %v2647
  %v2650 = vtanh.pop %v2648
  %v2651 = vadd.f32 %v2649, 1.0
  %v2652 = vadd.f32 %v2650, 1.0
  %v2653 = vmul.f32 %v2651, 0.5
  %v2654 = vmul.f32 %v2652, 0.5
  %v2655 = vmul.f32 %v2640, 0.5
  %v2656 = vmul.f32 %v2644, 0.5
  %v2657 = vtanh.pop %v2655
  %v2658 = vtanh.pop %v2656
  %v2659 = vadd.f32 %v2657, 1.0
  %v2660 = vadd.f32 %v2658, 1.0
  %v2661 = vmul.f32 %v2659, 0.5
  %v2662 = vmul.f32 %v2660, 0.5
  %v2663 = vtanh.pop %v2641
  %v2664 = vtanh.pop %v2645
  %v2665 = vmul.f32 %v2642, 0.5
  %v2666 = vmul.f32 %v2646, 0.5
  %v2667 = vtanh.pop %v2665
  %v2668 = vtanh.pop %v2666
  %v2669 = vadd.f32 %v2667, 1.0
  %v2670 = vadd.f32 %v2668, 1.0
  %v2671 = vmul.f32 %v2669, 0.5
  %v2672 = vmul.f32 %v2670, 0.5
  %v2673 = vmul.f32 %v2661, %v2298
  %v2674 = vmul.f32 %v2662, %v2299
  %v2675 = vmul.f32 %v2653, %v2663
  %v2676 = vmul.f32 %v2654, %v2664
  %v2677 = vadd.f32 %v2673, %v2675
  %v2678 = vadd.f32 %v2674, %v2676
  %v2679 = vtanh.pop %v2677
  %v2680 = vtanh.pop %v2678
  %v2681 = vmul.f32 %v2671, %v2679
  %v2682 = vmul.f32 %v2672, %v2680
  %v2683 = vpack.c.bf16 %v2682, %v2681
  %v2685 = vunpack.c.l.b16 %v2683
  %v2686 = vunpack.c.h.b16 %v2683
  %v2687 = vpack.c.b16 %v2685, %v2685
  %v2688 = vpack.c.b16 %v2686, %v2686
  %s2691 = scalar_lea.vmem [#allocation4], 16
  %2692 = vst [vmem:[%s2691] sm:$0xf] %v2687
  %2693 = vst [vmem:[%s2691 + $0x4] sm:$0xf] %v2688
  %s2694 = scalar_lea.vmem [#allocation2], 96
  %v2695 = vld [vmem:[%s2694] sm:$0xff]
  %v2696 = vld [vmem:[%s2694 + $0x8] sm:$0xff]
  %v2697 = vld [vmem:[%s2694 + $0x10] sm:$0xff]
  %v2698 = vld [vmem:[%s2694 + $0x18] sm:$0xff]
  %v2699 = vunpack.c.l.bf16 %v2695
  %v2700 = vunpack.c.h.bf16 %v2695
  %v2701 = vunpack.c.l.bf16 %v2696
  %v2702 = vunpack.c.h.bf16 %v2696
  %v2703 = vunpack.c.l.bf16 %v2697
  %v2704 = vunpack.c.h.bf16 %v2697
  %v2705 = vunpack.c.l.bf16 %v2698
  %v2706 = vunpack.c.h.bf16 %v2698
  %v2707 = vadd.f32 %v2699, %v2408
  %v2708 = vadd.f32 %v2700, %v2410
  %v2709 = vadd.f32 %v2701, %v2451
  %v2710 = vadd.f32 %v2702, %v2453
  %v2711 = vadd.f32 %v2703, %v2412
  %v2712 = vadd.f32 %v2704, %v2414
  %v2713 = vadd.f32 %v2705, %v2455
  %v2714 = vadd.f32 %v2706, %v2457
  %v2715 = vmul.f32 %v2707, 0.5
  %v2716 = vmul.f32 %v2711, 0.5
  %v2717 = vtanh.pop %v2715
  %v2718 = vtanh.pop %v2716
  %v2719 = vadd.f32 %v2717, 1.0
  %v2720 = vadd.f32 %v2718, 1.0
  %v2721 = vmul.f32 %v2719, 0.5
  %v2722 = vmul.f32 %v2720, 0.5
  %v2723 = vmul.f32 %v2708, 0.5
  %v2724 = vmul.f32 %v2712, 0.5
  %v2725 = vtanh.pop %v2723
  %v2726 = vtanh.pop %v2724
  %v2727 = vadd.f32 %v2725, 1.0
  %v2728 = vadd.f32 %v2726, 1.0
  %v2729 = vmul.f32 %v2727, 0.5
  %v2730 = vmul.f32 %v2728, 0.5
  %v2731 = vtanh.pop %v2709
  %v2732 = vtanh.pop %v2713
  %v2733 = vmul.f32 %v2710, 0.5
  %v2734 = vmul.f32 %v2714, 0.5
  %v2735 = vtanh.pop %v2733
  %v2736 = vtanh.pop %v2734
  %v2737 = vadd.f32 %v2735, 1.0
  %v2738 = vadd.f32 %v2736, 1.0
  %v2739 = vmul.f32 %v2737, 0.5
  %v2740 = vmul.f32 %v2738, 0.5
  %v2741 = vmul.f32 %v2729, %v2366
  %v2742 = vmul.f32 %v2730, %v2367
  %v2743 = vmul.f32 %v2721, %v2731
  %v2744 = vmul.f32 %v2722, %v2732
  %v2745 = vadd.f32 %v2741, %v2743
  %v2746 = vadd.f32 %v2742, %v2744
  %v2747 = vtanh.pop %v2745
  %v2748 = vtanh.pop %v2746
  %v2749 = vmul.f32 %v2739, %v2747
  %v2750 = vmul.f32 %v2740, %v2748
  %v2751 = vpack.c.bf16 %v2750, %v2749
  %2752 = vmatprep.subr.bf16.mxu0 %v1385
  %2753 = vmatpush1.bf16.msra.mxu0 %v1384
  %2754 = vmatprep.subr.bf16.mxu0 %v1377
  %2755 = vmatpush1.bf16.msra.mxu0 %v1376
  %2756 = vmatprep.subr.bf16.mxu0 %v1369
  %2757 = vmatpush1.bf16.msra.mxu0 %v1368
  %2758 = vmatprep.subr.bf16.mxu0 %v1361
  %2759 = vmatpush1.bf16.msra.mxu0 %v1360
  %2760 = vmatprep.subr.bf16.mxu0 %v1353
  %2761 = vmatpush1.bf16.msra.mxu0 %v1352
  %2762 = vmatprep.subr.bf16.mxu0 %v1345
  %2763 = vmatpush1.bf16.msra.mxu0 %v1344
  %2764 = vmatprep.subr.bf16.mxu0 %v1337
  %2765 = vmatpush1.bf16.msra.mxu0 %v1336
  %2766 = vmatprep.subr.bf16.mxu0 %v1329
  %2767 = vmatpush1.bf16.msra.mxu0 %v1328
  %2768 = vmatprep.subr.bf16.mxu0 0
  %2769 = vmatpush2.bf16.msra.mxu0 0
  %2770 = vmatprep.subr.bf16.mxu0 0
  %2771 = vmatpush2.bf16.msra.mxu0 0
  %2772 = vmatprep.subr.bf16.mxu0 0
  %2773 = vmatpush2.bf16.msra.mxu0 0
  %2774 = vmatprep.subr.bf16.mxu0 0
  %2775 = vmatpush2.bf16.msra.mxu0 0
  %2776 = vmatprep.subr.bf16.mxu0 0
  %2777 = vmatpush2.bf16.msra.mxu0 0
  %2778 = vmatprep.subr.bf16.mxu0 0
  %2779 = vmatpush2.bf16.msra.mxu0 0
  %2780 = vmatprep.subr.bf16.mxu0 0
  %2781 = vmatpush2.bf16.msra.mxu0 0
  %2782 = vmatprep.subr.bf16.mxu0 0
  %2783 = vmatpush2.bf16.msra.mxu0 0
  %2784 = vmatprep.mubr.bf16.mxu0 0
  %2785 = vmatmul.mubr.bf16.gmra.mxu0 %v2751
  %v2786 = vpop.f32.mrf.mxu0
  %v2787 = vadd.f32 0.0, %v2786
  %v2788 = vpop.f32.mrf.mxu0
  %v2789 = vadd.f32 0.0, %v2788
  %v2790 = vpop.f32.mrf.mxu0
  %v2791 = vadd.f32 0.0, %v2790
  %v2792 = vpop.f32.mrf.mxu0
  %v2793 = vadd.f32 0.0, %v2792
  %2794 = vdwg.mxu0
  %2795 = vmatprep.subr.bf16.mxu0 %v1387
  %2796 = vmatpush1.bf16.msra.mxu0 %v1386
  %2797 = vmatprep.subr.bf16.mxu0 %v1379
  %2798 = vmatpush1.bf16.msra.mxu0 %v1378
  %2799 = vmatprep.subr.bf16.mxu0 %v1371
  %2800 = vmatpush1.bf16.msra.mxu0 %v1370
  %2801 = vmatprep.subr.bf16.mxu0 %v1363
  %2802 = vmatpush1.bf16.msra.mxu0 %v1362
  %2803 = vmatprep.subr.bf16.mxu0 %v1355
  %2804 = vmatpush1.bf16.msra.mxu0 %v1354
  %2805 = vmatprep.subr.bf16.mxu0 %v1347
  %2806 = vmatpush1.bf16.msra.mxu0 %v1346
  %2807 = vmatprep.subr.bf16.mxu0 %v1339
  %2808 = vmatpush1.bf16.msra.mxu0 %v1338
  %2809 = vmatprep.subr.bf16.mxu0 %v1331
  %2810 = vmatpush1.bf16.msra.mxu0 %v1330
  %2811 = vmatprep.subr.bf16.mxu0 0
  %2812 = vmatpush2.bf16.msra.mxu0 0
  %2813 = vmatprep.subr.bf16.mxu0 0
  %2814 = vmatpush2.bf16.msra.mxu0 0
  %2815 = vmatprep.subr.bf16.mxu0 0
  %2816 = vmatpush2.bf16.msra.mxu0 0
  %2817 = vmatprep.subr.bf16.mxu0 0
  %2818 = vmatpush2.bf16.msra.mxu0 0
  %2819 = vmatprep.subr.bf16.mxu0 0
  %2820 = vmatpush2.bf16.msra.mxu0 0
  %2821 = vmatprep.subr.bf16.mxu0 0
  %2822 = vmatpush2.bf16.msra.mxu0 0
  %2823 = vmatprep.subr.bf16.mxu0 0
  %2824 = vmatpush2.bf16.msra.mxu0 0
  %2825 = vmatprep.subr.bf16.mxu0 0
  %2826 = vmatpush2.bf16.msra.mxu0 0
  %2827 = vmatprep.mubr.bf16.mxu0 0
  %2828 = vmatmul.mubr.bf16.gmra.mxu0 %v2751
  %v2829 = vpop.f32.mrf.mxu0
  %v2830 = vadd.f32 0.0, %v2829
  %v2831 = vpop.f32.mrf.mxu0
  %v2832 = vadd.f32 0.0, %v2831
  %v2833 = vpop.f32.mrf.mxu0
  %v2834 = vadd.f32 0.0, %v2833
  %v2835 = vpop.f32.mrf.mxu0
  %v2836 = vadd.f32 0.0, %v2835
  %2837 = vdwg.mxu0
  %2838 = vmatprep.subr.bf16.mxu0 %v1389
  %2839 = vmatpush1.bf16.msra.mxu0 %v1388
  %2840 = vmatprep.subr.bf16.mxu0 %v1381
  %2841 = vmatpush1.bf16.msra.mxu0 %v1380
  %2842 = vmatprep.subr.bf16.mxu0 %v1373
  %2843 = vmatpush1.bf16.msra.mxu0 %v1372
  %2844 = vmatprep.subr.bf16.mxu0 %v1365
  %2845 = vmatpush1.bf16.msra.mxu0 %v1364
  %2846 = vmatprep.subr.bf16.mxu0 %v1357
  %2847 = vmatpush1.bf16.msra.mxu0 %v1356
  %2848 = vmatprep.subr.bf16.mxu0 %v1349
  %2849 = vmatpush1.bf16.msra.mxu0 %v1348
  %2850 = vmatprep.subr.bf16.mxu0 %v1341
  %2851 = vmatpush1.bf16.msra.mxu0 %v1340
  %2852 = vmatprep.subr.bf16.mxu0 %v1333
  %2853 = vmatpush1.bf16.msra.mxu0 %v1332
  %2854 = vmatprep.subr.bf16.mxu0 0
  %2855 = vmatpush2.bf16.msra.mxu0 0
  %2856 = vmatprep.subr.bf16.mxu0 0
  %2857 = vmatpush2.bf16.msra.mxu0 0
  %2858 = vmatprep.subr.bf16.mxu0 0
  %2859 = vmatpush2.bf16.msra.mxu0 0
  %2860 = vmatprep.subr.bf16.mxu0 0
  %2861 = vmatpush2.bf16.msra.mxu0 0
  %2862 = vmatprep.subr.bf16.mxu0 0
  %2863 = vmatpush2.bf16.msra.mxu0 0
  %2864 = vmatprep.subr.bf16.mxu0 0
  %2865 = vmatpush2.bf16.msra.mxu0 0
  %2866 = vmatprep.subr.bf16.mxu0 0
  %2867 = vmatpush2.bf16.msra.mxu0 0
  %2868 = vmatprep.subr.bf16.mxu0 0
  %2869 = vmatpush2.bf16.msra.mxu0 0
  %2870 = vmatprep.mubr.bf16.mxu0 0
  %2871 = vmatmul.mubr.bf16.gmra.mxu0 %v2751
  %v2872 = vpop.f32.mrf.mxu0
  %v2873 = vadd.f32 0.0, %v2872
  %v2874 = vpop.f32.mrf.mxu0
  %v2875 = vadd.f32 0.0, %v2874
  %v2876 = vpop.f32.mrf.mxu0
  %v2877 = vadd.f32 0.0, %v2876
  %v2878 = vpop.f32.mrf.mxu0
  %v2879 = vadd.f32 0.0, %v2878
  %2880 = vdwg.mxu0
  %2881 = vmatprep.subr.bf16.mxu0 %v1391
  %2882 = vmatpush1.bf16.msra.mxu0 %v1390
  %2883 = vmatprep.subr.bf16.mxu0 %v1383
  %2884 = vmatpush1.bf16.msra.mxu0 %v1382
  %2885 = vmatprep.subr.bf16.mxu0 %v1375
  %2886 = vmatpush1.bf16.msra.mxu0 %v1374
  %2887 = vmatprep.subr.bf16.mxu0 %v1367
  %2888 = vmatpush1.bf16.msra.mxu0 %v1366
  %2889 = vmatprep.subr.bf16.mxu0 %v1359
  %2890 = vmatpush1.bf16.msra.mxu0 %v1358
  %2891 = vmatprep.subr.bf16.mxu0 %v1351
  %2892 = vmatpush1.bf16.msra.mxu0 %v1350
  %2893 = vmatprep.subr.bf16.mxu0 %v1343
  %2894 = vmatpush1.bf16.msra.mxu0 %v1342
  %2895 = vmatprep.subr.bf16.mxu0 %v1335
  %2896 = vmatpush1.bf16.msra.mxu0 %v1334
  %2897 = vmatprep.subr.bf16.mxu0 0
  %2898 = vmatpush2.bf16.msra.mxu0 0
  %2899 = vmatprep.subr.bf16.mxu0 0
  %2900 = vmatpush2.bf16.msra.mxu0 0
  %2901 = vmatprep.subr.bf16.mxu0 0
  %2902 = vmatpush2.bf16.msra.mxu0 0
  %2903 = vmatprep.subr.bf16.mxu0 0
  %2904 = vmatpush2.bf16.msra.mxu0 0
  %2905 = vmatprep.subr.bf16.mxu0 0
  %2906 = vmatpush2.bf16.msra.mxu0 0
  %2907 = vmatprep.subr.bf16.mxu0 0
  %2908 = vmatpush2.bf16.msra.mxu0 0
  %2909 = vmatprep.subr.bf16.mxu0 0
  %2910 = vmatpush2.bf16.msra.mxu0 0
  %2911 = vmatprep.subr.bf16.mxu0 0
  %2912 = vmatpush2.bf16.msra.mxu0 0
  %2913 = vmatprep.mubr.bf16.mxu0 0
  %2914 = vmatmul.mubr.bf16.gmra.mxu0 %v2751
  %v2915 = vpop.f32.mrf.mxu0
  %v2916 = vadd.f32 0.0, %v2915
  %v2917 = vpop.f32.mrf.mxu0
  %v2918 = vadd.f32 0.0, %v2917
  %v2919 = vpop.f32.mrf.mxu0
  %v2920 = vadd.f32 0.0, %v2919
  %v2921 = vpop.f32.mrf.mxu0
  %v2922 = vadd.f32 0.0, %v2921
  %2923 = vdwg.mxu0
  %2924 = vmatprep.subr.bf16.mxu0 %v1753
  %2925 = vmatpush1.bf16.msra.mxu0 %v1752
  %2926 = vmatprep.subr.bf16.mxu0 %v1749
  %2927 = vmatpush1.bf16.msra.mxu0 %v1748
  %2928 = vmatprep.subr.bf16.mxu0 %v1745
  %2929 = vmatpush1.bf16.msra.mxu0 %v1744
  %2930 = vmatprep.subr.bf16.mxu0 %v1741
  %2931 = vmatpush1.bf16.msra.mxu0 %v1740
  %2932 = vmatprep.subr.bf16.mxu0 %v1737
  %2933 = vmatpush1.bf16.msra.mxu0 %v1736
  %2934 = vmatprep.subr.bf16.mxu0 %v1733
  %2935 = vmatpush1.bf16.msra.mxu0 %v1732
  %2936 = vmatprep.subr.bf16.mxu0 %v1729
  %2937 = vmatpush1.bf16.msra.mxu0 %v1728
  %2938 = vmatprep.subr.bf16.mxu0 %v1725
  %2939 = vmatpush1.bf16.msra.mxu0 %v1724
  %2940 = vmatprep.subr.bf16.mxu0 0
  %2941 = vmatpush2.bf16.msra.mxu0 0
  %2942 = vmatprep.subr.bf16.mxu0 0
  %2943 = vmatpush2.bf16.msra.mxu0 0
  %2944 = vmatprep.subr.bf16.mxu0 0
  %2945 = vmatpush2.bf16.msra.mxu0 0
  %2946 = vmatprep.subr.bf16.mxu0 0
  %2947 = vmatpush2.bf16.msra.mxu0 0
  %2948 = vmatprep.subr.bf16.mxu0 0
  %2949 = vmatpush2.bf16.msra.mxu0 0
  %2950 = vmatprep.subr.bf16.mxu0 0
  %2951 = vmatpush2.bf16.msra.mxu0 0
  %2952 = vmatprep.subr.bf16.mxu0 0
  %2953 = vmatpush2.bf16.msra.mxu0 0
  %2954 = vmatprep.subr.bf16.mxu0 0
  %2955 = vmatpush2.bf16.msra.mxu0 0
  %2956 = vmatprep.mubr.bf16.mxu0 0
  %2957 = vmatmul.mubr.bf16.gmra.mxu0 %v2683
  %v2958 = vpop.f32.mrf.mxu0
  %v2959 = vadd.f32 0.0, %v2958
  %v2960 = vpop.f32.mrf.mxu0
  %v2961 = vadd.f32 0.0, %v2960
  %v2962 = vpop.f32.mrf.mxu0
  %v2963 = vadd.f32 0.0, %v2962
  %v2964 = vpop.f32.mrf.mxu0
  %v2965 = vadd.f32 0.0, %v2964
  %2966 = vdwg.mxu0
  %2967 = vmatprep.subr.bf16.mxu0 %v1755
  %2968 = vmatpush1.bf16.msra.mxu0 %v1754
  %2969 = vmatprep.subr.bf16.mxu0 %v1751
  %2970 = vmatpush1.bf16.msra.mxu0 %v1750
  %2971 = vmatprep.subr.bf16.mxu0 %v1747
  %2972 = vmatpush1.bf16.msra.mxu0 %v1746
  %2973 = vmatprep.subr.bf16.mxu0 %v1743
  %2974 = vmatpush1.bf16.msra.mxu0 %v1742
  %2975 = vmatprep.subr.bf16.mxu0 %v1739
  %2976 = vmatpush1.bf16.msra.mxu0 %v1738
  %2977 = vmatprep.subr.bf16.mxu0 %v1735
  %2978 = vmatpush1.bf16.msra.mxu0 %v1734
  %2979 = vmatprep.subr.bf16.mxu0 %v1731
  %2980 = vmatpush1.bf16.msra.mxu0 %v1730
  %2981 = vmatprep.subr.bf16.mxu0 %v1727
  %2982 = vmatpush1.bf16.msra.mxu0 %v1726
  %2983 = vmatprep.subr.bf16.mxu0 0
  %2984 = vmatpush2.bf16.msra.mxu0 0
  %2985 = vmatprep.subr.bf16.mxu0 0
  %2986 = vmatpush2.bf16.msra.mxu0 0
  %2987 = vmatprep.subr.bf16.mxu0 0
  %2988 = vmatpush2.bf16.msra.mxu0 0
  %2989 = vmatprep.subr.bf16.mxu0 0
  %2990 = vmatpush2.bf16.msra.mxu0 0
  %2991 = vmatprep.subr.bf16.mxu0 0
  %2992 = vmatpush2.bf16.msra.mxu0 0
  %2993 = vmatprep.subr.bf16.mxu0 0
  %2994 = vmatpush2.bf16.msra.mxu0 0
  %2995 = vmatprep.subr.bf16.mxu0 0
  %2996 = vmatpush2.bf16.msra.mxu0 0
  %2997 = vmatprep.subr.bf16.mxu0 0
  %2998 = vmatpush2.bf16.msra.mxu0 0
  %2999 = vmatprep.mubr.bf16.mxu0 0
  %3000 = vmatmul.mubr.bf16.gmra.mxu0 %v2683
  %v3001 = vpop.f32.mrf.mxu0
  %v3002 = vadd.f32 0.0, %v3001
  %v3003 = vpop.f32.mrf.mxu0
  %v3004 = vadd.f32 0.0, %v3003
  %v3005 = vpop.f32.mrf.mxu0
  %v3006 = vadd.f32 0.0, %v3005
  %v3007 = vpop.f32.mrf.mxu0
  %v3008 = vadd.f32 0.0, %v3007
  %3009 = vdwg.mxu0
  %v3010 = vadd.f32 %v2873, %v2959
  %v3011 = vadd.f32 %v2875, %v2961
  %v3012 = vadd.f32 %v2916, %v3002
  %v3013 = vadd.f32 %v2918, %v3004
  %v3014 = vadd.f32 %v2877, %v2963
  %v3015 = vadd.f32 %v2879, %v2965
  %v3016 = vadd.f32 %v2920, %v3006
  %v3017 = vadd.f32 %v2922, %v3008
  %v3018 = vadd.f32 %v3010, %v312
  %v3019 = vadd.f32 %v3011, %v316
  %v3020 = vadd.f32 %v3012, %v320
  %v3021 = vadd.f32 %v3013, %v324
  %v3022 = vadd.f32 %v3014, %v312
  %v3023 = vadd.f32 %v3015, %v316
  %v3024 = vadd.f32 %v3016, %v320
  %v3025 = vadd.f32 %v3017, %v324
  %v3026 = vmul.f32 %v3018, 0.5
  %v3027 = vmul.f32 %v3022, 0.5
  %v3028 = vtanh.pop %v3026
  %v3029 = vtanh.pop %v3027
  %v3030 = vadd.f32 %v3028, 1.0
  %v3031 = vadd.f32 %v3029, 1.0
  %v3032 = vmul.f32 %v3030, 0.5
  %v3033 = vmul.f32 %v3031, 0.5
  %v3034 = vmul.f32 %v3019, 0.5
  %v3035 = vmul.f32 %v3023, 0.5
  %v3036 = vtanh.pop %v3034
  %v3037 = vtanh.pop %v3035
  %v3038 = vadd.f32 %v3036, 1.0
  %v3039 = vadd.f32 %v3037, 1.0
  %v3040 = vmul.f32 %v3038, 0.5
  %v3041 = vmul.f32 %v3039, 0.5
  %v3042 = vtanh.pop %v3020
  %v3043 = vtanh.pop %v3024
  %v3044 = vmul.f32 %v3021, 0.5
  %v3045 = vmul.f32 %v3025, 0.5
  %v3046 = vtanh.pop %v3044
  %v3047 = vtanh.pop %v3045
  %v3048 = vadd.f32 %v3046, 1.0
  %v3049 = vadd.f32 %v3047, 1.0
  %v3050 = vmul.f32 %v3048, 0.5
  %v3051 = vmul.f32 %v3049, 0.5
  %v3052 = vmul.f32 %v3040, %v2677
  %v3053 = vmul.f32 %v3041, %v2678
  %v3054 = vmul.f32 %v3032, %v3042
  %v3055 = vmul.f32 %v3033, %v3043
  %v3056 = vadd.f32 %v3052, %v3054
  %v3057 = vadd.f32 %v3053, %v3055
  %v3058 = vtanh.pop %v3056
  %v3059 = vtanh.pop %v3057
  %v3060 = vmul.f32 %v3050, %v3058
  %v3061 = vmul.f32 %v3051, %v3059
  %v3062 = vpack.c.bf16 %v3061, %v3060
  %v3064 = vunpack.c.l.b16 %v3062
  %v3065 = vunpack.c.h.b16 %v3062
  %v3066 = vpack.c.b16 %v3064, %v3064
  %v3067 = vpack.c.b16 %v3065, %v3065
  %s3070 = scalar_lea.vmem [#allocation4], 24
  %3071 = vst [vmem:[%s3070] sm:$0xf] %v3066
  %3072 = vst [vmem:[%s3070 + $0x4] sm:$0xf] %v3067
  %s3073 = scalar_lea.vmem [#allocation2], 128
  %v3074 = vld [vmem:[%s3073] sm:$0xff]
  %v3075 = vld [vmem:[%s3073 + $0x8] sm:$0xff]
  %v3076 = vld [vmem:[%s3073 + $0x10] sm:$0xff]
  %v3077 = vld [vmem:[%s3073 + $0x18] sm:$0xff]
  %v3078 = vunpack.c.l.bf16 %v3074
  %v3079 = vunpack.c.h.bf16 %v3074
  %v3080 = vunpack.c.l.bf16 %v3075
  %v3081 = vunpack.c.h.bf16 %v3075
  %v3082 = vunpack.c.l.bf16 %v3076
  %v3083 = vunpack.c.h.bf16 %v3076
  %v3084 = vunpack.c.l.bf16 %v3077
  %v3085 = vunpack.c.h.bf16 %v3077
  %v3086 = vadd.f32 %v3078, %v2787
  %v3087 = vadd.f32 %v3079, %v2789
  %v3088 = vadd.f32 %v3080, %v2830
  %v3089 = vadd.f32 %v3081, %v2832
  %v3090 = vadd.f32 %v3082, %v2791
  %v3091 = vadd.f32 %v3083, %v2793
  %v3092 = vadd.f32 %v3084, %v2834
  %v3093 = vadd.f32 %v3085, %v2836
  %v3094 = vmul.f32 %v3086, 0.5
  %v3095 = vmul.f32 %v3090, 0.5
  %v3096 = vtanh.pop %v3094
  %v3097 = vtanh.pop %v3095
  %v3098 = vadd.f32 %v3096, 1.0
  %v3099 = vadd.f32 %v3097, 1.0
  %v3100 = vmul.f32 %v3098, 0.5
  %v3101 = vmul.f32 %v3099, 0.5
  %v3102 = vmul.f32 %v3087, 0.5
  %v3103 = vmul.f32 %v3091, 0.5
  %v3104 = vtanh.pop %v3102
  %v3105 = vtanh.pop %v3103
  %v3106 = vadd.f32 %v3104, 1.0
  %v3107 = vadd.f32 %v3105, 1.0
  %v3108 = vmul.f32 %v3106, 0.5
  %v3109 = vmul.f32 %v3107, 0.5
  %v3110 = vtanh.pop %v3088
  %v3111 = vtanh.pop %v3092
  %v3112 = vmul.f32 %v3089, 0.5
  %v3113 = vmul.f32 %v3093, 0.5
  %v3114 = vtanh.pop %v3112
  %v3115 = vtanh.pop %v3113
  %v3116 = vadd.f32 %v3114, 1.0
  %v3117 = vadd.f32 %v3115, 1.0
  %v3118 = vmul.f32 %v3116, 0.5
  %v3119 = vmul.f32 %v3117, 0.5
  %v3120 = vmul.f32 %v3108, %v2745
  %v3121 = vmul.f32 %v3109, %v2746
  %v3122 = vmul.f32 %v3100, %v3110
  %v3123 = vmul.f32 %v3101, %v3111
  %v3124 = vadd.f32 %v3120, %v3122
  %v3125 = vadd.f32 %v3121, %v3123
  %v3126 = vtanh.pop %v3124
  %v3127 = vtanh.pop %v3125
  %v3128 = vmul.f32 %v3118, %v3126
  %v3129 = vmul.f32 %v3119, %v3127
  %v3130 = vpack.c.bf16 %v3129, %v3128
  %3131 = vmatprep.subr.bf16.mxu0 %v1385
  %3132 = vmatpush1.bf16.msra.mxu0 %v1384
  %3133 = vmatprep.subr.bf16.mxu0 %v1377
  %3134 = vmatpush1.bf16.msra.mxu0 %v1376
  %3135 = vmatprep.subr.bf16.mxu0 %v1369
  %3136 = vmatpush1.bf16.msra.mxu0 %v1368
  %3137 = vmatprep.subr.bf16.mxu0 %v1361
  %3138 = vmatpush1.bf16.msra.mxu0 %v1360
  %3139 = vmatprep.subr.bf16.mxu0 %v1353
  %3140 = vmatpush1.bf16.msra.mxu0 %v1352
  %3141 = vmatprep.subr.bf16.mxu0 %v1345
  %3142 = vmatpush1.bf16.msra.mxu0 %v1344
  %3143 = vmatprep.subr.bf16.mxu0 %v1337
  %3144 = vmatpush1.bf16.msra.mxu0 %v1336
  %3145 = vmatprep.subr.bf16.mxu0 %v1329
  %3146 = vmatpush1.bf16.msra.mxu0 %v1328
  %3147 = vmatprep.subr.bf16.mxu0 0
  %3148 = vmatpush2.bf16.msra.mxu0 0
  %3149 = vmatprep.subr.bf16.mxu0 0
  %3150 = vmatpush2.bf16.msra.mxu0 0
  %3151 = vmatprep.subr.bf16.mxu0 0
  %3152 = vmatpush2.bf16.msra.mxu0 0
  %3153 = vmatprep.subr.bf16.mxu0 0
  %3154 = vmatpush2.bf16.msra.mxu0 0
  %3155 = vmatprep.subr.bf16.mxu0 0
  %3156 = vmatpush2.bf16.msra.mxu0 0
  %3157 = vmatprep.subr.bf16.mxu0 0
  %3158 = vmatpush2.bf16.msra.mxu0 0
  %3159 = vmatprep.subr.bf16.mxu0 0
  %3160 = vmatpush2.bf16.msra.mxu0 0
  %3161 = vmatprep.subr.bf16.mxu0 0
  %3162 = vmatpush2.bf16.msra.mxu0 0
  %3163 = vmatprep.mubr.bf16.mxu0 0
  %3164 = vmatmul.mubr.bf16.gmra.mxu0 %v3130
  %v3165 = vpop.f32.mrf.mxu0
  %v3166 = vadd.f32 0.0, %v3165
  %v3167 = vpop.f32.mrf.mxu0
  %v3168 = vadd.f32 0.0, %v3167
  %v3169 = vpop.f32.mrf.mxu0
  %v3170 = vadd.f32 0.0, %v3169
  %v3171 = vpop.f32.mrf.mxu0
  %v3172 = vadd.f32 0.0, %v3171
  %3173 = vdwg.mxu0
  %3174 = vmatprep.subr.bf16.mxu0 %v1387
  %3175 = vmatpush1.bf16.msra.mxu0 %v1386
  %3176 = vmatprep.subr.bf16.mxu0 %v1379
  %3177 = vmatpush1.bf16.msra.mxu0 %v1378
  %3178 = vmatprep.subr.bf16.mxu0 %v1371
  %3179 = vmatpush1.bf16.msra.mxu0 %v1370
  %3180 = vmatprep.subr.bf16.mxu0 %v1363
  %3181 = vmatpush1.bf16.msra.mxu0 %v1362
  %3182 = vmatprep.subr.bf16.mxu0 %v1355
  %3183 = vmatpush1.bf16.msra.mxu0 %v1354
  %3184 = vmatprep.subr.bf16.mxu0 %v1347
  %3185 = vmatpush1.bf16.msra.mxu0 %v1346
  %3186 = vmatprep.subr.bf16.mxu0 %v1339
  %3187 = vmatpush1.bf16.msra.mxu0 %v1338
  %3188 = vmatprep.subr.bf16.mxu0 %v1331
  %3189 = vmatpush1.bf16.msra.mxu0 %v1330
  %3190 = vmatprep.subr.bf16.mxu0 0
  %3191 = vmatpush2.bf16.msra.mxu0 0
  %3192 = vmatprep.subr.bf16.mxu0 0
  %3193 = vmatpush2.bf16.msra.mxu0 0
  %3194 = vmatprep.subr.bf16.mxu0 0
  %3195 = vmatpush2.bf16.msra.mxu0 0
  %3196 = vmatprep.subr.bf16.mxu0 0
  %3197 = vmatpush2.bf16.msra.mxu0 0
  %3198 = vmatprep.subr.bf16.mxu0 0
  %3199 = vmatpush2.bf16.msra.mxu0 0
  %3200 = vmatprep.subr.bf16.mxu0 0
  %3201 = vmatpush2.bf16.msra.mxu0 0
  %3202 = vmatprep.subr.bf16.mxu0 0
  %3203 = vmatpush2.bf16.msra.mxu0 0
  %3204 = vmatprep.subr.bf16.mxu0 0
  %3205 = vmatpush2.bf16.msra.mxu0 0
  %3206 = vmatprep.mubr.bf16.mxu0 0
  %3207 = vmatmul.mubr.bf16.gmra.mxu0 %v3130
  %v3208 = vpop.f32.mrf.mxu0
  %v3209 = vadd.f32 0.0, %v3208
  %v3210 = vpop.f32.mrf.mxu0
  %v3211 = vadd.f32 0.0, %v3210
  %v3212 = vpop.f32.mrf.mxu0
  %v3213 = vadd.f32 0.0, %v3212
  %v3214 = vpop.f32.mrf.mxu0
  %v3215 = vadd.f32 0.0, %v3214
  %3216 = vdwg.mxu0
  %3217 = vmatprep.subr.bf16.mxu0 %v1389
  %3218 = vmatpush1.bf16.msra.mxu0 %v1388
  %3219 = vmatprep.subr.bf16.mxu0 %v1381
  %3220 = vmatpush1.bf16.msra.mxu0 %v1380
  %3221 = vmatprep.subr.bf16.mxu0 %v1373
  %3222 = vmatpush1.bf16.msra.mxu0 %v1372
  %3223 = vmatprep.subr.bf16.mxu0 %v1365
  %3224 = vmatpush1.bf16.msra.mxu0 %v1364
  %3225 = vmatprep.subr.bf16.mxu0 %v1357
  %3226 = vmatpush1.bf16.msra.mxu0 %v1356
  %3227 = vmatprep.subr.bf16.mxu0 %v1349
  %3228 = vmatpush1.bf16.msra.mxu0 %v1348
  %3229 = vmatprep.subr.bf16.mxu0 %v1341
  %3230 = vmatpush1.bf16.msra.mxu0 %v1340
  %3231 = vmatprep.subr.bf16.mxu0 %v1333
  %3232 = vmatpush1.bf16.msra.mxu0 %v1332
  %3233 = vmatprep.subr.bf16.mxu0 0
  %3234 = vmatpush2.bf16.msra.mxu0 0
  %3235 = vmatprep.subr.bf16.mxu0 0
  %3236 = vmatpush2.bf16.msra.mxu0 0
  %3237 = vmatprep.subr.bf16.mxu0 0
  %3238 = vmatpush2.bf16.msra.mxu0 0
  %3239 = vmatprep.subr.bf16.mxu0 0
  %3240 = vmatpush2.bf16.msra.mxu0 0
  %3241 = vmatprep.subr.bf16.mxu0 0
  %3242 = vmatpush2.bf16.msra.mxu0 0
  %3243 = vmatprep.subr.bf16.mxu0 0
  %3244 = vmatpush2.bf16.msra.mxu0 0
  %3245 = vmatprep.subr.bf16.mxu0 0
  %3246 = vmatpush2.bf16.msra.mxu0 0
  %3247 = vmatprep.subr.bf16.mxu0 0
  %3248 = vmatpush2.bf16.msra.mxu0 0
  %3249 = vmatprep.mubr.bf16.mxu0 0
  %3250 = vmatmul.mubr.bf16.gmra.mxu0 %v3130
  %v3251 = vpop.f32.mrf.mxu0
  %v3252 = vadd.f32 0.0, %v3251
  %v3253 = vpop.f32.mrf.mxu0
  %v3254 = vadd.f32 0.0, %v3253
  %v3255 = vpop.f32.mrf.mxu0
  %v3256 = vadd.f32 0.0, %v3255
  %v3257 = vpop.f32.mrf.mxu0
  %v3258 = vadd.f32 0.0, %v3257
  %3259 = vdwg.mxu0
  %3260 = vmatprep.subr.bf16.mxu0 %v1391
  %3261 = vmatpush1.bf16.msra.mxu0 %v1390
  %3262 = vmatprep.subr.bf16.mxu0 %v1383
  %3263 = vmatpush1.bf16.msra.mxu0 %v1382
  %3264 = vmatprep.subr.bf16.mxu0 %v1375
  %3265 = vmatpush1.bf16.msra.mxu0 %v1374
  %3266 = vmatprep.subr.bf16.mxu0 %v1367
  %3267 = vmatpush1.bf16.msra.mxu0 %v1366
  %3268 = vmatprep.subr.bf16.mxu0 %v1359
  %3269 = vmatpush1.bf16.msra.mxu0 %v1358
  %3270 = vmatprep.subr.bf16.mxu0 %v1351
  %3271 = vmatpush1.bf16.msra.mxu0 %v1350
  %3272 = vmatprep.subr.bf16.mxu0 %v1343
  %3273 = vmatpush1.bf16.msra.mxu0 %v1342
  %3274 = vmatprep.subr.bf16.mxu0 %v1335
  %3275 = vmatpush1.bf16.msra.mxu0 %v1334
  %3276 = vmatprep.subr.bf16.mxu0 0
  %3277 = vmatpush2.bf16.msra.mxu0 0
  %3278 = vmatprep.subr.bf16.mxu0 0
  %3279 = vmatpush2.bf16.msra.mxu0 0
  %3280 = vmatprep.subr.bf16.mxu0 0
  %3281 = vmatpush2.bf16.msra.mxu0 0
  %3282 = vmatprep.subr.bf16.mxu0 0
  %3283 = vmatpush2.bf16.msra.mxu0 0
  %3284 = vmatprep.subr.bf16.mxu0 0
  %3285 = vmatpush2.bf16.msra.mxu0 0
  %3286 = vmatprep.subr.bf16.mxu0 0
  %3287 = vmatpush2.bf16.msra.mxu0 0
  %3288 = vmatprep.subr.bf16.mxu0 0
  %3289 = vmatpush2.bf16.msra.mxu0 0
  %3290 = vmatprep.subr.bf16.mxu0 0
  %3291 = vmatpush2.bf16.msra.mxu0 0
  %3292 = vmatprep.mubr.bf16.mxu0 0
  %3293 = vmatmul.mubr.bf16.gmra.mxu0 %v3130
  %v3294 = vpop.f32.mrf.mxu0
  %v3295 = vadd.f32 0.0, %v3294
  %v3296 = vpop.f32.mrf.mxu0
  %v3297 = vadd.f32 0.0, %v3296
  %v3298 = vpop.f32.mrf.mxu0
  %v3299 = vadd.f32 0.0, %v3298
  %v3300 = vpop.f32.mrf.mxu0
  %v3301 = vadd.f32 0.0, %v3300
  %3302 = vdwg.mxu0
  %3303 = vmatprep.subr.bf16.mxu0 %v1753
  %3304 = vmatpush1.bf16.msra.mxu0 %v1752
  %3305 = vmatprep.subr.bf16.mxu0 %v1749
  %3306 = vmatpush1.bf16.msra.mxu0 %v1748
  %3307 = vmatprep.subr.bf16.mxu0 %v1745
  %3308 = vmatpush1.bf16.msra.mxu0 %v1744
  %3309 = vmatprep.subr.bf16.mxu0 %v1741
  %3310 = vmatpush1.bf16.msra.mxu0 %v1740
  %3311 = vmatprep.subr.bf16.mxu0 %v1737
  %3312 = vmatpush1.bf16.msra.mxu0 %v1736
  %3313 = vmatprep.subr.bf16.mxu0 %v1733
  %3314 = vmatpush1.bf16.msra.mxu0 %v1732
  %3315 = vmatprep.subr.bf16.mxu0 %v1729
  %3316 = vmatpush1.bf16.msra.mxu0 %v1728
  %3317 = vmatprep.subr.bf16.mxu0 %v1725
  %3318 = vmatpush1.bf16.msra.mxu0 %v1724
  %3319 = vmatprep.subr.bf16.mxu0 0
  %3320 = vmatpush2.bf16.msra.mxu0 0
  %3321 = vmatprep.subr.bf16.mxu0 0
  %3322 = vmatpush2.bf16.msra.mxu0 0
  %3323 = vmatprep.subr.bf16.mxu0 0
  %3324 = vmatpush2.bf16.msra.mxu0 0
  %3325 = vmatprep.subr.bf16.mxu0 0
  %3326 = vmatpush2.bf16.msra.mxu0 0
  %3327 = vmatprep.subr.bf16.mxu0 0
  %3328 = vmatpush2.bf16.msra.mxu0 0
  %3329 = vmatprep.subr.bf16.mxu0 0
  %3330 = vmatpush2.bf16.msra.mxu0 0
  %3331 = vmatprep.subr.bf16.mxu0 0
  %3332 = vmatpush2.bf16.msra.mxu0 0
  %3333 = vmatprep.subr.bf16.mxu0 0
  %3334 = vmatpush2.bf16.msra.mxu0 0
  %3335 = vmatprep.mubr.bf16.mxu0 0
  %3336 = vmatmul.mubr.bf16.gmra.mxu0 %v3062
  %v3337 = vpop.f32.mrf.mxu0
  %v3338 = vadd.f32 0.0, %v3337
  %v3339 = vpop.f32.mrf.mxu0
  %v3340 = vadd.f32 0.0, %v3339
  %v3341 = vpop.f32.mrf.mxu0
  %v3342 = vadd.f32 0.0, %v3341
  %v3343 = vpop.f32.mrf.mxu0
  %v3344 = vadd.f32 0.0, %v3343
  %3345 = vdwg.mxu0
  %3346 = vmatprep.subr.bf16.mxu0 %v1755
  %3347 = vmatpush1.bf16.msra.mxu0 %v1754
  %3348 = vmatprep.subr.bf16.mxu0 %v1751
  %3349 = vmatpush1.bf16.msra.mxu0 %v1750
  %3350 = vmatprep.subr.bf16.mxu0 %v1747
  %3351 = vmatpush1.bf16.msra.mxu0 %v1746
  %3352 = vmatprep.subr.bf16.mxu0 %v1743
  %3353 = vmatpush1.bf16.msra.mxu0 %v1742
  %3354 = vmatprep.subr.bf16.mxu0 %v1739
  %3355 = vmatpush1.bf16.msra.mxu0 %v1738
  %3356 = vmatprep.subr.bf16.mxu0 %v1735
  %3357 = vmatpush1.bf16.msra.mxu0 %v1734
  %3358 = vmatprep.subr.bf16.mxu0 %v1731
  %3359 = vmatpush1.bf16.msra.mxu0 %v1730
  %3360 = vmatprep.subr.bf16.mxu0 %v1727
  %3361 = vmatpush1.bf16.msra.mxu0 %v1726
  %3362 = vmatprep.subr.bf16.mxu0 0
  %3363 = vmatpush2.bf16.msra.mxu0 0
  %3364 = vmatprep.subr.bf16.mxu0 0
  %3365 = vmatpush2.bf16.msra.mxu0 0
  %3366 = vmatprep.subr.bf16.mxu0 0
  %3367 = vmatpush2.bf16.msra.mxu0 0
  %3368 = vmatprep.subr.bf16.mxu0 0
  %3369 = vmatpush2.bf16.msra.mxu0 0
  %3370 = vmatprep.subr.bf16.mxu0 0
  %3371 = vmatpush2.bf16.msra.mxu0 0
  %3372 = vmatprep.subr.bf16.mxu0 0
  %3373 = vmatpush2.bf16.msra.mxu0 0
  %3374 = vmatprep.subr.bf16.mxu0 0
  %3375 = vmatpush2.bf16.msra.mxu0 0
  %3376 = vmatprep.subr.bf16.mxu0 0
  %3377 = vmatpush2.bf16.msra.mxu0 0
  %3378 = vmatprep.mubr.bf16.mxu0 0
  %3379 = vmatmul.mubr.bf16.gmra.mxu0 %v3062
  %v3380 = vpop.f32.mrf.mxu0
  %v3381 = vadd.f32 0.0, %v3380
  %v3382 = vpop.f32.mrf.mxu0
  %v3383 = vadd.f32 0.0, %v3382
  %v3384 = vpop.f32.mrf.mxu0
  %v3385 = vadd.f32 0.0, %v3384
  %v3386 = vpop.f32.mrf.mxu0
  %v3387 = vadd.f32 0.0, %v3386
  %3388 = vdwg.mxu0
  %v3389 = vadd.f32 %v3252, %v3338
  %v3390 = vadd.f32 %v3254, %v3340
  %v3391 = vadd.f32 %v3295, %v3381
  %v3392 = vadd.f32 %v3297, %v3383
  %v3393 = vadd.f32 %v3256, %v3342
  %v3394 = vadd.f32 %v3258, %v3344
  %v3395 = vadd.f32 %v3299, %v3385
  %v3396 = vadd.f32 %v3301, %v3387
  %v3397 = vadd.f32 %v3389, %v312
  %v3398 = vadd.f32 %v3390, %v316
  %v3399 = vadd.f32 %v3391, %v320
  %v3400 = vadd.f32 %v3392, %v324
  %v3401 = vadd.f32 %v3393, %v312
  %v3402 = vadd.f32 %v3394, %v316
  %v3403 = vadd.f32 %v3395, %v320
  %v3404 = vadd.f32 %v3396, %v324
  %v3405 = vmul.f32 %v3397, 0.5
  %v3406 = vmul.f32 %v3401, 0.5
  %v3407 = vtanh.pop %v3405
  %v3408 = vtanh.pop %v3406
  %v3409 = vadd.f32 %v3407, 1.0
  %v3410 = vadd.f32 %v3408, 1.0
  %v3411 = vmul.f32 %v3409, 0.5
  %v3412 = vmul.f32 %v3410, 0.5
  %v3413 = vmul.f32 %v3398, 0.5
  %v3414 = vmul.f32 %v3402, 0.5
  %v3415 = vtanh.pop %v3413
  %v3416 = vtanh.pop %v3414
  %v3417 = vadd.f32 %v3415, 1.0
  %v3418 = vadd.f32 %v3416, 1.0
  %v3419 = vmul.f32 %v3417, 0.5
  %v3420 = vmul.f32 %v3418, 0.5
  %v3421 = vtanh.pop %v3399
  %v3422 = vtanh.pop %v3403
  %v3423 = vmul.f32 %v3400, 0.5
  %v3424 = vmul.f32 %v3404, 0.5
  %v3425 = vtanh.pop %v3423
  %v3426 = vtanh.pop %v3424
  %v3427 = vadd.f32 %v3425, 1.0
  %v3428 = vadd.f32 %v3426, 1.0
  %v3429 = vmul.f32 %v3427, 0.5
  %v3430 = vmul.f32 %v3428, 0.5
  %v3431 = vmul.f32 %v3419, %v3056
  %v3432 = vmul.f32 %v3420, %v3057
  %v3433 = vmul.f32 %v3411, %v3421
  %v3434 = vmul.f32 %v3412, %v3422
  %v3435 = vadd.f32 %v3431, %v3433
  %v3436 = vadd.f32 %v3432, %v3434
  %v3437 = vtanh.pop %v3435
  %v3438 = vtanh.pop %v3436
  %v3439 = vmul.f32 %v3429, %v3437
  %v3440 = vmul.f32 %v3430, %v3438
  %v3441 = vpack.c.bf16 %v3440, %v3439
  %v3443 = vunpack.c.l.b16 %v3441
  %v3444 = vunpack.c.h.b16 %v3441
  %v3445 = vpack.c.b16 %v3443, %v3443
  %v3446 = vpack.c.b16 %v3444, %v3444
  %s3449 = scalar_lea.vmem [#allocation4], 32
  %3450 = vst [vmem:[%s3449] sm:$0xf] %v3445
  %3451 = vst [vmem:[%s3449 + $0x4] sm:$0xf] %v3446
  %s3452 = scalar_lea.vmem [#allocation2], 160
  %v3453 = vld [vmem:[%s3452] sm:$0xff]
  %v3454 = vld [vmem:[%s3452 + $0x8] sm:$0xff]
  %v3455 = vld [vmem:[%s3452 + $0x10] sm:$0xff]
  %v3456 = vld [vmem:[%s3452 + $0x18] sm:$0xff]
  %v3457 = vunpack.c.l.bf16 %v3453
  %v3458 = vunpack.c.h.bf16 %v3453
  %v3459 = vunpack.c.l.bf16 %v3454
  %v3460 = vunpack.c.h.bf16 %v3454
  %v3461 = vunpack.c.l.bf16 %v3455
  %v3462 = vunpack.c.h.bf16 %v3455
  %v3463 = vunpack.c.l.bf16 %v3456
  %v3464 = vunpack.c.h.bf16 %v3456
  %v3465 = vadd.f32 %v3457, %v3166
  %v3466 = vadd.f32 %v3458, %v3168
  %v3467 = vadd.f32 %v3459, %v3209
  %v3468 = vadd.f32 %v3460, %v3211
  %v3469 = vadd.f32 %v3461, %v3170
  %v3470 = vadd.f32 %v3462, %v3172
  %v3471 = vadd.f32 %v3463, %v3213
  %v3472 = vadd.f32 %v3464, %v3215
  %v3473 = vmul.f32 %v3465, 0.5
  %v3474 = vmul.f32 %v3469, 0.5
  %v3475 = vtanh.pop %v3473
  %v3476 = vtanh.pop %v3474
  %v3477 = vadd.f32 %v3475, 1.0
  %v3478 = vadd.f32 %v3476, 1.0
  %v3479 = vmul.f32 %v3477, 0.5
  %v3480 = vmul.f32 %v3478, 0.5
  %v3481 = vmul.f32 %v3466, 0.5
  %v3482 = vmul.f32 %v3470, 0.5
  %v3483 = vtanh.pop %v3481
  %v3484 = vtanh.pop %v3482
  %v3485 = vadd.f32 %v3483, 1.0
  %v3486 = vadd.f32 %v3484, 1.0
  %v3487 = vmul.f32 %v3485, 0.5
  %v3488 = vmul.f32 %v3486, 0.5
  %v3489 = vtanh.pop %v3467
  %v3490 = vtanh.pop %v3471
  %v3491 = vmul.f32 %v3468, 0.5
  %v3492 = vmul.f32 %v3472, 0.5
  %v3493 = vtanh.pop %v3491
  %v3494 = vtanh.pop %v3492
  %v3495 = vadd.f32 %v3493, 1.0
  %v3496 = vadd.f32 %v3494, 1.0
  %v3497 = vmul.f32 %v3495, 0.5
  %v3498 = vmul.f32 %v3496, 0.5
  %v3499 = vmul.f32 %v3487, %v3124
  %v3500 = vmul.f32 %v3488, %v3125
  %v3501 = vmul.f32 %v3479, %v3489
  %v3502 = vmul.f32 %v3480, %v3490
  %v3503 = vadd.f32 %v3499, %v3501
  %v3504 = vadd.f32 %v3500, %v3502
  %v3505 = vtanh.pop %v3503
  %v3506 = vtanh.pop %v3504
  %v3507 = vmul.f32 %v3497, %v3505
  %v3508 = vmul.f32 %v3498, %v3506
  %v3509 = vpack.c.bf16 %v3508, %v3507
  %3510 = vmatprep.subr.bf16.mxu0 %v1385
  %3511 = vmatpush1.bf16.msra.mxu0 %v1384
  %3512 = vmatprep.subr.bf16.mxu0 %v1377
  %3513 = vmatpush1.bf16.msra.mxu0 %v1376
  %3514 = vmatprep.subr.bf16.mxu0 %v1369
  %3515 = vmatpush1.bf16.msra.mxu0 %v1368
  %3516 = vmatprep.subr.bf16.mxu0 %v1361
  %3517 = vmatpush1.bf16.msra.mxu0 %v1360
  %3518 = vmatprep.subr.bf16.mxu0 %v1353
  %3519 = vmatpush1.bf16.msra.mxu0 %v1352
  %3520 = vmatprep.subr.bf16.mxu0 %v1345
  %3521 = vmatpush1.bf16.msra.mxu0 %v1344
  %3522 = vmatprep.subr.bf16.mxu0 %v1337
  %3523 = vmatpush1.bf16.msra.mxu0 %v1336
  %3524 = vmatprep.subr.bf16.mxu0 %v1329
  %3525 = vmatpush1.bf16.msra.mxu0 %v1328
  %3526 = vmatprep.subr.bf16.mxu0 0
  %3527 = vmatpush2.bf16.msra.mxu0 0
  %3528 = vmatprep.subr.bf16.mxu0 0
  %3529 = vmatpush2.bf16.msra.mxu0 0
  %3530 = vmatprep.subr.bf16.mxu0 0
  %3531 = vmatpush2.bf16.msra.mxu0 0
  %3532 = vmatprep.subr.bf16.mxu0 0
  %3533 = vmatpush2.bf16.msra.mxu0 0
  %3534 = vmatprep.subr.bf16.mxu0 0
  %3535 = vmatpush2.bf16.msra.mxu0 0
  %3536 = vmatprep.subr.bf16.mxu0 0
  %3537 = vmatpush2.bf16.msra.mxu0 0
  %3538 = vmatprep.subr.bf16.mxu0 0
  %3539 = vmatpush2.bf16.msra.mxu0 0
  %3540 = vmatprep.subr.bf16.mxu0 0
  %3541 = vmatpush2.bf16.msra.mxu0 0
  %3542 = vmatprep.mubr.bf16.mxu0 0
  %3543 = vmatmul.mubr.bf16.gmra.mxu0 %v3509
  %v3544 = vpop.f32.mrf.mxu0
  %v3545 = vadd.f32 0.0, %v3544
  %v3546 = vpop.f32.mrf.mxu0
  %v3547 = vadd.f32 0.0, %v3546
  %v3548 = vpop.f32.mrf.mxu0
  %v3549 = vadd.f32 0.0, %v3548
  %v3550 = vpop.f32.mrf.mxu0
  %v3551 = vadd.f32 0.0, %v3550
  %3552 = vdwg.mxu0
  %3553 = vmatprep.subr.bf16.mxu0 %v1387
  %3554 = vmatpush1.bf16.msra.mxu0 %v1386
  %3555 = vmatprep.subr.bf16.mxu0 %v1379
  %3556 = vmatpush1.bf16.msra.mxu0 %v1378
  %3557 = vmatprep.subr.bf16.mxu0 %v1371
  %3558 = vmatpush1.bf16.msra.mxu0 %v1370
  %3559 = vmatprep.subr.bf16.mxu0 %v1363
  %3560 = vmatpush1.bf16.msra.mxu0 %v1362
  %3561 = vmatprep.subr.bf16.mxu0 %v1355
  %3562 = vmatpush1.bf16.msra.mxu0 %v1354
  %3563 = vmatprep.subr.bf16.mxu0 %v1347
  %3564 = vmatpush1.bf16.msra.mxu0 %v1346
  %3565 = vmatprep.subr.bf16.mxu0 %v1339
  %3566 = vmatpush1.bf16.msra.mxu0 %v1338
  %3567 = vmatprep.subr.bf16.mxu0 %v1331
  %3568 = vmatpush1.bf16.msra.mxu0 %v1330
  %3569 = vmatprep.subr.bf16.mxu0 0
  %3570 = vmatpush2.bf16.msra.mxu0 0
  %3571 = vmatprep.subr.bf16.mxu0 0
  %3572 = vmatpush2.bf16.msra.mxu0 0
  %3573 = vmatprep.subr.bf16.mxu0 0
  %3574 = vmatpush2.bf16.msra.mxu0 0
  %3575 = vmatprep.subr.bf16.mxu0 0
  %3576 = vmatpush2.bf16.msra.mxu0 0
  %3577 = vmatprep.subr.bf16.mxu0 0
  %3578 = vmatpush2.bf16.msra.mxu0 0
  %3579 = vmatprep.subr.bf16.mxu0 0
  %3580 = vmatpush2.bf16.msra.mxu0 0
  %3581 = vmatprep.subr.bf16.mxu0 0
  %3582 = vmatpush2.bf16.msra.mxu0 0
  %3583 = vmatprep.subr.bf16.mxu0 0
  %3584 = vmatpush2.bf16.msra.mxu0 0
  %3585 = vmatprep.mubr.bf16.mxu0 0
  %3586 = vmatmul.mubr.bf16.gmra.mxu0 %v3509
  %v3587 = vpop.f32.mrf.mxu0
  %v3588 = vadd.f32 0.0, %v3587
  %v3589 = vpop.f32.mrf.mxu0
  %v3590 = vadd.f32 0.0, %v3589
  %v3591 = vpop.f32.mrf.mxu0
  %v3592 = vadd.f32 0.0, %v3591
  %v3593 = vpop.f32.mrf.mxu0
  %v3594 = vadd.f32 0.0, %v3593
  %3595 = vdwg.mxu0
  %3596 = vmatprep.subr.bf16.mxu0 %v1389
  %3597 = vmatpush1.bf16.msra.mxu0 %v1388
  %3598 = vmatprep.subr.bf16.mxu0 %v1381
  %3599 = vmatpush1.bf16.msra.mxu0 %v1380
  %3600 = vmatprep.subr.bf16.mxu0 %v1373
  %3601 = vmatpush1.bf16.msra.mxu0 %v1372
  %3602 = vmatprep.subr.bf16.mxu0 %v1365
  %3603 = vmatpush1.bf16.msra.mxu0 %v1364
  %3604 = vmatprep.subr.bf16.mxu0 %v1357
  %3605 = vmatpush1.bf16.msra.mxu0 %v1356
  %3606 = vmatprep.subr.bf16.mxu0 %v1349
  %3607 = vmatpush1.bf16.msra.mxu0 %v1348
  %3608 = vmatprep.subr.bf16.mxu0 %v1341
  %3609 = vmatpush1.bf16.msra.mxu0 %v1340
  %3610 = vmatprep.subr.bf16.mxu0 %v1333
  %3611 = vmatpush1.bf16.msra.mxu0 %v1332
  %3612 = vmatprep.subr.bf16.mxu0 0
  %3613 = vmatpush2.bf16.msra.mxu0 0
  %3614 = vmatprep.subr.bf16.mxu0 0
  %3615 = vmatpush2.bf16.msra.mxu0 0
  %3616 = vmatprep.subr.bf16.mxu0 0
  %3617 = vmatpush2.bf16.msra.mxu0 0
  %3618 = vmatprep.subr.bf16.mxu0 0
  %3619 = vmatpush2.bf16.msra.mxu0 0
  %3620 = vmatprep.subr.bf16.mxu0 0
  %3621 = vmatpush2.bf16.msra.mxu0 0
  %3622 = vmatprep.subr.bf16.mxu0 0
  %3623 = vmatpush2.bf16.msra.mxu0 0
  %3624 = vmatprep.subr.bf16.mxu0 0
  %3625 = vmatpush2.bf16.msra.mxu0 0
  %3626 = vmatprep.subr.bf16.mxu0 0
  %3627 = vmatpush2.bf16.msra.mxu0 0
  %3628 = vmatprep.mubr.bf16.mxu0 0
  %3629 = vmatmul.mubr.bf16.gmra.mxu0 %v3509
  %v3630 = vpop.f32.mrf.mxu0
  %v3631 = vadd.f32 0.0, %v3630
  %v3632 = vpop.f32.mrf.mxu0
  %v3633 = vadd.f32 0.0, %v3632
  %v3634 = vpop.f32.mrf.mxu0
  %v3635 = vadd.f32 0.0, %v3634
  %v3636 = vpop.f32.mrf.mxu0
  %v3637 = vadd.f32 0.0, %v3636
  %3638 = vdwg.mxu0
  %3639 = vmatprep.subr.bf16.mxu0 %v1391
  %3640 = vmatpush1.bf16.msra.mxu0 %v1390
  %3641 = vmatprep.subr.bf16.mxu0 %v1383
  %3642 = vmatpush1.bf16.msra.mxu0 %v1382
  %3643 = vmatprep.subr.bf16.mxu0 %v1375
  %3644 = vmatpush1.bf16.msra.mxu0 %v1374
  %3645 = vmatprep.subr.bf16.mxu0 %v1367
  %3646 = vmatpush1.bf16.msra.mxu0 %v1366
  %3647 = vmatprep.subr.bf16.mxu0 %v1359
  %3648 = vmatpush1.bf16.msra.mxu0 %v1358
  %3649 = vmatprep.subr.bf16.mxu0 %v1351
  %3650 = vmatpush1.bf16.msra.mxu0 %v1350
  %3651 = vmatprep.subr.bf16.mxu0 %v1343
  %3652 = vmatpush1.bf16.msra.mxu0 %v1342
  %3653 = vmatprep.subr.bf16.mxu0 %v1335
  %3654 = vmatpush1.bf16.msra.mxu0 %v1334
  %3655 = vmatprep.subr.bf16.mxu0 0
  %3656 = vmatpush2.bf16.msra.mxu0 0
  %3657 = vmatprep.subr.bf16.mxu0 0
  %3658 = vmatpush2.bf16.msra.mxu0 0
  %3659 = vmatprep.subr.bf16.mxu0 0
  %3660 = vmatpush2.bf16.msra.mxu0 0
  %3661 = vmatprep.subr.bf16.mxu0 0
  %3662 = vmatpush2.bf16.msra.mxu0 0
  %3663 = vmatprep.subr.bf16.mxu0 0
  %3664 = vmatpush2.bf16.msra.mxu0 0
  %3665 = vmatprep.subr.bf16.mxu0 0
  %3666 = vmatpush2.bf16.msra.mxu0 0
  %3667 = vmatprep.subr.bf16.mxu0 0
  %3668 = vmatpush2.bf16.msra.mxu0 0
  %3669 = vmatprep.subr.bf16.mxu0 0
  %3670 = vmatpush2.bf16.msra.mxu0 0
  %3671 = vmatprep.mubr.bf16.mxu0 0
  %3672 = vmatmul.mubr.bf16.gmra.mxu0 %v3509
  %v3673 = vpop.f32.mrf.mxu0
  %v3674 = vadd.f32 0.0, %v3673
  %v3675 = vpop.f32.mrf.mxu0
  %v3676 = vadd.f32 0.0, %v3675
  %v3677 = vpop.f32.mrf.mxu0
  %v3678 = vadd.f32 0.0, %v3677
  %v3679 = vpop.f32.mrf.mxu0
  %v3680 = vadd.f32 0.0, %v3679
  %3681 = vdwg.mxu0
  %3682 = vmatprep.subr.bf16.mxu0 %v1753
  %3683 = vmatpush1.bf16.msra.mxu0 %v1752
  %3684 = vmatprep.subr.bf16.mxu0 %v1749
  %3685 = vmatpush1.bf16.msra.mxu0 %v1748
  %3686 = vmatprep.subr.bf16.mxu0 %v1745
  %3687 = vmatpush1.bf16.msra.mxu0 %v1744
  %3688 = vmatprep.subr.bf16.mxu0 %v1741
  %3689 = vmatpush1.bf16.msra.mxu0 %v1740
  %3690 = vmatprep.subr.bf16.mxu0 %v1737
  %3691 = vmatpush1.bf16.msra.mxu0 %v1736
  %3692 = vmatprep.subr.bf16.mxu0 %v1733
  %3693 = vmatpush1.bf16.msra.mxu0 %v1732
  %3694 = vmatprep.subr.bf16.mxu0 %v1729
  %3695 = vmatpush1.bf16.msra.mxu0 %v1728
  %3696 = vmatprep.subr.bf16.mxu0 %v1725
  %3697 = vmatpush1.bf16.msra.mxu0 %v1724
  %3698 = vmatprep.subr.bf16.mxu0 0
  %3699 = vmatpush2.bf16.msra.mxu0 0
  %3700 = vmatprep.subr.bf16.mxu0 0
  %3701 = vmatpush2.bf16.msra.mxu0 0
  %3702 = vmatprep.subr.bf16.mxu0 0
  %3703 = vmatpush2.bf16.msra.mxu0 0
  %3704 = vmatprep.subr.bf16.mxu0 0
  %3705 = vmatpush2.bf16.msra.mxu0 0
  %3706 = vmatprep.subr.bf16.mxu0 0
  %3707 = vmatpush2.bf16.msra.mxu0 0
  %3708 = vmatprep.subr.bf16.mxu0 0
  %3709 = vmatpush2.bf16.msra.mxu0 0
  %3710 = vmatprep.subr.bf16.mxu0 0
  %3711 = vmatpush2.bf16.msra.mxu0 0
  %3712 = vmatprep.subr.bf16.mxu0 0
  %3713 = vmatpush2.bf16.msra.mxu0 0
  %3714 = vmatprep.mubr.bf16.mxu0 0
  %3715 = vmatmul.mubr.bf16.gmra.mxu0 %v3441
  %v3716 = vpop.f32.mrf.mxu0
  %v3717 = vadd.f32 0.0, %v3716
  %v3718 = vpop.f32.mrf.mxu0
  %v3719 = vadd.f32 0.0, %v3718
  %v3720 = vpop.f32.mrf.mxu0
  %v3721 = vadd.f32 0.0, %v3720
  %v3722 = vpop.f32.mrf.mxu0
  %v3723 = vadd.f32 0.0, %v3722
  %3724 = vdwg.mxu0
  %3725 = vmatprep.subr.bf16.mxu0 %v1755
  %3726 = vmatpush1.bf16.msra.mxu0 %v1754
  %3727 = vmatprep.subr.bf16.mxu0 %v1751
  %3728 = vmatpush1.bf16.msra.mxu0 %v1750
  %3729 = vmatprep.subr.bf16.mxu0 %v1747
  %3730 = vmatpush1.bf16.msra.mxu0 %v1746
  %3731 = vmatprep.subr.bf16.mxu0 %v1743
  %3732 = vmatpush1.bf16.msra.mxu0 %v1742
  %3733 = vmatprep.subr.bf16.mxu0 %v1739
  %3734 = vmatpush1.bf16.msra.mxu0 %v1738
  %3735 = vmatprep.subr.bf16.mxu0 %v1735
  %3736 = vmatpush1.bf16.msra.mxu0 %v1734
  %3737 = vmatprep.subr.bf16.mxu0 %v1731
  %3738 = vmatpush1.bf16.msra.mxu0 %v1730
  %3739 = vmatprep.subr.bf16.mxu0 %v1727
  %3740 = vmatpush1.bf16.msra.mxu0 %v1726
  %3741 = vmatprep.subr.bf16.mxu0 0
  %3742 = vmatpush2.bf16.msra.mxu0 0
  %3743 = vmatprep.subr.bf16.mxu0 0
  %3744 = vmatpush2.bf16.msra.mxu0 0
  %3745 = vmatprep.subr.bf16.mxu0 0
  %3746 = vmatpush2.bf16.msra.mxu0 0
  %3747 = vmatprep.subr.bf16.mxu0 0
  %3748 = vmatpush2.bf16.msra.mxu0 0
  %3749 = vmatprep.subr.bf16.mxu0 0
  %3750 = vmatpush2.bf16.msra.mxu0 0
  %3751 = vmatprep.subr.bf16.mxu0 0
  %3752 = vmatpush2.bf16.msra.mxu0 0
  %3753 = vmatprep.subr.bf16.mxu0 0
  %3754 = vmatpush2.bf16.msra.mxu0 0
  %3755 = vmatprep.subr.bf16.mxu0 0
  %3756 = vmatpush2.bf16.msra.mxu0 0
  %3757 = vmatprep.mubr.bf16.mxu0 0
  %3758 = vmatmul.mubr.bf16.gmra.mxu0 %v3441
  %v3759 = vpop.f32.mrf.mxu0
  %v3760 = vadd.f32 0.0, %v3759
  %v3761 = vpop.f32.mrf.mxu0
  %v3762 = vadd.f32 0.0, %v3761
  %v3763 = vpop.f32.mrf.mxu0
  %v3764 = vadd.f32 0.0, %v3763
  %v3765 = vpop.f32.mrf.mxu0
  %v3766 = vadd.f32 0.0, %v3765
  %3767 = vdwg.mxu0
  %v3768 = vadd.f32 %v3631, %v3717
  %v3769 = vadd.f32 %v3633, %v3719
  %v3770 = vadd.f32 %v3674, %v3760
  %v3771 = vadd.f32 %v3676, %v3762
  %v3772 = vadd.f32 %v3635, %v3721
  %v3773 = vadd.f32 %v3637, %v3723
  %v3774 = vadd.f32 %v3678, %v3764
  %v3775 = vadd.f32 %v3680, %v3766
  %v3776 = vadd.f32 %v3768, %v312
  %v3777 = vadd.f32 %v3769, %v316
  %v3778 = vadd.f32 %v3770, %v320
  %v3779 = vadd.f32 %v3771, %v324
  %v3780 = vadd.f32 %v3772, %v312
  %v3781 = vadd.f32 %v3773, %v316
  %v3782 = vadd.f32 %v3774, %v320
  %v3783 = vadd.f32 %v3775, %v324
  %v3784 = vmul.f32 %v3776, 0.5
  %v3785 = vmul.f32 %v3780, 0.5
  %v3786 = vtanh.pop %v3784
  %v3787 = vtanh.pop %v3785
  %v3788 = vadd.f32 %v3786, 1.0
  %v3789 = vadd.f32 %v3787, 1.0
  %v3790 = vmul.f32 %v3788, 0.5
  %v3791 = vmul.f32 %v3789, 0.5
  %v3792 = vmul.f32 %v3777, 0.5
  %v3793 = vmul.f32 %v3781, 0.5
  %v3794 = vtanh.pop %v3792
  %v3795 = vtanh.pop %v3793
  %v3796 = vadd.f32 %v3794, 1.0
  %v3797 = vadd.f32 %v3795, 1.0
  %v3798 = vmul.f32 %v3796, 0.5
  %v3799 = vmul.f32 %v3797, 0.5
  %v3800 = vtanh.pop %v3778
  %v3801 = vtanh.pop %v3782
  %v3802 = vmul.f32 %v3779, 0.5
  %v3803 = vmul.f32 %v3783, 0.5
  %v3804 = vtanh.pop %v3802
  %v3805 = vtanh.pop %v3803
  %v3806 = vadd.f32 %v3804, 1.0
  %v3807 = vadd.f32 %v3805, 1.0
  %v3808 = vmul.f32 %v3806, 0.5
  %v3809 = vmul.f32 %v3807, 0.5
  %v3810 = vmul.f32 %v3798, %v3435
  %v3811 = vmul.f32 %v3799, %v3436
  %v3812 = vmul.f32 %v3790, %v3800
  %v3813 = vmul.f32 %v3791, %v3801
  %v3814 = vadd.f32 %v3810, %v3812
  %v3815 = vadd.f32 %v3811, %v3813
  %v3816 = vtanh.pop %v3814
  %v3817 = vtanh.pop %v3815
  %v3818 = vmul.f32 %v3808, %v3816
  %v3819 = vmul.f32 %v3809, %v3817
  %v3820 = vpack.c.bf16 %v3819, %v3818
  %v3822 = vunpack.c.l.b16 %v3820
  %v3823 = vunpack.c.h.b16 %v3820
  %v3824 = vpack.c.b16 %v3822, %v3822
  %v3825 = vpack.c.b16 %v3823, %v3823
  %s3828 = scalar_lea.vmem [#allocation4], 40
  %3829 = vst [vmem:[%s3828] sm:$0xf] %v3824
  %3830 = vst [vmem:[%s3828 + $0x4] sm:$0xf] %v3825
  %s3831 = scalar_lea.vmem [#allocation2], 192
  %v3832 = vld [vmem:[%s3831] sm:$0xff]
  %v3833 = vld [vmem:[%s3831 + $0x8] sm:$0xff]
  %v3834 = vld [vmem:[%s3831 + $0x10] sm:$0xff]
  %v3835 = vld [vmem:[%s3831 + $0x18] sm:$0xff]
  %v3836 = vunpack.c.l.bf16 %v3832
  %v3837 = vunpack.c.h.bf16 %v3832
  %v3838 = vunpack.c.l.bf16 %v3833
  %v3839 = vunpack.c.h.bf16 %v3833
  %v3840 = vunpack.c.l.bf16 %v3834
  %v3841 = vunpack.c.h.bf16 %v3834
  %v3842 = vunpack.c.l.bf16 %v3835
  %v3843 = vunpack.c.h.bf16 %v3835
  %v3844 = vadd.f32 %v3836, %v3545
  %v3845 = vadd.f32 %v3837, %v3547
  %v3846 = vadd.f32 %v3838, %v3588
  %v3847 = vadd.f32 %v3839, %v3590
  %v3848 = vadd.f32 %v3840, %v3549
  %v3849 = vadd.f32 %v3841, %v3551
  %v3850 = vadd.f32 %v3842, %v3592
  %v3851 = vadd.f32 %v3843, %v3594
  %v3852 = vmul.f32 %v3844, 0.5
  %v3853 = vmul.f32 %v3848, 0.5
  %v3854 = vtanh.pop %v3852
  %v3855 = vtanh.pop %v3853
  %v3856 = vadd.f32 %v3854, 1.0
  %v3857 = vadd.f32 %v3855, 1.0
  %v3858 = vmul.f32 %v3856, 0.5
  %v3859 = vmul.f32 %v3857, 0.5
  %v3860 = vmul.f32 %v3845, 0.5
  %v3861 = vmul.f32 %v3849, 0.5
  %v3862 = vtanh.pop %v3860
  %v3863 = vtanh.pop %v3861
  %v3864 = vadd.f32 %v3862, 1.0
  %v3865 = vadd.f32 %v3863, 1.0
  %v3866 = vmul.f32 %v3864, 0.5
  %v3867 = vmul.f32 %v3865, 0.5
  %v3868 = vtanh.pop %v3846
  %v3869 = vtanh.pop %v3850
  %v3870 = vmul.f32 %v3847, 0.5
  %v3871 = vmul.f32 %v3851, 0.5
  %v3872 = vtanh.pop %v3870
  %v3873 = vtanh.pop %v3871
  %v3874 = vadd.f32 %v3872, 1.0
  %v3875 = vadd.f32 %v3873, 1.0
  %v3876 = vmul.f32 %v3874, 0.5
  %v3877 = vmul.f32 %v3875, 0.5
  %v3878 = vmul.f32 %v3866, %v3503
  %v3879 = vmul.f32 %v3867, %v3504
  %v3880 = vmul.f32 %v3858, %v3868
  %v3881 = vmul.f32 %v3859, %v3869
  %v3882 = vadd.f32 %v3878, %v3880
  %v3883 = vadd.f32 %v3879, %v3881
  %v3884 = vtanh.pop %v3882
  %v3885 = vtanh.pop %v3883
  %v3886 = vmul.f32 %v3876, %v3884
  %v3887 = vmul.f32 %v3877, %v3885
  %v3888 = vpack.c.bf16 %v3887, %v3886
  %3889 = vmatprep.subr.bf16.mxu0 %v1385
  %3890 = vmatpush1.bf16.msra.mxu0 %v1384
  %3891 = vmatprep.subr.bf16.mxu0 %v1377
  %3892 = vmatpush1.bf16.msra.mxu0 %v1376
  %3893 = vmatprep.subr.bf16.mxu0 %v1369
  %3894 = vmatpush1.bf16.msra.mxu0 %v1368
  %3895 = vmatprep.subr.bf16.mxu0 %v1361
  %3896 = vmatpush1.bf16.msra.mxu0 %v1360
  %3897 = vmatprep.subr.bf16.mxu0 %v1353
  %3898 = vmatpush1.bf16.msra.mxu0 %v1352
  %3899 = vmatprep.subr.bf16.mxu0 %v1345
  %3900 = vmatpush1.bf16.msra.mxu0 %v1344
  %3901 = vmatprep.subr.bf16.mxu0 %v1337
  %3902 = vmatpush1.bf16.msra.mxu0 %v1336
  %3903 = vmatprep.subr.bf16.mxu0 %v1329
  %3904 = vmatpush1.bf16.msra.mxu0 %v1328
  %3905 = vmatprep.subr.bf16.mxu0 0
  %3906 = vmatpush2.bf16.msra.mxu0 0
  %3907 = vmatprep.subr.bf16.mxu0 0
  %3908 = vmatpush2.bf16.msra.mxu0 0
  %3909 = vmatprep.subr.bf16.mxu0 0
  %3910 = vmatpush2.bf16.msra.mxu0 0
  %3911 = vmatprep.subr.bf16.mxu0 0
  %3912 = vmatpush2.bf16.msra.mxu0 0
  %3913 = vmatprep.subr.bf16.mxu0 0
  %3914 = vmatpush2.bf16.msra.mxu0 0
  %3915 = vmatprep.subr.bf16.mxu0 0
  %3916 = vmatpush2.bf16.msra.mxu0 0
  %3917 = vmatprep.subr.bf16.mxu0 0
  %3918 = vmatpush2.bf16.msra.mxu0 0
  %3919 = vmatprep.subr.bf16.mxu0 0
  %3920 = vmatpush2.bf16.msra.mxu0 0
  %3921 = vmatprep.mubr.bf16.mxu0 0
  %3922 = vmatmul.mubr.bf16.gmra.mxu0 %v3888
  %v3923 = vpop.f32.mrf.mxu0
  %v3924 = vadd.f32 0.0, %v3923
  %v3925 = vpop.f32.mrf.mxu0
  %v3926 = vadd.f32 0.0, %v3925
  %v3927 = vpop.f32.mrf.mxu0
  %v3928 = vadd.f32 0.0, %v3927
  %v3929 = vpop.f32.mrf.mxu0
  %v3930 = vadd.f32 0.0, %v3929
  %3931 = vdwg.mxu0
  %3932 = vmatprep.subr.bf16.mxu0 %v1387
  %3933 = vmatpush1.bf16.msra.mxu0 %v1386
  %3934 = vmatprep.subr.bf16.mxu0 %v1379
  %3935 = vmatpush1.bf16.msra.mxu0 %v1378
  %3936 = vmatprep.subr.bf16.mxu0 %v1371
  %3937 = vmatpush1.bf16.msra.mxu0 %v1370
  %3938 = vmatprep.subr.bf16.mxu0 %v1363
  %3939 = vmatpush1.bf16.msra.mxu0 %v1362
  %3940 = vmatprep.subr.bf16.mxu0 %v1355
  %3941 = vmatpush1.bf16.msra.mxu0 %v1354
  %3942 = vmatprep.subr.bf16.mxu0 %v1347
  %3943 = vmatpush1.bf16.msra.mxu0 %v1346
  %3944 = vmatprep.subr.bf16.mxu0 %v1339
  %3945 = vmatpush1.bf16.msra.mxu0 %v1338
  %3946 = vmatprep.subr.bf16.mxu0 %v1331
  %3947 = vmatpush1.bf16.msra.mxu0 %v1330
  %3948 = vmatprep.subr.bf16.mxu0 0
  %3949 = vmatpush2.bf16.msra.mxu0 0
  %3950 = vmatprep.subr.bf16.mxu0 0
  %3951 = vmatpush2.bf16.msra.mxu0 0
  %3952 = vmatprep.subr.bf16.mxu0 0
  %3953 = vmatpush2.bf16.msra.mxu0 0
  %3954 = vmatprep.subr.bf16.mxu0 0
  %3955 = vmatpush2.bf16.msra.mxu0 0
  %3956 = vmatprep.subr.bf16.mxu0 0
  %3957 = vmatpush2.bf16.msra.mxu0 0
  %3958 = vmatprep.subr.bf16.mxu0 0
  %3959 = vmatpush2.bf16.msra.mxu0 0
  %3960 = vmatprep.subr.bf16.mxu0 0
  %3961 = vmatpush2.bf16.msra.mxu0 0
  %3962 = vmatprep.subr.bf16.mxu0 0
  %3963 = vmatpush2.bf16.msra.mxu0 0
  %3964 = vmatprep.mubr.bf16.mxu0 0
  %3965 = vmatmul.mubr.bf16.gmra.mxu0 %v3888
  %v3966 = vpop.f32.mrf.mxu0
  %v3967 = vadd.f32 0.0, %v3966
  %v3968 = vpop.f32.mrf.mxu0
  %v3969 = vadd.f32 0.0, %v3968
  %v3970 = vpop.f32.mrf.mxu0
  %v3971 = vadd.f32 0.0, %v3970
  %v3972 = vpop.f32.mrf.mxu0
  %v3973 = vadd.f32 0.0, %v3972
  %3974 = vdwg.mxu0
  %3975 = vmatprep.subr.bf16.mxu0 %v1389
  %3976 = vmatpush1.bf16.msra.mxu0 %v1388
  %3977 = vmatprep.subr.bf16.mxu0 %v1381
  %3978 = vmatpush1.bf16.msra.mxu0 %v1380
  %3979 = vmatprep.subr.bf16.mxu0 %v1373
  %3980 = vmatpush1.bf16.msra.mxu0 %v1372
  %3981 = vmatprep.subr.bf16.mxu0 %v1365
  %3982 = vmatpush1.bf16.msra.mxu0 %v1364
  %3983 = vmatprep.subr.bf16.mxu0 %v1357
  %3984 = vmatpush1.bf16.msra.mxu0 %v1356
  %3985 = vmatprep.subr.bf16.mxu0 %v1349
  %3986 = vmatpush1.bf16.msra.mxu0 %v1348
  %3987 = vmatprep.subr.bf16.mxu0 %v1341
  %3988 = vmatpush1.bf16.msra.mxu0 %v1340
  %3989 = vmatprep.subr.bf16.mxu0 %v1333
  %3990 = vmatpush1.bf16.msra.mxu0 %v1332
  %3991 = vmatprep.subr.bf16.mxu0 0
  %3992 = vmatpush2.bf16.msra.mxu0 0
  %3993 = vmatprep.subr.bf16.mxu0 0
  %3994 = vmatpush2.bf16.msra.mxu0 0
  %3995 = vmatprep.subr.bf16.mxu0 0
  %3996 = vmatpush2.bf16.msra.mxu0 0
  %3997 = vmatprep.subr.bf16.mxu0 0
  %3998 = vmatpush2.bf16.msra.mxu0 0
  %3999 = vmatprep.subr.bf16.mxu0 0
  %4000 = vmatpush2.bf16.msra.mxu0 0
  %4001 = vmatprep.subr.bf16.mxu0 0
  %4002 = vmatpush2.bf16.msra.mxu0 0
  %4003 = vmatprep.subr.bf16.mxu0 0
  %4004 = vmatpush2.bf16.msra.mxu0 0
  %4005 = vmatprep.subr.bf16.mxu0 0
  %4006 = vmatpush2.bf16.msra.mxu0 0
  %4007 = vmatprep.mubr.bf16.mxu0 0
  %4008 = vmatmul.mubr.bf16.gmra.mxu0 %v3888
  %v4009 = vpop.f32.mrf.mxu0
  %v4010 = vadd.f32 0.0, %v4009
  %v4011 = vpop.f32.mrf.mxu0
  %v4012 = vadd.f32 0.0, %v4011
  %v4013 = vpop.f32.mrf.mxu0
  %v4014 = vadd.f32 0.0, %v4013
  %v4015 = vpop.f32.mrf.mxu0
  %v4016 = vadd.f32 0.0, %v4015
  %4017 = vdwg.mxu0
  %4018 = vmatprep.subr.bf16.mxu0 %v1391
  %4019 = vmatpush1.bf16.msra.mxu0 %v1390
  %4020 = vmatprep.subr.bf16.mxu0 %v1383
  %4021 = vmatpush1.bf16.msra.mxu0 %v1382
  %4022 = vmatprep.subr.bf16.mxu0 %v1375
  %4023 = vmatpush1.bf16.msra.mxu0 %v1374
  %4024 = vmatprep.subr.bf16.mxu0 %v1367
  %4025 = vmatpush1.bf16.msra.mxu0 %v1366
  %4026 = vmatprep.subr.bf16.mxu0 %v1359
  %4027 = vmatpush1.bf16.msra.mxu0 %v1358
  %4028 = vmatprep.subr.bf16.mxu0 %v1351
  %4029 = vmatpush1.bf16.msra.mxu0 %v1350
  %4030 = vmatprep.subr.bf16.mxu0 %v1343
  %4031 = vmatpush1.bf16.msra.mxu0 %v1342
  %4032 = vmatprep.subr.bf16.mxu0 %v1335
  %4033 = vmatpush1.bf16.msra.mxu0 %v1334
  %4034 = vmatprep.subr.bf16.mxu0 0
  %4035 = vmatpush2.bf16.msra.mxu0 0
  %4036 = vmatprep.subr.bf16.mxu0 0
  %4037 = vmatpush2.bf16.msra.mxu0 0
  %4038 = vmatprep.subr.bf16.mxu0 0
  %4039 = vmatpush2.bf16.msra.mxu0 0
  %4040 = vmatprep.subr.bf16.mxu0 0
  %4041 = vmatpush2.bf16.msra.mxu0 0
  %4042 = vmatprep.subr.bf16.mxu0 0
  %4043 = vmatpush2.bf16.msra.mxu0 0
  %4044 = vmatprep.subr.bf16.mxu0 0
  %4045 = vmatpush2.bf16.msra.mxu0 0
  %4046 = vmatprep.subr.bf16.mxu0 0
  %4047 = vmatpush2.bf16.msra.mxu0 0
  %4048 = vmatprep.subr.bf16.mxu0 0
  %4049 = vmatpush2.bf16.msra.mxu0 0
  %4050 = vmatprep.mubr.bf16.mxu0 0
  %4051 = vmatmul.mubr.bf16.gmra.mxu0 %v3888
  %v4052 = vpop.f32.mrf.mxu0
  %v4053 = vadd.f32 0.0, %v4052
  %v4054 = vpop.f32.mrf.mxu0
  %v4055 = vadd.f32 0.0, %v4054
  %v4056 = vpop.f32.mrf.mxu0
  %v4057 = vadd.f32 0.0, %v4056
  %v4058 = vpop.f32.mrf.mxu0
  %v4059 = vadd.f32 0.0, %v4058
  %4060 = vdwg.mxu0
  %4061 = vmatprep.subr.bf16.mxu0 %v1753
  %4062 = vmatpush1.bf16.msra.mxu0 %v1752
  %4063 = vmatprep.subr.bf16.mxu0 %v1749
  %4064 = vmatpush1.bf16.msra.mxu0 %v1748
  %4065 = vmatprep.subr.bf16.mxu0 %v1745
  %4066 = vmatpush1.bf16.msra.mxu0 %v1744
  %4067 = vmatprep.subr.bf16.mxu0 %v1741
  %4068 = vmatpush1.bf16.msra.mxu0 %v1740
  %4069 = vmatprep.subr.bf16.mxu0 %v1737
  %4070 = vmatpush1.bf16.msra.mxu0 %v1736
  %4071 = vmatprep.subr.bf16.mxu0 %v1733
  %4072 = vmatpush1.bf16.msra.mxu0 %v1732
  %4073 = vmatprep.subr.bf16.mxu0 %v1729
  %4074 = vmatpush1.bf16.msra.mxu0 %v1728
  %4075 = vmatprep.subr.bf16.mxu0 %v1725
  %4076 = vmatpush1.bf16.msra.mxu0 %v1724
  %4077 = vmatprep.subr.bf16.mxu0 0
  %4078 = vmatpush2.bf16.msra.mxu0 0
  %4079 = vmatprep.subr.bf16.mxu0 0
  %4080 = vmatpush2.bf16.msra.mxu0 0
  %4081 = vmatprep.subr.bf16.mxu0 0
  %4082 = vmatpush2.bf16.msra.mxu0 0
  %4083 = vmatprep.subr.bf16.mxu0 0
  %4084 = vmatpush2.bf16.msra.mxu0 0
  %4085 = vmatprep.subr.bf16.mxu0 0
  %4086 = vmatpush2.bf16.msra.mxu0 0
  %4087 = vmatprep.subr.bf16.mxu0 0
  %4088 = vmatpush2.bf16.msra.mxu0 0
  %4089 = vmatprep.subr.bf16.mxu0 0
  %4090 = vmatpush2.bf16.msra.mxu0 0
  %4091 = vmatprep.subr.bf16.mxu0 0
  %4092 = vmatpush2.bf16.msra.mxu0 0
  %4093 = vmatprep.mubr.bf16.mxu0 0
  %4094 = vmatmul.mubr.bf16.gmra.mxu0 %v3820
  %v4095 = vpop.f32.mrf.mxu0
  %v4096 = vadd.f32 0.0, %v4095
  %v4097 = vpop.f32.mrf.mxu0
  %v4098 = vadd.f32 0.0, %v4097
  %v4099 = vpop.f32.mrf.mxu0
  %v4100 = vadd.f32 0.0, %v4099
  %v4101 = vpop.f32.mrf.mxu0
  %v4102 = vadd.f32 0.0, %v4101
  %4103 = vdwg.mxu0
  %4104 = vmatprep.subr.bf16.mxu0 %v1755
  %4105 = vmatpush1.bf16.msra.mxu0 %v1754
  %4106 = vmatprep.subr.bf16.mxu0 %v1751
  %4107 = vmatpush1.bf16.msra.mxu0 %v1750
  %4108 = vmatprep.subr.bf16.mxu0 %v1747
  %4109 = vmatpush1.bf16.msra.mxu0 %v1746
  %4110 = vmatprep.subr.bf16.mxu0 %v1743
  %4111 = vmatpush1.bf16.msra.mxu0 %v1742
  %4112 = vmatprep.subr.bf16.mxu0 %v1739
  %4113 = vmatpush1.bf16.msra.mxu0 %v1738
  %4114 = vmatprep.subr.bf16.mxu0 %v1735
  %4115 = vmatpush1.bf16.msra.mxu0 %v1734
  %4116 = vmatprep.subr.bf16.mxu0 %v1731
  %4117 = vmatpush1.bf16.msra.mxu0 %v1730
  %4118 = vmatprep.subr.bf16.mxu0 %v1727
  %4119 = vmatpush1.bf16.msra.mxu0 %v1726
  %4120 = vmatprep.subr.bf16.mxu0 0
  %4121 = vmatpush2.bf16.msra.mxu0 0
  %4122 = vmatprep.subr.bf16.mxu0 0
  %4123 = vmatpush2.bf16.msra.mxu0 0
  %4124 = vmatprep.subr.bf16.mxu0 0
  %4125 = vmatpush2.bf16.msra.mxu0 0
  %4126 = vmatprep.subr.bf16.mxu0 0
  %4127 = vmatpush2.bf16.msra.mxu0 0
  %4128 = vmatprep.subr.bf16.mxu0 0
  %4129 = vmatpush2.bf16.msra.mxu0 0
  %4130 = vmatprep.subr.bf16.mxu0 0
  %4131 = vmatpush2.bf16.msra.mxu0 0
  %4132 = vmatprep.subr.bf16.mxu0 0
  %4133 = vmatpush2.bf16.msra.mxu0 0
  %4134 = vmatprep.subr.bf16.mxu0 0
  %4135 = vmatpush2.bf16.msra.mxu0 0
  %4136 = vmatprep.mubr.bf16.mxu0 0
  %4137 = vmatmul.mubr.bf16.gmra.mxu0 %v3820
  %v4138 = vpop.f32.mrf.mxu0
  %v4139 = vadd.f32 0.0, %v4138
  %v4140 = vpop.f32.mrf.mxu0
  %v4141 = vadd.f32 0.0, %v4140
  %v4142 = vpop.f32.mrf.mxu0
  %v4143 = vadd.f32 0.0, %v4142
  %v4144 = vpop.f32.mrf.mxu0
  %v4145 = vadd.f32 0.0, %v4144
  %4146 = vdwg.mxu0
  %v4147 = vadd.f32 %v4010, %v4096
  %v4148 = vadd.f32 %v4012, %v4098
  %v4149 = vadd.f32 %v4053, %v4139
  %v4150 = vadd.f32 %v4055, %v4141
  %v4151 = vadd.f32 %v4014, %v4100
  %v4152 = vadd.f32 %v4016, %v4102
  %v4153 = vadd.f32 %v4057, %v4143
  %v4154 = vadd.f32 %v4059, %v4145
  %v4155 = vadd.f32 %v4147, %v312
  %v4156 = vadd.f32 %v4148, %v316
  %v4157 = vadd.f32 %v4149, %v320
  %v4158 = vadd.f32 %v4150, %v324
  %v4159 = vadd.f32 %v4151, %v312
  %v4160 = vadd.f32 %v4152, %v316
  %v4161 = vadd.f32 %v4153, %v320
  %v4162 = vadd.f32 %v4154, %v324
  %v4163 = vmul.f32 %v4155, 0.5
  %v4164 = vmul.f32 %v4159, 0.5
  %v4165 = vtanh.pop %v4163
  %v4166 = vtanh.pop %v4164
  %v4167 = vadd.f32 %v4165, 1.0
  %v4168 = vadd.f32 %v4166, 1.0
  %v4169 = vmul.f32 %v4167, 0.5
  %v4170 = vmul.f32 %v4168, 0.5
  %v4171 = vmul.f32 %v4156, 0.5
  %v4172 = vmul.f32 %v4160, 0.5
  %v4173 = vtanh.pop %v4171
  %v4174 = vtanh.pop %v4172
  %v4175 = vadd.f32 %v4173, 1.0
  %v4176 = vadd.f32 %v4174, 1.0
  %v4177 = vmul.f32 %v4175, 0.5
  %v4178 = vmul.f32 %v4176, 0.5
  %v4179 = vtanh.pop %v4157
  %v4180 = vtanh.pop %v4161
  %v4181 = vmul.f32 %v4158, 0.5
  %v4182 = vmul.f32 %v4162, 0.5
  %v4183 = vtanh.pop %v4181
  %v4184 = vtanh.pop %v4182
  %v4185 = vadd.f32 %v4183, 1.0
  %v4186 = vadd.f32 %v4184, 1.0
  %v4187 = vmul.f32 %v4185, 0.5
  %v4188 = vmul.f32 %v4186, 0.5
  %v4189 = vmul.f32 %v4177, %v3814
  %v4190 = vmul.f32 %v4178, %v3815
  %v4191 = vmul.f32 %v4169, %v4179
  %v4192 = vmul.f32 %v4170, %v4180
  %v4193 = vadd.f32 %v4189, %v4191
  %v4194 = vadd.f32 %v4190, %v4192
  %v4195 = vtanh.pop %v4193
  %v4196 = vtanh.pop %v4194
  %v4197 = vmul.f32 %v4187, %v4195
  %v4198 = vmul.f32 %v4188, %v4196
  %v4199 = vpack.c.bf16 %v4198, %v4197
  %v4201 = vunpack.c.l.b16 %v4199
  %v4202 = vunpack.c.h.b16 %v4199
  %v4203 = vpack.c.b16 %v4201, %v4201
  %v4204 = vpack.c.b16 %v4202, %v4202
  %s4207 = scalar_lea.vmem [#allocation4], 48
  %4208 = vst [vmem:[%s4207] sm:$0xf] %v4203
  %4209 = vst [vmem:[%s4207 + $0x4] sm:$0xf] %v4204
  %s4210 = scalar_lea.vmem [#allocation2], 224
  %v4211 = vld [vmem:[%s4210] sm:$0xff]
  %v4212 = vld [vmem:[%s4210 + $0x8] sm:$0xff]
  %v4213 = vld [vmem:[%s4210 + $0x10] sm:$0xff]
  %v4214 = vld [vmem:[%s4210 + $0x18] sm:$0xff]
  %v4215 = vunpack.c.l.bf16 %v4211
  %v4216 = vunpack.c.h.bf16 %v4211
  %v4217 = vunpack.c.l.bf16 %v4212
  %v4218 = vunpack.c.h.bf16 %v4212
  %v4219 = vunpack.c.l.bf16 %v4213
  %v4220 = vunpack.c.h.bf16 %v4213
  %v4221 = vunpack.c.l.bf16 %v4214
  %v4222 = vunpack.c.h.bf16 %v4214
  %v4223 = vadd.f32 %v4215, %v3924
  %v4224 = vadd.f32 %v4216, %v3926
  %v4225 = vadd.f32 %v4217, %v3967
  %v4226 = vadd.f32 %v4218, %v3969
  %v4227 = vadd.f32 %v4219, %v3928
  %v4228 = vadd.f32 %v4220, %v3930
  %v4229 = vadd.f32 %v4221, %v3971
  %v4230 = vadd.f32 %v4222, %v3973
  %v4231 = vmul.f32 %v4223, 0.5
  %v4232 = vmul.f32 %v4227, 0.5
  %v4233 = vtanh.pop %v4231
  %v4234 = vtanh.pop %v4232
  %v4235 = vadd.f32 %v4233, 1.0
  %v4236 = vadd.f32 %v4234, 1.0
  %v4237 = vmul.f32 %v4235, 0.5
  %v4238 = vmul.f32 %v4236, 0.5
  %v4239 = vmul.f32 %v4224, 0.5
  %v4240 = vmul.f32 %v4228, 0.5
  %v4241 = vtanh.pop %v4239
  %v4242 = vtanh.pop %v4240
  %v4243 = vadd.f32 %v4241, 1.0
  %v4244 = vadd.f32 %v4242, 1.0
  %v4245 = vmul.f32 %v4243, 0.5
  %v4246 = vmul.f32 %v4244, 0.5
  %v4247 = vtanh.pop %v4225
  %v4248 = vtanh.pop %v4229
  %v4249 = vmul.f32 %v4226, 0.5
  %v4250 = vmul.f32 %v4230, 0.5
  %v4251 = vtanh.pop %v4249
  %v4252 = vtanh.pop %v4250
  %v4253 = vadd.f32 %v4251, 1.0
  %v4254 = vadd.f32 %v4252, 1.0
  %v4255 = vmul.f32 %v4253, 0.5
  %v4256 = vmul.f32 %v4254, 0.5
  %v4257 = vmul.f32 %v4245, %v3882
  %v4258 = vmul.f32 %v4246, %v3883
  %v4259 = vmul.f32 %v4237, %v4247
  %v4260 = vmul.f32 %v4238, %v4248
  %v4261 = vadd.f32 %v4257, %v4259
  %v4262 = vadd.f32 %v4258, %v4260
  %v4263 = vtanh.pop %v4261
  %v4264 = vtanh.pop %v4262
  %v4265 = vmul.f32 %v4255, %v4263
  %v4266 = vmul.f32 %v4256, %v4264
  %v4267 = vpack.c.bf16 %v4266, %v4265
  %4268 = vmatprep.subr.bf16.mxu0 %v1389
  %4269 = vmatpush1.bf16.msra.mxu0 %v1388
  %4270 = vmatprep.subr.bf16.mxu0 %v1381
  %4271 = vmatpush1.bf16.msra.mxu0 %v1380
  %4272 = vmatprep.subr.bf16.mxu0 %v1373
  %4273 = vmatpush1.bf16.msra.mxu0 %v1372
  %4274 = vmatprep.subr.bf16.mxu0 %v1365
  %4275 = vmatpush1.bf16.msra.mxu0 %v1364
  %4276 = vmatprep.subr.bf16.mxu0 %v1357
  %4277 = vmatpush1.bf16.msra.mxu0 %v1356
  %4278 = vmatprep.subr.bf16.mxu0 %v1349
  %4279 = vmatpush1.bf16.msra.mxu0 %v1348
  %4280 = vmatprep.subr.bf16.mxu0 %v1341
  %4281 = vmatpush1.bf16.msra.mxu0 %v1340
  %4282 = vmatprep.subr.bf16.mxu0 %v1333
  %4283 = vmatpush1.bf16.msra.mxu0 %v1332
  %4284 = vmatprep.subr.bf16.mxu0 0
  %4285 = vmatpush2.bf16.msra.mxu0 0
  %4286 = vmatprep.subr.bf16.mxu0 0
  %4287 = vmatpush2.bf16.msra.mxu0 0
  %4288 = vmatprep.subr.bf16.mxu0 0
  %4289 = vmatpush2.bf16.msra.mxu0 0
  %4290 = vmatprep.subr.bf16.mxu0 0
  %4291 = vmatpush2.bf16.msra.mxu0 0
  %4292 = vmatprep.subr.bf16.mxu0 0
  %4293 = vmatpush2.bf16.msra.mxu0 0
  %4294 = vmatprep.subr.bf16.mxu0 0
  %4295 = vmatpush2.bf16.msra.mxu0 0
  %4296 = vmatprep.subr.bf16.mxu0 0
  %4297 = vmatpush2.bf16.msra.mxu0 0
  %4298 = vmatprep.subr.bf16.mxu0 0
  %4299 = vmatpush2.bf16.msra.mxu0 0
  %4300 = vmatprep.mubr.bf16.mxu0 0
  %4301 = vmatmul.mubr.bf16.gmra.mxu0 %v4267
  %v4302 = vpop.f32.mrf.mxu0
  %v4303 = vadd.f32 0.0, %v4302
  %v4304 = vpop.f32.mrf.mxu0
  %v4305 = vadd.f32 0.0, %v4304
  %v4306 = vpop.f32.mrf.mxu0
  %v4307 = vadd.f32 0.0, %v4306
  %v4308 = vpop.f32.mrf.mxu0
  %v4309 = vadd.f32 0.0, %v4308
  %4310 = vdwg.mxu0
  %4311 = vmatprep.subr.bf16.mxu0 %v1391
  %4312 = vmatpush1.bf16.msra.mxu0 %v1390
  %4313 = vmatprep.subr.bf16.mxu0 %v1383
  %4314 = vmatpush1.bf16.msra.mxu0 %v1382
  %4315 = vmatprep.subr.bf16.mxu0 %v1375
  %4316 = vmatpush1.bf16.msra.mxu0 %v1374
  %4317 = vmatprep.subr.bf16.mxu0 %v1367
  %4318 = vmatpush1.bf16.msra.mxu0 %v1366
  %4319 = vmatprep.subr.bf16.mxu0 %v1359
  %4320 = vmatpush1.bf16.msra.mxu0 %v1358
  %4321 = vmatprep.subr.bf16.mxu0 %v1351
  %4322 = vmatpush1.bf16.msra.mxu0 %v1350
  %4323 = vmatprep.subr.bf16.mxu0 %v1343
  %4324 = vmatpush1.bf16.msra.mxu0 %v1342
  %4325 = vmatprep.subr.bf16.mxu0 %v1335
  %4326 = vmatpush1.bf16.msra.mxu0 %v1334
  %4327 = vmatprep.subr.bf16.mxu0 0
  %4328 = vmatpush2.bf16.msra.mxu0 0
  %4329 = vmatprep.subr.bf16.mxu0 0
  %4330 = vmatpush2.bf16.msra.mxu0 0
  %4331 = vmatprep.subr.bf16.mxu0 0
  %4332 = vmatpush2.bf16.msra.mxu0 0
  %4333 = vmatprep.subr.bf16.mxu0 0
  %4334 = vmatpush2.bf16.msra.mxu0 0
  %4335 = vmatprep.subr.bf16.mxu0 0
  %4336 = vmatpush2.bf16.msra.mxu0 0
  %4337 = vmatprep.subr.bf16.mxu0 0
  %4338 = vmatpush2.bf16.msra.mxu0 0
  %4339 = vmatprep.subr.bf16.mxu0 0
  %4340 = vmatpush2.bf16.msra.mxu0 0
  %4341 = vmatprep.subr.bf16.mxu0 0
  %4342 = vmatpush2.bf16.msra.mxu0 0
  %4343 = vmatprep.mubr.bf16.mxu0 0
  %4344 = vmatmul.mubr.bf16.gmra.mxu0 %v4267
  %v4345 = vpop.f32.mrf.mxu0
  %v4346 = vadd.f32 0.0, %v4345
  %v4347 = vpop.f32.mrf.mxu0
  %v4348 = vadd.f32 0.0, %v4347
  %v4349 = vpop.f32.mrf.mxu0
  %v4350 = vadd.f32 0.0, %v4349
  %v4351 = vpop.f32.mrf.mxu0
  %v4352 = vadd.f32 0.0, %v4351
  %4353 = vdwg.mxu0
  %4354 = vmatprep.subr.bf16.mxu0 %v1753
  %4355 = vmatpush1.bf16.msra.mxu0 %v1752
  %4356 = vmatprep.subr.bf16.mxu0 %v1749
  %4357 = vmatpush1.bf16.msra.mxu0 %v1748
  %4358 = vmatprep.subr.bf16.mxu0 %v1745
  %4359 = vmatpush1.bf16.msra.mxu0 %v1744
  %4360 = vmatprep.subr.bf16.mxu0 %v1741
  %4361 = vmatpush1.bf16.msra.mxu0 %v1740
  %4362 = vmatprep.subr.bf16.mxu0 %v1737
  %4363 = vmatpush1.bf16.msra.mxu0 %v1736
  %4364 = vmatprep.subr.bf16.mxu0 %v1733
  %4365 = vmatpush1.bf16.msra.mxu0 %v1732
  %4366 = vmatprep.subr.bf16.mxu0 %v1729
  %4367 = vmatpush1.bf16.msra.mxu0 %v1728
  %4368 = vmatprep.subr.bf16.mxu0 %v1725
  %4369 = vmatpush1.bf16.msra.mxu0 %v1724
  %4370 = vmatprep.subr.bf16.mxu0 0
  %4371 = vmatpush2.bf16.msra.mxu0 0
  %4372 = vmatprep.subr.bf16.mxu0 0
  %4373 = vmatpush2.bf16.msra.mxu0 0
  %4374 = vmatprep.subr.bf16.mxu0 0
  %4375 = vmatpush2.bf16.msra.mxu0 0
  %4376 = vmatprep.subr.bf16.mxu0 0
  %4377 = vmatpush2.bf16.msra.mxu0 0
  %4378 = vmatprep.subr.bf16.mxu0 0
  %4379 = vmatpush2.bf16.msra.mxu0 0
  %4380 = vmatprep.subr.bf16.mxu0 0
  %4381 = vmatpush2.bf16.msra.mxu0 0
  %4382 = vmatprep.subr.bf16.mxu0 0
  %4383 = vmatpush2.bf16.msra.mxu0 0
  %4384 = vmatprep.subr.bf16.mxu0 0
  %4385 = vmatpush2.bf16.msra.mxu0 0
  %4386 = vmatprep.mubr.bf16.mxu0 0
  %4387 = vmatmul.mubr.bf16.gmra.mxu0 %v4199
  %v4388 = vpop.f32.mrf.mxu0
  %v4389 = vadd.f32 0.0, %v4388
  %v4390 = vpop.f32.mrf.mxu0
  %v4391 = vadd.f32 0.0, %v4390
  %v4392 = vpop.f32.mrf.mxu0
  %v4393 = vadd.f32 0.0, %v4392
  %v4394 = vpop.f32.mrf.mxu0
  %v4395 = vadd.f32 0.0, %v4394
  %4396 = vdwg.mxu0
  %4397 = vmatprep.subr.bf16.mxu0 %v1755
  %4398 = vmatpush1.bf16.msra.mxu0 %v1754
  %4399 = vmatprep.subr.bf16.mxu0 %v1751
  %4400 = vmatpush1.bf16.msra.mxu0 %v1750
  %4401 = vmatprep.subr.bf16.mxu0 %v1747
  %4402 = vmatpush1.bf16.msra.mxu0 %v1746
  %4403 = vmatprep.subr.bf16.mxu0 %v1743
  %4404 = vmatpush1.bf16.msra.mxu0 %v1742
  %4405 = vmatprep.subr.bf16.mxu0 %v1739
  %4406 = vmatpush1.bf16.msra.mxu0 %v1738
  %4407 = vmatprep.subr.bf16.mxu0 %v1735
  %4408 = vmatpush1.bf16.msra.mxu0 %v1734
  %4409 = vmatprep.subr.bf16.mxu0 %v1731
  %4410 = vmatpush1.bf16.msra.mxu0 %v1730
  %4411 = vmatprep.subr.bf16.mxu0 %v1727
  %4412 = vmatpush1.bf16.msra.mxu0 %v1726
  %4413 = vmatprep.subr.bf16.mxu0 0
  %4414 = vmatpush2.bf16.msra.mxu0 0
  %4415 = vmatprep.subr.bf16.mxu0 0
  %4416 = vmatpush2.bf16.msra.mxu0 0
  %4417 = vmatprep.subr.bf16.mxu0 0
  %4418 = vmatpush2.bf16.msra.mxu0 0
  %4419 = vmatprep.subr.bf16.mxu0 0
  %4420 = vmatpush2.bf16.msra.mxu0 0
  %4421 = vmatprep.subr.bf16.mxu0 0
  %4422 = vmatpush2.bf16.msra.mxu0 0
  %4423 = vmatprep.subr.bf16.mxu0 0
  %4424 = vmatpush2.bf16.msra.mxu0 0
  %4425 = vmatprep.subr.bf16.mxu0 0
  %4426 = vmatpush2.bf16.msra.mxu0 0
  %4427 = vmatprep.subr.bf16.mxu0 0
  %4428 = vmatpush2.bf16.msra.mxu0 0
  %4429 = vmatprep.mubr.bf16.mxu0 0
  %4430 = vmatmul.mubr.bf16.gmra.mxu0 %v4199
  %v4431 = vpop.f32.mrf.mxu0
  %v4432 = vadd.f32 0.0, %v4431
  %v4433 = vpop.f32.mrf.mxu0
  %v4434 = vadd.f32 0.0, %v4433
  %v4435 = vpop.f32.mrf.mxu0
  %v4436 = vadd.f32 0.0, %v4435
  %v4437 = vpop.f32.mrf.mxu0
  %v4438 = vadd.f32 0.0, %v4437
  %4439 = vdwg.mxu0
  %v4440 = vadd.f32 %v4303, %v4389
  %v4441 = vadd.f32 %v4305, %v4391
  %v4442 = vadd.f32 %v4346, %v4432
  %v4443 = vadd.f32 %v4348, %v4434
  %v4444 = vadd.f32 %v4307, %v4393
  %v4445 = vadd.f32 %v4309, %v4395
  %v4446 = vadd.f32 %v4350, %v4436
  %v4447 = vadd.f32 %v4352, %v4438
  %v4448 = vadd.f32 %v4440, %v312
  %v4449 = vadd.f32 %v4441, %v316
  %v4450 = vadd.f32 %v4442, %v320
  %v4451 = vadd.f32 %v4443, %v324
  %v4452 = vadd.f32 %v4444, %v312
  %v4453 = vadd.f32 %v4445, %v316
  %v4454 = vadd.f32 %v4446, %v320
  %v4455 = vadd.f32 %v4447, %v324
  %v4456 = vmul.f32 %v4448, 0.5
  %v4457 = vmul.f32 %v4452, 0.5
  %v4458 = vtanh.pop %v4456
  %v4459 = vtanh.pop %v4457
  %v4460 = vadd.f32 %v4458, 1.0
  %v4461 = vadd.f32 %v4459, 1.0
  %v4462 = vmul.f32 %v4460, 0.5
  %v4463 = vmul.f32 %v4461, 0.5
  %v4464 = vmul.f32 %v4449, 0.5
  %v4465 = vmul.f32 %v4453, 0.5
  %v4466 = vtanh.pop %v4464
  %v4467 = vtanh.pop %v4465
  %v4468 = vadd.f32 %v4466, 1.0
  %v4469 = vadd.f32 %v4467, 1.0
  %v4470 = vmul.f32 %v4468, 0.5
  %v4471 = vmul.f32 %v4469, 0.5
  %v4472 = vtanh.pop %v4450
  %v4473 = vtanh.pop %v4454
  %v4474 = vmul.f32 %v4451, 0.5
  %v4475 = vmul.f32 %v4455, 0.5
  %v4476 = vtanh.pop %v4474
  %v4477 = vtanh.pop %v4475
  %v4478 = vadd.f32 %v4476, 1.0
  %v4479 = vadd.f32 %v4477, 1.0
  %v4480 = vmul.f32 %v4478, 0.5
  %v4481 = vmul.f32 %v4479, 0.5
  %v4482 = vmul.f32 %v4470, %v4193
  %v4483 = vmul.f32 %v4471, %v4194
  %v4484 = vmul.f32 %v4462, %v4472
  %v4485 = vmul.f32 %v4463, %v4473
  %v4486 = vadd.f32 %v4482, %v4484
  %v4487 = vadd.f32 %v4483, %v4485
  %v4488 = vtanh.pop %v4486
  %v4489 = vtanh.pop %v4487
  %v4490 = vmul.f32 %v4480, %v4488
  %v4491 = vmul.f32 %v4481, %v4489
  %v4492 = vpack.c.bf16 %v4491, %v4490
  %v4494 = vunpack.c.l.b16 %v4492
  %v4495 = vunpack.c.h.b16 %v4492
  %v4496 = vpack.c.b16 %v4494, %v4494
  %v4497 = vpack.c.b16 %v4495, %v4495
  %s4500 = scalar_lea.vmem [#allocation4], 56
  %4501 = vst [vmem:[%s4500] sm:$0xf] %v4496
  %4502 = vst [vmem:[%s4500 + $0x4] sm:$0xf] %v4497
  %v4503 = vld [vmem:[%s2] sm:$0xff]
  %v4504 = vld [vmem:[%s2 + $0x8] sm:$0xff]
  %v4505 = vld [vmem:[%s2 + $0x10] sm:$0xff]
  %v4506 = vld [vmem:[%s2 + $0x18] sm:$0xff]
  %v4507 = vld [vmem:[%s2 + $0x20] sm:$0xff]
  %v4508 = vld [vmem:[%s2 + $0x28] sm:$0xff]
  %v4509 = vld [vmem:[%s2 + $0x30] sm:$0xff]
  %v4510 = vld [vmem:[%s2 + $0x38] sm:$0xff]
  %v4511 = vld [vmem:[%s2 + $0x40] sm:$0xff]
  %v4512 = vld [vmem:[%s2 + $0x48] sm:$0xff]
  %v4513 = vld [vmem:[%s2 + $0x50] sm:$0xff]
  %v4514 = vld [vmem:[%s2 + $0x58] sm:$0xff]
  %v4515 = vld [vmem:[%s2 + $0x60] sm:$0xff]
  %v4516 = vld [vmem:[%s2 + $0x68] sm:$0xff]
  %v4517 = vld [vmem:[%s2 + $0x70] sm:$0xff]
  %v4518 = vld [vmem:[%s2 + $0x78] sm:$0xff]
  %v4519 = vld [vmem:[#allocation4] sm:$0xf]
  %v4520 = vld [vmem:[#allocation4 + $0x4] sm:$0xf]
  %v4521 = vld [vmem:[#allocation4 + $0x8] sm:$0xf]
  %v4522 = vld [vmem:[#allocation4 + $0xc] sm:$0xf]
  %v4523 = vld [vmem:[#allocation4 + $0x10] sm:$0xf]
  %v4524 = vld [vmem:[#allocation4 + $0x14] sm:$0xf]
  %v4525 = vld [vmem:[#allocation4 + $0x18] sm:$0xf]
  %v4526 = vld [vmem:[#allocation4 + $0x1c] sm:$0xf]
  %v4527 = vld [vmem:[#allocation4 + $0x20] sm:$0xf]
  %v4528 = vld [vmem:[#allocation4 + $0x24] sm:$0xf]
  %v4529 = vld [vmem:[#allocation4 + $0x28] sm:$0xf]
  %v4530 = vld [vmem:[#allocation4 + $0x2c] sm:$0xf]
  %v4531 = vld [vmem:[#allocation4 + $0x30] sm:$0xf]
  %v4532 = vld [vmem:[#allocation4 + $0x34] sm:$0xf]
  %v4533 = vld [vmem:[#allocation4 + $0x38] sm:$0xf]
  %v4534 = vld [vmem:[#allocation4 + $0x3c] sm:$0xf]
  %v4535 = vunpack.c.l.bf16 %v4519
  %v4536 = vunpack.c.l.bf16 %v4520
  %v4537 = vunpack.c.l.bf16 %v4521
  %v4538 = vunpack.c.l.bf16 %v4522
  %v4539 = vunpack.c.l.bf16 %v4523
  %v4540 = vunpack.c.l.bf16 %v4524
  %v4541 = vunpack.c.l.bf16 %v4525
  %v4542 = vunpack.c.l.bf16 %v4526
  %v4543 = vunpack.c.l.bf16 %v4527
  %v4544 = vunpack.c.l.bf16 %v4528
  %v4545 = vunpack.c.l.bf16 %v4529
  %v4546 = vunpack.c.l.bf16 %v4530
  %v4547 = vunpack.c.l.bf16 %v4531
  %v4548 = vunpack.c.l.bf16 %v4532
  %v4549 = vunpack.c.l.bf16 %v4533
  %v4550 = vunpack.c.l.bf16 %v4534
  %4552 = vset.pattern.permute.xlu0 0
  %4553 = vperm.xlu0 %4552, %v4503
  %v4554 = vpop.permute.xlu0 %4553
  %4557 = vset.pattern.permute.xlu0 0
  %4558 = vperm.xlu0 %4557, %v4504
  %v4559 = vpop.permute.xlu0 %4558
  %4562 = vset.pattern.permute.xlu0 0
  %4563 = vperm.xlu0 %4562, %v4505
  %v4564 = vpop.permute.xlu0 %4563
  %4567 = vset.pattern.permute.xlu0 0
  %4568 = vperm.xlu0 %4567, %v4506
  %v4569 = vpop.permute.xlu0 %4568
  %4572 = vset.pattern.permute.xlu0 0
  %4573 = vperm.xlu0 %4572, %v4507
  %v4574 = vpop.permute.xlu0 %4573
  %4577 = vset.pattern.permute.xlu0 0
  %4578 = vperm.xlu0 %4577, %v4508
  %v4579 = vpop.permute.xlu0 %4578
  %4582 = vset.pattern.permute.xlu0 0
  %4583 = vperm.xlu0 %4582, %v4509
  %v4584 = vpop.permute.xlu0 %4583
  %4587 = vset.pattern.permute.xlu0 0
  %4588 = vperm.xlu0 %4587, %v4510
  %v4589 = vpop.permute.xlu0 %4588
  %4592 = vset.pattern.permute.xlu0 0
  %4593 = vperm.xlu0 %4592, %v4511
  %v4594 = vpop.permute.xlu0 %4593
  %4597 = vset.pattern.permute.xlu0 0
  %4598 = vperm.xlu0 %4597, %v4512
  %v4599 = vpop.permute.xlu0 %4598
  %4602 = vset.pattern.permute.xlu0 0
  %4603 = vperm.xlu0 %4602, %v4513
  %v4604 = vpop.permute.xlu0 %4603
  %4607 = vset.pattern.permute.xlu0 0
  %4608 = vperm.xlu0 %4607, %v4514
  %v4609 = vpop.permute.xlu0 %4608
  %4612 = vset.pattern.permute.xlu0 0
  %4613 = vperm.xlu0 %4612, %v4515
  %v4614 = vpop.permute.xlu0 %4613
  %4617 = vset.pattern.permute.xlu0 0
  %4618 = vperm.xlu0 %4617, %v4516
  %v4619 = vpop.permute.xlu0 %4618
  %4622 = vset.pattern.permute.xlu0 0
  %4623 = vperm.xlu0 %4622, %v4517
  %v4624 = vpop.permute.xlu0 %4623
  %4627 = vset.pattern.permute.xlu0 0
  %4628 = vperm.xlu0 %4627, %v4518
  %v4629 = vpop.permute.xlu0 %4628
  %v4631 = vmul.f32 %v4554, %v4535
  %v4632 = vmul.f32 %v4559, %v4536
  %v4633 = vmul.f32 %v4564, %v4537
  %v4634 = vmul.f32 %v4569, %v4538
  %v4635 = vmul.f32 %v4574, %v4539
  %v4636 = vmul.f32 %v4579, %v4540
  %v4637 = vmul.f32 %v4584, %v4541
  %v4638 = vmul.f32 %v4589, %v4542
  %v4639 = vmul.f32 %v4594, %v4543
  %v4640 = vmul.f32 %v4599, %v4544
  %v4641 = vmul.f32 %v4604, %v4545
  %v4642 = vmul.f32 %v4609, %v4546
  %v4643 = vmul.f32 %v4614, %v4547
  %v4644 = vmul.f32 %v4619, %v4548
  %v4645 = vmul.f32 %v4624, %v4549
  %v4646 = vmul.f32 %v4629, %v4550
  %v4647 = vadd.f32 %v4631, %v4633
  %v4648 = vadd.f32 %v4647, %v4635
  %v4649 = vadd.f32 %v4648, %v4637
  %v4650 = vadd.f32 %v4649, %v4639
  %v4651 = vadd.f32 %v4650, %v4641
  %v4652 = vadd.f32 %v4651, %v4643
  %v4653 = vadd.f32 %v4652, %v4645
  %v4654 = vadd.f32 %v4632, %v4634
  %v4655 = vadd.f32 %v4654, %v4636
  %v4656 = vadd.f32 %v4655, %v4638
  %v4657 = vadd.f32 %v4656, %v4640
  %v4658 = vadd.f32 %v4657, %v4642
  %v4659 = vadd.f32 %v4658, %v4644
  %v4660 = vadd.f32 %v4659, %v4646
  %v4661 = vpack.c.bf16 %v4660, %v4653
  %v4662 = vld [vmem:[%s10] sm:$0xff]
  %v4663 = vld [vmem:[%s10 + $0x8] sm:$0xff]
  %v4664 = vld [vmem:[%s10 + $0x10] sm:$0xff]
  %v4665 = vld [vmem:[%s10 + $0x18] sm:$0xff]
  %v4666 = vld [vmem:[%s10 + $0x20] sm:$0xff]
  %v4667 = vld [vmem:[%s10 + $0x28] sm:$0xff]
  %v4668 = vld [vmem:[%s10 + $0x30] sm:$0xff]
  %v4669 = vld [vmem:[%s10 + $0x38] sm:$0xff]
  %v4670 = vld [vmem:[%s10 + $0x40] sm:$0xff]
  %v4671 = vld [vmem:[%s10 + $0x48] sm:$0xff]
  %v4672 = vld [vmem:[%s10 + $0x50] sm:$0xff]
  %v4673 = vld [vmem:[%s10 + $0x58] sm:$0xff]
  %v4674 = vld [vmem:[%s10 + $0x60] sm:$0xff]
  %v4675 = vld [vmem:[%s10 + $0x68] sm:$0xff]
  %v4676 = vld [vmem:[%s10 + $0x70] sm:$0xff]
  %v4677 = vld [vmem:[%s10 + $0x78] sm:$0xff]
  %v4678 = vld [vmem:[%s10 + $0x80] sm:$0xff]
  %v4679 = vld [vmem:[%s10 + $0x88] sm:$0xff]
  %v4680 = vld [vmem:[%s10 + $0x90] sm:$0xff]
  %v4681 = vld [vmem:[%s10 + $0x98] sm:$0xff]
  %v4682 = vld [vmem:[%s10 + $0xa0] sm:$0xff]
  %v4683 = vld [vmem:[%s10 + $0xa8] sm:$0xff]
  %v4684 = vld [vmem:[%s10 + $0xb0] sm:$0xff]
  %v4685 = vld [vmem:[%s10 + $0xb8] sm:$0xff]
  %v4686 = vld [vmem:[%s10 + $0xc0] sm:$0xff]
  %v4687 = vld [vmem:[%s10 + $0xc8] sm:$0xff]
  %v4688 = vld [vmem:[%s10 + $0xd0] sm:$0xff]
  %v4689 = vld [vmem:[%s10 + $0xd8] sm:$0xff]
  %v4690 = vld [vmem:[%s10 + $0xe0] sm:$0xff]
  %v4691 = vld [vmem:[%s10 + $0xe8] sm:$0xff]
  %v4692 = vld [vmem:[%s10 + $0xf0] sm:$0xff]
  %v4693 = vld [vmem:[%s10 + $0xf8] sm:$0xff]
  %v4694 = vld [vmem:[%s14] sm:$0xf]
  %v4696 = vlaneseq
  %v4697 = vshrl.u32 %v4696, 7
  %v4698 = vsub.s32 0, %v4697
  %v4699 = vrot.slane %v4694, %v4698
  %v4700 = vlaneseq
  %v4701 = vshrl.u32 %v4700, 7
  %v4702 = vsub.s32 1, %v4701
  %v4703 = vrot.slane %v4694, %v4702
  %v4704 = vlaneseq
  %v4705 = vshrl.u32 %v4704, 7
  %v4706 = vsub.s32 2, %v4705
  %v4707 = vrot.slane %v4694, %v4706
  %v4708 = vlaneseq
  %v4709 = vshrl.u32 %v4708, 7
  %v4710 = vsub.s32 3, %v4709
  %v4711 = vrot.slane %v4694, %v4710
  %v4748 = vunpack.c.l.b16 %v4662
  %v4749 = vunpack.c.h.b16 %v4662
  %v4750 = vunpack.c.l.b16 %v4663
  %v4751 = vunpack.c.h.b16 %v4663
  %v4752 = vunpack.c.l.b16 %v4664
  %v4753 = vunpack.c.h.b16 %v4664
  %v4754 = vunpack.c.l.b16 %v4665
  %v4755 = vunpack.c.h.b16 %v4665
  %v4756 = vunpack.c.l.b16 %v4666
  %v4757 = vunpack.c.h.b16 %v4666
  %v4758 = vunpack.c.l.b16 %v4667
  %v4759 = vunpack.c.h.b16 %v4667
  %v4760 = vunpack.c.l.b16 %v4668
  %v4761 = vunpack.c.h.b16 %v4668
  %v4762 = vunpack.c.l.b16 %v4669
  %v4763 = vunpack.c.h.b16 %v4669
  %v4764 = vunpack.c.l.b16 %v4670
  %v4765 = vunpack.c.h.b16 %v4670
  %v4766 = vunpack.c.l.b16 %v4671
  %v4767 = vunpack.c.h.b16 %v4671
  %v4768 = vunpack.c.l.b16 %v4672
  %v4769 = vunpack.c.h.b16 %v4672
  %v4770 = vunpack.c.l.b16 %v4673
  %v4771 = vunpack.c.h.b16 %v4673
  %v4772 = vunpack.c.l.b16 %v4674
  %v4773 = vunpack.c.h.b16 %v4674
  %v4774 = vunpack.c.l.b16 %v4675
  %v4775 = vunpack.c.h.b16 %v4675
  %v4776 = vunpack.c.l.b16 %v4676
  %v4777 = vunpack.c.h.b16 %v4676
  %v4778 = vunpack.c.l.b16 %v4677
  %v4779 = vunpack.c.h.b16 %v4677
  %v4780 = vunpack.c.l.b16 %v4678
  %v4781 = vunpack.c.h.b16 %v4678
  %v4782 = vunpack.c.l.b16 %v4679
  %v4783 = vunpack.c.h.b16 %v4679
  %v4784 = vunpack.c.l.b16 %v4680
  %v4785 = vunpack.c.h.b16 %v4680
  %v4786 = vunpack.c.l.b16 %v4681
  %v4787 = vunpack.c.h.b16 %v4681
  %v4788 = vunpack.c.l.b16 %v4682
  %v4789 = vunpack.c.h.b16 %v4682
  %v4790 = vunpack.c.l.b16 %v4683
  %v4791 = vunpack.c.h.b16 %v4683
  %v4792 = vunpack.c.l.b16 %v4684
  %v4793 = vunpack.c.h.b16 %v4684
  %v4794 = vunpack.c.l.b16 %v4685
  %v4795 = vunpack.c.h.b16 %v4685
  %v4796 = vunpack.c.l.b16 %v4686
  %v4797 = vunpack.c.h.b16 %v4686
  %v4798 = vunpack.c.l.b16 %v4687
  %v4799 = vunpack.c.h.b16 %v4687
  %v4800 = vunpack.c.l.b16 %v4688
  %v4801 = vunpack.c.h.b16 %v4688
  %v4802 = vunpack.c.l.b16 %v4689
  %v4803 = vunpack.c.h.b16 %v4689
  %v4804 = vunpack.c.l.b16 %v4690
  %v4805 = vunpack.c.h.b16 %v4690
  %v4806 = vunpack.c.l.b16 %v4691
  %v4807 = vunpack.c.h.b16 %v4691
  %v4808 = vunpack.c.l.b16 %v4692
  %v4809 = vunpack.c.h.b16 %v4692
  %v4810 = vunpack.c.l.b16 %v4693
  %v4811 = vunpack.c.h.b16 %v4693
  %v4812 = vpack.c.b16 %v4752, %v4748
  %v4813 = vpack.c.b16 %v4753, %v4749
  %v4814 = vpack.c.b16 %v4754, %v4750
  %v4815 = vpack.c.b16 %v4755, %v4751
  %v4816 = vpack.c.b16 %v4760, %v4756
  %v4817 = vpack.c.b16 %v4761, %v4757
  %v4818 = vpack.c.b16 %v4762, %v4758
  %v4819 = vpack.c.b16 %v4763, %v4759
  %v4820 = vpack.c.b16 %v4768, %v4764
  %v4821 = vpack.c.b16 %v4769, %v4765
  %v4822 = vpack.c.b16 %v4770, %v4766
  %v4823 = vpack.c.b16 %v4771, %v4767
  %v4824 = vpack.c.b16 %v4776, %v4772
  %v4825 = vpack.c.b16 %v4777, %v4773
  %v4826 = vpack.c.b16 %v4778, %v4774
  %v4827 = vpack.c.b16 %v4779, %v4775
  %v4828 = vpack.c.b16 %v4784, %v4780
  %v4829 = vpack.c.b16 %v4785, %v4781
  %v4830 = vpack.c.b16 %v4786, %v4782
  %v4831 = vpack.c.b16 %v4787, %v4783
  %v4832 = vpack.c.b16 %v4792, %v4788
  %v4833 = vpack.c.b16 %v4793, %v4789
  %v4834 = vpack.c.b16 %v4794, %v4790
  %v4835 = vpack.c.b16 %v4795, %v4791
  %v4836 = vpack.c.b16 %v4800, %v4796
  %v4837 = vpack.c.b16 %v4801, %v4797
  %v4838 = vpack.c.b16 %v4802, %v4798
  %v4839 = vpack.c.b16 %v4803, %v4799
  %v4840 = vpack.c.b16 %v4808, %v4804
  %v4841 = vpack.c.b16 %v4809, %v4805
  %v4842 = vpack.c.b16 %v4810, %v4806
  %v4843 = vpack.c.b16 %v4811, %v4807
  %4876 = vmatprep.subr.bf16.mxu0 %v4841
  %4877 = vmatpush1.bf16.msra.mxu0 %v4840
  %4878 = vmatprep.subr.bf16.mxu0 %v4837
  %4879 = vmatpush1.bf16.msra.mxu0 %v4836
  %4880 = vmatprep.subr.bf16.mxu0 %v4833
  %4881 = vmatpush1.bf16.msra.mxu0 %v4832
  %4882 = vmatprep.subr.bf16.mxu0 %v4829
  %4883 = vmatpush1.bf16.msra.mxu0 %v4828
  %4884 = vmatprep.subr.bf16.mxu0 %v4825
  %4885 = vmatpush1.bf16.msra.mxu0 %v4824
  %4886 = vmatprep.subr.bf16.mxu0 %v4821
  %4887 = vmatpush1.bf16.msra.mxu0 %v4820
  %4888 = vmatprep.subr.bf16.mxu0 %v4817
  %4889 = vmatpush1.bf16.msra.mxu0 %v4816
  %4890 = vmatprep.subr.bf16.mxu0 %v4813
  %4891 = vmatpush1.bf16.msra.mxu0 %v4812
  %4892 = vmatprep.subr.bf16.mxu0 0
  %4893 = vmatpush2.bf16.msra.mxu0 0
  %4894 = vmatprep.subr.bf16.mxu0 0
  %4895 = vmatpush2.bf16.msra.mxu0 0
  %4896 = vmatprep.subr.bf16.mxu0 0
  %4897 = vmatpush2.bf16.msra.mxu0 0
  %4898 = vmatprep.subr.bf16.mxu0 0
  %4899 = vmatpush2.bf16.msra.mxu0 0
  %4900 = vmatprep.subr.bf16.mxu0 0
  %4901 = vmatpush2.bf16.msra.mxu0 0
  %4902 = vmatprep.subr.bf16.mxu0 0
  %4903 = vmatpush2.bf16.msra.mxu0 0
  %4904 = vmatprep.subr.bf16.mxu0 0
  %4905 = vmatpush2.bf16.msra.mxu0 0
  %4906 = vmatprep.subr.bf16.mxu0 0
  %4907 = vmatpush2.bf16.msra.mxu0 0
  %4908 = vmatprep.mubr.bf16.mxu0 0
  %4909 = vmatmul.mubr.bf16.gmra.mxu0 %v4661
  %v4910 = vpop.f32.mrf.mxu0
  %v4911 = vadd.f32 %v4699, %v4910
  %v4912 = vpop.f32.mrf.mxu0
  %v4913 = vadd.f32 %v4703, %v4912
  %v4914 = vpop.f32.mrf.mxu0
  %v4915 = vadd.f32 %v4699, %v4914
  %v4916 = vpop.f32.mrf.mxu0
  %v4917 = vadd.f32 %v4703, %v4916
  %4918 = vdwg.mxu0
  %4919 = vmatprep.subr.bf16.mxu0 %v4843
  %4920 = vmatpush1.bf16.msra.mxu0 %v4842
  %4921 = vmatprep.subr.bf16.mxu0 %v4839
  %4922 = vmatpush1.bf16.msra.mxu0 %v4838
  %4923 = vmatprep.subr.bf16.mxu0 %v4835
  %4924 = vmatpush1.bf16.msra.mxu0 %v4834
  %4925 = vmatprep.subr.bf16.mxu0 %v4831
  %4926 = vmatpush1.bf16.msra.mxu0 %v4830
  %4927 = vmatprep.subr.bf16.mxu0 %v4827
  %4928 = vmatpush1.bf16.msra.mxu0 %v4826
  %4929 = vmatprep.subr.bf16.mxu0 %v4823
  %4930 = vmatpush1.bf16.msra.mxu0 %v4822
  %4931 = vmatprep.subr.bf16.mxu0 %v4819
  %4932 = vmatpush1.bf16.msra.mxu0 %v4818
  %4933 = vmatprep.subr.bf16.mxu0 %v4815
  %4934 = vmatpush1.bf16.msra.mxu0 %v4814
  %4935 = vmatprep.subr.bf16.mxu0 0
  %4936 = vmatpush2.bf16.msra.mxu0 0
  %4937 = vmatprep.subr.bf16.mxu0 0
  %4938 = vmatpush2.bf16.msra.mxu0 0
  %4939 = vmatprep.subr.bf16.mxu0 0
  %4940 = vmatpush2.bf16.msra.mxu0 0
  %4941 = vmatprep.subr.bf16.mxu0 0
  %4942 = vmatpush2.bf16.msra.mxu0 0
  %4943 = vmatprep.subr.bf16.mxu0 0
  %4944 = vmatpush2.bf16.msra.mxu0 0
  %4945 = vmatprep.subr.bf16.mxu0 0
  %4946 = vmatpush2.bf16.msra.mxu0 0
  %4947 = vmatprep.subr.bf16.mxu0 0
  %4948 = vmatpush2.bf16.msra.mxu0 0
  %4949 = vmatprep.subr.bf16.mxu0 0
  %4950 = vmatpush2.bf16.msra.mxu0 0
  %4951 = vmatprep.mubr.bf16.mxu0 0
  %4952 = vmatmul.mubr.bf16.gmra.mxu0 %v4661
  %v4953 = vpop.f32.mrf.mxu0
  %v4954 = vadd.f32 %v4707, %v4953
  %v4955 = vpop.f32.mrf.mxu0
  %v4956 = vadd.f32 %v4711, %v4955
  %v4957 = vpop.f32.mrf.mxu0
  %v4958 = vadd.f32 %v4707, %v4957
  %v4959 = vpop.f32.mrf.mxu0
  %v4960 = vadd.f32 %v4711, %v4959
  %4961 = vdwg.mxu0
  %v4962 = vld [vmem:[%s1] sm:$0xf]
  %v4963 = vld [vmem:[%s1 + $0x4] sm:$0xf]
  %v4964 = vld [vmem:[%s1 + $0x8] sm:$0xf]
  %v4965 = vld [vmem:[%s1 + $0xc] sm:$0xf]
  %v4966 = vld [vmem:[%s1 + $0x10] sm:$0xf]
  %v4967 = vld [vmem:[%s1 + $0x14] sm:$0xf]
  %v4968 = vld [vmem:[%s1 + $0x18] sm:$0xf]
  %v4969 = vld [vmem:[%s1 + $0x1c] sm:$0xf]
  %v4970 = vld [vmem:[%s1 + $0x20] sm:$0xf]
  %v4971 = vld [vmem:[%s1 + $0x24] sm:$0xf]
  %v4972 = vld [vmem:[%s1 + $0x28] sm:$0xf]
  %v4973 = vld [vmem:[%s1 + $0x2c] sm:$0xf]
  %v4974 = vld [vmem:[%s1 + $0x30] sm:$0xf]
  %v4975 = vld [vmem:[%s1 + $0x34] sm:$0xf]
  %v4976 = vld [vmem:[%s11] sm:$0xff]
  %v4977 = vld [vmem:[%s11 + $0x8] sm:$0xff]
  %v4978 = vld [vmem:[%s11 + $0x10] sm:$0xff]
  %v4979 = vld [vmem:[%s11 + $0x18] sm:$0xff]
  %v4980 = vld [vmem:[%s11 + $0x20] sm:$0xff]
  %v4981 = vld [vmem:[%s11 + $0x28] sm:$0xff]
  %v4982 = vld [vmem:[%s11 + $0x30] sm:$0xff]
  %v4983 = vld [vmem:[%s11 + $0x38] sm:$0xff]
  %v4984 = vld [vmem:[%s11 + $0x40] sm:$0xff]
  %v4985 = vld [vmem:[%s11 + $0x48] sm:$0xff]
  %v4986 = vld [vmem:[%s11 + $0x50] sm:$0xff]
  %v4987 = vld [vmem:[%s11 + $0x58] sm:$0xff]
  %v4988 = vld [vmem:[%s11 + $0x60] sm:$0xff]
  %v4989 = vld [vmem:[%s11 + $0x68] sm:$0xff]
  %v4990 = vld [vmem:[%s11 + $0x70] sm:$0xff]
  %v4991 = vld [vmem:[%s11 + $0x78] sm:$0xff]
  %v4992 = vld [vmem:[%s11 + $0x80] sm:$0xff]
  %v4993 = vld [vmem:[%s11 + $0x88] sm:$0xff]
  %v4994 = vld [vmem:[%s11 + $0x90] sm:$0xff]
  %v4995 = vld [vmem:[%s11 + $0x98] sm:$0xff]
  %v4996 = vld [vmem:[%s11 + $0xa0] sm:$0xff]
  %v4997 = vld [vmem:[%s11 + $0xa8] sm:$0xff]
  %v4998 = vld [vmem:[%s11 + $0xb0] sm:$0xff]
  %v4999 = vld [vmem:[%s11 + $0xb8] sm:$0xff]
  %v5000 = vld [vmem:[%s11 + $0xc0] sm:$0xff]
  %v5001 = vld [vmem:[%s11 + $0xc8] sm:$0xff]
  %v5002 = vld [vmem:[%s11 + $0xd0] sm:$0xff]
  %v5003 = vld [vmem:[%s11 + $0xd8] sm:$0xff]
  %v5004 = vld [vmem:[%s11 + $0xe0] sm:$0xff]
  %v5005 = vld [vmem:[%s11 + $0xe8] sm:$0xff]
  %v5006 = vld [vmem:[%s11 + $0xf0] sm:$0xff]
  %v5007 = vld [vmem:[%s11 + $0xf8] sm:$0xff]
  %v5022 = vunpack.c.l.b16 %v4962
  %v5023 = vunpack.c.l.b16 %v4963
  %v5024 = vunpack.c.l.b16 %v4964
  %v5025 = vunpack.c.l.b16 %v4965
  %v5026 = vunpack.c.l.b16 %v4966
  %v5027 = vunpack.c.l.b16 %v4967
  %v5028 = vunpack.c.l.b16 %v4968
  %v5029 = vunpack.c.l.b16 %v4969
  %v5030 = vunpack.c.l.b16 %v4970
  %v5031 = vunpack.c.l.b16 %v4971
  %v5032 = vunpack.c.l.b16 %v4972
  %v5033 = vunpack.c.l.b16 %v4973
  %v5034 = vunpack.c.l.b16 %v4974
  %v5035 = vunpack.c.l.b16 %v4975
  %v5036 = vpack.c.b16 %v5023, %v5022
  %v5037 = vpack.c.b16 %v5025, %v5024
  %v5038 = vpack.c.b16 %v5027, %v5026
  %v5039 = vpack.c.b16 %v5029, %v5028
  %v5040 = vpack.c.b16 %v5031, %v5030
  %v5041 = vpack.c.b16 %v5033, %v5032
  %v5042 = vpack.c.b16 %v5035, %v5034
  %v5082 = vunpack.c.l.b16 %v4976
  %v5083 = vunpack.c.h.b16 %v4976
  %v5084 = vunpack.c.l.b16 %v4977
  %v5085 = vunpack.c.h.b16 %v4977
  %v5086 = vunpack.c.l.b16 %v4978
  %v5087 = vunpack.c.h.b16 %v4978
  %v5088 = vunpack.c.l.b16 %v4979
  %v5089 = vunpack.c.h.b16 %v4979
  %v5090 = vunpack.c.l.b16 %v4980
  %v5091 = vunpack.c.h.b16 %v4980
  %v5092 = vunpack.c.l.b16 %v4981
  %v5093 = vunpack.c.h.b16 %v4981
  %v5094 = vunpack.c.l.b16 %v4982
  %v5095 = vunpack.c.h.b16 %v4982
  %v5096 = vunpack.c.l.b16 %v4983
  %v5097 = vunpack.c.h.b16 %v4983
  %v5098 = vunpack.c.l.b16 %v4984
  %v5099 = vunpack.c.h.b16 %v4984
  %v5100 = vunpack.c.l.b16 %v4985
  %v5101 = vunpack.c.h.b16 %v4985
  %v5102 = vunpack.c.l.b16 %v4986
  %v5103 = vunpack.c.h.b16 %v4986
  %v5104 = vunpack.c.l.b16 %v4987
  %v5105 = vunpack.c.h.b16 %v4987
  %v5106 = vunpack.c.l.b16 %v4988
  %v5107 = vunpack.c.h.b16 %v4988
  %v5108 = vunpack.c.l.b16 %v4989
  %v5109 = vunpack.c.h.b16 %v4989
  %v5110 = vunpack.c.l.b16 %v4990
  %v5111 = vunpack.c.h.b16 %v4990
  %v5112 = vunpack.c.l.b16 %v4991
  %v5113 = vunpack.c.h.b16 %v4991
  %v5114 = vunpack.c.l.b16 %v4992
  %v5115 = vunpack.c.h.b16 %v4992
  %v5116 = vunpack.c.l.b16 %v4993
  %v5117 = vunpack.c.h.b16 %v4993
  %v5118 = vunpack.c.l.b16 %v4994
  %v5119 = vunpack.c.h.b16 %v4994
  %v5120 = vunpack.c.l.b16 %v4995
  %v5121 = vunpack.c.h.b16 %v4995
  %v5122 = vunpack.c.l.b16 %v4996
  %v5123 = vunpack.c.h.b16 %v4996
  %v5124 = vunpack.c.l.b16 %v4997
  %v5125 = vunpack.c.h.b16 %v4997
  %v5126 = vunpack.c.l.b16 %v4998
  %v5127 = vunpack.c.h.b16 %v4998
  %v5128 = vunpack.c.l.b16 %v4999
  %v5129 = vunpack.c.h.b16 %v4999
  %v5130 = vunpack.c.l.b16 %v5000
  %v5131 = vunpack.c.h.b16 %v5000
  %v5132 = vunpack.c.l.b16 %v5001
  %v5133 = vunpack.c.h.b16 %v5001
  %v5134 = vunpack.c.l.b16 %v5002
  %v5135 = vunpack.c.h.b16 %v5002
  %v5136 = vunpack.c.l.b16 %v5003
  %v5137 = vunpack.c.h.b16 %v5003
  %v5138 = vunpack.c.l.b16 %v5004
  %v5139 = vunpack.c.h.b16 %v5004
  %v5140 = vunpack.c.l.b16 %v5005
  %v5141 = vunpack.c.h.b16 %v5005
  %v5142 = vunpack.c.l.b16 %v5006
  %v5143 = vunpack.c.h.b16 %v5006
  %v5144 = vunpack.c.l.b16 %v5007
  %v5145 = vunpack.c.h.b16 %v5007
  %v5146 = vpack.c.b16 %v5086, %v5082
  %v5147 = vpack.c.b16 %v5087, %v5083
  %v5148 = vpack.c.b16 %v5088, %v5084
  %v5149 = vpack.c.b16 %v5089, %v5085
  %v5150 = vpack.c.b16 %v5094, %v5090
  %v5151 = vpack.c.b16 %v5095, %v5091
  %v5152 = vpack.c.b16 %v5096, %v5092
  %v5153 = vpack.c.b16 %v5097, %v5093
  %v5154 = vpack.c.b16 %v5102, %v5098
  %v5155 = vpack.c.b16 %v5103, %v5099
  %v5156 = vpack.c.b16 %v5104, %v5100
  %v5157 = vpack.c.b16 %v5105, %v5101
  %v5158 = vpack.c.b16 %v5110, %v5106
  %v5159 = vpack.c.b16 %v5111, %v5107
  %v5160 = vpack.c.b16 %v5112, %v5108
  %v5161 = vpack.c.b16 %v5113, %v5109
  %v5162 = vpack.c.b16 %v5118, %v5114
  %v5163 = vpack.c.b16 %v5119, %v5115
  %v5164 = vpack.c.b16 %v5120, %v5116
  %v5165 = vpack.c.b16 %v5121, %v5117
  %v5166 = vpack.c.b16 %v5126, %v5122
  %v5167 = vpack.c.b16 %v5127, %v5123
  %v5168 = vpack.c.b16 %v5128, %v5124
  %v5169 = vpack.c.b16 %v5129, %v5125
  %v5170 = vpack.c.b16 %v5134, %v5130
  %v5171 = vpack.c.b16 %v5135, %v5131
  %v5172 = vpack.c.b16 %v5136, %v5132
  %v5173 = vpack.c.b16 %v5137, %v5133
  %v5174 = vpack.c.b16 %v5142, %v5138
  %v5175 = vpack.c.b16 %v5143, %v5139
  %v5176 = vpack.c.b16 %v5144, %v5140
  %v5177 = vpack.c.b16 %v5145, %v5141
  %5210 = vmatprep.subr.bf16.mxu0 %v5175
  %5211 = vmatpush1.bf16.msra.mxu0 %v5174
  %5212 = vmatprep.subr.bf16.mxu0 %v5171
  %5213 = vmatpush1.bf16.msra.mxu0 %v5170
  %5214 = vmatprep.subr.bf16.mxu0 %v5167
  %5215 = vmatpush1.bf16.msra.mxu0 %v5166
  %5216 = vmatprep.subr.bf16.mxu0 %v5163
  %5217 = vmatpush1.bf16.msra.mxu0 %v5162
  %5218 = vmatprep.subr.bf16.mxu0 %v5159
  %5219 = vmatpush1.bf16.msra.mxu0 %v5158
  %5220 = vmatprep.subr.bf16.mxu0 %v5155
  %5221 = vmatpush1.bf16.msra.mxu0 %v5154
  %5222 = vmatprep.subr.bf16.mxu0 %v5151
  %5223 = vmatpush1.bf16.msra.mxu0 %v5150
  %5224 = vmatprep.subr.bf16.mxu0 %v5147
  %5225 = vmatpush1.bf16.msra.mxu0 %v5146
  %5226 = vmatprep.subr.bf16.mxu0 0
  %5227 = vmatpush2.bf16.msra.mxu0 0
  %5228 = vmatprep.subr.bf16.mxu0 0
  %5229 = vmatpush2.bf16.msra.mxu0 0
  %5230 = vmatprep.subr.bf16.mxu0 0
  %5231 = vmatpush2.bf16.msra.mxu0 0
  %5232 = vmatprep.subr.bf16.mxu0 0
  %5233 = vmatpush2.bf16.msra.mxu0 0
  %5234 = vmatprep.subr.bf16.mxu0 0
  %5235 = vmatpush2.bf16.msra.mxu0 0
  %5236 = vmatprep.subr.bf16.mxu0 0
  %5237 = vmatpush2.bf16.msra.mxu0 0
  %5238 = vmatprep.subr.bf16.mxu0 0
  %5239 = vmatpush2.bf16.msra.mxu0 0
  %5240 = vmatprep.subr.bf16.mxu0 0
  %5241 = vmatpush2.bf16.msra.mxu0 0
  %5242 = vmatprep.mubr.bf16.mxu0 0
  %5243 = vmatmul.mubr.bf16.gmra.mxu0 %v5036
  %v5244 = vpop.f32.mrf.mxu0
  %v5245 = vadd.f32 0.0, %v5244
  %v5246 = vpop.f32.mrf.mxu0
  %v5247 = vadd.f32 0.0, %v5246
  %v5248 = vpop.f32.mrf.mxu0
  %v5249 = vadd.f32 0.0, %v5248
  %v5250 = vpop.f32.mrf.mxu0
  %v5251 = vadd.f32 0.0, %v5250
  %5252 = vmatprep.mubr.bf16.mxu0 0
  %5253 = vmatmul.mubr.bf16.gmra.mxu0 %v5037
  %v5254 = vpop.f32.mrf.mxu0
  %v5255 = vadd.f32 0.0, %v5254
  %v5256 = vpop.f32.mrf.mxu0
  %v5257 = vadd.f32 0.0, %v5256
  %v5258 = vpop.f32.mrf.mxu0
  %v5259 = vadd.f32 0.0, %v5258
  %v5260 = vpop.f32.mrf.mxu0
  %v5261 = vadd.f32 0.0, %v5260
  %5262 = vmatprep.mubr.bf16.mxu0 0
  %5263 = vmatmul.mubr.bf16.gmra.mxu0 %v5038
  %v5264 = vpop.f32.mrf.mxu0
  %v5265 = vadd.f32 0.0, %v5264
  %v5266 = vpop.f32.mrf.mxu0
  %v5267 = vadd.f32 0.0, %v5266
  %v5268 = vpop.f32.mrf.mxu0
  %v5269 = vadd.f32 0.0, %v5268
  %v5270 = vpop.f32.mrf.mxu0
  %v5271 = vadd.f32 0.0, %v5270
  %5272 = vmatprep.mubr.bf16.mxu0 0
  %5273 = vmatmul.mubr.bf16.gmra.mxu0 %v5039
  %v5274 = vpop.f32.mrf.mxu0
  %v5275 = vadd.f32 0.0, %v5274
  %v5276 = vpop.f32.mrf.mxu0
  %v5277 = vadd.f32 0.0, %v5276
  %v5278 = vpop.f32.mrf.mxu0
  %v5279 = vadd.f32 0.0, %v5278
  %v5280 = vpop.f32.mrf.mxu0
  %v5281 = vadd.f32 0.0, %v5280
  %5282 = vmatprep.mubr.bf16.mxu0 0
  %5283 = vmatmul.mubr.bf16.gmra.mxu0 %v5040
  %v5284 = vpop.f32.mrf.mxu0
  %v5285 = vadd.f32 0.0, %v5284
  %v5286 = vpop.f32.mrf.mxu0
  %v5287 = vadd.f32 0.0, %v5286
  %v5288 = vpop.f32.mrf.mxu0
  %v5289 = vadd.f32 0.0, %v5288
  %v5290 = vpop.f32.mrf.mxu0
  %v5291 = vadd.f32 0.0, %v5290
  %5292 = vmatprep.mubr.bf16.mxu0 0
  %5293 = vmatmul.mubr.bf16.gmra.mxu0 %v5041
  %v5294 = vpop.f32.mrf.mxu0
  %v5295 = vadd.f32 0.0, %v5294
  %v5296 = vpop.f32.mrf.mxu0
  %v5297 = vadd.f32 0.0, %v5296
  %v5298 = vpop.f32.mrf.mxu0
  %v5299 = vadd.f32 0.0, %v5298
  %v5300 = vpop.f32.mrf.mxu0
  %v5301 = vadd.f32 0.0, %v5300
  %5302 = vmatprep.mubr.bf16.mxu0 0
  %5303 = vmatmul.mubr.bf16.gmra.mxu0 %v5042
  %v5304 = vpop.f32.mrf.mxu0
  %v5305 = vadd.f32 0.0, %v5304
  %v5306 = vpop.f32.mrf.mxu0
  %v5307 = vadd.f32 0.0, %v5306
  %v5308 = vpop.f32.mrf.mxu0
  %v5309 = vadd.f32 0.0, %v5308
  %v5310 = vpop.f32.mrf.mxu0
  %v5311 = vadd.f32 0.0, %v5310
  %5312 = vdwg.mxu0
  %5313 = vmatprep.subr.bf16.mxu0 %v5177
  %5314 = vmatpush1.bf16.msra.mxu0 %v5176
  %5315 = vmatprep.subr.bf16.mxu0 %v5173
  %5316 = vmatpush1.bf16.msra.mxu0 %v5172
  %5317 = vmatprep.subr.bf16.mxu0 %v5169
  %5318 = vmatpush1.bf16.msra.mxu0 %v5168
  %5319 = vmatprep.subr.bf16.mxu0 %v5165
  %5320 = vmatpush1.bf16.msra.mxu0 %v5164
  %5321 = vmatprep.subr.bf16.mxu0 %v5161
  %5322 = vmatpush1.bf16.msra.mxu0 %v5160
  %5323 = vmatprep.subr.bf16.mxu0 %v5157
  %5324 = vmatpush1.bf16.msra.mxu0 %v5156
  %5325 = vmatprep.subr.bf16.mxu0 %v5153
  %5326 = vmatpush1.bf16.msra.mxu0 %v5152
  %5327 = vmatprep.subr.bf16.mxu0 %v5149
  %5328 = vmatpush1.bf16.msra.mxu0 %v5148
  %5329 = vmatprep.subr.bf16.mxu0 0
  %5330 = vmatpush2.bf16.msra.mxu0 0
  %5331 = vmatprep.subr.bf16.mxu0 0
  %5332 = vmatpush2.bf16.msra.mxu0 0
  %5333 = vmatprep.subr.bf16.mxu0 0
  %5334 = vmatpush2.bf16.msra.mxu0 0
  %5335 = vmatprep.subr.bf16.mxu0 0
  %5336 = vmatpush2.bf16.msra.mxu0 0
  %5337 = vmatprep.subr.bf16.mxu0 0
  %5338 = vmatpush2.bf16.msra.mxu0 0
  %5339 = vmatprep.subr.bf16.mxu0 0
  %5340 = vmatpush2.bf16.msra.mxu0 0
  %5341 = vmatprep.subr.bf16.mxu0 0
  %5342 = vmatpush2.bf16.msra.mxu0 0
  %5343 = vmatprep.subr.bf16.mxu0 0
  %5344 = vmatpush2.bf16.msra.mxu0 0
  %5345 = vmatprep.mubr.bf16.mxu0 0
  %5346 = vmatmul.mubr.bf16.gmra.mxu0 %v5036
  %v5347 = vpop.f32.mrf.mxu0
  %v5348 = vadd.f32 0.0, %v5347
  %v5349 = vpop.f32.mrf.mxu0
  %v5350 = vadd.f32 0.0, %v5349
  %v5351 = vpop.f32.mrf.mxu0
  %v5352 = vadd.f32 0.0, %v5351
  %v5353 = vpop.f32.mrf.mxu0
  %v5354 = vadd.f32 0.0, %v5353
  %5355 = vmatprep.mubr.bf16.mxu0 0
  %5356 = vmatmul.mubr.bf16.gmra.mxu0 %v5037
  %v5357 = vpop.f32.mrf.mxu0
  %v5358 = vadd.f32 0.0, %v5357
  %v5359 = vpop.f32.mrf.mxu0
  %v5360 = vadd.f32 0.0, %v5359
  %v5361 = vpop.f32.mrf.mxu0
  %v5362 = vadd.f32 0.0, %v5361
  %v5363 = vpop.f32.mrf.mxu0
  %v5364 = vadd.f32 0.0, %v5363
  %5365 = vmatprep.mubr.bf16.mxu0 0
  %5366 = vmatmul.mubr.bf16.gmra.mxu0 %v5038
  %v5367 = vpop.f32.mrf.mxu0
  %v5368 = vadd.f32 0.0, %v5367
  %v5369 = vpop.f32.mrf.mxu0
  %v5370 = vadd.f32 0.0, %v5369
  %v5371 = vpop.f32.mrf.mxu0
  %v5372 = vadd.f32 0.0, %v5371
  %v5373 = vpop.f32.mrf.mxu0
  %v5374 = vadd.f32 0.0, %v5373
  %5375 = vmatprep.mubr.bf16.mxu0 0
  %5376 = vmatmul.mubr.bf16.gmra.mxu0 %v5039
  %v5377 = vpop.f32.mrf.mxu0
  %v5378 = vadd.f32 0.0, %v5377
  %v5379 = vpop.f32.mrf.mxu0
  %v5380 = vadd.f32 0.0, %v5379
  %v5381 = vpop.f32.mrf.mxu0
  %v5382 = vadd.f32 0.0, %v5381
  %v5383 = vpop.f32.mrf.mxu0
  %v5384 = vadd.f32 0.0, %v5383
  %5385 = vmatprep.mubr.bf16.mxu0 0
  %5386 = vmatmul.mubr.bf16.gmra.mxu0 %v5040
  %v5387 = vpop.f32.mrf.mxu0
  %v5388 = vadd.f32 0.0, %v5387
  %v5389 = vpop.f32.mrf.mxu0
  %v5390 = vadd.f32 0.0, %v5389
  %v5391 = vpop.f32.mrf.mxu0
  %v5392 = vadd.f32 0.0, %v5391
  %v5393 = vpop.f32.mrf.mxu0
  %v5394 = vadd.f32 0.0, %v5393
  %5395 = vmatprep.mubr.bf16.mxu0 0
  %5396 = vmatmul.mubr.bf16.gmra.mxu0 %v5041
  %v5397 = vpop.f32.mrf.mxu0
  %v5398 = vadd.f32 0.0, %v5397
  %v5399 = vpop.f32.mrf.mxu0
  %v5400 = vadd.f32 0.0, %v5399
  %v5401 = vpop.f32.mrf.mxu0
  %v5402 = vadd.f32 0.0, %v5401
  %v5403 = vpop.f32.mrf.mxu0
  %v5404 = vadd.f32 0.0, %v5403
  %5405 = vmatprep.mubr.bf16.mxu0 0
  %5406 = vmatmul.mubr.bf16.gmra.mxu0 %v5042
  %v5407 = vpop.f32.mrf.mxu0
  %v5408 = vadd.f32 0.0, %v5407
  %v5409 = vpop.f32.mrf.mxu0
  %v5410 = vadd.f32 0.0, %v5409
  %v5411 = vpop.f32.mrf.mxu0
  %v5412 = vadd.f32 0.0, %v5411
  %v5413 = vpop.f32.mrf.mxu0
  %v5414 = vadd.f32 0.0, %v5413
  %5415 = vdwg.mxu0
  %v5416 = vadd.f32 %v5245, %v4911
  %v5417 = vadd.f32 %v5247, %v4913
  %v5418 = vadd.f32 %v5348, %v4954
  %v5419 = vadd.f32 %v5350, %v4956
  %v5420 = vadd.f32 %v5249, %v4915
  %v5421 = vadd.f32 %v5251, %v4917
  %v5422 = vadd.f32 %v5352, %v4958
  %v5423 = vadd.f32 %v5354, %v4960
  %v5424 = vadd.f32 %v5255, %v4911
  %v5425 = vadd.f32 %v5257, %v4913
  %v5426 = vadd.f32 %v5358, %v4954
  %v5427 = vadd.f32 %v5360, %v4956
  %v5428 = vadd.f32 %v5259, %v4915
  %v5429 = vadd.f32 %v5261, %v4917
  %v5430 = vadd.f32 %v5362, %v4958
  %v5431 = vadd.f32 %v5364, %v4960
  %v5432 = vadd.f32 %v5265, %v4911
  %v5433 = vadd.f32 %v5267, %v4913
  %v5434 = vadd.f32 %v5368, %v4954
  %v5435 = vadd.f32 %v5370, %v4956
  %v5436 = vadd.f32 %v5269, %v4915
  %v5437 = vadd.f32 %v5271, %v4917
  %v5438 = vadd.f32 %v5372, %v4958
  %v5439 = vadd.f32 %v5374, %v4960
  %v5440 = vadd.f32 %v5275, %v4911
  %v5441 = vadd.f32 %v5277, %v4913
  %v5442 = vadd.f32 %v5378, %v4954
  %v5443 = vadd.f32 %v5380, %v4956
  %v5444 = vadd.f32 %v5279, %v4915
  %v5445 = vadd.f32 %v5281, %v4917
  %v5446 = vadd.f32 %v5382, %v4958
  %v5447 = vadd.f32 %v5384, %v4960
  %v5448 = vadd.f32 %v5285, %v4911
  %v5449 = vadd.f32 %v5287, %v4913
  %v5450 = vadd.f32 %v5388, %v4954
  %v5451 = vadd.f32 %v5390, %v4956
  %v5452 = vadd.f32 %v5289, %v4915
  %v5453 = vadd.f32 %v5291, %v4917
  %v5454 = vadd.f32 %v5392, %v4958
  %v5455 = vadd.f32 %v5394, %v4960
  %v5456 = vadd.f32 %v5295, %v4911
  %v5457 = vadd.f32 %v5297, %v4913
  %v5458 = vadd.f32 %v5398, %v4954
  %v5459 = vadd.f32 %v5400, %v4956
  %v5460 = vadd.f32 %v5299, %v4915
  %v5461 = vadd.f32 %v5301, %v4917
  %v5462 = vadd.f32 %v5402, %v4958
  %v5463 = vadd.f32 %v5404, %v4960
  %v5464 = vadd.f32 %v5305, %v4911
  %v5465 = vadd.f32 %v5307, %v4913
  %v5466 = vadd.f32 %v5408, %v4954
  %v5467 = vadd.f32 %v5410, %v4956
  %v5468 = vadd.f32 %v5309, %v4915
  %v5469 = vadd.f32 %v5311, %v4917
  %v5470 = vadd.f32 %v5412, %v4958
  %v5471 = vadd.f32 %v5414, %v4960
  %v5472 = vpack.c.bf16 %v5420, %v5416
  %v5473 = vpack.c.bf16 %v5421, %v5417
  %v5474 = vpack.c.bf16 %v5422, %v5418
  %v5475 = vpack.c.bf16 %v5423, %v5419
  %v5476 = vpack.c.bf16 %v5428, %v5424
  %v5477 = vpack.c.bf16 %v5429, %v5425
  %v5478 = vpack.c.bf16 %v5430, %v5426
  %v5479 = vpack.c.bf16 %v5431, %v5427
  %v5480 = vpack.c.bf16 %v5436, %v5432
  %v5481 = vpack.c.bf16 %v5437, %v5433
  %v5482 = vpack.c.bf16 %v5438, %v5434
  %v5483 = vpack.c.bf16 %v5439, %v5435
  %v5484 = vpack.c.bf16 %v5444, %v5440
  %v5485 = vpack.c.bf16 %v5445, %v5441
  %v5486 = vpack.c.bf16 %v5446, %v5442
  %v5487 = vpack.c.bf16 %v5447, %v5443
  %v5488 = vpack.c.bf16 %v5452, %v5448
  %v5489 = vpack.c.bf16 %v5453, %v5449
  %v5490 = vpack.c.bf16 %v5454, %v5450
  %v5491 = vpack.c.bf16 %v5455, %v5451
  %v5492 = vpack.c.bf16 %v5460, %v5456
  %v5493 = vpack.c.bf16 %v5461, %v5457
  %v5494 = vpack.c.bf16 %v5462, %v5458
  %v5495 = vpack.c.bf16 %v5463, %v5459
  %v5496 = vpack.c.bf16 %v5468, %v5464
  %v5497 = vpack.c.bf16 %v5469, %v5465
  %v5498 = vpack.c.bf16 %v5470, %v5466
  %v5499 = vpack.c.bf16 %v5471, %v5467
  %v5528 = vunpack.c.l.b16 %v5472
  %v5529 = vunpack.c.l.b16 %v5473
  %v5530 = vunpack.c.l.b16 %v5474
  %v5531 = vunpack.c.l.b16 %v5475
  %v5532 = vunpack.c.h.b16 %v5472
  %v5533 = vunpack.c.h.b16 %v5473
  %v5534 = vunpack.c.h.b16 %v5474
  %v5535 = vunpack.c.h.b16 %v5475
  %v5536 = vunpack.c.l.b16 %v5476
  %v5537 = vunpack.c.l.b16 %v5477
  %v5538 = vunpack.c.l.b16 %v5478
  %v5539 = vunpack.c.l.b16 %v5479
  %v5540 = vunpack.c.h.b16 %v5476
  %v5541 = vunpack.c.h.b16 %v5477
  %v5542 = vunpack.c.h.b16 %v5478
  %v5543 = vunpack.c.h.b16 %v5479
  %v5544 = vunpack.c.l.b16 %v5480
  %v5545 = vunpack.c.l.b16 %v5481
  %v5546 = vunpack.c.l.b16 %v5482
  %v5547 = vunpack.c.l.b16 %v5483
  %v5548 = vunpack.c.h.b16 %v5480
  %v5549 = vunpack.c.h.b16 %v5481
  %v5550 = vunpack.c.h.b16 %v5482
  %v5551 = vunpack.c.h.b16 %v5483
  %v5552 = vunpack.c.l.b16 %v5484
  %v5553 = vunpack.c.l.b16 %v5485
  %v5554 = vunpack.c.l.b16 %v5486
  %v5555 = vunpack.c.l.b16 %v5487
  %v5556 = vunpack.c.h.b16 %v5484
  %v5557 = vunpack.c.h.b16 %v5485
  %v5558 = vunpack.c.h.b16 %v5486
  %v5559 = vunpack.c.h.b16 %v5487
  %v5560 = vunpack.c.l.b16 %v5488
  %v5561 = vunpack.c.l.b16 %v5489
  %v5562 = vunpack.c.l.b16 %v5490
  %v5563 = vunpack.c.l.b16 %v5491
  %v5564 = vunpack.c.h.b16 %v5488
  %v5565 = vunpack.c.h.b16 %v5489
  %v5566 = vunpack.c.h.b16 %v5490
  %v5567 = vunpack.c.h.b16 %v5491
  %v5568 = vunpack.c.l.b16 %v5492
  %v5569 = vunpack.c.l.b16 %v5493
  %v5570 = vunpack.c.l.b16 %v5494
  %v5571 = vunpack.c.l.b16 %v5495
  %v5572 = vunpack.c.h.b16 %v5492
  %v5573 = vunpack.c.h.b16 %v5493
  %v5574 = vunpack.c.h.b16 %v5494
  %v5575 = vunpack.c.h.b16 %v5495
  %v5576 = vunpack.c.l.b16 %v5496
  %v5577 = vunpack.c.l.b16 %v5497
  %v5578 = vunpack.c.l.b16 %v5498
  %v5579 = vunpack.c.l.b16 %v5499
  %v5580 = vunpack.c.h.b16 %v5496
  %v5581 = vunpack.c.h.b16 %v5497
  %v5582 = vunpack.c.h.b16 %v5498
  %v5583 = vunpack.c.h.b16 %v5499
  %v5584 = vpack.c.b16 %v5529, %v5528
  %v5585 = vpack.c.b16 %v5531, %v5530
  %v5586 = vpack.c.b16 %v5533, %v5532
  %v5587 = vpack.c.b16 %v5535, %v5534
  %v5588 = vpack.c.b16 %v5537, %v5536
  %v5589 = vpack.c.b16 %v5539, %v5538
  %v5590 = vpack.c.b16 %v5541, %v5540
  %v5591 = vpack.c.b16 %v5543, %v5542
  %v5592 = vpack.c.b16 %v5545, %v5544
  %v5593 = vpack.c.b16 %v5547, %v5546
  %v5594 = vpack.c.b16 %v5549, %v5548
  %v5595 = vpack.c.b16 %v5551, %v5550
  %v5596 = vpack.c.b16 %v5553, %v5552
  %v5597 = vpack.c.b16 %v5555, %v5554
  %v5598 = vpack.c.b16 %v5557, %v5556
  %v5599 = vpack.c.b16 %v5559, %v5558
  %v5600 = vpack.c.b16 %v5561, %v5560
  %v5601 = vpack.c.b16 %v5563, %v5562
  %v5602 = vpack.c.b16 %v5565, %v5564
  %v5603 = vpack.c.b16 %v5567, %v5566
  %v5604 = vpack.c.b16 %v5569, %v5568
  %v5605 = vpack.c.b16 %v5571, %v5570
  %v5606 = vpack.c.b16 %v5573, %v5572
  %v5607 = vpack.c.b16 %v5575, %v5574
  %v5608 = vpack.c.b16 %v5577, %v5576
  %v5609 = vpack.c.b16 %v5579, %v5578
  %v5610 = vpack.c.b16 %v5581, %v5580
  %v5611 = vpack.c.b16 %v5583, %v5582
  %5640 = vst [vmem:[#allocation3] sm:$0xff] %v5584
  %5641 = vst [vmem:[#allocation3 + $0x8] sm:$0xff] %v5585
  %5642 = vst [vmem:[#allocation3 + $0x10] sm:$0xff] %v5586
  %5643 = vst [vmem:[#allocation3 + $0x18] sm:$0xff] %v5587
  %5644 = vst [vmem:[#allocation3 + $0x20] sm:$0xff] %v5588
  %5645 = vst [vmem:[#allocation3 + $0x28] sm:$0xff] %v5589
  %5646 = vst [vmem:[#allocation3 + $0x30] sm:$0xff] %v5590
  %5647 = vst [vmem:[#allocation3 + $0x38] sm:$0xff] %v5591
  %5648 = vst [vmem:[#allocation3 + $0x40] sm:$0xff] %v5592
  %5649 = vst [vmem:[#allocation3 + $0x48] sm:$0xff] %v5593
  %5650 = vst [vmem:[#allocation3 + $0x50] sm:$0xff] %v5594
  %5651 = vst [vmem:[#allocation3 + $0x58] sm:$0xff] %v5595
  %5652 = vst [vmem:[#allocation3 + $0x60] sm:$0xff] %v5596
  %5653 = vst [vmem:[#allocation3 + $0x68] sm:$0xff] %v5597
  %5654 = vst [vmem:[#allocation3 + $0x70] sm:$0xff] %v5598
  %5655 = vst [vmem:[#allocation3 + $0x78] sm:$0xff] %v5599
  %5656 = vst [vmem:[#allocation3 + $0x80] sm:$0xff] %v5600
  %5657 = vst [vmem:[#allocation3 + $0x88] sm:$0xff] %v5601
  %5658 = vst [vmem:[#allocation3 + $0x90] sm:$0xff] %v5602
  %5659 = vst [vmem:[#allocation3 + $0x98] sm:$0xff] %v5603
  %5660 = vst [vmem:[#allocation3 + $0xa0] sm:$0xff] %v5604
  %5661 = vst [vmem:[#allocation3 + $0xa8] sm:$0xff] %v5605
  %5662 = vst [vmem:[#allocation3 + $0xb0] sm:$0xff] %v5606
  %5663 = vst [vmem:[#allocation3 + $0xb8] sm:$0xff] %v5607
  %5664 = vst [vmem:[#allocation3 + $0xc0] sm:$0xff] %v5608
  %5665 = vst [vmem:[#allocation3 + $0xc8] sm:$0xff] %v5609
  %5666 = vst [vmem:[#allocation3 + $0xd0] sm:$0xff] %v5610
  %5667 = vst [vmem:[#allocation3 + $0xd8] sm:$0xff] %v5611
  %v5668 = vld [vmem:[#allocation3] sm:$0xff]
  %v5669 = vld [vmem:[#allocation3 + $0x8] sm:$0xff]
  %v5670 = vld [vmem:[#allocation3 + $0x10] sm:$0xff]
  %v5671 = vld [vmem:[#allocation3 + $0x18] sm:$0xff]
  %v5672 = vunpack.c.l.bf16 %v5668
  %v5673 = vunpack.c.h.bf16 %v5668
  %v5674 = vunpack.c.l.bf16 %v5669
  %v5675 = vunpack.c.h.bf16 %v5669
  %v5676 = vunpack.c.l.bf16 %v5670
  %v5677 = vunpack.c.h.bf16 %v5670
  %v5678 = vunpack.c.l.bf16 %v5671
  %v5679 = vunpack.c.h.bf16 %v5671
  %v5680 = vadd.f32 %v5672, 0.0
  %v5681 = vadd.f32 %v5673, 0.0
  %v5682 = vadd.f32 %v5674, 0.0
  %v5683 = vadd.f32 %v5675, 0.0
  %v5684 = vadd.f32 %v5676, 0.0
  %v5685 = vadd.f32 %v5677, 0.0
  %v5686 = vadd.f32 %v5678, 0.0
  %v5687 = vadd.f32 %v5679, 0.0
  %v5688 = vmul.f32 %v5680, 0.5
  %v5689 = vmul.f32 %v5684, 0.5
  %v5690 = vtanh.pop %v5688
  %v5691 = vtanh.pop %v5689
  %v5692 = vadd.f32 %v5690, 1.0
  %v5693 = vadd.f32 %v5691, 1.0
  %v5694 = vmul.f32 %v5692, 0.5
  %v5695 = vmul.f32 %v5693, 0.5
  %v5696 = vmul.f32 %v5681, 0.5
  %v5697 = vmul.f32 %v5685, 0.5
  %v5698 = vtanh.pop %v5696
  %v5699 = vtanh.pop %v5697
  %v5700 = vadd.f32 %v5698, 1.0
  %v5701 = vadd.f32 %v5699, 1.0
  %v5702 = vmul.f32 %v5700, 0.5
  %v5703 = vmul.f32 %v5701, 0.5
  %v5704 = vtanh.pop %v5682
  %v5705 = vtanh.pop %v5686
  %v5706 = vmul.f32 %v5683, 0.5
  %v5707 = vmul.f32 %v5687, 0.5
  %v5708 = vtanh.pop %v5706
  %v5709 = vtanh.pop %v5707
  %v5710 = vadd.f32 %v5708, 1.0
  %v5711 = vadd.f32 %v5709, 1.0
  %v5712 = vmul.f32 %v5710, 0.5
  %v5713 = vmul.f32 %v5711, 0.5
  %v5714 = vmul.f32 %v5702, 0.0
  %v5715 = vmul.f32 %v5703, 0.0
  %v5716 = vmul.f32 %v5694, %v5704
  %v5717 = vmul.f32 %v5695, %v5705
  %v5718 = vadd.f32 %v5714, %v5716
  %v5719 = vadd.f32 %v5715, %v5717
  %v5720 = vtanh.pop %v5718
  %v5721 = vtanh.pop %v5719
  %v5722 = vmul.f32 %v5712, %v5720
  %v5723 = vmul.f32 %v5713, %v5721
  %v5724 = vpack.c.bf16 %v5723, %v5722
  %v5789 = vunpack.c.l.b16 %v211
  %v5790 = vunpack.c.h.b16 %v211
  %v5791 = vunpack.c.l.b16 %v212
  %v5792 = vunpack.c.h.b16 %v212
  %v5793 = vunpack.c.l.b16 %v213
  %v5794 = vunpack.c.h.b16 %v213
  %v5795 = vunpack.c.l.b16 %v214
  %v5796 = vunpack.c.h.b16 %v214
  %v5797 = vunpack.c.l.b16 %v215
  %v5798 = vunpack.c.h.b16 %v215
  %v5799 = vunpack.c.l.b16 %v216
  %v5800 = vunpack.c.h.b16 %v216
  %v5801 = vunpack.c.l.b16 %v217
  %v5802 = vunpack.c.h.b16 %v217
  %v5803 = vunpack.c.l.b16 %v218
  %v5804 = vunpack.c.h.b16 %v218
  %v5805 = vunpack.c.l.b16 %v219
  %v5806 = vunpack.c.h.b16 %v219
  %v5807 = vunpack.c.l.b16 %v220
  %v5808 = vunpack.c.h.b16 %v220
  %v5809 = vunpack.c.l.b16 %v221
  %v5810 = vunpack.c.h.b16 %v221
  %v5811 = vunpack.c.l.b16 %v222
  %v5812 = vunpack.c.h.b16 %v222
  %v5813 = vunpack.c.l.b16 %v223
  %v5814 = vunpack.c.h.b16 %v223
  %v5815 = vunpack.c.l.b16 %v224
  %v5816 = vunpack.c.h.b16 %v224
  %v5817 = vunpack.c.l.b16 %v225
  %v5818 = vunpack.c.h.b16 %v225
  %v5819 = vunpack.c.l.b16 %v226
  %v5820 = vunpack.c.h.b16 %v226
  %v5821 = vunpack.c.l.b16 %v227
  %v5822 = vunpack.c.h.b16 %v227
  %v5823 = vunpack.c.l.b16 %v228
  %v5824 = vunpack.c.h.b16 %v228
  %v5825 = vunpack.c.l.b16 %v229
  %v5826 = vunpack.c.h.b16 %v229
  %v5827 = vunpack.c.l.b16 %v230
  %v5828 = vunpack.c.h.b16 %v230
  %v5829 = vunpack.c.l.b16 %v231
  %v5830 = vunpack.c.h.b16 %v231
  %v5831 = vunpack.c.l.b16 %v232
  %v5832 = vunpack.c.h.b16 %v232
  %v5833 = vunpack.c.l.b16 %v233
  %v5834 = vunpack.c.h.b16 %v233
  %v5835 = vunpack.c.l.b16 %v234
  %v5836 = vunpack.c.h.b16 %v234
  %v5837 = vunpack.c.l.b16 %v235
  %v5838 = vunpack.c.h.b16 %v235
  %v5839 = vunpack.c.l.b16 %v236
  %v5840 = vunpack.c.h.b16 %v236
  %v5841 = vunpack.c.l.b16 %v237
  %v5842 = vunpack.c.h.b16 %v237
  %v5843 = vunpack.c.l.b16 %v238
  %v5844 = vunpack.c.h.b16 %v238
  %v5845 = vunpack.c.l.b16 %v239
  %v5846 = vunpack.c.h.b16 %v239
  %v5847 = vunpack.c.l.b16 %v240
  %v5848 = vunpack.c.h.b16 %v240
  %v5849 = vunpack.c.l.b16 %v241
  %v5850 = vunpack.c.h.b16 %v241
  %v5851 = vunpack.c.l.b16 %v242
  %v5852 = vunpack.c.h.b16 %v242
  %v5853 = vunpack.c.l.b16 %v243
  %v5854 = vunpack.c.h.b16 %v243
  %v5855 = vunpack.c.l.b16 %v244
  %v5856 = vunpack.c.h.b16 %v244
  %v5857 = vunpack.c.l.b16 %v245
  %v5858 = vunpack.c.h.b16 %v245
  %v5859 = vunpack.c.l.b16 %v246
  %v5860 = vunpack.c.h.b16 %v246
  %v5861 = vunpack.c.l.b16 %v247
  %v5862 = vunpack.c.h.b16 %v247
  %v5863 = vunpack.c.l.b16 %v248
  %v5864 = vunpack.c.h.b16 %v248
  %v5865 = vunpack.c.l.b16 %v249
  %v5866 = vunpack.c.h.b16 %v249
  %v5867 = vunpack.c.l.b16 %v250
  %v5868 = vunpack.c.h.b16 %v250
  %v5869 = vunpack.c.l.b16 %v251
  %v5870 = vunpack.c.h.b16 %v251
  %v5871 = vunpack.c.l.b16 %v252
  %v5872 = vunpack.c.h.b16 %v252
  %v5873 = vunpack.c.l.b16 %v253
  %v5874 = vunpack.c.h.b16 %v253
  %v5875 = vunpack.c.l.b16 %v254
  %v5876 = vunpack.c.h.b16 %v254
  %v5877 = vunpack.c.l.b16 %v255
  %v5878 = vunpack.c.h.b16 %v255
  %v5879 = vunpack.c.l.b16 %v256
  %v5880 = vunpack.c.h.b16 %v256
  %v5881 = vunpack.c.l.b16 %v257
  %v5882 = vunpack.c.h.b16 %v257
  %v5883 = vunpack.c.l.b16 %v258
  %v5884 = vunpack.c.h.b16 %v258
  %v5885 = vunpack.c.l.b16 %v259
  %v5886 = vunpack.c.h.b16 %v259
  %v5887 = vunpack.c.l.b16 %v260
  %v5888 = vunpack.c.h.b16 %v260
  %v5889 = vunpack.c.l.b16 %v261
  %v5890 = vunpack.c.h.b16 %v261
  %v5891 = vunpack.c.l.b16 %v262
  %v5892 = vunpack.c.h.b16 %v262
  %v5893 = vunpack.c.l.b16 %v263
  %v5894 = vunpack.c.h.b16 %v263
  %v5895 = vunpack.c.l.b16 %v264
  %v5896 = vunpack.c.h.b16 %v264
  %v5897 = vunpack.c.l.b16 %v265
  %v5898 = vunpack.c.h.b16 %v265
  %v5899 = vunpack.c.l.b16 %v266
  %v5900 = vunpack.c.h.b16 %v266
  %v5901 = vunpack.c.l.b16 %v267
  %v5902 = vunpack.c.h.b16 %v267
  %v5903 = vunpack.c.l.b16 %v268
  %v5904 = vunpack.c.h.b16 %v268
  %v5905 = vunpack.c.l.b16 %v269
  %v5906 = vunpack.c.h.b16 %v269
  %v5907 = vunpack.c.l.b16 %v270
  %v5908 = vunpack.c.h.b16 %v270
  %v5909 = vunpack.c.l.b16 %v271
  %v5910 = vunpack.c.h.b16 %v271
  %v5911 = vunpack.c.l.b16 %v272
  %v5912 = vunpack.c.h.b16 %v272
  %v5913 = vunpack.c.l.b16 %v273
  %v5914 = vunpack.c.h.b16 %v273
  %v5915 = vunpack.c.l.b16 %v274
  %v5916 = vunpack.c.h.b16 %v274
  %v5917 = vpack.c.b16 %v5797, %v5789
  %v5918 = vpack.c.b16 %v5798, %v5790
  %v5919 = vpack.c.b16 %v5799, %v5791
  %v5920 = vpack.c.b16 %v5800, %v5792
  %v5921 = vpack.c.b16 %v5801, %v5793
  %v5922 = vpack.c.b16 %v5802, %v5794
  %v5923 = vpack.c.b16 %v5803, %v5795
  %v5924 = vpack.c.b16 %v5804, %v5796
  %v5925 = vpack.c.b16 %v5813, %v5805
  %v5926 = vpack.c.b16 %v5814, %v5806
  %v5927 = vpack.c.b16 %v5815, %v5807
  %v5928 = vpack.c.b16 %v5816, %v5808
  %v5929 = vpack.c.b16 %v5817, %v5809
  %v5930 = vpack.c.b16 %v5818, %v5810
  %v5931 = vpack.c.b16 %v5819, %v5811
  %v5932 = vpack.c.b16 %v5820, %v5812
  %v5933 = vpack.c.b16 %v5829, %v5821
  %v5934 = vpack.c.b16 %v5830, %v5822
  %v5935 = vpack.c.b16 %v5831, %v5823
  %v5936 = vpack.c.b16 %v5832, %v5824
  %v5937 = vpack.c.b16 %v5833, %v5825
  %v5938 = vpack.c.b16 %v5834, %v5826
  %v5939 = vpack.c.b16 %v5835, %v5827
  %v5940 = vpack.c.b16 %v5836, %v5828
  %v5941 = vpack.c.b16 %v5845, %v5837
  %v5942 = vpack.c.b16 %v5846, %v5838
  %v5943 = vpack.c.b16 %v5847, %v5839
  %v5944 = vpack.c.b16 %v5848, %v5840
  %v5945 = vpack.c.b16 %v5849, %v5841
  %v5946 = vpack.c.b16 %v5850, %v5842
  %v5947 = vpack.c.b16 %v5851, %v5843
  %v5948 = vpack.c.b16 %v5852, %v5844
  %v5949 = vpack.c.b16 %v5861, %v5853
  %v5950 = vpack.c.b16 %v5862, %v5854
  %v5951 = vpack.c.b16 %v5863, %v5855
  %v5952 = vpack.c.b16 %v5864, %v5856
  %v5953 = vpack.c.b16 %v5865, %v5857
  %v5954 = vpack.c.b16 %v5866, %v5858
  %v5955 = vpack.c.b16 %v5867, %v5859
  %v5956 = vpack.c.b16 %v5868, %v5860
  %v5957 = vpack.c.b16 %v5877, %v5869
  %v5958 = vpack.c.b16 %v5878, %v5870
  %v5959 = vpack.c.b16 %v5879, %v5871
  %v5960 = vpack.c.b16 %v5880, %v5872
  %v5961 = vpack.c.b16 %v5881, %v5873
  %v5962 = vpack.c.b16 %v5882, %v5874
  %v5963 = vpack.c.b16 %v5883, %v5875
  %v5964 = vpack.c.b16 %v5884, %v5876
  %v5965 = vpack.c.b16 %v5893, %v5885
  %v5966 = vpack.c.b16 %v5894, %v5886
  %v5967 = vpack.c.b16 %v5895, %v5887
  %v5968 = vpack.c.b16 %v5896, %v5888
  %v5969 = vpack.c.b16 %v5897, %v5889
  %v5970 = vpack.c.b16 %v5898, %v5890
  %v5971 = vpack.c.b16 %v5899, %v5891
  %v5972 = vpack.c.b16 %v5900, %v5892
  %v5973 = vpack.c.b16 %v5909, %v5901
  %v5974 = vpack.c.b16 %v5910, %v5902
  %v5975 = vpack.c.b16 %v5911, %v5903
  %v5976 = vpack.c.b16 %v5912, %v5904
  %v5977 = vpack.c.b16 %v5913, %v5905
  %v5978 = vpack.c.b16 %v5914, %v5906
  %v5979 = vpack.c.b16 %v5915, %v5907
  %v5980 = vpack.c.b16 %v5916, %v5908
  %6045 = vmatprep.subr.bf16.mxu0 %v5974
  %6046 = vmatpush1.bf16.msra.mxu0 %v5973
  %6047 = vmatprep.subr.bf16.mxu0 %v5966
  %6048 = vmatpush1.bf16.msra.mxu0 %v5965
  %6049 = vmatprep.subr.bf16.mxu0 %v5958
  %6050 = vmatpush1.bf16.msra.mxu0 %v5957
  %6051 = vmatprep.subr.bf16.mxu0 %v5950
  %6052 = vmatpush1.bf16.msra.mxu0 %v5949
  %6053 = vmatprep.subr.bf16.mxu0 %v5942
  %6054 = vmatpush1.bf16.msra.mxu0 %v5941
  %6055 = vmatprep.subr.bf16.mxu0 %v5934
  %6056 = vmatpush1.bf16.msra.mxu0 %v5933
  %6057 = vmatprep.subr.bf16.mxu0 %v5926
  %6058 = vmatpush1.bf16.msra.mxu0 %v5925
  %6059 = vmatprep.subr.bf16.mxu0 %v5918
  %6060 = vmatpush1.bf16.msra.mxu0 %v5917
  %6061 = vmatprep.subr.bf16.mxu0 0
  %6062 = vmatpush2.bf16.msra.mxu0 0
  %6063 = vmatprep.subr.bf16.mxu0 0
  %6064 = vmatpush2.bf16.msra.mxu0 0
  %6065 = vmatprep.subr.bf16.mxu0 0
  %6066 = vmatpush2.bf16.msra.mxu0 0
  %6067 = vmatprep.subr.bf16.mxu0 0
  %6068 = vmatpush2.bf16.msra.mxu0 0
  %6069 = vmatprep.subr.bf16.mxu0 0
  %6070 = vmatpush2.bf16.msra.mxu0 0
  %6071 = vmatprep.subr.bf16.mxu0 0
  %6072 = vmatpush2.bf16.msra.mxu0 0
  %6073 = vmatprep.subr.bf16.mxu0 0
  %6074 = vmatpush2.bf16.msra.mxu0 0
  %6075 = vmatprep.subr.bf16.mxu0 0
  %6076 = vmatpush2.bf16.msra.mxu0 0
  %6077 = vmatprep.mubr.bf16.mxu0 0
  %6078 = vmatmul.mubr.bf16.gmra.mxu0 %v5724
  %v6079 = vpop.f32.mrf.mxu0
  %v6080 = vadd.f32 0.0, %v6079
  %v6081 = vpop.f32.mrf.mxu0
  %v6082 = vadd.f32 0.0, %v6081
  %v6083 = vpop.f32.mrf.mxu0
  %v6084 = vadd.f32 0.0, %v6083
  %v6085 = vpop.f32.mrf.mxu0
  %v6086 = vadd.f32 0.0, %v6085
  %6087 = vdwg.mxu0
  %6088 = vmatprep.subr.bf16.mxu0 %v5976
  %6089 = vmatpush1.bf16.msra.mxu0 %v5975
  %6090 = vmatprep.subr.bf16.mxu0 %v5968
  %6091 = vmatpush1.bf16.msra.mxu0 %v5967
  %6092 = vmatprep.subr.bf16.mxu0 %v5960
  %6093 = vmatpush1.bf16.msra.mxu0 %v5959
  %6094 = vmatprep.subr.bf16.mxu0 %v5952
  %6095 = vmatpush1.bf16.msra.mxu0 %v5951
  %6096 = vmatprep.subr.bf16.mxu0 %v5944
  %6097 = vmatpush1.bf16.msra.mxu0 %v5943
  %6098 = vmatprep.subr.bf16.mxu0 %v5936
  %6099 = vmatpush1.bf16.msra.mxu0 %v5935
  %6100 = vmatprep.subr.bf16.mxu0 %v5928
  %6101 = vmatpush1.bf16.msra.mxu0 %v5927
  %6102 = vmatprep.subr.bf16.mxu0 %v5920
  %6103 = vmatpush1.bf16.msra.mxu0 %v5919
  %6104 = vmatprep.subr.bf16.mxu0 0
  %6105 = vmatpush2.bf16.msra.mxu0 0
  %6106 = vmatprep.subr.bf16.mxu0 0
  %6107 = vmatpush2.bf16.msra.mxu0 0
  %6108 = vmatprep.subr.bf16.mxu0 0
  %6109 = vmatpush2.bf16.msra.mxu0 0
  %6110 = vmatprep.subr.bf16.mxu0 0
  %6111 = vmatpush2.bf16.msra.mxu0 0
  %6112 = vmatprep.subr.bf16.mxu0 0
  %6113 = vmatpush2.bf16.msra.mxu0 0
  %6114 = vmatprep.subr.bf16.mxu0 0
  %6115 = vmatpush2.bf16.msra.mxu0 0
  %6116 = vmatprep.subr.bf16.mxu0 0
  %6117 = vmatpush2.bf16.msra.mxu0 0
  %6118 = vmatprep.subr.bf16.mxu0 0
  %6119 = vmatpush2.bf16.msra.mxu0 0
  %6120 = vmatprep.mubr.bf16.mxu0 0
  %6121 = vmatmul.mubr.bf16.gmra.mxu0 %v5724
  %v6122 = vpop.f32.mrf.mxu0
  %v6123 = vadd.f32 0.0, %v6122
  %v6124 = vpop.f32.mrf.mxu0
  %v6125 = vadd.f32 0.0, %v6124
  %v6126 = vpop.f32.mrf.mxu0
  %v6127 = vadd.f32 0.0, %v6126
  %v6128 = vpop.f32.mrf.mxu0
  %v6129 = vadd.f32 0.0, %v6128
  %6130 = vdwg.mxu0
  %6131 = vmatprep.subr.bf16.mxu0 %v5978
  %6132 = vmatpush1.bf16.msra.mxu0 %v5977
  %6133 = vmatprep.subr.bf16.mxu0 %v5970
  %6134 = vmatpush1.bf16.msra.mxu0 %v5969
  %6135 = vmatprep.subr.bf16.mxu0 %v5962
  %6136 = vmatpush1.bf16.msra.mxu0 %v5961
  %6137 = vmatprep.subr.bf16.mxu0 %v5954
  %6138 = vmatpush1.bf16.msra.mxu0 %v5953
  %6139 = vmatprep.subr.bf16.mxu0 %v5946
  %6140 = vmatpush1.bf16.msra.mxu0 %v5945
  %6141 = vmatprep.subr.bf16.mxu0 %v5938
  %6142 = vmatpush1.bf16.msra.mxu0 %v5937
  %6143 = vmatprep.subr.bf16.mxu0 %v5930
  %6144 = vmatpush1.bf16.msra.mxu0 %v5929
  %6145 = vmatprep.subr.bf16.mxu0 %v5922
  %6146 = vmatpush1.bf16.msra.mxu0 %v5921
  %6147 = vmatprep.subr.bf16.mxu0 0
  %6148 = vmatpush2.bf16.msra.mxu0 0
  %6149 = vmatprep.subr.bf16.mxu0 0
  %6150 = vmatpush2.bf16.msra.mxu0 0
  %6151 = vmatprep.subr.bf16.mxu0 0
  %6152 = vmatpush2.bf16.msra.mxu0 0
  %6153 = vmatprep.subr.bf16.mxu0 0
  %6154 = vmatpush2.bf16.msra.mxu0 0
  %6155 = vmatprep.subr.bf16.mxu0 0
  %6156 = vmatpush2.bf16.msra.mxu0 0
  %6157 = vmatprep.subr.bf16.mxu0 0
  %6158 = vmatpush2.bf16.msra.mxu0 0
  %6159 = vmatprep.subr.bf16.mxu0 0
  %6160 = vmatpush2.bf16.msra.mxu0 0
  %6161 = vmatprep.subr.bf16.mxu0 0
  %6162 = vmatpush2.bf16.msra.mxu0 0
  %6163 = vmatprep.mubr.bf16.mxu0 0
  %6164 = vmatmul.mubr.bf16.gmra.mxu0 %v5724
  %v6165 = vpop.f32.mrf.mxu0
  %v6166 = vadd.f32 0.0, %v6165
  %v6167 = vpop.f32.mrf.mxu0
  %v6168 = vadd.f32 0.0, %v6167
  %v6169 = vpop.f32.mrf.mxu0
  %v6170 = vadd.f32 0.0, %v6169
  %v6171 = vpop.f32.mrf.mxu0
  %v6172 = vadd.f32 0.0, %v6171
  %6173 = vdwg.mxu0
  %6174 = vmatprep.subr.bf16.mxu0 %v5980
  %6175 = vmatpush1.bf16.msra.mxu0 %v5979
  %6176 = vmatprep.subr.bf16.mxu0 %v5972
  %6177 = vmatpush1.bf16.msra.mxu0 %v5971
  %6178 = vmatprep.subr.bf16.mxu0 %v5964
  %6179 = vmatpush1.bf16.msra.mxu0 %v5963
  %6180 = vmatprep.subr.bf16.mxu0 %v5956
  %6181 = vmatpush1.bf16.msra.mxu0 %v5955
  %6182 = vmatprep.subr.bf16.mxu0 %v5948
  %6183 = vmatpush1.bf16.msra.mxu0 %v5947
  %6184 = vmatprep.subr.bf16.mxu0 %v5940
  %6185 = vmatpush1.bf16.msra.mxu0 %v5939
  %6186 = vmatprep.subr.bf16.mxu0 %v5932
  %6187 = vmatpush1.bf16.msra.mxu0 %v5931
  %6188 = vmatprep.subr.bf16.mxu0 %v5924
  %6189 = vmatpush1.bf16.msra.mxu0 %v5923
  %6190 = vmatprep.subr.bf16.mxu0 0
  %6191 = vmatpush2.bf16.msra.mxu0 0
  %6192 = vmatprep.subr.bf16.mxu0 0
  %6193 = vmatpush2.bf16.msra.mxu0 0
  %6194 = vmatprep.subr.bf16.mxu0 0
  %6195 = vmatpush2.bf16.msra.mxu0 0
  %6196 = vmatprep.subr.bf16.mxu0 0
  %6197 = vmatpush2.bf16.msra.mxu0 0
  %6198 = vmatprep.subr.bf16.mxu0 0
  %6199 = vmatpush2.bf16.msra.mxu0 0
  %6200 = vmatprep.subr.bf16.mxu0 0
  %6201 = vmatpush2.bf16.msra.mxu0 0
  %6202 = vmatprep.subr.bf16.mxu0 0
  %6203 = vmatpush2.bf16.msra.mxu0 0
  %6204 = vmatprep.subr.bf16.mxu0 0
  %6205 = vmatpush2.bf16.msra.mxu0 0
  %6206 = vmatprep.mubr.bf16.mxu0 0
  %6207 = vmatmul.mubr.bf16.gmra.mxu0 %v5724
  %v6208 = vpop.f32.mrf.mxu0
  %v6209 = vadd.f32 0.0, %v6208
  %v6210 = vpop.f32.mrf.mxu0
  %v6211 = vadd.f32 0.0, %v6210
  %v6212 = vpop.f32.mrf.mxu0
  %v6213 = vadd.f32 0.0, %v6212
  %v6214 = vpop.f32.mrf.mxu0
  %v6215 = vadd.f32 0.0, %v6214
  %6216 = vdwg.mxu0
  %v6249 = vunpack.c.l.b16 %v275
  %v6250 = vunpack.c.h.b16 %v275
  %v6251 = vunpack.c.l.b16 %v276
  %v6252 = vunpack.c.h.b16 %v276
  %v6253 = vunpack.c.l.b16 %v277
  %v6254 = vunpack.c.h.b16 %v277
  %v6255 = vunpack.c.l.b16 %v278
  %v6256 = vunpack.c.h.b16 %v278
  %v6257 = vunpack.c.l.b16 %v279
  %v6258 = vunpack.c.h.b16 %v279
  %v6259 = vunpack.c.l.b16 %v280
  %v6260 = vunpack.c.h.b16 %v280
  %v6261 = vunpack.c.l.b16 %v281
  %v6262 = vunpack.c.h.b16 %v281
  %v6263 = vunpack.c.l.b16 %v282
  %v6264 = vunpack.c.h.b16 %v282
  %v6265 = vunpack.c.l.b16 %v283
  %v6266 = vunpack.c.h.b16 %v283
  %v6267 = vunpack.c.l.b16 %v284
  %v6268 = vunpack.c.h.b16 %v284
  %v6269 = vunpack.c.l.b16 %v285
  %v6270 = vunpack.c.h.b16 %v285
  %v6271 = vunpack.c.l.b16 %v286
  %v6272 = vunpack.c.h.b16 %v286
  %v6273 = vunpack.c.l.b16 %v287
  %v6274 = vunpack.c.h.b16 %v287
  %v6275 = vunpack.c.l.b16 %v288
  %v6276 = vunpack.c.h.b16 %v288
  %v6277 = vunpack.c.l.b16 %v289
  %v6278 = vunpack.c.h.b16 %v289
  %v6279 = vunpack.c.l.b16 %v290
  %v6280 = vunpack.c.h.b16 %v290
  %v6281 = vunpack.c.l.b16 %v291
  %v6282 = vunpack.c.h.b16 %v291
  %v6283 = vunpack.c.l.b16 %v292
  %v6284 = vunpack.c.h.b16 %v292
  %v6285 = vunpack.c.l.b16 %v293
  %v6286 = vunpack.c.h.b16 %v293
  %v6287 = vunpack.c.l.b16 %v294
  %v6288 = vunpack.c.h.b16 %v294
  %v6289 = vunpack.c.l.b16 %v295
  %v6290 = vunpack.c.h.b16 %v295
  %v6291 = vunpack.c.l.b16 %v296
  %v6292 = vunpack.c.h.b16 %v296
  %v6293 = vunpack.c.l.b16 %v297
  %v6294 = vunpack.c.h.b16 %v297
  %v6295 = vunpack.c.l.b16 %v298
  %v6296 = vunpack.c.h.b16 %v298
  %v6297 = vunpack.c.l.b16 %v299
  %v6298 = vunpack.c.h.b16 %v299
  %v6299 = vunpack.c.l.b16 %v300
  %v6300 = vunpack.c.h.b16 %v300
  %v6301 = vunpack.c.l.b16 %v301
  %v6302 = vunpack.c.h.b16 %v301
  %v6303 = vunpack.c.l.b16 %v302
  %v6304 = vunpack.c.h.b16 %v302
  %v6305 = vunpack.c.l.b16 %v303
  %v6306 = vunpack.c.h.b16 %v303
  %v6307 = vunpack.c.l.b16 %v304
  %v6308 = vunpack.c.h.b16 %v304
  %v6309 = vunpack.c.l.b16 %v305
  %v6310 = vunpack.c.h.b16 %v305
  %v6311 = vunpack.c.l.b16 %v306
  %v6312 = vunpack.c.h.b16 %v306
  %v6313 = vpack.c.b16 %v6253, %v6249
  %v6314 = vpack.c.b16 %v6254, %v6250
  %v6315 = vpack.c.b16 %v6255, %v6251
  %v6316 = vpack.c.b16 %v6256, %v6252
  %v6317 = vpack.c.b16 %v6261, %v6257
  %v6318 = vpack.c.b16 %v6262, %v6258
  %v6319 = vpack.c.b16 %v6263, %v6259
  %v6320 = vpack.c.b16 %v6264, %v6260
  %v6321 = vpack.c.b16 %v6269, %v6265
  %v6322 = vpack.c.b16 %v6270, %v6266
  %v6323 = vpack.c.b16 %v6271, %v6267
  %v6324 = vpack.c.b16 %v6272, %v6268
  %v6325 = vpack.c.b16 %v6277, %v6273
  %v6326 = vpack.c.b16 %v6278, %v6274
  %v6327 = vpack.c.b16 %v6279, %v6275
  %v6328 = vpack.c.b16 %v6280, %v6276
  %v6329 = vpack.c.b16 %v6285, %v6281
  %v6330 = vpack.c.b16 %v6286, %v6282
  %v6331 = vpack.c.b16 %v6287, %v6283
  %v6332 = vpack.c.b16 %v6288, %v6284
  %v6333 = vpack.c.b16 %v6293, %v6289
  %v6334 = vpack.c.b16 %v6294, %v6290
  %v6335 = vpack.c.b16 %v6295, %v6291
  %v6336 = vpack.c.b16 %v6296, %v6292
  %v6337 = vpack.c.b16 %v6301, %v6297
  %v6338 = vpack.c.b16 %v6302, %v6298
  %v6339 = vpack.c.b16 %v6303, %v6299
  %v6340 = vpack.c.b16 %v6304, %v6300
  %v6341 = vpack.c.b16 %v6309, %v6305
  %v6342 = vpack.c.b16 %v6310, %v6306
  %v6343 = vpack.c.b16 %v6311, %v6307
  %v6344 = vpack.c.b16 %v6312, %v6308
  %6377 = vmatprep.subr.bf16.mxu0 %v6342
  %6378 = vmatpush1.bf16.msra.mxu0 %v6341
  %6379 = vmatprep.subr.bf16.mxu0 %v6338
  %6380 = vmatpush1.bf16.msra.mxu0 %v6337
  %6381 = vmatprep.subr.bf16.mxu0 %v6334
  %6382 = vmatpush1.bf16.msra.mxu0 %v6333
  %6383 = vmatprep.subr.bf16.mxu0 %v6330
  %6384 = vmatpush1.bf16.msra.mxu0 %v6329
  %6385 = vmatprep.subr.bf16.mxu0 %v6326
  %6386 = vmatpush1.bf16.msra.mxu0 %v6325
  %6387 = vmatprep.subr.bf16.mxu0 %v6322
  %6388 = vmatpush1.bf16.msra.mxu0 %v6321
  %6389 = vmatprep.subr.bf16.mxu0 %v6318
  %6390 = vmatpush1.bf16.msra.mxu0 %v6317
  %6391 = vmatprep.subr.bf16.mxu0 %v6314
  %6392 = vmatpush1.bf16.msra.mxu0 %v6313
  %6393 = vmatprep.subr.bf16.mxu0 0
  %6394 = vmatpush2.bf16.msra.mxu0 0
  %6395 = vmatprep.subr.bf16.mxu0 0
  %6396 = vmatpush2.bf16.msra.mxu0 0
  %6397 = vmatprep.subr.bf16.mxu0 0
  %6398 = vmatpush2.bf16.msra.mxu0 0
  %6399 = vmatprep.subr.bf16.mxu0 0
  %6400 = vmatpush2.bf16.msra.mxu0 0
  %6401 = vmatprep.subr.bf16.mxu0 0
  %6402 = vmatpush2.bf16.msra.mxu0 0
  %6403 = vmatprep.subr.bf16.mxu0 0
  %6404 = vmatpush2.bf16.msra.mxu0 0
  %6405 = vmatprep.subr.bf16.mxu0 0
  %6406 = vmatpush2.bf16.msra.mxu0 0
  %6407 = vmatprep.subr.bf16.mxu0 0
  %6408 = vmatpush2.bf16.msra.mxu0 0
  %6409 = vmatprep.mubr.bf16.mxu0 0
  %6410 = vmatmul.mubr.bf16.gmra.mxu0 0
  %v6411 = vpop.f32.mrf.mxu0
  %v6412 = vadd.f32 0.0, %v6411
  %v6413 = vpop.f32.mrf.mxu0
  %v6414 = vadd.f32 0.0, %v6413
  %v6415 = vpop.f32.mrf.mxu0
  %v6416 = vadd.f32 0.0, %v6415
  %v6417 = vpop.f32.mrf.mxu0
  %v6418 = vadd.f32 0.0, %v6417
  %6419 = vdwg.mxu0
  %6420 = vmatprep.subr.bf16.mxu0 %v6344
  %6421 = vmatpush1.bf16.msra.mxu0 %v6343
  %6422 = vmatprep.subr.bf16.mxu0 %v6340
  %6423 = vmatpush1.bf16.msra.mxu0 %v6339
  %6424 = vmatprep.subr.bf16.mxu0 %v6336
  %6425 = vmatpush1.bf16.msra.mxu0 %v6335
  %6426 = vmatprep.subr.bf16.mxu0 %v6332
  %6427 = vmatpush1.bf16.msra.mxu0 %v6331
  %6428 = vmatprep.subr.bf16.mxu0 %v6328
  %6429 = vmatpush1.bf16.msra.mxu0 %v6327
  %6430 = vmatprep.subr.bf16.mxu0 %v6324
  %6431 = vmatpush1.bf16.msra.mxu0 %v6323
  %6432 = vmatprep.subr.bf16.mxu0 %v6320
  %6433 = vmatpush1.bf16.msra.mxu0 %v6319
  %6434 = vmatprep.subr.bf16.mxu0 %v6316
  %6435 = vmatpush1.bf16.msra.mxu0 %v6315
  %6436 = vmatprep.subr.bf16.mxu0 0
  %6437 = vmatpush2.bf16.msra.mxu0 0
  %6438 = vmatprep.subr.bf16.mxu0 0
  %6439 = vmatpush2.bf16.msra.mxu0 0
  %6440 = vmatprep.subr.bf16.mxu0 0
  %6441 = vmatpush2.bf16.msra.mxu0 0
  %6442 = vmatprep.subr.bf16.mxu0 0
  %6443 = vmatpush2.bf16.msra.mxu0 0
  %6444 = vmatprep.subr.bf16.mxu0 0
  %6445 = vmatpush2.bf16.msra.mxu0 0
  %6446 = vmatprep.subr.bf16.mxu0 0
  %6447 = vmatpush2.bf16.msra.mxu0 0
  %6448 = vmatprep.subr.bf16.mxu0 0
  %6449 = vmatpush2.bf16.msra.mxu0 0
  %6450 = vmatprep.subr.bf16.mxu0 0
  %6451 = vmatpush2.bf16.msra.mxu0 0
  %6452 = vmatprep.mubr.bf16.mxu0 0
  %6453 = vmatmul.mubr.bf16.gmra.mxu0 0
  %v6454 = vpop.f32.mrf.mxu0
  %v6455 = vadd.f32 0.0, %v6454
  %v6456 = vpop.f32.mrf.mxu0
  %v6457 = vadd.f32 0.0, %v6456
  %v6458 = vpop.f32.mrf.mxu0
  %v6459 = vadd.f32 0.0, %v6458
  %v6460 = vpop.f32.mrf.mxu0
  %v6461 = vadd.f32 0.0, %v6460
  %6462 = vdwg.mxu0
  %v6463 = vadd.f32 %v6166, %v6412
  %v6464 = vadd.f32 %v6168, %v6414
  %v6465 = vadd.f32 %v6209, %v6455
  %v6466 = vadd.f32 %v6211, %v6457
  %v6467 = vadd.f32 %v6170, %v6416
  %v6468 = vadd.f32 %v6172, %v6418
  %v6469 = vadd.f32 %v6213, %v6459
  %v6470 = vadd.f32 %v6215, %v6461
  %v6471 = vadd.f32 %v6463, %v334
  %v6472 = vadd.f32 %v6464, %v338
  %v6473 = vadd.f32 %v6465, %v342
  %v6474 = vadd.f32 %v6466, %v346
  %v6475 = vadd.f32 %v6467, %v334
  %v6476 = vadd.f32 %v6468, %v338
  %v6477 = vadd.f32 %v6469, %v342
  %v6478 = vadd.f32 %v6470, %v346
  %v6479 = vmul.f32 %v6471, 0.5
  %v6480 = vmul.f32 %v6475, 0.5
  %v6481 = vtanh.pop %v6479
  %v6482 = vtanh.pop %v6480
  %v6483 = vadd.f32 %v6481, 1.0
  %v6484 = vadd.f32 %v6482, 1.0
  %v6485 = vmul.f32 %v6483, 0.5
  %v6486 = vmul.f32 %v6484, 0.5
  %v6487 = vmul.f32 %v6472, 0.5
  %v6488 = vmul.f32 %v6476, 0.5
  %v6489 = vtanh.pop %v6487
  %v6490 = vtanh.pop %v6488
  %v6491 = vadd.f32 %v6489, 1.0
  %v6492 = vadd.f32 %v6490, 1.0
  %v6493 = vmul.f32 %v6491, 0.5
  %v6494 = vmul.f32 %v6492, 0.5
  %v6495 = vtanh.pop %v6473
  %v6496 = vtanh.pop %v6477
  %v6497 = vmul.f32 %v6474, 0.5
  %v6498 = vmul.f32 %v6478, 0.5
  %v6499 = vtanh.pop %v6497
  %v6500 = vtanh.pop %v6498
  %v6501 = vadd.f32 %v6499, 1.0
  %v6502 = vadd.f32 %v6500, 1.0
  %v6503 = vmul.f32 %v6501, 0.5
  %v6504 = vmul.f32 %v6502, 0.5
  %v6505 = vmul.f32 %v6493, 0.0
  %v6506 = vmul.f32 %v6494, 0.0
  %v6507 = vmul.f32 %v6485, %v6495
  %v6508 = vmul.f32 %v6486, %v6496
  %v6509 = vadd.f32 %v6505, %v6507
  %v6510 = vadd.f32 %v6506, %v6508
  %v6511 = vtanh.pop %v6509
  %v6512 = vtanh.pop %v6510
  %v6513 = vmul.f32 %v6503, %v6511
  %v6514 = vmul.f32 %v6504, %v6512
  %v6515 = vpack.c.bf16 %v6514, %v6513
  %v6517 = vunpack.c.l.b16 %v6515
  %v6518 = vunpack.c.h.b16 %v6515
  %v6519 = vpack.c.b16 %v6517, %v6517
  %v6520 = vpack.c.b16 %v6518, %v6518
  %6523 = vst [vmem:[#allocation5] sm:$0xf] %v6519
  %6524 = vst [vmem:[#allocation5 + $0x4] sm:$0xf] %v6520
  %s6525 = scalar_lea.vmem [#allocation3], 32
  %v6526 = vld [vmem:[%s6525] sm:$0xff]
  %v6527 = vld [vmem:[%s6525 + $0x8] sm:$0xff]
  %v6528 = vld [vmem:[%s6525 + $0x10] sm:$0xff]
  %v6529 = vld [vmem:[%s6525 + $0x18] sm:$0xff]
  %v6530 = vunpack.c.l.bf16 %v6526
  %v6531 = vunpack.c.h.bf16 %v6526
  %v6532 = vunpack.c.l.bf16 %v6527
  %v6533 = vunpack.c.h.bf16 %v6527
  %v6534 = vunpack.c.l.bf16 %v6528
  %v6535 = vunpack.c.h.bf16 %v6528
  %v6536 = vunpack.c.l.bf16 %v6529
  %v6537 = vunpack.c.h.bf16 %v6529
  %v6538 = vadd.f32 %v6530, %v6080
  %v6539 = vadd.f32 %v6531, %v6082
  %v6540 = vadd.f32 %v6532, %v6123
  %v6541 = vadd.f32 %v6533, %v6125
  %v6542 = vadd.f32 %v6534, %v6084
  %v6543 = vadd.f32 %v6535, %v6086
  %v6544 = vadd.f32 %v6536, %v6127
  %v6545 = vadd.f32 %v6537, %v6129
  %v6546 = vmul.f32 %v6538, 0.5
  %v6547 = vmul.f32 %v6542, 0.5
  %v6548 = vtanh.pop %v6546
  %v6549 = vtanh.pop %v6547
  %v6550 = vadd.f32 %v6548, 1.0
  %v6551 = vadd.f32 %v6549, 1.0
  %v6552 = vmul.f32 %v6550, 0.5
  %v6553 = vmul.f32 %v6551, 0.5
  %v6554 = vmul.f32 %v6539, 0.5
  %v6555 = vmul.f32 %v6543, 0.5
  %v6556 = vtanh.pop %v6554
  %v6557 = vtanh.pop %v6555
  %v6558 = vadd.f32 %v6556, 1.0
  %v6559 = vadd.f32 %v6557, 1.0
  %v6560 = vmul.f32 %v6558, 0.5
  %v6561 = vmul.f32 %v6559, 0.5
  %v6562 = vtanh.pop %v6540
  %v6563 = vtanh.pop %v6544
  %v6564 = vmul.f32 %v6541, 0.5
  %v6565 = vmul.f32 %v6545, 0.5
  %v6566 = vtanh.pop %v6564
  %v6567 = vtanh.pop %v6565
  %v6568 = vadd.f32 %v6566, 1.0
  %v6569 = vadd.f32 %v6567, 1.0
  %v6570 = vmul.f32 %v6568, 0.5
  %v6571 = vmul.f32 %v6569, 0.5
  %v6572 = vmul.f32 %v6560, %v5718
  %v6573 = vmul.f32 %v6561, %v5719
  %v6574 = vmul.f32 %v6552, %v6562
  %v6575 = vmul.f32 %v6553, %v6563
  %v6576 = vadd.f32 %v6572, %v6574
  %v6577 = vadd.f32 %v6573, %v6575
  %v6578 = vtanh.pop %v6576
  %v6579 = vtanh.pop %v6577
  %v6580 = vmul.f32 %v6570, %v6578
  %v6581 = vmul.f32 %v6571, %v6579
  %v6582 = vpack.c.bf16 %v6581, %v6580
  %6583 = vmatprep.subr.bf16.mxu0 %v5974
  %6584 = vmatpush1.bf16.msra.mxu0 %v5973
  %6585 = vmatprep.subr.bf16.mxu0 %v5966
  %6586 = vmatpush1.bf16.msra.mxu0 %v5965
  %6587 = vmatprep.subr.bf16.mxu0 %v5958
  %6588 = vmatpush1.bf16.msra.mxu0 %v5957
  %6589 = vmatprep.subr.bf16.mxu0 %v5950
  %6590 = vmatpush1.bf16.msra.mxu0 %v5949
  %6591 = vmatprep.subr.bf16.mxu0 %v5942
  %6592 = vmatpush1.bf16.msra.mxu0 %v5941
  %6593 = vmatprep.subr.bf16.mxu0 %v5934
  %6594 = vmatpush1.bf16.msra.mxu0 %v5933
  %6595 = vmatprep.subr.bf16.mxu0 %v5926
  %6596 = vmatpush1.bf16.msra.mxu0 %v5925
  %6597 = vmatprep.subr.bf16.mxu0 %v5918
  %6598 = vmatpush1.bf16.msra.mxu0 %v5917
  %6599 = vmatprep.subr.bf16.mxu0 0
  %6600 = vmatpush2.bf16.msra.mxu0 0
  %6601 = vmatprep.subr.bf16.mxu0 0
  %6602 = vmatpush2.bf16.msra.mxu0 0
  %6603 = vmatprep.subr.bf16.mxu0 0
  %6604 = vmatpush2.bf16.msra.mxu0 0
  %6605 = vmatprep.subr.bf16.mxu0 0
  %6606 = vmatpush2.bf16.msra.mxu0 0
  %6607 = vmatprep.subr.bf16.mxu0 0
  %6608 = vmatpush2.bf16.msra.mxu0 0
  %6609 = vmatprep.subr.bf16.mxu0 0
  %6610 = vmatpush2.bf16.msra.mxu0 0
  %6611 = vmatprep.subr.bf16.mxu0 0
  %6612 = vmatpush2.bf16.msra.mxu0 0
  %6613 = vmatprep.subr.bf16.mxu0 0
  %6614 = vmatpush2.bf16.msra.mxu0 0
  %6615 = vmatprep.mubr.bf16.mxu0 0
  %6616 = vmatmul.mubr.bf16.gmra.mxu0 %v6582
  %v6617 = vpop.f32.mrf.mxu0
  %v6618 = vadd.f32 0.0, %v6617
  %v6619 = vpop.f32.mrf.mxu0
  %v6620 = vadd.f32 0.0, %v6619
  %v6621 = vpop.f32.mrf.mxu0
  %v6622 = vadd.f32 0.0, %v6621
  %v6623 = vpop.f32.mrf.mxu0
  %v6624 = vadd.f32 0.0, %v6623
  %6625 = vdwg.mxu0
  %6626 = vmatprep.subr.bf16.mxu0 %v5976
  %6627 = vmatpush1.bf16.msra.mxu0 %v5975
  %6628 = vmatprep.subr.bf16.mxu0 %v5968
  %6629 = vmatpush1.bf16.msra.mxu0 %v5967
  %6630 = vmatprep.subr.bf16.mxu0 %v5960
  %6631 = vmatpush1.bf16.msra.mxu0 %v5959
  %6632 = vmatprep.subr.bf16.mxu0 %v5952
  %6633 = vmatpush1.bf16.msra.mxu0 %v5951
  %6634 = vmatprep.subr.bf16.mxu0 %v5944
  %6635 = vmatpush1.bf16.msra.mxu0 %v5943
  %6636 = vmatprep.subr.bf16.mxu0 %v5936
  %6637 = vmatpush1.bf16.msra.mxu0 %v5935
  %6638 = vmatprep.subr.bf16.mxu0 %v5928
  %6639 = vmatpush1.bf16.msra.mxu0 %v5927
  %6640 = vmatprep.subr.bf16.mxu0 %v5920
  %6641 = vmatpush1.bf16.msra.mxu0 %v5919
  %6642 = vmatprep.subr.bf16.mxu0 0
  %6643 = vmatpush2.bf16.msra.mxu0 0
  %6644 = vmatprep.subr.bf16.mxu0 0
  %6645 = vmatpush2.bf16.msra.mxu0 0
  %6646 = vmatprep.subr.bf16.mxu0 0
  %6647 = vmatpush2.bf16.msra.mxu0 0
  %6648 = vmatprep.subr.bf16.mxu0 0
  %6649 = vmatpush2.bf16.msra.mxu0 0
  %6650 = vmatprep.subr.bf16.mxu0 0
  %6651 = vmatpush2.bf16.msra.mxu0 0
  %6652 = vmatprep.subr.bf16.mxu0 0
  %6653 = vmatpush2.bf16.msra.mxu0 0
  %6654 = vmatprep.subr.bf16.mxu0 0
  %6655 = vmatpush2.bf16.msra.mxu0 0
  %6656 = vmatprep.subr.bf16.mxu0 0
  %6657 = vmatpush2.bf16.msra.mxu0 0
  %6658 = vmatprep.mubr.bf16.mxu0 0
  %6659 = vmatmul.mubr.bf16.gmra.mxu0 %v6582
  %v6660 = vpop.f32.mrf.mxu0
  %v6661 = vadd.f32 0.0, %v6660
  %v6662 = vpop.f32.mrf.mxu0
  %v6663 = vadd.f32 0.0, %v6662
  %v6664 = vpop.f32.mrf.mxu0
  %v6665 = vadd.f32 0.0, %v6664
  %v6666 = vpop.f32.mrf.mxu0
  %v6667 = vadd.f32 0.0, %v6666
  %6668 = vdwg.mxu0
  %6669 = vmatprep.subr.bf16.mxu0 %v5978
  %6670 = vmatpush1.bf16.msra.mxu0 %v5977
  %6671 = vmatprep.subr.bf16.mxu0 %v5970
  %6672 = vmatpush1.bf16.msra.mxu0 %v5969
  %6673 = vmatprep.subr.bf16.mxu0 %v5962
  %6674 = vmatpush1.bf16.msra.mxu0 %v5961
  %6675 = vmatprep.subr.bf16.mxu0 %v5954
  %6676 = vmatpush1.bf16.msra.mxu0 %v5953
  %6677 = vmatprep.subr.bf16.mxu0 %v5946
  %6678 = vmatpush1.bf16.msra.mxu0 %v5945
  %6679 = vmatprep.subr.bf16.mxu0 %v5938
  %6680 = vmatpush1.bf16.msra.mxu0 %v5937
  %6681 = vmatprep.subr.bf16.mxu0 %v5930
  %6682 = vmatpush1.bf16.msra.mxu0 %v5929
  %6683 = vmatprep.subr.bf16.mxu0 %v5922
  %6684 = vmatpush1.bf16.msra.mxu0 %v5921
  %6685 = vmatprep.subr.bf16.mxu0 0
  %6686 = vmatpush2.bf16.msra.mxu0 0
  %6687 = vmatprep.subr.bf16.mxu0 0
  %6688 = vmatpush2.bf16.msra.mxu0 0
  %6689 = vmatprep.subr.bf16.mxu0 0
  %6690 = vmatpush2.bf16.msra.mxu0 0
  %6691 = vmatprep.subr.bf16.mxu0 0
  %6692 = vmatpush2.bf16.msra.mxu0 0
  %6693 = vmatprep.subr.bf16.mxu0 0
  %6694 = vmatpush2.bf16.msra.mxu0 0
  %6695 = vmatprep.subr.bf16.mxu0 0
  %6696 = vmatpush2.bf16.msra.mxu0 0
  %6697 = vmatprep.subr.bf16.mxu0 0
  %6698 = vmatpush2.bf16.msra.mxu0 0
  %6699 = vmatprep.subr.bf16.mxu0 0
  %6700 = vmatpush2.bf16.msra.mxu0 0
  %6701 = vmatprep.mubr.bf16.mxu0 0
  %6702 = vmatmul.mubr.bf16.gmra.mxu0 %v6582
  %v6703 = vpop.f32.mrf.mxu0
  %v6704 = vadd.f32 0.0, %v6703
  %v6705 = vpop.f32.mrf.mxu0
  %v6706 = vadd.f32 0.0, %v6705
  %v6707 = vpop.f32.mrf.mxu0
  %v6708 = vadd.f32 0.0, %v6707
  %v6709 = vpop.f32.mrf.mxu0
  %v6710 = vadd.f32 0.0, %v6709
  %6711 = vdwg.mxu0
  %6712 = vmatprep.subr.bf16.mxu0 %v5980
  %6713 = vmatpush1.bf16.msra.mxu0 %v5979
  %6714 = vmatprep.subr.bf16.mxu0 %v5972
  %6715 = vmatpush1.bf16.msra.mxu0 %v5971
  %6716 = vmatprep.subr.bf16.mxu0 %v5964
  %6717 = vmatpush1.bf16.msra.mxu0 %v5963
  %6718 = vmatprep.subr.bf16.mxu0 %v5956
  %6719 = vmatpush1.bf16.msra.mxu0 %v5955
  %6720 = vmatprep.subr.bf16.mxu0 %v5948
  %6721 = vmatpush1.bf16.msra.mxu0 %v5947
  %6722 = vmatprep.subr.bf16.mxu0 %v5940
  %6723 = vmatpush1.bf16.msra.mxu0 %v5939
  %6724 = vmatprep.subr.bf16.mxu0 %v5932
  %6725 = vmatpush1.bf16.msra.mxu0 %v5931
  %6726 = vmatprep.subr.bf16.mxu0 %v5924
  %6727 = vmatpush1.bf16.msra.mxu0 %v5923
  %6728 = vmatprep.subr.bf16.mxu0 0
  %6729 = vmatpush2.bf16.msra.mxu0 0
  %6730 = vmatprep.subr.bf16.mxu0 0
  %6731 = vmatpush2.bf16.msra.mxu0 0
  %6732 = vmatprep.subr.bf16.mxu0 0
  %6733 = vmatpush2.bf16.msra.mxu0 0
  %6734 = vmatprep.subr.bf16.mxu0 0
  %6735 = vmatpush2.bf16.msra.mxu0 0
  %6736 = vmatprep.subr.bf16.mxu0 0
  %6737 = vmatpush2.bf16.msra.mxu0 0
  %6738 = vmatprep.subr.bf16.mxu0 0
  %6739 = vmatpush2.bf16.msra.mxu0 0
  %6740 = vmatprep.subr.bf16.mxu0 0
  %6741 = vmatpush2.bf16.msra.mxu0 0
  %6742 = vmatprep.subr.bf16.mxu0 0
  %6743 = vmatpush2.bf16.msra.mxu0 0
  %6744 = vmatprep.mubr.bf16.mxu0 0
  %6745 = vmatmul.mubr.bf16.gmra.mxu0 %v6582
  %v6746 = vpop.f32.mrf.mxu0
  %v6747 = vadd.f32 0.0, %v6746
  %v6748 = vpop.f32.mrf.mxu0
  %v6749 = vadd.f32 0.0, %v6748
  %v6750 = vpop.f32.mrf.mxu0
  %v6751 = vadd.f32 0.0, %v6750
  %v6752 = vpop.f32.mrf.mxu0
  %v6753 = vadd.f32 0.0, %v6752
  %6754 = vdwg.mxu0
  %6755 = vmatprep.subr.bf16.mxu0 %v6342
  %6756 = vmatpush1.bf16.msra.mxu0 %v6341
  %6757 = vmatprep.subr.bf16.mxu0 %v6338
  %6758 = vmatpush1.bf16.msra.mxu0 %v6337
  %6759 = vmatprep.subr.bf16.mxu0 %v6334
  %6760 = vmatpush1.bf16.msra.mxu0 %v6333
  %6761 = vmatprep.subr.bf16.mxu0 %v6330
  %6762 = vmatpush1.bf16.msra.mxu0 %v6329
  %6763 = vmatprep.subr.bf16.mxu0 %v6326
  %6764 = vmatpush1.bf16.msra.mxu0 %v6325
  %6765 = vmatprep.subr.bf16.mxu0 %v6322
  %6766 = vmatpush1.bf16.msra.mxu0 %v6321
  %6767 = vmatprep.subr.bf16.mxu0 %v6318
  %6768 = vmatpush1.bf16.msra.mxu0 %v6317
  %6769 = vmatprep.subr.bf16.mxu0 %v6314
  %6770 = vmatpush1.bf16.msra.mxu0 %v6313
  %6771 = vmatprep.subr.bf16.mxu0 0
  %6772 = vmatpush2.bf16.msra.mxu0 0
  %6773 = vmatprep.subr.bf16.mxu0 0
  %6774 = vmatpush2.bf16.msra.mxu0 0
  %6775 = vmatprep.subr.bf16.mxu0 0
  %6776 = vmatpush2.bf16.msra.mxu0 0
  %6777 = vmatprep.subr.bf16.mxu0 0
  %6778 = vmatpush2.bf16.msra.mxu0 0
  %6779 = vmatprep.subr.bf16.mxu0 0
  %6780 = vmatpush2.bf16.msra.mxu0 0
  %6781 = vmatprep.subr.bf16.mxu0 0
  %6782 = vmatpush2.bf16.msra.mxu0 0
  %6783 = vmatprep.subr.bf16.mxu0 0
  %6784 = vmatpush2.bf16.msra.mxu0 0
  %6785 = vmatprep.subr.bf16.mxu0 0
  %6786 = vmatpush2.bf16.msra.mxu0 0
  %6787 = vmatprep.mubr.bf16.mxu0 0
  %6788 = vmatmul.mubr.bf16.gmra.mxu0 %v6515
  %v6789 = vpop.f32.mrf.mxu0
  %v6790 = vadd.f32 0.0, %v6789
  %v6791 = vpop.f32.mrf.mxu0
  %v6792 = vadd.f32 0.0, %v6791
  %v6793 = vpop.f32.mrf.mxu0
  %v6794 = vadd.f32 0.0, %v6793
  %v6795 = vpop.f32.mrf.mxu0
  %v6796 = vadd.f32 0.0, %v6795
  %6797 = vdwg.mxu0
  %6798 = vmatprep.subr.bf16.mxu0 %v6344
  %6799 = vmatpush1.bf16.msra.mxu0 %v6343
  %6800 = vmatprep.subr.bf16.mxu0 %v6340
  %6801 = vmatpush1.bf16.msra.mxu0 %v6339
  %6802 = vmatprep.subr.bf16.mxu0 %v6336
  %6803 = vmatpush1.bf16.msra.mxu0 %v6335
  %6804 = vmatprep.subr.bf16.mxu0 %v6332
  %6805 = vmatpush1.bf16.msra.mxu0 %v6331
  %6806 = vmatprep.subr.bf16.mxu0 %v6328
  %6807 = vmatpush1.bf16.msra.mxu0 %v6327
  %6808 = vmatprep.subr.bf16.mxu0 %v6324
  %6809 = vmatpush1.bf16.msra.mxu0 %v6323
  %6810 = vmatprep.subr.bf16.mxu0 %v6320
  %6811 = vmatpush1.bf16.msra.mxu0 %v6319
  %6812 = vmatprep.subr.bf16.mxu0 %v6316
  %6813 = vmatpush1.bf16.msra.mxu0 %v6315
  %6814 = vmatprep.subr.bf16.mxu0 0
  %6815 = vmatpush2.bf16.msra.mxu0 0
  %6816 = vmatprep.subr.bf16.mxu0 0
  %6817 = vmatpush2.bf16.msra.mxu0 0
  %6818 = vmatprep.subr.bf16.mxu0 0
  %6819 = vmatpush2.bf16.msra.mxu0 0
  %6820 = vmatprep.subr.bf16.mxu0 0
  %6821 = vmatpush2.bf16.msra.mxu0 0
  %6822 = vmatprep.subr.bf16.mxu0 0
  %6823 = vmatpush2.bf16.msra.mxu0 0
  %6824 = vmatprep.subr.bf16.mxu0 0
  %6825 = vmatpush2.bf16.msra.mxu0 0
  %6826 = vmatprep.subr.bf16.mxu0 0
  %6827 = vmatpush2.bf16.msra.mxu0 0
  %6828 = vmatprep.subr.bf16.mxu0 0
  %6829 = vmatpush2.bf16.msra.mxu0 0
  %6830 = vmatprep.mubr.bf16.mxu0 0
  %6831 = vmatmul.mubr.bf16.gmra.mxu0 %v6515
  %v6832 = vpop.f32.mrf.mxu0
  %v6833 = vadd.f32 0.0, %v6832
  %v6834 = vpop.f32.mrf.mxu0
  %v6835 = vadd.f32 0.0, %v6834
  %v6836 = vpop.f32.mrf.mxu0
  %v6837 = vadd.f32 0.0, %v6836
  %v6838 = vpop.f32.mrf.mxu0
  %v6839 = vadd.f32 0.0, %v6838
  %6840 = vdwg.mxu0
  %v6841 = vadd.f32 %v6704, %v6790
  %v6842 = vadd.f32 %v6706, %v6792
  %v6843 = vadd.f32 %v6747, %v6833
  %v6844 = vadd.f32 %v6749, %v6835
  %v6845 = vadd.f32 %v6708, %v6794
  %v6846 = vadd.f32 %v6710, %v6796
  %v6847 = vadd.f32 %v6751, %v6837
  %v6848 = vadd.f32 %v6753, %v6839
  %v6849 = vadd.f32 %v6841, %v334
  %v6850 = vadd.f32 %v6842, %v338
  %v6851 = vadd.f32 %v6843, %v342
  %v6852 = vadd.f32 %v6844, %v346
  %v6853 = vadd.f32 %v6845, %v334
  %v6854 = vadd.f32 %v6846, %v338
  %v6855 = vadd.f32 %v6847, %v342
  %v6856 = vadd.f32 %v6848, %v346
  %v6857 = vmul.f32 %v6849, 0.5
  %v6858 = vmul.f32 %v6853, 0.5
  %v6859 = vtanh.pop %v6857
  %v6860 = vtanh.pop %v6858
  %v6861 = vadd.f32 %v6859, 1.0
  %v6862 = vadd.f32 %v6860, 1.0
  %v6863 = vmul.f32 %v6861, 0.5
  %v6864 = vmul.f32 %v6862, 0.5
  %v6865 = vmul.f32 %v6850, 0.5
  %v6866 = vmul.f32 %v6854, 0.5
  %v6867 = vtanh.pop %v6865
  %v6868 = vtanh.pop %v6866
  %v6869 = vadd.f32 %v6867, 1.0
  %v6870 = vadd.f32 %v6868, 1.0
  %v6871 = vmul.f32 %v6869, 0.5
  %v6872 = vmul.f32 %v6870, 0.5
  %v6873 = vtanh.pop %v6851
  %v6874 = vtanh.pop %v6855
  %v6875 = vmul.f32 %v6852, 0.5
  %v6876 = vmul.f32 %v6856, 0.5
  %v6877 = vtanh.pop %v6875
  %v6878 = vtanh.pop %v6876
  %v6879 = vadd.f32 %v6877, 1.0
  %v6880 = vadd.f32 %v6878, 1.0
  %v6881 = vmul.f32 %v6879, 0.5
  %v6882 = vmul.f32 %v6880, 0.5
  %v6883 = vmul.f32 %v6871, %v6509
  %v6884 = vmul.f32 %v6872, %v6510
  %v6885 = vmul.f32 %v6863, %v6873
  %v6886 = vmul.f32 %v6864, %v6874
  %v6887 = vadd.f32 %v6883, %v6885
  %v6888 = vadd.f32 %v6884, %v6886
  %v6889 = vtanh.pop %v6887
  %v6890 = vtanh.pop %v6888
  %v6891 = vmul.f32 %v6881, %v6889
  %v6892 = vmul.f32 %v6882, %v6890
  %v6893 = vpack.c.bf16 %v6892, %v6891
  %v6895 = vunpack.c.l.b16 %v6893
  %v6896 = vunpack.c.h.b16 %v6893
  %v6897 = vpack.c.b16 %v6895, %v6895
  %v6898 = vpack.c.b16 %v6896, %v6896
  %s6901 = scalar_lea.vmem [#allocation5], 8
  %6902 = vst [vmem:[%s6901] sm:$0xf] %v6897
  %6903 = vst [vmem:[%s6901 + $0x4] sm:$0xf] %v6898
  %s6904 = scalar_lea.vmem [#allocation3], 64
  %v6905 = vld [vmem:[%s6904] sm:$0xff]
  %v6906 = vld [vmem:[%s6904 + $0x8] sm:$0xff]
  %v6907 = vld [vmem:[%s6904 + $0x10] sm:$0xff]
  %v6908 = vld [vmem:[%s6904 + $0x18] sm:$0xff]
  %v6909 = vunpack.c.l.bf16 %v6905
  %v6910 = vunpack.c.h.bf16 %v6905
  %v6911 = vunpack.c.l.bf16 %v6906
  %v6912 = vunpack.c.h.bf16 %v6906
  %v6913 = vunpack.c.l.bf16 %v6907
  %v6914 = vunpack.c.h.bf16 %v6907
  %v6915 = vunpack.c.l.bf16 %v6908
  %v6916 = vunpack.c.h.bf16 %v6908
  %v6917 = vadd.f32 %v6909, %v6618
  %v6918 = vadd.f32 %v6910, %v6620
  %v6919 = vadd.f32 %v6911, %v6661
  %v6920 = vadd.f32 %v6912, %v6663
  %v6921 = vadd.f32 %v6913, %v6622
  %v6922 = vadd.f32 %v6914, %v6624
  %v6923 = vadd.f32 %v6915, %v6665
  %v6924 = vadd.f32 %v6916, %v6667
  %v6925 = vmul.f32 %v6917, 0.5
  %v6926 = vmul.f32 %v6921, 0.5
  %v6927 = vtanh.pop %v6925
  %v6928 = vtanh.pop %v6926
  %v6929 = vadd.f32 %v6927, 1.0
  %v6930 = vadd.f32 %v6928, 1.0
  %v6931 = vmul.f32 %v6929, 0.5
  %v6932 = vmul.f32 %v6930, 0.5
  %v6933 = vmul.f32 %v6918, 0.5
  %v6934 = vmul.f32 %v6922, 0.5
  %v6935 = vtanh.pop %v6933
  %v6936 = vtanh.pop %v6934
  %v6937 = vadd.f32 %v6935, 1.0
  %v6938 = vadd.f32 %v6936, 1.0
  %v6939 = vmul.f32 %v6937, 0.5
  %v6940 = vmul.f32 %v6938, 0.5
  %v6941 = vtanh.pop %v6919
  %v6942 = vtanh.pop %v6923
  %v6943 = vmul.f32 %v6920, 0.5
  %v6944 = vmul.f32 %v6924, 0.5
  %v6945 = vtanh.pop %v6943
  %v6946 = vtanh.pop %v6944
  %v6947 = vadd.f32 %v6945, 1.0
  %v6948 = vadd.f32 %v6946, 1.0
  %v6949 = vmul.f32 %v6947, 0.5
  %v6950 = vmul.f32 %v6948, 0.5
  %v6951 = vmul.f32 %v6939, %v6576
  %v6952 = vmul.f32 %v6940, %v6577
  %v6953 = vmul.f32 %v6931, %v6941
  %v6954 = vmul.f32 %v6932, %v6942
  %v6955 = vadd.f32 %v6951, %v6953
  %v6956 = vadd.f32 %v6952, %v6954
  %v6957 = vtanh.pop %v6955
  %v6958 = vtanh.pop %v6956
  %v6959 = vmul.f32 %v6949, %v6957
  %v6960 = vmul.f32 %v6950, %v6958
  %v6961 = vpack.c.bf16 %v6960, %v6959
  %6962 = vmatprep.subr.bf16.mxu0 %v5974
  %6963 = vmatpush1.bf16.msra.mxu0 %v5973
  %6964 = vmatprep.subr.bf16.mxu0 %v5966
  %6965 = vmatpush1.bf16.msra.mxu0 %v5965
  %6966 = vmatprep.subr.bf16.mxu0 %v5958
  %6967 = vmatpush1.bf16.msra.mxu0 %v5957
  %6968 = vmatprep.subr.bf16.mxu0 %v5950
  %6969 = vmatpush1.bf16.msra.mxu0 %v5949
  %6970 = vmatprep.subr.bf16.mxu0 %v5942
  %6971 = vmatpush1.bf16.msra.mxu0 %v5941
  %6972 = vmatprep.subr.bf16.mxu0 %v5934
  %6973 = vmatpush1.bf16.msra.mxu0 %v5933
  %6974 = vmatprep.subr.bf16.mxu0 %v5926
  %6975 = vmatpush1.bf16.msra.mxu0 %v5925
  %6976 = vmatprep.subr.bf16.mxu0 %v5918
  %6977 = vmatpush1.bf16.msra.mxu0 %v5917
  %6978 = vmatprep.subr.bf16.mxu0 0
  %6979 = vmatpush2.bf16.msra.mxu0 0
  %6980 = vmatprep.subr.bf16.mxu0 0
  %6981 = vmatpush2.bf16.msra.mxu0 0
  %6982 = vmatprep.subr.bf16.mxu0 0
  %6983 = vmatpush2.bf16.msra.mxu0 0
  %6984 = vmatprep.subr.bf16.mxu0 0
  %6985 = vmatpush2.bf16.msra.mxu0 0
  %6986 = vmatprep.subr.bf16.mxu0 0
  %6987 = vmatpush2.bf16.msra.mxu0 0
  %6988 = vmatprep.subr.bf16.mxu0 0
  %6989 = vmatpush2.bf16.msra.mxu0 0
  %6990 = vmatprep.subr.bf16.mxu0 0
  %6991 = vmatpush2.bf16.msra.mxu0 0
  %6992 = vmatprep.subr.bf16.mxu0 0
  %6993 = vmatpush2.bf16.msra.mxu0 0
  %6994 = vmatprep.mubr.bf16.mxu0 0
  %6995 = vmatmul.mubr.bf16.gmra.mxu0 %v6961
  %v6996 = vpop.f32.mrf.mxu0
  %v6997 = vadd.f32 0.0, %v6996
  %v6998 = vpop.f32.mrf.mxu0
  %v6999 = vadd.f32 0.0, %v6998
  %v7000 = vpop.f32.mrf.mxu0
  %v7001 = vadd.f32 0.0, %v7000
  %v7002 = vpop.f32.mrf.mxu0
  %v7003 = vadd.f32 0.0, %v7002
  %7004 = vdwg.mxu0
  %7005 = vmatprep.subr.bf16.mxu0 %v5976
  %7006 = vmatpush1.bf16.msra.mxu0 %v5975
  %7007 = vmatprep.subr.bf16.mxu0 %v5968
  %7008 = vmatpush1.bf16.msra.mxu0 %v5967
  %7009 = vmatprep.subr.bf16.mxu0 %v5960
  %7010 = vmatpush1.bf16.msra.mxu0 %v5959
  %7011 = vmatprep.subr.bf16.mxu0 %v5952
  %7012 = vmatpush1.bf16.msra.mxu0 %v5951
  %7013 = vmatprep.subr.bf16.mxu0 %v5944
  %7014 = vmatpush1.bf16.msra.mxu0 %v5943
  %7015 = vmatprep.subr.bf16.mxu0 %v5936
  %7016 = vmatpush1.bf16.msra.mxu0 %v5935
  %7017 = vmatprep.subr.bf16.mxu0 %v5928
  %7018 = vmatpush1.bf16.msra.mxu0 %v5927
  %7019 = vmatprep.subr.bf16.mxu0 %v5920
  %7020 = vmatpush1.bf16.msra.mxu0 %v5919
  %7021 = vmatprep.subr.bf16.mxu0 0
  %7022 = vmatpush2.bf16.msra.mxu0 0
  %7023 = vmatprep.subr.bf16.mxu0 0
  %7024 = vmatpush2.bf16.msra.mxu0 0
  %7025 = vmatprep.subr.bf16.mxu0 0
  %7026 = vmatpush2.bf16.msra.mxu0 0
  %7027 = vmatprep.subr.bf16.mxu0 0
  %7028 = vmatpush2.bf16.msra.mxu0 0
  %7029 = vmatprep.subr.bf16.mxu0 0
  %7030 = vmatpush2.bf16.msra.mxu0 0
  %7031 = vmatprep.subr.bf16.mxu0 0
  %7032 = vmatpush2.bf16.msra.mxu0 0
  %7033 = vmatprep.subr.bf16.mxu0 0
  %7034 = vmatpush2.bf16.msra.mxu0 0
  %7035 = vmatprep.subr.bf16.mxu0 0
  %7036 = vmatpush2.bf16.msra.mxu0 0
  %7037 = vmatprep.mubr.bf16.mxu0 0
  %7038 = vmatmul.mubr.bf16.gmra.mxu0 %v6961
  %v7039 = vpop.f32.mrf.mxu0
  %v7040 = vadd.f32 0.0, %v7039
  %v7041 = vpop.f32.mrf.mxu0
  %v7042 = vadd.f32 0.0, %v7041
  %v7043 = vpop.f32.mrf.mxu0
  %v7044 = vadd.f32 0.0, %v7043
  %v7045 = vpop.f32.mrf.mxu0
  %v7046 = vadd.f32 0.0, %v7045
  %7047 = vdwg.mxu0
  %7048 = vmatprep.subr.bf16.mxu0 %v5978
  %7049 = vmatpush1.bf16.msra.mxu0 %v5977
  %7050 = vmatprep.subr.bf16.mxu0 %v5970
  %7051 = vmatpush1.bf16.msra.mxu0 %v5969
  %7052 = vmatprep.subr.bf16.mxu0 %v5962
  %7053 = vmatpush1.bf16.msra.mxu0 %v5961
  %7054 = vmatprep.subr.bf16.mxu0 %v5954
  %7055 = vmatpush1.bf16.msra.mxu0 %v5953
  %7056 = vmatprep.subr.bf16.mxu0 %v5946
  %7057 = vmatpush1.bf16.msra.mxu0 %v5945
  %7058 = vmatprep.subr.bf16.mxu0 %v5938
  %7059 = vmatpush1.bf16.msra.mxu0 %v5937
  %7060 = vmatprep.subr.bf16.mxu0 %v5930
  %7061 = vmatpush1.bf16.msra.mxu0 %v5929
  %7062 = vmatprep.subr.bf16.mxu0 %v5922
  %7063 = vmatpush1.bf16.msra.mxu0 %v5921
  %7064 = vmatprep.subr.bf16.mxu0 0
  %7065 = vmatpush2.bf16.msra.mxu0 0
  %7066 = vmatprep.subr.bf16.mxu0 0
  %7067 = vmatpush2.bf16.msra.mxu0 0
  %7068 = vmatprep.subr.bf16.mxu0 0
  %7069 = vmatpush2.bf16.msra.mxu0 0
  %7070 = vmatprep.subr.bf16.mxu0 0
  %7071 = vmatpush2.bf16.msra.mxu0 0
  %7072 = vmatprep.subr.bf16.mxu0 0
  %7073 = vmatpush2.bf16.msra.mxu0 0
  %7074 = vmatprep.subr.bf16.mxu0 0
  %7075 = vmatpush2.bf16.msra.mxu0 0
  %7076 = vmatprep.subr.bf16.mxu0 0
  %7077 = vmatpush2.bf16.msra.mxu0 0
  %7078 = vmatprep.subr.bf16.mxu0 0
  %7079 = vmatpush2.bf16.msra.mxu0 0
  %7080 = vmatprep.mubr.bf16.mxu0 0
  %7081 = vmatmul.mubr.bf16.gmra.mxu0 %v6961
  %v7082 = vpop.f32.mrf.mxu0
  %v7083 = vadd.f32 0.0, %v7082
  %v7084 = vpop.f32.mrf.mxu0
  %v7085 = vadd.f32 0.0, %v7084
  %v7086 = vpop.f32.mrf.mxu0
  %v7087 = vadd.f32 0.0, %v7086
  %v7088 = vpop.f32.mrf.mxu0
  %v7089 = vadd.f32 0.0, %v7088
  %7090 = vdwg.mxu0
  %7091 = vmatprep.subr.bf16.mxu0 %v5980
  %7092 = vmatpush1.bf16.msra.mxu0 %v5979
  %7093 = vmatprep.subr.bf16.mxu0 %v5972
  %7094 = vmatpush1.bf16.msra.mxu0 %v5971
  %7095 = vmatprep.subr.bf16.mxu0 %v5964
  %7096 = vmatpush1.bf16.msra.mxu0 %v5963
  %7097 = vmatprep.subr.bf16.mxu0 %v5956
  %7098 = vmatpush1.bf16.msra.mxu0 %v5955
  %7099 = vmatprep.subr.bf16.mxu0 %v5948
  %7100 = vmatpush1.bf16.msra.mxu0 %v5947
  %7101 = vmatprep.subr.bf16.mxu0 %v5940
  %7102 = vmatpush1.bf16.msra.mxu0 %v5939
  %7103 = vmatprep.subr.bf16.mxu0 %v5932
  %7104 = vmatpush1.bf16.msra.mxu0 %v5931
  %7105 = vmatprep.subr.bf16.mxu0 %v5924
  %7106 = vmatpush1.bf16.msra.mxu0 %v5923
  %7107 = vmatprep.subr.bf16.mxu0 0
  %7108 = vmatpush2.bf16.msra.mxu0 0
  %7109 = vmatprep.subr.bf16.mxu0 0
  %7110 = vmatpush2.bf16.msra.mxu0 0
  %7111 = vmatprep.subr.bf16.mxu0 0
  %7112 = vmatpush2.bf16.msra.mxu0 0
  %7113 = vmatprep.subr.bf16.mxu0 0
  %7114 = vmatpush2.bf16.msra.mxu0 0
  %7115 = vmatprep.subr.bf16.mxu0 0
  %7116 = vmatpush2.bf16.msra.mxu0 0
  %7117 = vmatprep.subr.bf16.mxu0 0
  %7118 = vmatpush2.bf16.msra.mxu0 0
  %7119 = vmatprep.subr.bf16.mxu0 0
  %7120 = vmatpush2.bf16.msra.mxu0 0
  %7121 = vmatprep.subr.bf16.mxu0 0
  %7122 = vmatpush2.bf16.msra.mxu0 0
  %7123 = vmatprep.mubr.bf16.mxu0 0
  %7124 = vmatmul.mubr.bf16.gmra.mxu0 %v6961
  %v7125 = vpop.f32.mrf.mxu0
  %v7126 = vadd.f32 0.0, %v7125
  %v7127 = vpop.f32.mrf.mxu0
  %v7128 = vadd.f32 0.0, %v7127
  %v7129 = vpop.f32.mrf.mxu0
  %v7130 = vadd.f32 0.0, %v7129
  %v7131 = vpop.f32.mrf.mxu0
  %v7132 = vadd.f32 0.0, %v7131
  %7133 = vdwg.mxu0
  %7134 = vmatprep.subr.bf16.mxu0 %v6342
  %7135 = vmatpush1.bf16.msra.mxu0 %v6341
  %7136 = vmatprep.subr.bf16.mxu0 %v6338
  %7137 = vmatpush1.bf16.msra.mxu0 %v6337
  %7138 = vmatprep.subr.bf16.mxu0 %v6334
  %7139 = vmatpush1.bf16.msra.mxu0 %v6333
  %7140 = vmatprep.subr.bf16.mxu0 %v6330
  %7141 = vmatpush1.bf16.msra.mxu0 %v6329
  %7142 = vmatprep.subr.bf16.mxu0 %v6326
  %7143 = vmatpush1.bf16.msra.mxu0 %v6325
  %7144 = vmatprep.subr.bf16.mxu0 %v6322
  %7145 = vmatpush1.bf16.msra.mxu0 %v6321
  %7146 = vmatprep.subr.bf16.mxu0 %v6318
  %7147 = vmatpush1.bf16.msra.mxu0 %v6317
  %7148 = vmatprep.subr.bf16.mxu0 %v6314
  %7149 = vmatpush1.bf16.msra.mxu0 %v6313
  %7150 = vmatprep.subr.bf16.mxu0 0
  %7151 = vmatpush2.bf16.msra.mxu0 0
  %7152 = vmatprep.subr.bf16.mxu0 0
  %7153 = vmatpush2.bf16.msra.mxu0 0
  %7154 = vmatprep.subr.bf16.mxu0 0
  %7155 = vmatpush2.bf16.msra.mxu0 0
  %7156 = vmatprep.subr.bf16.mxu0 0
  %7157 = vmatpush2.bf16.msra.mxu0 0
  %7158 = vmatprep.subr.bf16.mxu0 0
  %7159 = vmatpush2.bf16.msra.mxu0 0
  %7160 = vmatprep.subr.bf16.mxu0 0
  %7161 = vmatpush2.bf16.msra.mxu0 0
  %7162 = vmatprep.subr.bf16.mxu0 0
  %7163 = vmatpush2.bf16.msra.mxu0 0
  %7164 = vmatprep.subr.bf16.mxu0 0
  %7165 = vmatpush2.bf16.msra.mxu0 0
  %7166 = vmatprep.mubr.bf16.mxu0 0
  %7167 = vmatmul.mubr.bf16.gmra.mxu0 %v6893
  %v7168 = vpop.f32.mrf.mxu0
  %v7169 = vadd.f32 0.0, %v7168
  %v7170 = vpop.f32.mrf.mxu0
  %v7171 = vadd.f32 0.0, %v7170
  %v7172 = vpop.f32.mrf.mxu0
  %v7173 = vadd.f32 0.0, %v7172
  %v7174 = vpop.f32.mrf.mxu0
  %v7175 = vadd.f32 0.0, %v7174
  %7176 = vdwg.mxu0
  %7177 = vmatprep.subr.bf16.mxu0 %v6344
  %7178 = vmatpush1.bf16.msra.mxu0 %v6343
  %7179 = vmatprep.subr.bf16.mxu0 %v6340
  %7180 = vmatpush1.bf16.msra.mxu0 %v6339
  %7181 = vmatprep.subr.bf16.mxu0 %v6336
  %7182 = vmatpush1.bf16.msra.mxu0 %v6335
  %7183 = vmatprep.subr.bf16.mxu0 %v6332
  %7184 = vmatpush1.bf16.msra.mxu0 %v6331
  %7185 = vmatprep.subr.bf16.mxu0 %v6328
  %7186 = vmatpush1.bf16.msra.mxu0 %v6327
  %7187 = vmatprep.subr.bf16.mxu0 %v6324
  %7188 = vmatpush1.bf16.msra.mxu0 %v6323
  %7189 = vmatprep.subr.bf16.mxu0 %v6320
  %7190 = vmatpush1.bf16.msra.mxu0 %v6319
  %7191 = vmatprep.subr.bf16.mxu0 %v6316
  %7192 = vmatpush1.bf16.msra.mxu0 %v6315
  %7193 = vmatprep.subr.bf16.mxu0 0
  %7194 = vmatpush2.bf16.msra.mxu0 0
  %7195 = vmatprep.subr.bf16.mxu0 0
  %7196 = vmatpush2.bf16.msra.mxu0 0
  %7197 = vmatprep.subr.bf16.mxu0 0
  %7198 = vmatpush2.bf16.msra.mxu0 0
  %7199 = vmatprep.subr.bf16.mxu0 0
  %7200 = vmatpush2.bf16.msra.mxu0 0
  %7201 = vmatprep.subr.bf16.mxu0 0
  %7202 = vmatpush2.bf16.msra.mxu0 0
  %7203 = vmatprep.subr.bf16.mxu0 0
  %7204 = vmatpush2.bf16.msra.mxu0 0
  %7205 = vmatprep.subr.bf16.mxu0 0
  %7206 = vmatpush2.bf16.msra.mxu0 0
  %7207 = vmatprep.subr.bf16.mxu0 0
  %7208 = vmatpush2.bf16.msra.mxu0 0
  %7209 = vmatprep.mubr.bf16.mxu0 0
  %7210 = vmatmul.mubr.bf16.gmra.mxu0 %v6893
  %v7211 = vpop.f32.mrf.mxu0
  %v7212 = vadd.f32 0.0, %v7211
  %v7213 = vpop.f32.mrf.mxu0
  %v7214 = vadd.f32 0.0, %v7213
  %v7215 = vpop.f32.mrf.mxu0
  %v7216 = vadd.f32 0.0, %v7215
  %v7217 = vpop.f32.mrf.mxu0
  %v7218 = vadd.f32 0.0, %v7217
  %7219 = vdwg.mxu0
  %v7220 = vadd.f32 %v7083, %v7169
  %v7221 = vadd.f32 %v7085, %v7171
  %v7222 = vadd.f32 %v7126, %v7212
  %v7223 = vadd.f32 %v7128, %v7214
  %v7224 = vadd.f32 %v7087, %v7173
  %v7225 = vadd.f32 %v7089, %v7175
  %v7226 = vadd.f32 %v7130, %v7216
  %v7227 = vadd.f32 %v7132, %v7218
  %v7228 = vadd.f32 %v7220, %v334
  %v7229 = vadd.f32 %v7221, %v338
  %v7230 = vadd.f32 %v7222, %v342
  %v7231 = vadd.f32 %v7223, %v346
  %v7232 = vadd.f32 %v7224, %v334
  %v7233 = vadd.f32 %v7225, %v338
  %v7234 = vadd.f32 %v7226, %v342
  %v7235 = vadd.f32 %v7227, %v346
  %v7236 = vmul.f32 %v7228, 0.5
  %v7237 = vmul.f32 %v7232, 0.5
  %v7238 = vtanh.pop %v7236
  %v7239 = vtanh.pop %v7237
  %v7240 = vadd.f32 %v7238, 1.0
  %v7241 = vadd.f32 %v7239, 1.0
  %v7242 = vmul.f32 %v7240, 0.5
  %v7243 = vmul.f32 %v7241, 0.5
  %v7244 = vmul.f32 %v7229, 0.5
  %v7245 = vmul.f32 %v7233, 0.5
  %v7246 = vtanh.pop %v7244
  %v7247 = vtanh.pop %v7245
  %v7248 = vadd.f32 %v7246, 1.0
  %v7249 = vadd.f32 %v7247, 1.0
  %v7250 = vmul.f32 %v7248, 0.5
  %v7251 = vmul.f32 %v7249, 0.5
  %v7252 = vtanh.pop %v7230
  %v7253 = vtanh.pop %v7234
  %v7254 = vmul.f32 %v7231, 0.5
  %v7255 = vmul.f32 %v7235, 0.5
  %v7256 = vtanh.pop %v7254
  %v7257 = vtanh.pop %v7255
  %v7258 = vadd.f32 %v7256, 1.0
  %v7259 = vadd.f32 %v7257, 1.0
  %v7260 = vmul.f32 %v7258, 0.5
  %v7261 = vmul.f32 %v7259, 0.5
  %v7262 = vmul.f32 %v7250, %v6887
  %v7263 = vmul.f32 %v7251, %v6888
  %v7264 = vmul.f32 %v7242, %v7252
  %v7265 = vmul.f32 %v7243, %v7253
  %v7266 = vadd.f32 %v7262, %v7264
  %v7267 = vadd.f32 %v7263, %v7265
  %v7268 = vtanh.pop %v7266
  %v7269 = vtanh.pop %v7267
  %v7270 = vmul.f32 %v7260, %v7268
  %v7271 = vmul.f32 %v7261, %v7269
  %v7272 = vpack.c.bf16 %v7271, %v7270
  %v7274 = vunpack.c.l.b16 %v7272
  %v7275 = vunpack.c.h.b16 %v7272
  %v7276 = vpack.c.b16 %v7274, %v7274
  %v7277 = vpack.c.b16 %v7275, %v7275
  %s7280 = scalar_lea.vmem [#allocation5], 16
  %7281 = vst [vmem:[%s7280] sm:$0xf] %v7276
  %7282 = vst [vmem:[%s7280 + $0x4] sm:$0xf] %v7277
  %s7283 = scalar_lea.vmem [#allocation3], 96
  %v7284 = vld [vmem:[%s7283] sm:$0xff]
  %v7285 = vld [vmem:[%s7283 + $0x8] sm:$0xff]
  %v7286 = vld [vmem:[%s7283 + $0x10] sm:$0xff]
  %v7287 = vld [vmem:[%s7283 + $0x18] sm:$0xff]
  %v7288 = vunpack.c.l.bf16 %v7284
  %v7289 = vunpack.c.h.bf16 %v7284
  %v7290 = vunpack.c.l.bf16 %v7285
  %v7291 = vunpack.c.h.bf16 %v7285
  %v7292 = vunpack.c.l.bf16 %v7286
  %v7293 = vunpack.c.h.bf16 %v7286
  %v7294 = vunpack.c.l.bf16 %v7287
  %v7295 = vunpack.c.h.bf16 %v7287
  %v7296 = vadd.f32 %v7288, %v6997
  %v7297 = vadd.f32 %v7289, %v6999
  %v7298 = vadd.f32 %v7290, %v7040
  %v7299 = vadd.f32 %v7291, %v7042
  %v7300 = vadd.f32 %v7292, %v7001
  %v7301 = vadd.f32 %v7293, %v7003
  %v7302 = vadd.f32 %v7294, %v7044
  %v7303 = vadd.f32 %v7295, %v7046
  %v7304 = vmul.f32 %v7296, 0.5
  %v7305 = vmul.f32 %v7300, 0.5
  %v7306 = vtanh.pop %v7304
  %v7307 = vtanh.pop %v7305
  %v7308 = vadd.f32 %v7306, 1.0
  %v7309 = vadd.f32 %v7307, 1.0
  %v7310 = vmul.f32 %v7308, 0.5
  %v7311 = vmul.f32 %v7309, 0.5
  %v7312 = vmul.f32 %v7297, 0.5
  %v7313 = vmul.f32 %v7301, 0.5
  %v7314 = vtanh.pop %v7312
  %v7315 = vtanh.pop %v7313
  %v7316 = vadd.f32 %v7314, 1.0
  %v7317 = vadd.f32 %v7315, 1.0
  %v7318 = vmul.f32 %v7316, 0.5
  %v7319 = vmul.f32 %v7317, 0.5
  %v7320 = vtanh.pop %v7298
  %v7321 = vtanh.pop %v7302
  %v7322 = vmul.f32 %v7299, 0.5
  %v7323 = vmul.f32 %v7303, 0.5
  %v7324 = vtanh.pop %v7322
  %v7325 = vtanh.pop %v7323
  %v7326 = vadd.f32 %v7324, 1.0
  %v7327 = vadd.f32 %v7325, 1.0
  %v7328 = vmul.f32 %v7326, 0.5
  %v7329 = vmul.f32 %v7327, 0.5
  %v7330 = vmul.f32 %v7318, %v6955
  %v7331 = vmul.f32 %v7319, %v6956
  %v7332 = vmul.f32 %v7310, %v7320
  %v7333 = vmul.f32 %v7311, %v7321
  %v7334 = vadd.f32 %v7330, %v7332
  %v7335 = vadd.f32 %v7331, %v7333
  %v7336 = vtanh.pop %v7334
  %v7337 = vtanh.pop %v7335
  %v7338 = vmul.f32 %v7328, %v7336
  %v7339 = vmul.f32 %v7329, %v7337
  %v7340 = vpack.c.bf16 %v7339, %v7338
  %7341 = vmatprep.subr.bf16.mxu0 %v5974
  %7342 = vmatpush1.bf16.msra.mxu0 %v5973
  %7343 = vmatprep.subr.bf16.mxu0 %v5966
  %7344 = vmatpush1.bf16.msra.mxu0 %v5965
  %7345 = vmatprep.subr.bf16.mxu0 %v5958
  %7346 = vmatpush1.bf16.msra.mxu0 %v5957
  %7347 = vmatprep.subr.bf16.mxu0 %v5950
  %7348 = vmatpush1.bf16.msra.mxu0 %v5949
  %7349 = vmatprep.subr.bf16.mxu0 %v5942
  %7350 = vmatpush1.bf16.msra.mxu0 %v5941
  %7351 = vmatprep.subr.bf16.mxu0 %v5934
  %7352 = vmatpush1.bf16.msra.mxu0 %v5933
  %7353 = vmatprep.subr.bf16.mxu0 %v5926
  %7354 = vmatpush1.bf16.msra.mxu0 %v5925
  %7355 = vmatprep.subr.bf16.mxu0 %v5918
  %7356 = vmatpush1.bf16.msra.mxu0 %v5917
  %7357 = vmatprep.subr.bf16.mxu0 0
  %7358 = vmatpush2.bf16.msra.mxu0 0
  %7359 = vmatprep.subr.bf16.mxu0 0
  %7360 = vmatpush2.bf16.msra.mxu0 0
  %7361 = vmatprep.subr.bf16.mxu0 0
  %7362 = vmatpush2.bf16.msra.mxu0 0
  %7363 = vmatprep.subr.bf16.mxu0 0
  %7364 = vmatpush2.bf16.msra.mxu0 0
  %7365 = vmatprep.subr.bf16.mxu0 0
  %7366 = vmatpush2.bf16.msra.mxu0 0
  %7367 = vmatprep.subr.bf16.mxu0 0
  %7368 = vmatpush2.bf16.msra.mxu0 0
  %7369 = vmatprep.subr.bf16.mxu0 0
  %7370 = vmatpush2.bf16.msra.mxu0 0
  %7371 = vmatprep.subr.bf16.mxu0 0
  %7372 = vmatpush2.bf16.msra.mxu0 0
  %7373 = vmatprep.mubr.bf16.mxu0 0
  %7374 = vmatmul.mubr.bf16.gmra.mxu0 %v7340
  %v7375 = vpop.f32.mrf.mxu0
  %v7376 = vadd.f32 0.0, %v7375
  %v7377 = vpop.f32.mrf.mxu0
  %v7378 = vadd.f32 0.0, %v7377
  %v7379 = vpop.f32.mrf.mxu0
  %v7380 = vadd.f32 0.0, %v7379
  %v7381 = vpop.f32.mrf.mxu0
  %v7382 = vadd.f32 0.0, %v7381
  %7383 = vdwg.mxu0
  %7384 = vmatprep.subr.bf16.mxu0 %v5976
  %7385 = vmatpush1.bf16.msra.mxu0 %v5975
  %7386 = vmatprep.subr.bf16.mxu0 %v5968
  %7387 = vmatpush1.bf16.msra.mxu0 %v5967
  %7388 = vmatprep.subr.bf16.mxu0 %v5960
  %7389 = vmatpush1.bf16.msra.mxu0 %v5959
  %7390 = vmatprep.subr.bf16.mxu0 %v5952
  %7391 = vmatpush1.bf16.msra.mxu0 %v5951
  %7392 = vmatprep.subr.bf16.mxu0 %v5944
  %7393 = vmatpush1.bf16.msra.mxu0 %v5943
  %7394 = vmatprep.subr.bf16.mxu0 %v5936
  %7395 = vmatpush1.bf16.msra.mxu0 %v5935
  %7396 = vmatprep.subr.bf16.mxu0 %v5928
  %7397 = vmatpush1.bf16.msra.mxu0 %v5927
  %7398 = vmatprep.subr.bf16.mxu0 %v5920
  %7399 = vmatpush1.bf16.msra.mxu0 %v5919
  %7400 = vmatprep.subr.bf16.mxu0 0
  %7401 = vmatpush2.bf16.msra.mxu0 0
  %7402 = vmatprep.subr.bf16.mxu0 0
  %7403 = vmatpush2.bf16.msra.mxu0 0
  %7404 = vmatprep.subr.bf16.mxu0 0
  %7405 = vmatpush2.bf16.msra.mxu0 0
  %7406 = vmatprep.subr.bf16.mxu0 0
  %7407 = vmatpush2.bf16.msra.mxu0 0
  %7408 = vmatprep.subr.bf16.mxu0 0
  %7409 = vmatpush2.bf16.msra.mxu0 0
  %7410 = vmatprep.subr.bf16.mxu0 0
  %7411 = vmatpush2.bf16.msra.mxu0 0
  %7412 = vmatprep.subr.bf16.mxu0 0
  %7413 = vmatpush2.bf16.msra.mxu0 0
  %7414 = vmatprep.subr.bf16.mxu0 0
  %7415 = vmatpush2.bf16.msra.mxu0 0
  %7416 = vmatprep.mubr.bf16.mxu0 0
  %7417 = vmatmul.mubr.bf16.gmra.mxu0 %v7340
  %v7418 = vpop.f32.mrf.mxu0
  %v7419 = vadd.f32 0.0, %v7418
  %v7420 = vpop.f32.mrf.mxu0
  %v7421 = vadd.f32 0.0, %v7420
  %v7422 = vpop.f32.mrf.mxu0
  %v7423 = vadd.f32 0.0, %v7422
  %v7424 = vpop.f32.mrf.mxu0
  %v7425 = vadd.f32 0.0, %v7424
  %7426 = vdwg.mxu0
  %7427 = vmatprep.subr.bf16.mxu0 %v5978
  %7428 = vmatpush1.bf16.msra.mxu0 %v5977
  %7429 = vmatprep.subr.bf16.mxu0 %v5970
  %7430 = vmatpush1.bf16.msra.mxu0 %v5969
  %7431 = vmatprep.subr.bf16.mxu0 %v5962
  %7432 = vmatpush1.bf16.msra.mxu0 %v5961
  %7433 = vmatprep.subr.bf16.mxu0 %v5954
  %7434 = vmatpush1.bf16.msra.mxu0 %v5953
  %7435 = vmatprep.subr.bf16.mxu0 %v5946
  %7436 = vmatpush1.bf16.msra.mxu0 %v5945
  %7437 = vmatprep.subr.bf16.mxu0 %v5938
  %7438 = vmatpush1.bf16.msra.mxu0 %v5937
  %7439 = vmatprep.subr.bf16.mxu0 %v5930
  %7440 = vmatpush1.bf16.msra.mxu0 %v5929
  %7441 = vmatprep.subr.bf16.mxu0 %v5922
  %7442 = vmatpush1.bf16.msra.mxu0 %v5921
  %7443 = vmatprep.subr.bf16.mxu0 0
  %7444 = vmatpush2.bf16.msra.mxu0 0
  %7445 = vmatprep.subr.bf16.mxu0 0
  %7446 = vmatpush2.bf16.msra.mxu0 0
  %7447 = vmatprep.subr.bf16.mxu0 0
  %7448 = vmatpush2.bf16.msra.mxu0 0
  %7449 = vmatprep.subr.bf16.mxu0 0
  %7450 = vmatpush2.bf16.msra.mxu0 0
  %7451 = vmatprep.subr.bf16.mxu0 0
  %7452 = vmatpush2.bf16.msra.mxu0 0
  %7453 = vmatprep.subr.bf16.mxu0 0
  %7454 = vmatpush2.bf16.msra.mxu0 0
  %7455 = vmatprep.subr.bf16.mxu0 0
  %7456 = vmatpush2.bf16.msra.mxu0 0
  %7457 = vmatprep.subr.bf16.mxu0 0
  %7458 = vmatpush2.bf16.msra.mxu0 0
  %7459 = vmatprep.mubr.bf16.mxu0 0
  %7460 = vmatmul.mubr.bf16.gmra.mxu0 %v7340
  %v7461 = vpop.f32.mrf.mxu0
  %v7462 = vadd.f32 0.0, %v7461
  %v7463 = vpop.f32.mrf.mxu0
  %v7464 = vadd.f32 0.0, %v7463
  %v7465 = vpop.f32.mrf.mxu0
  %v7466 = vadd.f32 0.0, %v7465
  %v7467 = vpop.f32.mrf.mxu0
  %v7468 = vadd.f32 0.0, %v7467
  %7469 = vdwg.mxu0
  %7470 = vmatprep.subr.bf16.mxu0 %v5980
  %7471 = vmatpush1.bf16.msra.mxu0 %v5979
  %7472 = vmatprep.subr.bf16.mxu0 %v5972
  %7473 = vmatpush1.bf16.msra.mxu0 %v5971
  %7474 = vmatprep.subr.bf16.mxu0 %v5964
  %7475 = vmatpush1.bf16.msra.mxu0 %v5963
  %7476 = vmatprep.subr.bf16.mxu0 %v5956
  %7477 = vmatpush1.bf16.msra.mxu0 %v5955
  %7478 = vmatprep.subr.bf16.mxu0 %v5948
  %7479 = vmatpush1.bf16.msra.mxu0 %v5947
  %7480 = vmatprep.subr.bf16.mxu0 %v5940
  %7481 = vmatpush1.bf16.msra.mxu0 %v5939
  %7482 = vmatprep.subr.bf16.mxu0 %v5932
  %7483 = vmatpush1.bf16.msra.mxu0 %v5931
  %7484 = vmatprep.subr.bf16.mxu0 %v5924
  %7485 = vmatpush1.bf16.msra.mxu0 %v5923
  %7486 = vmatprep.subr.bf16.mxu0 0
  %7487 = vmatpush2.bf16.msra.mxu0 0
  %7488 = vmatprep.subr.bf16.mxu0 0
  %7489 = vmatpush2.bf16.msra.mxu0 0
  %7490 = vmatprep.subr.bf16.mxu0 0
  %7491 = vmatpush2.bf16.msra.mxu0 0
  %7492 = vmatprep.subr.bf16.mxu0 0
  %7493 = vmatpush2.bf16.msra.mxu0 0
  %7494 = vmatprep.subr.bf16.mxu0 0
  %7495 = vmatpush2.bf16.msra.mxu0 0
  %7496 = vmatprep.subr.bf16.mxu0 0
  %7497 = vmatpush2.bf16.msra.mxu0 0
  %7498 = vmatprep.subr.bf16.mxu0 0
  %7499 = vmatpush2.bf16.msra.mxu0 0
  %7500 = vmatprep.subr.bf16.mxu0 0
  %7501 = vmatpush2.bf16.msra.mxu0 0
  %7502 = vmatprep.mubr.bf16.mxu0 0
  %7503 = vmatmul.mubr.bf16.gmra.mxu0 %v7340
  %v7504 = vpop.f32.mrf.mxu0
  %v7505 = vadd.f32 0.0, %v7504
  %v7506 = vpop.f32.mrf.mxu0
  %v7507 = vadd.f32 0.0, %v7506
  %v7508 = vpop.f32.mrf.mxu0
  %v7509 = vadd.f32 0.0, %v7508
  %v7510 = vpop.f32.mrf.mxu0
  %v7511 = vadd.f32 0.0, %v7510
  %7512 = vdwg.mxu0
  %7513 = vmatprep.subr.bf16.mxu0 %v6342
  %7514 = vmatpush1.bf16.msra.mxu0 %v6341
  %7515 = vmatprep.subr.bf16.mxu0 %v6338
  %7516 = vmatpush1.bf16.msra.mxu0 %v6337
  %7517 = vmatprep.subr.bf16.mxu0 %v6334
  %7518 = vmatpush1.bf16.msra.mxu0 %v6333
  %7519 = vmatprep.subr.bf16.mxu0 %v6330
  %7520 = vmatpush1.bf16.msra.mxu0 %v6329
  %7521 = vmatprep.subr.bf16.mxu0 %v6326
  %7522 = vmatpush1.bf16.msra.mxu0 %v6325
  %7523 = vmatprep.subr.bf16.mxu0 %v6322
  %7524 = vmatpush1.bf16.msra.mxu0 %v6321
  %7525 = vmatprep.subr.bf16.mxu0 %v6318
  %7526 = vmatpush1.bf16.msra.mxu0 %v6317
  %7527 = vmatprep.subr.bf16.mxu0 %v6314
  %7528 = vmatpush1.bf16.msra.mxu0 %v6313
  %7529 = vmatprep.subr.bf16.mxu0 0
  %7530 = vmatpush2.bf16.msra.mxu0 0
  %7531 = vmatprep.subr.bf16.mxu0 0
  %7532 = vmatpush2.bf16.msra.mxu0 0
  %7533 = vmatprep.subr.bf16.mxu0 0
  %7534 = vmatpush2.bf16.msra.mxu0 0
  %7535 = vmatprep.subr.bf16.mxu0 0
  %7536 = vmatpush2.bf16.msra.mxu0 0
  %7537 = vmatprep.subr.bf16.mxu0 0
  %7538 = vmatpush2.bf16.msra.mxu0 0
  %7539 = vmatprep.subr.bf16.mxu0 0
  %7540 = vmatpush2.bf16.msra.mxu0 0
  %7541 = vmatprep.subr.bf16.mxu0 0
  %7542 = vmatpush2.bf16.msra.mxu0 0
  %7543 = vmatprep.subr.bf16.mxu0 0
  %7544 = vmatpush2.bf16.msra.mxu0 0
  %7545 = vmatprep.mubr.bf16.mxu0 0
  %7546 = vmatmul.mubr.bf16.gmra.mxu0 %v7272
  %v7547 = vpop.f32.mrf.mxu0
  %v7548 = vadd.f32 0.0, %v7547
  %v7549 = vpop.f32.mrf.mxu0
  %v7550 = vadd.f32 0.0, %v7549
  %v7551 = vpop.f32.mrf.mxu0
  %v7552 = vadd.f32 0.0, %v7551
  %v7553 = vpop.f32.mrf.mxu0
  %v7554 = vadd.f32 0.0, %v7553
  %7555 = vdwg.mxu0
  %7556 = vmatprep.subr.bf16.mxu0 %v6344
  %7557 = vmatpush1.bf16.msra.mxu0 %v6343
  %7558 = vmatprep.subr.bf16.mxu0 %v6340
  %7559 = vmatpush1.bf16.msra.mxu0 %v6339
  %7560 = vmatprep.subr.bf16.mxu0 %v6336
  %7561 = vmatpush1.bf16.msra.mxu0 %v6335
  %7562 = vmatprep.subr.bf16.mxu0 %v6332
  %7563 = vmatpush1.bf16.msra.mxu0 %v6331
  %7564 = vmatprep.subr.bf16.mxu0 %v6328
  %7565 = vmatpush1.bf16.msra.mxu0 %v6327
  %7566 = vmatprep.subr.bf16.mxu0 %v6324
  %7567 = vmatpush1.bf16.msra.mxu0 %v6323
  %7568 = vmatprep.subr.bf16.mxu0 %v6320
  %7569 = vmatpush1.bf16.msra.mxu0 %v6319
  %7570 = vmatprep.subr.bf16.mxu0 %v6316
  %7571 = vmatpush1.bf16.msra.mxu0 %v6315
  %7572 = vmatprep.subr.bf16.mxu0 0
  %7573 = vmatpush2.bf16.msra.mxu0 0
  %7574 = vmatprep.subr.bf16.mxu0 0
  %7575 = vmatpush2.bf16.msra.mxu0 0
  %7576 = vmatprep.subr.bf16.mxu0 0
  %7577 = vmatpush2.bf16.msra.mxu0 0
  %7578 = vmatprep.subr.bf16.mxu0 0
  %7579 = vmatpush2.bf16.msra.mxu0 0
  %7580 = vmatprep.subr.bf16.mxu0 0
  %7581 = vmatpush2.bf16.msra.mxu0 0
  %7582 = vmatprep.subr.bf16.mxu0 0
  %7583 = vmatpush2.bf16.msra.mxu0 0
  %7584 = vmatprep.subr.bf16.mxu0 0
  %7585 = vmatpush2.bf16.msra.mxu0 0
  %7586 = vmatprep.subr.bf16.mxu0 0
  %7587 = vmatpush2.bf16.msra.mxu0 0
  %7588 = vmatprep.mubr.bf16.mxu0 0
  %7589 = vmatmul.mubr.bf16.gmra.mxu0 %v7272
  %v7590 = vpop.f32.mrf.mxu0
  %v7591 = vadd.f32 0.0, %v7590
  %v7592 = vpop.f32.mrf.mxu0
  %v7593 = vadd.f32 0.0, %v7592
  %v7594 = vpop.f32.mrf.mxu0
  %v7595 = vadd.f32 0.0, %v7594
  %v7596 = vpop.f32.mrf.mxu0
  %v7597 = vadd.f32 0.0, %v7596
  %7598 = vdwg.mxu0
  %v7599 = vadd.f32 %v7462, %v7548
  %v7600 = vadd.f32 %v7464, %v7550
  %v7601 = vadd.f32 %v7505, %v7591
  %v7602 = vadd.f32 %v7507, %v7593
  %v7603 = vadd.f32 %v7466, %v7552
  %v7604 = vadd.f32 %v7468, %v7554
  %v7605 = vadd.f32 %v7509, %v7595
  %v7606 = vadd.f32 %v7511, %v7597
  %v7607 = vadd.f32 %v7599, %v334
  %v7608 = vadd.f32 %v7600, %v338
  %v7609 = vadd.f32 %v7601, %v342
  %v7610 = vadd.f32 %v7602, %v346
  %v7611 = vadd.f32 %v7603, %v334
  %v7612 = vadd.f32 %v7604, %v338
  %v7613 = vadd.f32 %v7605, %v342
  %v7614 = vadd.f32 %v7606, %v346
  %v7615 = vmul.f32 %v7607, 0.5
  %v7616 = vmul.f32 %v7611, 0.5
  %v7617 = vtanh.pop %v7615
  %v7618 = vtanh.pop %v7616
  %v7619 = vadd.f32 %v7617, 1.0
  %v7620 = vadd.f32 %v7618, 1.0
  %v7621 = vmul.f32 %v7619, 0.5
  %v7622 = vmul.f32 %v7620, 0.5
  %v7623 = vmul.f32 %v7608, 0.5
  %v7624 = vmul.f32 %v7612, 0.5
  %v7625 = vtanh.pop %v7623
  %v7626 = vtanh.pop %v7624
  %v7627 = vadd.f32 %v7625, 1.0
  %v7628 = vadd.f32 %v7626, 1.0
  %v7629 = vmul.f32 %v7627, 0.5
  %v7630 = vmul.f32 %v7628, 0.5
  %v7631 = vtanh.pop %v7609
  %v7632 = vtanh.pop %v7613
  %v7633 = vmul.f32 %v7610, 0.5
  %v7634 = vmul.f32 %v7614, 0.5
  %v7635 = vtanh.pop %v7633
  %v7636 = vtanh.pop %v7634
  %v7637 = vadd.f32 %v7635, 1.0
  %v7638 = vadd.f32 %v7636, 1.0
  %v7639 = vmul.f32 %v7637, 0.5
  %v7640 = vmul.f32 %v7638, 0.5
  %v7641 = vmul.f32 %v7629, %v7266
  %v7642 = vmul.f32 %v7630, %v7267
  %v7643 = vmul.f32 %v7621, %v7631
  %v7644 = vmul.f32 %v7622, %v7632
  %v7645 = vadd.f32 %v7641, %v7643
  %v7646 = vadd.f32 %v7642, %v7644
  %v7647 = vtanh.pop %v7645
  %v7648 = vtanh.pop %v7646
  %v7649 = vmul.f32 %v7639, %v7647
  %v7650 = vmul.f32 %v7640, %v7648
  %v7651 = vpack.c.bf16 %v7650, %v7649
  %v7653 = vunpack.c.l.b16 %v7651
  %v7654 = vunpack.c.h.b16 %v7651
  %v7655 = vpack.c.b16 %v7653, %v7653
  %v7656 = vpack.c.b16 %v7654, %v7654
  %s7659 = scalar_lea.vmem [#allocation5], 24
  %7660 = vst [vmem:[%s7659] sm:$0xf] %v7655
  %7661 = vst [vmem:[%s7659 + $0x4] sm:$0xf] %v7656
  %s7662 = scalar_lea.vmem [#allocation3], 128
  %v7663 = vld [vmem:[%s7662] sm:$0xff]
  %v7664 = vld [vmem:[%s7662 + $0x8] sm:$0xff]
  %v7665 = vld [vmem:[%s7662 + $0x10] sm:$0xff]
  %v7666 = vld [vmem:[%s7662 + $0x18] sm:$0xff]
  %v7667 = vunpack.c.l.bf16 %v7663
  %v7668 = vunpack.c.h.bf16 %v7663
  %v7669 = vunpack.c.l.bf16 %v7664
  %v7670 = vunpack.c.h.bf16 %v7664
  %v7671 = vunpack.c.l.bf16 %v7665
  %v7672 = vunpack.c.h.bf16 %v7665
  %v7673 = vunpack.c.l.bf16 %v7666
  %v7674 = vunpack.c.h.bf16 %v7666
  %v7675 = vadd.f32 %v7667, %v7376
  %v7676 = vadd.f32 %v7668, %v7378
  %v7677 = vadd.f32 %v7669, %v7419
  %v7678 = vadd.f32 %v7670, %v7421
  %v7679 = vadd.f32 %v7671, %v7380
  %v7680 = vadd.f32 %v7672, %v7382
  %v7681 = vadd.f32 %v7673, %v7423
  %v7682 = vadd.f32 %v7674, %v7425
  %v7683 = vmul.f32 %v7675, 0.5
  %v7684 = vmul.f32 %v7679, 0.5
  %v7685 = vtanh.pop %v7683
  %v7686 = vtanh.pop %v7684
  %v7687 = vadd.f32 %v7685, 1.0
  %v7688 = vadd.f32 %v7686, 1.0
  %v7689 = vmul.f32 %v7687, 0.5
  %v7690 = vmul.f32 %v7688, 0.5
  %v7691 = vmul.f32 %v7676, 0.5
  %v7692 = vmul.f32 %v7680, 0.5
  %v7693 = vtanh.pop %v7691
  %v7694 = vtanh.pop %v7692
  %v7695 = vadd.f32 %v7693, 1.0
  %v7696 = vadd.f32 %v7694, 1.0
  %v7697 = vmul.f32 %v7695, 0.5
  %v7698 = vmul.f32 %v7696, 0.5
  %v7699 = vtanh.pop %v7677
  %v7700 = vtanh.pop %v7681
  %v7701 = vmul.f32 %v7678, 0.5
  %v7702 = vmul.f32 %v7682, 0.5
  %v7703 = vtanh.pop %v7701
  %v7704 = vtanh.pop %v7702
  %v7705 = vadd.f32 %v7703, 1.0
  %v7706 = vadd.f32 %v7704, 1.0
  %v7707 = vmul.f32 %v7705, 0.5
  %v7708 = vmul.f32 %v7706, 0.5
  %v7709 = vmul.f32 %v7697, %v7334
  %v7710 = vmul.f32 %v7698, %v7335
  %v7711 = vmul.f32 %v7689, %v7699
  %v7712 = vmul.f32 %v7690, %v7700
  %v7713 = vadd.f32 %v7709, %v7711
  %v7714 = vadd.f32 %v7710, %v7712
  %v7715 = vtanh.pop %v7713
  %v7716 = vtanh.pop %v7714
  %v7717 = vmul.f32 %v7707, %v7715
  %v7718 = vmul.f32 %v7708, %v7716
  %v7719 = vpack.c.bf16 %v7718, %v7717
  %7720 = vmatprep.subr.bf16.mxu0 %v5974
  %7721 = vmatpush1.bf16.msra.mxu0 %v5973
  %7722 = vmatprep.subr.bf16.mxu0 %v5966
  %7723 = vmatpush1.bf16.msra.mxu0 %v5965
  %7724 = vmatprep.subr.bf16.mxu0 %v5958
  %7725 = vmatpush1.bf16.msra.mxu0 %v5957
  %7726 = vmatprep.subr.bf16.mxu0 %v5950
  %7727 = vmatpush1.bf16.msra.mxu0 %v5949
  %7728 = vmatprep.subr.bf16.mxu0 %v5942
  %7729 = vmatpush1.bf16.msra.mxu0 %v5941
  %7730 = vmatprep.subr.bf16.mxu0 %v5934
  %7731 = vmatpush1.bf16.msra.mxu0 %v5933
  %7732 = vmatprep.subr.bf16.mxu0 %v5926
  %7733 = vmatpush1.bf16.msra.mxu0 %v5925
  %7734 = vmatprep.subr.bf16.mxu0 %v5918
  %7735 = vmatpush1.bf16.msra.mxu0 %v5917
  %7736 = vmatprep.subr.bf16.mxu0 0
  %7737 = vmatpush2.bf16.msra.mxu0 0
  %7738 = vmatprep.subr.bf16.mxu0 0
  %7739 = vmatpush2.bf16.msra.mxu0 0
  %7740 = vmatprep.subr.bf16.mxu0 0
  %7741 = vmatpush2.bf16.msra.mxu0 0
  %7742 = vmatprep.subr.bf16.mxu0 0
  %7743 = vmatpush2.bf16.msra.mxu0 0
  %7744 = vmatprep.subr.bf16.mxu0 0
  %7745 = vmatpush2.bf16.msra.mxu0 0
  %7746 = vmatprep.subr.bf16.mxu0 0
  %7747 = vmatpush2.bf16.msra.mxu0 0
  %7748 = vmatprep.subr.bf16.mxu0 0
  %7749 = vmatpush2.bf16.msra.mxu0 0
  %7750 = vmatprep.subr.bf16.mxu0 0
  %7751 = vmatpush2.bf16.msra.mxu0 0
  %7752 = vmatprep.mubr.bf16.mxu0 0
  %7753 = vmatmul.mubr.bf16.gmra.mxu0 %v7719
  %v7754 = vpop.f32.mrf.mxu0
  %v7755 = vadd.f32 0.0, %v7754
  %v7756 = vpop.f32.mrf.mxu0
  %v7757 = vadd.f32 0.0, %v7756
  %v7758 = vpop.f32.mrf.mxu0
  %v7759 = vadd.f32 0.0, %v7758
  %v7760 = vpop.f32.mrf.mxu0
  %v7761 = vadd.f32 0.0, %v7760
  %7762 = vdwg.mxu0
  %7763 = vmatprep.subr.bf16.mxu0 %v5976
  %7764 = vmatpush1.bf16.msra.mxu0 %v5975
  %7765 = vmatprep.subr.bf16.mxu0 %v5968
  %7766 = vmatpush1.bf16.msra.mxu0 %v5967
  %7767 = vmatprep.subr.bf16.mxu0 %v5960
  %7768 = vmatpush1.bf16.msra.mxu0 %v5959
  %7769 = vmatprep.subr.bf16.mxu0 %v5952
  %7770 = vmatpush1.bf16.msra.mxu0 %v5951
  %7771 = vmatprep.subr.bf16.mxu0 %v5944
  %7772 = vmatpush1.bf16.msra.mxu0 %v5943
  %7773 = vmatprep.subr.bf16.mxu0 %v5936
  %7774 = vmatpush1.bf16.msra.mxu0 %v5935
  %7775 = vmatprep.subr.bf16.mxu0 %v5928
  %7776 = vmatpush1.bf16.msra.mxu0 %v5927
  %7777 = vmatprep.subr.bf16.mxu0 %v5920
  %7778 = vmatpush1.bf16.msra.mxu0 %v5919
  %7779 = vmatprep.subr.bf16.mxu0 0
  %7780 = vmatpush2.bf16.msra.mxu0 0
  %7781 = vmatprep.subr.bf16.mxu0 0
  %7782 = vmatpush2.bf16.msra.mxu0 0
  %7783 = vmatprep.subr.bf16.mxu0 0
  %7784 = vmatpush2.bf16.msra.mxu0 0
  %7785 = vmatprep.subr.bf16.mxu0 0
  %7786 = vmatpush2.bf16.msra.mxu0 0
  %7787 = vmatprep.subr.bf16.mxu0 0
  %7788 = vmatpush2.bf16.msra.mxu0 0
  %7789 = vmatprep.subr.bf16.mxu0 0
  %7790 = vmatpush2.bf16.msra.mxu0 0
  %7791 = vmatprep.subr.bf16.mxu0 0
  %7792 = vmatpush2.bf16.msra.mxu0 0
  %7793 = vmatprep.subr.bf16.mxu0 0
  %7794 = vmatpush2.bf16.msra.mxu0 0
  %7795 = vmatprep.mubr.bf16.mxu0 0
  %7796 = vmatmul.mubr.bf16.gmra.mxu0 %v7719
  %v7797 = vpop.f32.mrf.mxu0
  %v7798 = vadd.f32 0.0, %v7797
  %v7799 = vpop.f32.mrf.mxu0
  %v7800 = vadd.f32 0.0, %v7799
  %v7801 = vpop.f32.mrf.mxu0
  %v7802 = vadd.f32 0.0, %v7801
  %v7803 = vpop.f32.mrf.mxu0
  %v7804 = vadd.f32 0.0, %v7803
  %7805 = vdwg.mxu0
  %7806 = vmatprep.subr.bf16.mxu0 %v5978
  %7807 = vmatpush1.bf16.msra.mxu0 %v5977
  %7808 = vmatprep.subr.bf16.mxu0 %v5970
  %7809 = vmatpush1.bf16.msra.mxu0 %v5969
  %7810 = vmatprep.subr.bf16.mxu0 %v5962
  %7811 = vmatpush1.bf16.msra.mxu0 %v5961
  %7812 = vmatprep.subr.bf16.mxu0 %v5954
  %7813 = vmatpush1.bf16.msra.mxu0 %v5953
  %7814 = vmatprep.subr.bf16.mxu0 %v5946
  %7815 = vmatpush1.bf16.msra.mxu0 %v5945
  %7816 = vmatprep.subr.bf16.mxu0 %v5938
  %7817 = vmatpush1.bf16.msra.mxu0 %v5937
  %7818 = vmatprep.subr.bf16.mxu0 %v5930
  %7819 = vmatpush1.bf16.msra.mxu0 %v5929
  %7820 = vmatprep.subr.bf16.mxu0 %v5922
  %7821 = vmatpush1.bf16.msra.mxu0 %v5921
  %7822 = vmatprep.subr.bf16.mxu0 0
  %7823 = vmatpush2.bf16.msra.mxu0 0
  %7824 = vmatprep.subr.bf16.mxu0 0
  %7825 = vmatpush2.bf16.msra.mxu0 0
  %7826 = vmatprep.subr.bf16.mxu0 0
  %7827 = vmatpush2.bf16.msra.mxu0 0
  %7828 = vmatprep.subr.bf16.mxu0 0
  %7829 = vmatpush2.bf16.msra.mxu0 0
  %7830 = vmatprep.subr.bf16.mxu0 0
  %7831 = vmatpush2.bf16.msra.mxu0 0
  %7832 = vmatprep.subr.bf16.mxu0 0
  %7833 = vmatpush2.bf16.msra.mxu0 0
  %7834 = vmatprep.subr.bf16.mxu0 0
  %7835 = vmatpush2.bf16.msra.mxu0 0
  %7836 = vmatprep.subr.bf16.mxu0 0
  %7837 = vmatpush2.bf16.msra.mxu0 0
  %7838 = vmatprep.mubr.bf16.mxu0 0
  %7839 = vmatmul.mubr.bf16.gmra.mxu0 %v7719
  %v7840 = vpop.f32.mrf.mxu0
  %v7841 = vadd.f32 0.0, %v7840
  %v7842 = vpop.f32.mrf.mxu0
  %v7843 = vadd.f32 0.0, %v7842
  %v7844 = vpop.f32.mrf.mxu0
  %v7845 = vadd.f32 0.0, %v7844
  %v7846 = vpop.f32.mrf.mxu0
  %v7847 = vadd.f32 0.0, %v7846
  %7848 = vdwg.mxu0
  %7849 = vmatprep.subr.bf16.mxu0 %v5980
  %7850 = vmatpush1.bf16.msra.mxu0 %v5979
  %7851 = vmatprep.subr.bf16.mxu0 %v5972
  %7852 = vmatpush1.bf16.msra.mxu0 %v5971
  %7853 = vmatprep.subr.bf16.mxu0 %v5964
  %7854 = vmatpush1.bf16.msra.mxu0 %v5963
  %7855 = vmatprep.subr.bf16.mxu0 %v5956
  %7856 = vmatpush1.bf16.msra.mxu0 %v5955
  %7857 = vmatprep.subr.bf16.mxu0 %v5948
  %7858 = vmatpush1.bf16.msra.mxu0 %v5947
  %7859 = vmatprep.subr.bf16.mxu0 %v5940
  %7860 = vmatpush1.bf16.msra.mxu0 %v5939
  %7861 = vmatprep.subr.bf16.mxu0 %v5932
  %7862 = vmatpush1.bf16.msra.mxu0 %v5931
  %7863 = vmatprep.subr.bf16.mxu0 %v5924
  %7864 = vmatpush1.bf16.msra.mxu0 %v5923
  %7865 = vmatprep.subr.bf16.mxu0 0
  %7866 = vmatpush2.bf16.msra.mxu0 0
  %7867 = vmatprep.subr.bf16.mxu0 0
  %7868 = vmatpush2.bf16.msra.mxu0 0
  %7869 = vmatprep.subr.bf16.mxu0 0
  %7870 = vmatpush2.bf16.msra.mxu0 0
  %7871 = vmatprep.subr.bf16.mxu0 0
  %7872 = vmatpush2.bf16.msra.mxu0 0
  %7873 = vmatprep.subr.bf16.mxu0 0
  %7874 = vmatpush2.bf16.msra.mxu0 0
  %7875 = vmatprep.subr.bf16.mxu0 0
  %7876 = vmatpush2.bf16.msra.mxu0 0
  %7877 = vmatprep.subr.bf16.mxu0 0
  %7878 = vmatpush2.bf16.msra.mxu0 0
  %7879 = vmatprep.subr.bf16.mxu0 0
  %7880 = vmatpush2.bf16.msra.mxu0 0
  %7881 = vmatprep.mubr.bf16.mxu0 0
  %7882 = vmatmul.mubr.bf16.gmra.mxu0 %v7719
  %v7883 = vpop.f32.mrf.mxu0
  %v7884 = vadd.f32 0.0, %v7883
  %v7885 = vpop.f32.mrf.mxu0
  %v7886 = vadd.f32 0.0, %v7885
  %v7887 = vpop.f32.mrf.mxu0
  %v7888 = vadd.f32 0.0, %v7887
  %v7889 = vpop.f32.mrf.mxu0
  %v7890 = vadd.f32 0.0, %v7889
  %7891 = vdwg.mxu0
  %7892 = vmatprep.subr.bf16.mxu0 %v6342
  %7893 = vmatpush1.bf16.msra.mxu0 %v6341
  %7894 = vmatprep.subr.bf16.mxu0 %v6338
  %7895 = vmatpush1.bf16.msra.mxu0 %v6337
  %7896 = vmatprep.subr.bf16.mxu0 %v6334
  %7897 = vmatpush1.bf16.msra.mxu0 %v6333
  %7898 = vmatprep.subr.bf16.mxu0 %v6330
  %7899 = vmatpush1.bf16.msra.mxu0 %v6329
  %7900 = vmatprep.subr.bf16.mxu0 %v6326
  %7901 = vmatpush1.bf16.msra.mxu0 %v6325
  %7902 = vmatprep.subr.bf16.mxu0 %v6322
  %7903 = vmatpush1.bf16.msra.mxu0 %v6321
  %7904 = vmatprep.subr.bf16.mxu0 %v6318
  %7905 = vmatpush1.bf16.msra.mxu0 %v6317
  %7906 = vmatprep.subr.bf16.mxu0 %v6314
  %7907 = vmatpush1.bf16.msra.mxu0 %v6313
  %7908 = vmatprep.subr.bf16.mxu0 0
  %7909 = vmatpush2.bf16.msra.mxu0 0
  %7910 = vmatprep.subr.bf16.mxu0 0
  %7911 = vmatpush2.bf16.msra.mxu0 0
  %7912 = vmatprep.subr.bf16.mxu0 0
  %7913 = vmatpush2.bf16.msra.mxu0 0
  %7914 = vmatprep.subr.bf16.mxu0 0
  %7915 = vmatpush2.bf16.msra.mxu0 0
  %7916 = vmatprep.subr.bf16.mxu0 0
  %7917 = vmatpush2.bf16.msra.mxu0 0
  %7918 = vmatprep.subr.bf16.mxu0 0
  %7919 = vmatpush2.bf16.msra.mxu0 0
  %7920 = vmatprep.subr.bf16.mxu0 0
  %7921 = vmatpush2.bf16.msra.mxu0 0
  %7922 = vmatprep.subr.bf16.mxu0 0
  %7923 = vmatpush2.bf16.msra.mxu0 0
  %7924 = vmatprep.mubr.bf16.mxu0 0
  %7925 = vmatmul.mubr.bf16.gmra.mxu0 %v7651
  %v7926 = vpop.f32.mrf.mxu0
  %v7927 = vadd.f32 0.0, %v7926
  %v7928 = vpop.f32.mrf.mxu0
  %v7929 = vadd.f32 0.0, %v7928
  %v7930 = vpop.f32.mrf.mxu0
  %v7931 = vadd.f32 0.0, %v7930
  %v7932 = vpop.f32.mrf.mxu0
  %v7933 = vadd.f32 0.0, %v7932
  %7934 = vdwg.mxu0
  %7935 = vmatprep.subr.bf16.mxu0 %v6344
  %7936 = vmatpush1.bf16.msra.mxu0 %v6343
  %7937 = vmatprep.subr.bf16.mxu0 %v6340
  %7938 = vmatpush1.bf16.msra.mxu0 %v6339
  %7939 = vmatprep.subr.bf16.mxu0 %v6336
  %7940 = vmatpush1.bf16.msra.mxu0 %v6335
  %7941 = vmatprep.subr.bf16.mxu0 %v6332
  %7942 = vmatpush1.bf16.msra.mxu0 %v6331
  %7943 = vmatprep.subr.bf16.mxu0 %v6328
  %7944 = vmatpush1.bf16.msra.mxu0 %v6327
  %7945 = vmatprep.subr.bf16.mxu0 %v6324
  %7946 = vmatpush1.bf16.msra.mxu0 %v6323
  %7947 = vmatprep.subr.bf16.mxu0 %v6320
  %7948 = vmatpush1.bf16.msra.mxu0 %v6319
  %7949 = vmatprep.subr.bf16.mxu0 %v6316
  %7950 = vmatpush1.bf16.msra.mxu0 %v6315
  %7951 = vmatprep.subr.bf16.mxu0 0
  %7952 = vmatpush2.bf16.msra.mxu0 0
  %7953 = vmatprep.subr.bf16.mxu0 0
  %7954 = vmatpush2.bf16.msra.mxu0 0
  %7955 = vmatprep.subr.bf16.mxu0 0
  %7956 = vmatpush2.bf16.msra.mxu0 0
  %7957 = vmatprep.subr.bf16.mxu0 0
  %7958 = vmatpush2.bf16.msra.mxu0 0
  %7959 = vmatprep.subr.bf16.mxu0 0
  %7960 = vmatpush2.bf16.msra.mxu0 0
  %7961 = vmatprep.subr.bf16.mxu0 0
  %7962 = vmatpush2.bf16.msra.mxu0 0
  %7963 = vmatprep.subr.bf16.mxu0 0
  %7964 = vmatpush2.bf16.msra.mxu0 0
  %7965 = vmatprep.subr.bf16.mxu0 0
  %7966 = vmatpush2.bf16.msra.mxu0 0
  %7967 = vmatprep.mubr.bf16.mxu0 0
  %7968 = vmatmul.mubr.bf16.gmra.mxu0 %v7651
  %v7969 = vpop.f32.mrf.mxu0
  %v7970 = vadd.f32 0.0, %v7969
  %v7971 = vpop.f32.mrf.mxu0
  %v7972 = vadd.f32 0.0, %v7971
  %v7973 = vpop.f32.mrf.mxu0
  %v7974 = vadd.f32 0.0, %v7973
  %v7975 = vpop.f32.mrf.mxu0
  %v7976 = vadd.f32 0.0, %v7975
  %7977 = vdwg.mxu0
  %v7978 = vadd.f32 %v7841, %v7927
  %v7979 = vadd.f32 %v7843, %v7929
  %v7980 = vadd.f32 %v7884, %v7970
  %v7981 = vadd.f32 %v7886, %v7972
  %v7982 = vadd.f32 %v7845, %v7931
  %v7983 = vadd.f32 %v7847, %v7933
  %v7984 = vadd.f32 %v7888, %v7974
  %v7985 = vadd.f32 %v7890, %v7976
  %v7986 = vadd.f32 %v7978, %v334
  %v7987 = vadd.f32 %v7979, %v338
  %v7988 = vadd.f32 %v7980, %v342
  %v7989 = vadd.f32 %v7981, %v346
  %v7990 = vadd.f32 %v7982, %v334
  %v7991 = vadd.f32 %v7983, %v338
  %v7992 = vadd.f32 %v7984, %v342
  %v7993 = vadd.f32 %v7985, %v346
  %v7994 = vmul.f32 %v7986, 0.5
  %v7995 = vmul.f32 %v7990, 0.5
  %v7996 = vtanh.pop %v7994
  %v7997 = vtanh.pop %v7995
  %v7998 = vadd.f32 %v7996, 1.0
  %v7999 = vadd.f32 %v7997, 1.0
  %v8000 = vmul.f32 %v7998, 0.5
  %v8001 = vmul.f32 %v7999, 0.5
  %v8002 = vmul.f32 %v7987, 0.5
  %v8003 = vmul.f32 %v7991, 0.5
  %v8004 = vtanh.pop %v8002
  %v8005 = vtanh.pop %v8003
  %v8006 = vadd.f32 %v8004, 1.0
  %v8007 = vadd.f32 %v8005, 1.0
  %v8008 = vmul.f32 %v8006, 0.5
  %v8009 = vmul.f32 %v8007, 0.5
  %v8010 = vtanh.pop %v7988
  %v8011 = vtanh.pop %v7992
  %v8012 = vmul.f32 %v7989, 0.5
  %v8013 = vmul.f32 %v7993, 0.5
  %v8014 = vtanh.pop %v8012
  %v8015 = vtanh.pop %v8013
  %v8016 = vadd.f32 %v8014, 1.0
  %v8017 = vadd.f32 %v8015, 1.0
  %v8018 = vmul.f32 %v8016, 0.5
  %v8019 = vmul.f32 %v8017, 0.5
  %v8020 = vmul.f32 %v8008, %v7645
  %v8021 = vmul.f32 %v8009, %v7646
  %v8022 = vmul.f32 %v8000, %v8010
  %v8023 = vmul.f32 %v8001, %v8011
  %v8024 = vadd.f32 %v8020, %v8022
  %v8025 = vadd.f32 %v8021, %v8023
  %v8026 = vtanh.pop %v8024
  %v8027 = vtanh.pop %v8025
  %v8028 = vmul.f32 %v8018, %v8026
  %v8029 = vmul.f32 %v8019, %v8027
  %v8030 = vpack.c.bf16 %v8029, %v8028
  %v8032 = vunpack.c.l.b16 %v8030
  %v8033 = vunpack.c.h.b16 %v8030
  %v8034 = vpack.c.b16 %v8032, %v8032
  %v8035 = vpack.c.b16 %v8033, %v8033
  %s8038 = scalar_lea.vmem [#allocation5], 32
  %8039 = vst [vmem:[%s8038] sm:$0xf] %v8034
  %8040 = vst [vmem:[%s8038 + $0x4] sm:$0xf] %v8035
  %s8041 = scalar_lea.vmem [#allocation3], 160
  %v8042 = vld [vmem:[%s8041] sm:$0xff]
  %v8043 = vld [vmem:[%s8041 + $0x8] sm:$0xff]
  %v8044 = vld [vmem:[%s8041 + $0x10] sm:$0xff]
  %v8045 = vld [vmem:[%s8041 + $0x18] sm:$0xff]
  %v8046 = vunpack.c.l.bf16 %v8042
  %v8047 = vunpack.c.h.bf16 %v8042
  %v8048 = vunpack.c.l.bf16 %v8043
  %v8049 = vunpack.c.h.bf16 %v8043
  %v8050 = vunpack.c.l.bf16 %v8044
  %v8051 = vunpack.c.h.bf16 %v8044
  %v8052 = vunpack.c.l.bf16 %v8045
  %v8053 = vunpack.c.h.bf16 %v8045
  %v8054 = vadd.f32 %v8046, %v7755
  %v8055 = vadd.f32 %v8047, %v7757
  %v8056 = vadd.f32 %v8048, %v7798
  %v8057 = vadd.f32 %v8049, %v7800
  %v8058 = vadd.f32 %v8050, %v7759
  %v8059 = vadd.f32 %v8051, %v7761
  %v8060 = vadd.f32 %v8052, %v7802
  %v8061 = vadd.f32 %v8053, %v7804
  %v8062 = vmul.f32 %v8054, 0.5
  %v8063 = vmul.f32 %v8058, 0.5
  %v8064 = vtanh.pop %v8062
  %v8065 = vtanh.pop %v8063
  %v8066 = vadd.f32 %v8064, 1.0
  %v8067 = vadd.f32 %v8065, 1.0
  %v8068 = vmul.f32 %v8066, 0.5
  %v8069 = vmul.f32 %v8067, 0.5
  %v8070 = vmul.f32 %v8055, 0.5
  %v8071 = vmul.f32 %v8059, 0.5
  %v8072 = vtanh.pop %v8070
  %v8073 = vtanh.pop %v8071
  %v8074 = vadd.f32 %v8072, 1.0
  %v8075 = vadd.f32 %v8073, 1.0
  %v8076 = vmul.f32 %v8074, 0.5
  %v8077 = vmul.f32 %v8075, 0.5
  %v8078 = vtanh.pop %v8056
  %v8079 = vtanh.pop %v8060
  %v8080 = vmul.f32 %v8057, 0.5
  %v8081 = vmul.f32 %v8061, 0.5
  %v8082 = vtanh.pop %v8080
  %v8083 = vtanh.pop %v8081
  %v8084 = vadd.f32 %v8082, 1.0
  %v8085 = vadd.f32 %v8083, 1.0
  %v8086 = vmul.f32 %v8084, 0.5
  %v8087 = vmul.f32 %v8085, 0.5
  %v8088 = vmul.f32 %v8076, %v7713
  %v8089 = vmul.f32 %v8077, %v7714
  %v8090 = vmul.f32 %v8068, %v8078
  %v8091 = vmul.f32 %v8069, %v8079
  %v8092 = vadd.f32 %v8088, %v8090
  %v8093 = vadd.f32 %v8089, %v8091
  %v8094 = vtanh.pop %v8092
  %v8095 = vtanh.pop %v8093
  %v8096 = vmul.f32 %v8086, %v8094
  %v8097 = vmul.f32 %v8087, %v8095
  %v8098 = vpack.c.bf16 %v8097, %v8096
  %8099 = vmatprep.subr.bf16.mxu0 %v5974
  %8100 = vmatpush1.bf16.msra.mxu0 %v5973
  %8101 = vmatprep.subr.bf16.mxu0 %v5966
  %8102 = vmatpush1.bf16.msra.mxu0 %v5965
  %8103 = vmatprep.subr.bf16.mxu0 %v5958
  %8104 = vmatpush1.bf16.msra.mxu0 %v5957
  %8105 = vmatprep.subr.bf16.mxu0 %v5950
  %8106 = vmatpush1.bf16.msra.mxu0 %v5949
  %8107 = vmatprep.subr.bf16.mxu0 %v5942
  %8108 = vmatpush1.bf16.msra.mxu0 %v5941
  %8109 = vmatprep.subr.bf16.mxu0 %v5934
  %8110 = vmatpush1.bf16.msra.mxu0 %v5933
  %8111 = vmatprep.subr.bf16.mxu0 %v5926
  %8112 = vmatpush1.bf16.msra.mxu0 %v5925
  %8113 = vmatprep.subr.bf16.mxu0 %v5918
  %8114 = vmatpush1.bf16.msra.mxu0 %v5917
  %8115 = vmatprep.subr.bf16.mxu0 0
  %8116 = vmatpush2.bf16.msra.mxu0 0
  %8117 = vmatprep.subr.bf16.mxu0 0
  %8118 = vmatpush2.bf16.msra.mxu0 0
  %8119 = vmatprep.subr.bf16.mxu0 0
  %8120 = vmatpush2.bf16.msra.mxu0 0
  %8121 = vmatprep.subr.bf16.mxu0 0
  %8122 = vmatpush2.bf16.msra.mxu0 0
  %8123 = vmatprep.subr.bf16.mxu0 0
  %8124 = vmatpush2.bf16.msra.mxu0 0
  %8125 = vmatprep.subr.bf16.mxu0 0
  %8126 = vmatpush2.bf16.msra.mxu0 0
  %8127 = vmatprep.subr.bf16.mxu0 0
  %8128 = vmatpush2.bf16.msra.mxu0 0
  %8129 = vmatprep.subr.bf16.mxu0 0
  %8130 = vmatpush2.bf16.msra.mxu0 0
  %8131 = vmatprep.mubr.bf16.mxu0 0
  %8132 = vmatmul.mubr.bf16.gmra.mxu0 %v8098
  %v8133 = vpop.f32.mrf.mxu0
  %v8134 = vadd.f32 0.0, %v8133
  %v8135 = vpop.f32.mrf.mxu0
  %v8136 = vadd.f32 0.0, %v8135
  %v8137 = vpop.f32.mrf.mxu0
  %v8138 = vadd.f32 0.0, %v8137
  %v8139 = vpop.f32.mrf.mxu0
  %v8140 = vadd.f32 0.0, %v8139
  %8141 = vdwg.mxu0
  %8142 = vmatprep.subr.bf16.mxu0 %v5976
  %8143 = vmatpush1.bf16.msra.mxu0 %v5975
  %8144 = vmatprep.subr.bf16.mxu0 %v5968
  %8145 = vmatpush1.bf16.msra.mxu0 %v5967
  %8146 = vmatprep.subr.bf16.mxu0 %v5960
  %8147 = vmatpush1.bf16.msra.mxu0 %v5959
  %8148 = vmatprep.subr.bf16.mxu0 %v5952
  %8149 = vmatpush1.bf16.msra.mxu0 %v5951
  %8150 = vmatprep.subr.bf16.mxu0 %v5944
  %8151 = vmatpush1.bf16.msra.mxu0 %v5943
  %8152 = vmatprep.subr.bf16.mxu0 %v5936
  %8153 = vmatpush1.bf16.msra.mxu0 %v5935
  %8154 = vmatprep.subr.bf16.mxu0 %v5928
  %8155 = vmatpush1.bf16.msra.mxu0 %v5927
  %8156 = vmatprep.subr.bf16.mxu0 %v5920
  %8157 = vmatpush1.bf16.msra.mxu0 %v5919
  %8158 = vmatprep.subr.bf16.mxu0 0
  %8159 = vmatpush2.bf16.msra.mxu0 0
  %8160 = vmatprep.subr.bf16.mxu0 0
  %8161 = vmatpush2.bf16.msra.mxu0 0
  %8162 = vmatprep.subr.bf16.mxu0 0
  %8163 = vmatpush2.bf16.msra.mxu0 0
  %8164 = vmatprep.subr.bf16.mxu0 0
  %8165 = vmatpush2.bf16.msra.mxu0 0
  %8166 = vmatprep.subr.bf16.mxu0 0
  %8167 = vmatpush2.bf16.msra.mxu0 0
  %8168 = vmatprep.subr.bf16.mxu0 0
  %8169 = vmatpush2.bf16.msra.mxu0 0
  %8170 = vmatprep.subr.bf16.mxu0 0
  %8171 = vmatpush2.bf16.msra.mxu0 0
  %8172 = vmatprep.subr.bf16.mxu0 0
  %8173 = vmatpush2.bf16.msra.mxu0 0
  %8174 = vmatprep.mubr.bf16.mxu0 0
  %8175 = vmatmul.mubr.bf16.gmra.mxu0 %v8098
  %v8176 = vpop.f32.mrf.mxu0
  %v8177 = vadd.f32 0.0, %v8176
  %v8178 = vpop.f32.mrf.mxu0
  %v8179 = vadd.f32 0.0, %v8178
  %v8180 = vpop.f32.mrf.mxu0
  %v8181 = vadd.f32 0.0, %v8180
  %v8182 = vpop.f32.mrf.mxu0
  %v8183 = vadd.f32 0.0, %v8182
  %8184 = vdwg.mxu0
  %8185 = vmatprep.subr.bf16.mxu0 %v5978
  %8186 = vmatpush1.bf16.msra.mxu0 %v5977
  %8187 = vmatprep.subr.bf16.mxu0 %v5970
  %8188 = vmatpush1.bf16.msra.mxu0 %v5969
  %8189 = vmatprep.subr.bf16.mxu0 %v5962
  %8190 = vmatpush1.bf16.msra.mxu0 %v5961
  %8191 = vmatprep.subr.bf16.mxu0 %v5954
  %8192 = vmatpush1.bf16.msra.mxu0 %v5953
  %8193 = vmatprep.subr.bf16.mxu0 %v5946
  %8194 = vmatpush1.bf16.msra.mxu0 %v5945
  %8195 = vmatprep.subr.bf16.mxu0 %v5938
  %8196 = vmatpush1.bf16.msra.mxu0 %v5937
  %8197 = vmatprep.subr.bf16.mxu0 %v5930
  %8198 = vmatpush1.bf16.msra.mxu0 %v5929
  %8199 = vmatprep.subr.bf16.mxu0 %v5922
  %8200 = vmatpush1.bf16.msra.mxu0 %v5921
  %8201 = vmatprep.subr.bf16.mxu0 0
  %8202 = vmatpush2.bf16.msra.mxu0 0
  %8203 = vmatprep.subr.bf16.mxu0 0
  %8204 = vmatpush2.bf16.msra.mxu0 0
  %8205 = vmatprep.subr.bf16.mxu0 0
  %8206 = vmatpush2.bf16.msra.mxu0 0
  %8207 = vmatprep.subr.bf16.mxu0 0
  %8208 = vmatpush2.bf16.msra.mxu0 0
  %8209 = vmatprep.subr.bf16.mxu0 0
  %8210 = vmatpush2.bf16.msra.mxu0 0
  %8211 = vmatprep.subr.bf16.mxu0 0
  %8212 = vmatpush2.bf16.msra.mxu0 0
  %8213 = vmatprep.subr.bf16.mxu0 0
  %8214 = vmatpush2.bf16.msra.mxu0 0
  %8215 = vmatprep.subr.bf16.mxu0 0
  %8216 = vmatpush2.bf16.msra.mxu0 0
  %8217 = vmatprep.mubr.bf16.mxu0 0
  %8218 = vmatmul.mubr.bf16.gmra.mxu0 %v8098
  %v8219 = vpop.f32.mrf.mxu0
  %v8220 = vadd.f32 0.0, %v8219
  %v8221 = vpop.f32.mrf.mxu0
  %v8222 = vadd.f32 0.0, %v8221
  %v8223 = vpop.f32.mrf.mxu0
  %v8224 = vadd.f32 0.0, %v8223
  %v8225 = vpop.f32.mrf.mxu0
  %v8226 = vadd.f32 0.0, %v8225
  %8227 = vdwg.mxu0
  %8228 = vmatprep.subr.bf16.mxu0 %v5980
  %8229 = vmatpush1.bf16.msra.mxu0 %v5979
  %8230 = vmatprep.subr.bf16.mxu0 %v5972
  %8231 = vmatpush1.bf16.msra.mxu0 %v5971
  %8232 = vmatprep.subr.bf16.mxu0 %v5964
  %8233 = vmatpush1.bf16.msra.mxu0 %v5963
  %8234 = vmatprep.subr.bf16.mxu0 %v5956
  %8235 = vmatpush1.bf16.msra.mxu0 %v5955
  %8236 = vmatprep.subr.bf16.mxu0 %v5948
  %8237 = vmatpush1.bf16.msra.mxu0 %v5947
  %8238 = vmatprep.subr.bf16.mxu0 %v5940
  %8239 = vmatpush1.bf16.msra.mxu0 %v5939
  %8240 = vmatprep.subr.bf16.mxu0 %v5932
  %8241 = vmatpush1.bf16.msra.mxu0 %v5931
  %8242 = vmatprep.subr.bf16.mxu0 %v5924
  %8243 = vmatpush1.bf16.msra.mxu0 %v5923
  %8244 = vmatprep.subr.bf16.mxu0 0
  %8245 = vmatpush2.bf16.msra.mxu0 0
  %8246 = vmatprep.subr.bf16.mxu0 0
  %8247 = vmatpush2.bf16.msra.mxu0 0
  %8248 = vmatprep.subr.bf16.mxu0 0
  %8249 = vmatpush2.bf16.msra.mxu0 0
  %8250 = vmatprep.subr.bf16.mxu0 0
  %8251 = vmatpush2.bf16.msra.mxu0 0
  %8252 = vmatprep.subr.bf16.mxu0 0
  %8253 = vmatpush2.bf16.msra.mxu0 0
  %8254 = vmatprep.subr.bf16.mxu0 0
  %8255 = vmatpush2.bf16.msra.mxu0 0
  %8256 = vmatprep.subr.bf16.mxu0 0
  %8257 = vmatpush2.bf16.msra.mxu0 0
  %8258 = vmatprep.subr.bf16.mxu0 0
  %8259 = vmatpush2.bf16.msra.mxu0 0
  %8260 = vmatprep.mubr.bf16.mxu0 0
  %8261 = vmatmul.mubr.bf16.gmra.mxu0 %v8098
  %v8262 = vpop.f32.mrf.mxu0
  %v8263 = vadd.f32 0.0, %v8262
  %v8264 = vpop.f32.mrf.mxu0
  %v8265 = vadd.f32 0.0, %v8264
  %v8266 = vpop.f32.mrf.mxu0
  %v8267 = vadd.f32 0.0, %v8266
  %v8268 = vpop.f32.mrf.mxu0
  %v8269 = vadd.f32 0.0, %v8268
  %8270 = vdwg.mxu0
  %8271 = vmatprep.subr.bf16.mxu0 %v6342
  %8272 = vmatpush1.bf16.msra.mxu0 %v6341
  %8273 = vmatprep.subr.bf16.mxu0 %v6338
  %8274 = vmatpush1.bf16.msra.mxu0 %v6337
  %8275 = vmatprep.subr.bf16.mxu0 %v6334
  %8276 = vmatpush1.bf16.msra.mxu0 %v6333
  %8277 = vmatprep.subr.bf16.mxu0 %v6330
  %8278 = vmatpush1.bf16.msra.mxu0 %v6329
  %8279 = vmatprep.subr.bf16.mxu0 %v6326
  %8280 = vmatpush1.bf16.msra.mxu0 %v6325
  %8281 = vmatprep.subr.bf16.mxu0 %v6322
  %8282 = vmatpush1.bf16.msra.mxu0 %v6321
  %8283 = vmatprep.subr.bf16.mxu0 %v6318
  %8284 = vmatpush1.bf16.msra.mxu0 %v6317
  %8285 = vmatprep.subr.bf16.mxu0 %v6314
  %8286 = vmatpush1.bf16.msra.mxu0 %v6313
  %8287 = vmatprep.subr.bf16.mxu0 0
  %8288 = vmatpush2.bf16.msra.mxu0 0
  %8289 = vmatprep.subr.bf16.mxu0 0
  %8290 = vmatpush2.bf16.msra.mxu0 0
  %8291 = vmatprep.subr.bf16.mxu0 0
  %8292 = vmatpush2.bf16.msra.mxu0 0
  %8293 = vmatprep.subr.bf16.mxu0 0
  %8294 = vmatpush2.bf16.msra.mxu0 0
  %8295 = vmatprep.subr.bf16.mxu0 0
  %8296 = vmatpush2.bf16.msra.mxu0 0
  %8297 = vmatprep.subr.bf16.mxu0 0
  %8298 = vmatpush2.bf16.msra.mxu0 0
  %8299 = vmatprep.subr.bf16.mxu0 0
  %8300 = vmatpush2.bf16.msra.mxu0 0
  %8301 = vmatprep.subr.bf16.mxu0 0
  %8302 = vmatpush2.bf16.msra.mxu0 0
  %8303 = vmatprep.mubr.bf16.mxu0 0
  %8304 = vmatmul.mubr.bf16.gmra.mxu0 %v8030
  %v8305 = vpop.f32.mrf.mxu0
  %v8306 = vadd.f32 0.0, %v8305
  %v8307 = vpop.f32.mrf.mxu0
  %v8308 = vadd.f32 0.0, %v8307
  %v8309 = vpop.f32.mrf.mxu0
  %v8310 = vadd.f32 0.0, %v8309
  %v8311 = vpop.f32.mrf.mxu0
  %v8312 = vadd.f32 0.0, %v8311
  %8313 = vdwg.mxu0
  %8314 = vmatprep.subr.bf16.mxu0 %v6344
  %8315 = vmatpush1.bf16.msra.mxu0 %v6343
  %8316 = vmatprep.subr.bf16.mxu0 %v6340
  %8317 = vmatpush1.bf16.msra.mxu0 %v6339
  %8318 = vmatprep.subr.bf16.mxu0 %v6336
  %8319 = vmatpush1.bf16.msra.mxu0 %v6335
  %8320 = vmatprep.subr.bf16.mxu0 %v6332
  %8321 = vmatpush1.bf16.msra.mxu0 %v6331
  %8322 = vmatprep.subr.bf16.mxu0 %v6328
  %8323 = vmatpush1.bf16.msra.mxu0 %v6327
  %8324 = vmatprep.subr.bf16.mxu0 %v6324
  %8325 = vmatpush1.bf16.msra.mxu0 %v6323
  %8326 = vmatprep.subr.bf16.mxu0 %v6320
  %8327 = vmatpush1.bf16.msra.mxu0 %v6319
  %8328 = vmatprep.subr.bf16.mxu0 %v6316
  %8329 = vmatpush1.bf16.msra.mxu0 %v6315
  %8330 = vmatprep.subr.bf16.mxu0 0
  %8331 = vmatpush2.bf16.msra.mxu0 0
  %8332 = vmatprep.subr.bf16.mxu0 0
  %8333 = vmatpush2.bf16.msra.mxu0 0
  %8334 = vmatprep.subr.bf16.mxu0 0
  %8335 = vmatpush2.bf16.msra.mxu0 0
  %8336 = vmatprep.subr.bf16.mxu0 0
  %8337 = vmatpush2.bf16.msra.mxu0 0
  %8338 = vmatprep.subr.bf16.mxu0 0
  %8339 = vmatpush2.bf16.msra.mxu0 0
  %8340 = vmatprep.subr.bf16.mxu0 0
  %8341 = vmatpush2.bf16.msra.mxu0 0
  %8342 = vmatprep.subr.bf16.mxu0 0
  %8343 = vmatpush2.bf16.msra.mxu0 0
  %8344 = vmatprep.subr.bf16.mxu0 0
  %8345 = vmatpush2.bf16.msra.mxu0 0
  %8346 = vmatprep.mubr.bf16.mxu0 0
  %8347 = vmatmul.mubr.bf16.gmra.mxu0 %v8030
  %v8348 = vpop.f32.mrf.mxu0
  %v8349 = vadd.f32 0.0, %v8348
  %v8350 = vpop.f32.mrf.mxu0
  %v8351 = vadd.f32 0.0, %v8350
  %v8352 = vpop.f32.mrf.mxu0
  %v8353 = vadd.f32 0.0, %v8352
  %v8354 = vpop.f32.mrf.mxu0
  %v8355 = vadd.f32 0.0, %v8354
  %8356 = vdwg.mxu0
  %v8357 = vadd.f32 %v8220, %v8306
  %v8358 = vadd.f32 %v8222, %v8308
  %v8359 = vadd.f32 %v8263, %v8349
  %v8360 = vadd.f32 %v8265, %v8351
  %v8361 = vadd.f32 %v8224, %v8310
  %v8362 = vadd.f32 %v8226, %v8312
  %v8363 = vadd.f32 %v8267, %v8353
  %v8364 = vadd.f32 %v8269, %v8355
  %v8365 = vadd.f32 %v8357, %v334
  %v8366 = vadd.f32 %v8358, %v338
  %v8367 = vadd.f32 %v8359, %v342
  %v8368 = vadd.f32 %v8360, %v346
  %v8369 = vadd.f32 %v8361, %v334
  %v8370 = vadd.f32 %v8362, %v338
  %v8371 = vadd.f32 %v8363, %v342
  %v8372 = vadd.f32 %v8364, %v346
  %v8373 = vmul.f32 %v8365, 0.5
  %v8374 = vmul.f32 %v8369, 0.5
  %v8375 = vtanh.pop %v8373
  %v8376 = vtanh.pop %v8374
  %v8377 = vadd.f32 %v8375, 1.0
  %v8378 = vadd.f32 %v8376, 1.0
  %v8379 = vmul.f32 %v8377, 0.5
  %v8380 = vmul.f32 %v8378, 0.5
  %v8381 = vmul.f32 %v8366, 0.5
  %v8382 = vmul.f32 %v8370, 0.5
  %v8383 = vtanh.pop %v8381
  %v8384 = vtanh.pop %v8382
  %v8385 = vadd.f32 %v8383, 1.0
  %v8386 = vadd.f32 %v8384, 1.0
  %v8387 = vmul.f32 %v8385, 0.5
  %v8388 = vmul.f32 %v8386, 0.5
  %v8389 = vtanh.pop %v8367
  %v8390 = vtanh.pop %v8371
  %v8391 = vmul.f32 %v8368, 0.5
  %v8392 = vmul.f32 %v8372, 0.5
  %v8393 = vtanh.pop %v8391
  %v8394 = vtanh.pop %v8392
  %v8395 = vadd.f32 %v8393, 1.0
  %v8396 = vadd.f32 %v8394, 1.0
  %v8397 = vmul.f32 %v8395, 0.5
  %v8398 = vmul.f32 %v8396, 0.5
  %v8399 = vmul.f32 %v8387, %v8024
  %v8400 = vmul.f32 %v8388, %v8025
  %v8401 = vmul.f32 %v8379, %v8389
  %v8402 = vmul.f32 %v8380, %v8390
  %v8403 = vadd.f32 %v8399, %v8401
  %v8404 = vadd.f32 %v8400, %v8402
  %v8405 = vtanh.pop %v8403
  %v8406 = vtanh.pop %v8404
  %v8407 = vmul.f32 %v8397, %v8405
  %v8408 = vmul.f32 %v8398, %v8406
  %v8409 = vpack.c.bf16 %v8408, %v8407
  %v8411 = vunpack.c.l.b16 %v8409
  %v8412 = vunpack.c.h.b16 %v8409
  %v8413 = vpack.c.b16 %v8411, %v8411
  %v8414 = vpack.c.b16 %v8412, %v8412
  %s8417 = scalar_lea.vmem [#allocation5], 40
  %8418 = vst [vmem:[%s8417] sm:$0xf] %v8413
  %8419 = vst [vmem:[%s8417 + $0x4] sm:$0xf] %v8414
  %s8420 = scalar_lea.vmem [#allocation3], 192
  %v8421 = vld [vmem:[%s8420] sm:$0xff]
  %v8422 = vld [vmem:[%s8420 + $0x8] sm:$0xff]
  %v8423 = vld [vmem:[%s8420 + $0x10] sm:$0xff]
  %v8424 = vld [vmem:[%s8420 + $0x18] sm:$0xff]
  %v8425 = vunpack.c.l.bf16 %v8421
  %v8426 = vunpack.c.h.bf16 %v8421
  %v8427 = vunpack.c.l.bf16 %v8422
  %v8428 = vunpack.c.h.bf16 %v8422
  %v8429 = vunpack.c.l.bf16 %v8423
  %v8430 = vunpack.c.h.bf16 %v8423
  %v8431 = vunpack.c.l.bf16 %v8424
  %v8432 = vunpack.c.h.bf16 %v8424
  %v8433 = vadd.f32 %v8425, %v8134
  %v8434 = vadd.f32 %v8426, %v8136
  %v8435 = vadd.f32 %v8427, %v8177
  %v8436 = vadd.f32 %v8428, %v8179
  %v8437 = vadd.f32 %v8429, %v8138
  %v8438 = vadd.f32 %v8430, %v8140
  %v8439 = vadd.f32 %v8431, %v8181
  %v8440 = vadd.f32 %v8432, %v8183
  %v8441 = vmul.f32 %v8433, 0.5
  %v8442 = vmul.f32 %v8437, 0.5
  %v8443 = vtanh.pop %v8441
  %v8444 = vtanh.pop %v8442
  %v8445 = vadd.f32 %v8443, 1.0
  %v8446 = vadd.f32 %v8444, 1.0
  %v8447 = vmul.f32 %v8445, 0.5
  %v8448 = vmul.f32 %v8446, 0.5
  %v8449 = vmul.f32 %v8434, 0.5
  %v8450 = vmul.f32 %v8438, 0.5
  %v8451 = vtanh.pop %v8449
  %v8452 = vtanh.pop %v8450
  %v8453 = vadd.f32 %v8451, 1.0
  %v8454 = vadd.f32 %v8452, 1.0
  %v8455 = vmul.f32 %v8453, 0.5
  %v8456 = vmul.f32 %v8454, 0.5
  %v8457 = vtanh.pop %v8435
  %v8458 = vtanh.pop %v8439
  %v8459 = vmul.f32 %v8436, 0.5
  %v8460 = vmul.f32 %v8440, 0.5
  %v8461 = vtanh.pop %v8459
  %v8462 = vtanh.pop %v8460
  %v8463 = vadd.f32 %v8461, 1.0
  %v8464 = vadd.f32 %v8462, 1.0
  %v8465 = vmul.f32 %v8463, 0.5
  %v8466 = vmul.f32 %v8464, 0.5
  %v8467 = vmul.f32 %v8455, %v8092
  %v8468 = vmul.f32 %v8456, %v8093
  %v8469 = vmul.f32 %v8447, %v8457
  %v8470 = vmul.f32 %v8448, %v8458
  %v8471 = vadd.f32 %v8467, %v8469
  %v8472 = vadd.f32 %v8468, %v8470
  %v8473 = vtanh.pop %v8471
  %v8474 = vtanh.pop %v8472
  %v8475 = vmul.f32 %v8465, %v8473
  %v8476 = vmul.f32 %v8466, %v8474
  %v8477 = vpack.c.bf16 %v8476, %v8475
  %8478 = vmatprep.subr.bf16.mxu0 %v5978
  %8479 = vmatpush1.bf16.msra.mxu0 %v5977
  %8480 = vmatprep.subr.bf16.mxu0 %v5970
  %8481 = vmatpush1.bf16.msra.mxu0 %v5969
  %8482 = vmatprep.subr.bf16.mxu0 %v5962
  %8483 = vmatpush1.bf16.msra.mxu0 %v5961
  %8484 = vmatprep.subr.bf16.mxu0 %v5954
  %8485 = vmatpush1.bf16.msra.mxu0 %v5953
  %8486 = vmatprep.subr.bf16.mxu0 %v5946
  %8487 = vmatpush1.bf16.msra.mxu0 %v5945
  %8488 = vmatprep.subr.bf16.mxu0 %v5938
  %8489 = vmatpush1.bf16.msra.mxu0 %v5937
  %8490 = vmatprep.subr.bf16.mxu0 %v5930
  %8491 = vmatpush1.bf16.msra.mxu0 %v5929
  %8492 = vmatprep.subr.bf16.mxu0 %v5922
  %8493 = vmatpush1.bf16.msra.mxu0 %v5921
  %8494 = vmatprep.subr.bf16.mxu0 0
  %8495 = vmatpush2.bf16.msra.mxu0 0
  %8496 = vmatprep.subr.bf16.mxu0 0
  %8497 = vmatpush2.bf16.msra.mxu0 0
  %8498 = vmatprep.subr.bf16.mxu0 0
  %8499 = vmatpush2.bf16.msra.mxu0 0
  %8500 = vmatprep.subr.bf16.mxu0 0
  %8501 = vmatpush2.bf16.msra.mxu0 0
  %8502 = vmatprep.subr.bf16.mxu0 0
  %8503 = vmatpush2.bf16.msra.mxu0 0
  %8504 = vmatprep.subr.bf16.mxu0 0
  %8505 = vmatpush2.bf16.msra.mxu0 0
  %8506 = vmatprep.subr.bf16.mxu0 0
  %8507 = vmatpush2.bf16.msra.mxu0 0
  %8508 = vmatprep.subr.bf16.mxu0 0
  %8509 = vmatpush2.bf16.msra.mxu0 0
  %8510 = vmatprep.mubr.bf16.mxu0 0
  %8511 = vmatmul.mubr.bf16.gmra.mxu0 %v8477
  %v8512 = vpop.f32.mrf.mxu0
  %v8513 = vadd.f32 0.0, %v8512
  %v8514 = vpop.f32.mrf.mxu0
  %v8515 = vadd.f32 0.0, %v8514
  %v8516 = vpop.f32.mrf.mxu0
  %v8517 = vadd.f32 0.0, %v8516
  %v8518 = vpop.f32.mrf.mxu0
  %v8519 = vadd.f32 0.0, %v8518
  %8520 = vdwg.mxu0
  %8521 = vmatprep.subr.bf16.mxu0 %v5980
  %8522 = vmatpush1.bf16.msra.mxu0 %v5979
  %8523 = vmatprep.subr.bf16.mxu0 %v5972
  %8524 = vmatpush1.bf16.msra.mxu0 %v5971
  %8525 = vmatprep.subr.bf16.mxu0 %v5964
  %8526 = vmatpush1.bf16.msra.mxu0 %v5963
  %8527 = vmatprep.subr.bf16.mxu0 %v5956
  %8528 = vmatpush1.bf16.msra.mxu0 %v5955
  %8529 = vmatprep.subr.bf16.mxu0 %v5948
  %8530 = vmatpush1.bf16.msra.mxu0 %v5947
  %8531 = vmatprep.subr.bf16.mxu0 %v5940
  %8532 = vmatpush1.bf16.msra.mxu0 %v5939
  %8533 = vmatprep.subr.bf16.mxu0 %v5932
  %8534 = vmatpush1.bf16.msra.mxu0 %v5931
  %8535 = vmatprep.subr.bf16.mxu0 %v5924
  %8536 = vmatpush1.bf16.msra.mxu0 %v5923
  %8537 = vmatprep.subr.bf16.mxu0 0
  %8538 = vmatpush2.bf16.msra.mxu0 0
  %8539 = vmatprep.subr.bf16.mxu0 0
  %8540 = vmatpush2.bf16.msra.mxu0 0
  %8541 = vmatprep.subr.bf16.mxu0 0
  %8542 = vmatpush2.bf16.msra.mxu0 0
  %8543 = vmatprep.subr.bf16.mxu0 0
  %8544 = vmatpush2.bf16.msra.mxu0 0
  %8545 = vmatprep.subr.bf16.mxu0 0
  %8546 = vmatpush2.bf16.msra.mxu0 0
  %8547 = vmatprep.subr.bf16.mxu0 0
  %8548 = vmatpush2.bf16.msra.mxu0 0
  %8549 = vmatprep.subr.bf16.mxu0 0
  %8550 = vmatpush2.bf16.msra.mxu0 0
  %8551 = vmatprep.subr.bf16.mxu0 0
  %8552 = vmatpush2.bf16.msra.mxu0 0
  %8553 = vmatprep.mubr.bf16.mxu0 0
  %8554 = vmatmul.mubr.bf16.gmra.mxu0 %v8477
  %v8555 = vpop.f32.mrf.mxu0
  %v8556 = vadd.f32 0.0, %v8555
  %v8557 = vpop.f32.mrf.mxu0
  %v8558 = vadd.f32 0.0, %v8557
  %v8559 = vpop.f32.mrf.mxu0
  %v8560 = vadd.f32 0.0, %v8559
  %v8561 = vpop.f32.mrf.mxu0
  %v8562 = vadd.f32 0.0, %v8561
  %8563 = vdwg.mxu0
  %8564 = vmatprep.subr.bf16.mxu0 %v6342
  %8565 = vmatpush1.bf16.msra.mxu0 %v6341
  %8566 = vmatprep.subr.bf16.mxu0 %v6338
  %8567 = vmatpush1.bf16.msra.mxu0 %v6337
  %8568 = vmatprep.subr.bf16.mxu0 %v6334
  %8569 = vmatpush1.bf16.msra.mxu0 %v6333
  %8570 = vmatprep.subr.bf16.mxu0 %v6330
  %8571 = vmatpush1.bf16.msra.mxu0 %v6329
  %8572 = vmatprep.subr.bf16.mxu0 %v6326
  %8573 = vmatpush1.bf16.msra.mxu0 %v6325
  %8574 = vmatprep.subr.bf16.mxu0 %v6322
  %8575 = vmatpush1.bf16.msra.mxu0 %v6321
  %8576 = vmatprep.subr.bf16.mxu0 %v6318
  %8577 = vmatpush1.bf16.msra.mxu0 %v6317
  %8578 = vmatprep.subr.bf16.mxu0 %v6314
  %8579 = vmatpush1.bf16.msra.mxu0 %v6313
  %8580 = vmatprep.subr.bf16.mxu0 0
  %8581 = vmatpush2.bf16.msra.mxu0 0
  %8582 = vmatprep.subr.bf16.mxu0 0
  %8583 = vmatpush2.bf16.msra.mxu0 0
  %8584 = vmatprep.subr.bf16.mxu0 0
  %8585 = vmatpush2.bf16.msra.mxu0 0
  %8586 = vmatprep.subr.bf16.mxu0 0
  %8587 = vmatpush2.bf16.msra.mxu0 0
  %8588 = vmatprep.subr.bf16.mxu0 0
  %8589 = vmatpush2.bf16.msra.mxu0 0
  %8590 = vmatprep.subr.bf16.mxu0 0
  %8591 = vmatpush2.bf16.msra.mxu0 0
  %8592 = vmatprep.subr.bf16.mxu0 0
  %8593 = vmatpush2.bf16.msra.mxu0 0
  %8594 = vmatprep.subr.bf16.mxu0 0
  %8595 = vmatpush2.bf16.msra.mxu0 0
  %8596 = vmatprep.mubr.bf16.mxu0 0
  %8597 = vmatmul.mubr.bf16.gmra.mxu0 %v8409
  %v8598 = vpop.f32.mrf.mxu0
  %v8599 = vadd.f32 0.0, %v8598
  %v8600 = vpop.f32.mrf.mxu0
  %v8601 = vadd.f32 0.0, %v8600
  %v8602 = vpop.f32.mrf.mxu0
  %v8603 = vadd.f32 0.0, %v8602
  %v8604 = vpop.f32.mrf.mxu0
  %v8605 = vadd.f32 0.0, %v8604
  %8606 = vdwg.mxu0
  %8607 = vmatprep.subr.bf16.mxu0 %v6344
  %8608 = vmatpush1.bf16.msra.mxu0 %v6343
  %8609 = vmatprep.subr.bf16.mxu0 %v6340
  %8610 = vmatpush1.bf16.msra.mxu0 %v6339
  %8611 = vmatprep.subr.bf16.mxu0 %v6336
  %8612 = vmatpush1.bf16.msra.mxu0 %v6335
  %8613 = vmatprep.subr.bf16.mxu0 %v6332
  %8614 = vmatpush1.bf16.msra.mxu0 %v6331
  %8615 = vmatprep.subr.bf16.mxu0 %v6328
  %8616 = vmatpush1.bf16.msra.mxu0 %v6327
  %8617 = vmatprep.subr.bf16.mxu0 %v6324
  %8618 = vmatpush1.bf16.msra.mxu0 %v6323
  %8619 = vmatprep.subr.bf16.mxu0 %v6320
  %8620 = vmatpush1.bf16.msra.mxu0 %v6319
  %8621 = vmatprep.subr.bf16.mxu0 %v6316
  %8622 = vmatpush1.bf16.msra.mxu0 %v6315
  %8623 = vmatprep.subr.bf16.mxu0 0
  %8624 = vmatpush2.bf16.msra.mxu0 0
  %8625 = vmatprep.subr.bf16.mxu0 0
  %8626 = vmatpush2.bf16.msra.mxu0 0
  %8627 = vmatprep.subr.bf16.mxu0 0
  %8628 = vmatpush2.bf16.msra.mxu0 0
  %8629 = vmatprep.subr.bf16.mxu0 0
  %8630 = vmatpush2.bf16.msra.mxu0 0
  %8631 = vmatprep.subr.bf16.mxu0 0
  %8632 = vmatpush2.bf16.msra.mxu0 0
  %8633 = vmatprep.subr.bf16.mxu0 0
  %8634 = vmatpush2.bf16.msra.mxu0 0
  %8635 = vmatprep.subr.bf16.mxu0 0
  %8636 = vmatpush2.bf16.msra.mxu0 0
  %8637 = vmatprep.subr.bf16.mxu0 0
  %8638 = vmatpush2.bf16.msra.mxu0 0
  %8639 = vmatprep.mubr.bf16.mxu0 0
  %8640 = vmatmul.mubr.bf16.gmra.mxu0 %v8409
  %v8641 = vpop.f32.mrf.mxu0
  %v8642 = vadd.f32 0.0, %v8641
  %v8643 = vpop.f32.mrf.mxu0
  %v8644 = vadd.f32 0.0, %v8643
  %v8645 = vpop.f32.mrf.mxu0
  %v8646 = vadd.f32 0.0, %v8645
  %v8647 = vpop.f32.mrf.mxu0
  %v8648 = vadd.f32 0.0, %v8647
  %8649 = vdwg.mxu0
  %v8650 = vadd.f32 %v8513, %v8599
  %v8651 = vadd.f32 %v8515, %v8601
  %v8652 = vadd.f32 %v8556, %v8642
  %v8653 = vadd.f32 %v8558, %v8644
  %v8654 = vadd.f32 %v8517, %v8603
  %v8655 = vadd.f32 %v8519, %v8605
  %v8656 = vadd.f32 %v8560, %v8646
  %v8657 = vadd.f32 %v8562, %v8648
  %v8658 = vadd.f32 %v8650, %v334
  %v8659 = vadd.f32 %v8651, %v338
  %v8660 = vadd.f32 %v8652, %v342
  %v8661 = vadd.f32 %v8653, %v346
  %v8662 = vadd.f32 %v8654, %v334
  %v8663 = vadd.f32 %v8655, %v338
  %v8664 = vadd.f32 %v8656, %v342
  %v8665 = vadd.f32 %v8657, %v346
  %v8666 = vmul.f32 %v8658, 0.5
  %v8667 = vmul.f32 %v8662, 0.5
  %v8668 = vtanh.pop %v8666
  %v8669 = vtanh.pop %v8667
  %v8670 = vadd.f32 %v8668, 1.0
  %v8671 = vadd.f32 %v8669, 1.0
  %v8672 = vmul.f32 %v8670, 0.5
  %v8673 = vmul.f32 %v8671, 0.5
  %v8674 = vmul.f32 %v8659, 0.5
  %v8675 = vmul.f32 %v8663, 0.5
  %v8676 = vtanh.pop %v8674
  %v8677 = vtanh.pop %v8675
  %v8678 = vadd.f32 %v8676, 1.0
  %v8679 = vadd.f32 %v8677, 1.0
  %v8680 = vmul.f32 %v8678, 0.5
  %v8681 = vmul.f32 %v8679, 0.5
  %v8682 = vtanh.pop %v8660
  %v8683 = vtanh.pop %v8664
  %v8684 = vmul.f32 %v8661, 0.5
  %v8685 = vmul.f32 %v8665, 0.5
  %v8686 = vtanh.pop %v8684
  %v8687 = vtanh.pop %v8685
  %v8688 = vadd.f32 %v8686, 1.0
  %v8689 = vadd.f32 %v8687, 1.0
  %v8690 = vmul.f32 %v8688, 0.5
  %v8691 = vmul.f32 %v8689, 0.5
  %v8692 = vmul.f32 %v8680, %v8403
  %v8693 = vmul.f32 %v8681, %v8404
  %v8694 = vmul.f32 %v8672, %v8682
  %v8695 = vmul.f32 %v8673, %v8683
  %v8696 = vadd.f32 %v8692, %v8694
  %v8697 = vadd.f32 %v8693, %v8695
  %v8698 = vtanh.pop %v8696
  %v8699 = vtanh.pop %v8697
  %v8700 = vmul.f32 %v8690, %v8698
  %v8701 = vmul.f32 %v8691, %v8699
  %v8702 = vpack.c.bf16 %v8701, %v8700
  %v8704 = vunpack.c.l.b16 %v8702
  %v8705 = vunpack.c.h.b16 %v8702
  %v8706 = vpack.c.b16 %v8704, %v8704
  %v8707 = vpack.c.b16 %v8705, %v8705
  %s8710 = scalar_lea.vmem [#allocation5], 48
  %8711 = vst [vmem:[%s8710] sm:$0xf] %v8706
  %8712 = vst [vmem:[%s8710 + $0x4] sm:$0xf] %v8707
  %s8713 = smul.u32 4, 16
  %s8714 = smul.u32 %s8713, 1
  %s8715 = sshll.u32 %s8714, 4
  %8716 = dma.done [#allocation7], %s8715
  %v8717 = vld [vmem:[#allocation5] sm:$0xf]
  %v8718 = vld [vmem:[#allocation5 + $0x4] sm:$0xf]
  %v8719 = vld [vmem:[#allocation5 + $0x8] sm:$0xf]
  %v8720 = vld [vmem:[#allocation5 + $0xc] sm:$0xf]
  %v8721 = vld [vmem:[#allocation5 + $0x10] sm:$0xf]
  %v8722 = vld [vmem:[#allocation5 + $0x14] sm:$0xf]
  %v8723 = vld [vmem:[#allocation5 + $0x18] sm:$0xf]
  %v8724 = vld [vmem:[#allocation5 + $0x1c] sm:$0xf]
  %v8725 = vld [vmem:[#allocation5 + $0x20] sm:$0xf]
  %v8726 = vld [vmem:[#allocation5 + $0x24] sm:$0xf]
  %v8727 = vld [vmem:[#allocation5 + $0x28] sm:$0xf]
  %v8728 = vld [vmem:[#allocation5 + $0x2c] sm:$0xf]
  %v8729 = vld [vmem:[#allocation5 + $0x30] sm:$0xf]
  %v8730 = vld [vmem:[#allocation5 + $0x34] sm:$0xf]
  %v8731 = vld [vmem:[#allocation6] sm:$0xf]
  %v8732 = vld [vmem:[#allocation6 + $0x4] sm:$0xf]
  %v8733 = vld [vmem:[#allocation6 + $0x8] sm:$0xf]
  %v8734 = vld [vmem:[#allocation6 + $0xc] sm:$0xf]
  %v8735 = vld [vmem:[#allocation6 + $0x10] sm:$0xf]
  %v8736 = vld [vmem:[#allocation6 + $0x14] sm:$0xf]
  %v8737 = vld [vmem:[#allocation6 + $0x18] sm:$0xf]
  %v8738 = vld [vmem:[#allocation6 + $0x1c] sm:$0xf]
  %v8739 = vld [vmem:[#allocation6 + $0x20] sm:$0xf]
  %v8740 = vld [vmem:[#allocation6 + $0x24] sm:$0xf]
  %v8741 = vld [vmem:[#allocation6 + $0x28] sm:$0xf]
  %v8742 = vld [vmem:[#allocation6 + $0x2c] sm:$0xf]
  %v8743 = vld [vmem:[#allocation6 + $0x30] sm:$0xf]
  %v8744 = vld [vmem:[#allocation6 + $0x34] sm:$0xf]
  %v8745 = vld [vmem:[#allocation6 + $0x38] sm:$0xf]
  %v8746 = vld [vmem:[#allocation6 + $0x3c] sm:$0xf]
  %v8747 = vld [vmem:[%s16] sm:$0x1]
  %v8749 = vlaneseq
  %v8750 = vshrl.u32 %v8749, 7
  %v8751 = vsub.s32 0, %v8750
  %v8752 = vrot.slane %v8747, %v8751
  %v8768 = vunpack.c.l.b16 %v8717
  %v8769 = vunpack.c.l.b16 %v8718
  %v8770 = vunpack.c.l.b16 %v8719
  %v8771 = vunpack.c.l.b16 %v8720
  %v8772 = vunpack.c.l.b16 %v8721
  %v8773 = vunpack.c.l.b16 %v8722
  %v8774 = vunpack.c.l.b16 %v8723
  %v8775 = vunpack.c.l.b16 %v8724
  %v8776 = vunpack.c.l.b16 %v8725
  %v8777 = vunpack.c.l.b16 %v8726
  %v8778 = vunpack.c.l.b16 %v8727
  %v8779 = vunpack.c.l.b16 %v8728
  %v8780 = vunpack.c.l.b16 %v8729
  %v8781 = vunpack.c.l.b16 %v8730
  %v8782 = vpack.c.b16 %v8769, %v8768
  %v8783 = vpack.c.b16 %v8771, %v8770
  %v8784 = vpack.c.b16 %v8773, %v8772
  %v8785 = vpack.c.b16 %v8775, %v8774
  %v8786 = vpack.c.b16 %v8777, %v8776
  %v8787 = vpack.c.b16 %v8779, %v8778
  %v8788 = vpack.c.b16 %v8781, %v8780
  %v8812 = vunpack.c.l.b16 %v8731
  %v8813 = vunpack.c.l.b16 %v8732
  %v8814 = vunpack.c.l.b16 %v8733
  %v8815 = vunpack.c.l.b16 %v8734
  %v8816 = vunpack.c.l.b16 %v8735
  %v8817 = vunpack.c.l.b16 %v8736
  %v8818 = vunpack.c.l.b16 %v8737
  %v8819 = vunpack.c.l.b16 %v8738
  %v8820 = vunpack.c.l.b16 %v8739
  %v8821 = vunpack.c.l.b16 %v8740
  %v8822 = vunpack.c.l.b16 %v8741
  %v8823 = vunpack.c.l.b16 %v8742
  %v8824 = vunpack.c.l.b16 %v8743
  %v8825 = vunpack.c.l.b16 %v8744
  %v8826 = vunpack.c.l.b16 %v8745
  %v8827 = vunpack.c.l.b16 %v8746
  %v8828 = vpack.c.b16 %v8813, %v8812
  %v8829 = vpack.c.b16 %v8815, %v8814
  %v8830 = vpack.c.b16 %v8817, %v8816
  %v8831 = vpack.c.b16 %v8819, %v8818
  %v8832 = vpack.c.b16 %v8821, %v8820
  %v8833 = vpack.c.b16 %v8823, %v8822
  %v8834 = vpack.c.b16 %v8825, %v8824
  %v8835 = vpack.c.b16 %v8827, %v8826
  %8844 = vmatprep.subr.bf16.mxu0 0
  %8845 = vmatpush1.bf16.msra.mxu0 %v8835
  %8846 = vmatprep.subr.bf16.mxu0 0
  %8847 = vmatpush1.bf16.msra.mxu0 %v8834
  %8848 = vmatprep.subr.bf16.mxu0 0
  %8849 = vmatpush1.bf16.msra.mxu0 %v8833
  %8850 = vmatprep.subr.bf16.mxu0 0
  %8851 = vmatpush1.bf16.msra.mxu0 %v8832
  %8852 = vmatprep.subr.bf16.mxu0 0
  %8853 = vmatpush1.bf16.msra.mxu0 %v8831
  %8854 = vmatprep.subr.bf16.mxu0 0
  %8855 = vmatpush1.bf16.msra.mxu0 %v8830
  %8856 = vmatprep.subr.bf16.mxu0 0
  %8857 = vmatpush1.bf16.msra.mxu0 %v8829
  %8858 = vmatprep.subr.bf16.mxu0 0
  %8859 = vmatpush1.bf16.msra.mxu0 %v8828
  %8860 = vmatprep.subr.bf16.mxu0 0
  %8861 = vmatpush2.bf16.msra.mxu0 0
  %8862 = vmatprep.subr.bf16.mxu0 0
  %8863 = vmatpush2.bf16.msra.mxu0 0
  %8864 = vmatprep.subr.bf16.mxu0 0
  %8865 = vmatpush2.bf16.msra.mxu0 0
  %8866 = vmatprep.subr.bf16.mxu0 0
  %8867 = vmatpush2.bf16.msra.mxu0 0
  %8868 = vmatprep.subr.bf16.mxu0 0
  %8869 = vmatpush2.bf16.msra.mxu0 0
  %8870 = vmatprep.subr.bf16.mxu0 0
  %8871 = vmatpush2.bf16.msra.mxu0 0
  %8872 = vmatprep.subr.bf16.mxu0 0
  %8873 = vmatpush2.bf16.msra.mxu0 0
  %8874 = vmatprep.subr.bf16.mxu0 0
  %8875 = vmatpush2.bf16.msra.mxu0 0
  %8876 = vmatprep.mubr.bf16.mxu0 0
  %8877 = vmatmul.mubr.bf16.gmra.mxu0 %v8782
  %v8878 = vpop.f32.mrf.mxu0
  %v8879 = vadd.f32 %v8752, %v8878
  %v8880 = vpop.f32.mrf.mxu0
  %v8881 = vpop.f32.mrf.mxu0
  %v8882 = vadd.f32 %v8752, %v8881
  %v8883 = vpop.f32.mrf.mxu0
  %8884 = vmatprep.mubr.bf16.mxu0 0
  %8885 = vmatmul.mubr.bf16.gmra.mxu0 %v8783
  %v8886 = vpop.f32.mrf.mxu0
  %v8887 = vadd.f32 %v8752, %v8886
  %v8888 = vpop.f32.mrf.mxu0
  %v8889 = vpop.f32.mrf.mxu0
  %v8890 = vadd.f32 %v8752, %v8889
  %v8891 = vpop.f32.mrf.mxu0
  %8892 = vmatprep.mubr.bf16.mxu0 0
  %8893 = vmatmul.mubr.bf16.gmra.mxu0 %v8784
  %v8894 = vpop.f32.mrf.mxu0
  %v8895 = vadd.f32 %v8752, %v8894
  %v8896 = vpop.f32.mrf.mxu0
  %v8897 = vpop.f32.mrf.mxu0
  %v8898 = vadd.f32 %v8752, %v8897
  %v8899 = vpop.f32.mrf.mxu0
  %8900 = vmatprep.mubr.bf16.mxu0 0
  %8901 = vmatmul.mubr.bf16.gmra.mxu0 %v8785
  %v8902 = vpop.f32.mrf.mxu0
  %v8903 = vadd.f32 %v8752, %v8902
  %v8904 = vpop.f32.mrf.mxu0
  %v8905 = vpop.f32.mrf.mxu0
  %v8906 = vadd.f32 %v8752, %v8905
  %v8907 = vpop.f32.mrf.mxu0
  %8908 = vmatprep.mubr.bf16.mxu0 0
  %8909 = vmatmul.mubr.bf16.gmra.mxu0 %v8786
  %v8910 = vpop.f32.mrf.mxu0
  %v8911 = vadd.f32 %v8752, %v8910
  %v8912 = vpop.f32.mrf.mxu0
  %v8913 = vpop.f32.mrf.mxu0
  %v8914 = vadd.f32 %v8752, %v8913
  %v8915 = vpop.f32.mrf.mxu0
  %8916 = vmatprep.mubr.bf16.mxu0 0
  %8917 = vmatmul.mubr.bf16.gmra.mxu0 %v8787
  %v8918 = vpop.f32.mrf.mxu0
  %v8919 = vadd.f32 %v8752, %v8918
  %v8920 = vpop.f32.mrf.mxu0
  %v8921 = vpop.f32.mrf.mxu0
  %v8922 = vadd.f32 %v8752, %v8921
  %v8923 = vpop.f32.mrf.mxu0
  %8924 = vmatprep.mubr.bf16.mxu0 0
  %8925 = vmatmul.mubr.bf16.gmra.mxu0 %v8788
  %v8926 = vpop.f32.mrf.mxu0
  %v8927 = vadd.f32 %v8752, %v8926
  %v8928 = vpop.f32.mrf.mxu0
  %v8929 = vpop.f32.mrf.mxu0
  %v8930 = vadd.f32 %v8752, %v8929
  %v8931 = vpop.f32.mrf.mxu0
  %8932 = vdwg.mxu0
  %8933 = vmax.xlane.f32.xlu0 %v8879
  %v8934 = vpop.xlane.xlu0 %8933
  %8935 = vmax.xlane.f32.xlu0 %v8882
  %v8936 = vpop.xlane.xlu0 %8935
  %8937 = vmax.xlane.f32.xlu0 %v8887
  %v8938 = vpop.xlane.xlu0 %8937
  %8939 = vmax.xlane.f32.xlu0 %v8890
  %v8940 = vpop.xlane.xlu0 %8939
  %8941 = vmax.xlane.f32.xlu0 %v8895
  %v8942 = vpop.xlane.xlu0 %8941
  %8943 = vmax.xlane.f32.xlu0 %v8898
  %v8944 = vpop.xlane.xlu0 %8943
  %8945 = vmax.xlane.f32.xlu0 %v8903
  %v8946 = vpop.xlane.xlu0 %8945
  %8947 = vmax.xlane.f32.xlu0 %v8906
  %v8948 = vpop.xlane.xlu0 %8947
  %8949 = vmax.xlane.f32.xlu0 %v8911
  %v8950 = vpop.xlane.xlu0 %8949
  %8951 = vmax.xlane.f32.xlu0 %v8914
  %v8952 = vpop.xlane.xlu0 %8951
  %8953 = vmax.xlane.f32.xlu0 %v8919
  %v8954 = vpop.xlane.xlu0 %8953
  %8955 = vmax.xlane.f32.xlu0 %v8922
  %v8956 = vpop.xlane.xlu0 %8955
  %8957 = vmax.xlane.f32.xlu0 %v8927
  %v8958 = vpop.xlane.xlu0 %8957
  %8959 = vmax.xlane.f32.xlu0 %v8930
  %v8960 = vpop.xlane.xlu0 %8959
  %v8961 = vsub.f32 %v8879, %v8934
  %v8962 = vsub.f32 %v8882, %v8936
  %v8963 = vsub.f32 %v8887, %v8938
  %v8964 = vsub.f32 %v8890, %v8940
  %v8965 = vsub.f32 %v8895, %v8942
  %v8966 = vsub.f32 %v8898, %v8944
  %v8967 = vsub.f32 %v8903, %v8946
  %v8968 = vsub.f32 %v8906, %v8948
  %v8969 = vsub.f32 %v8911, %v8950
  %v8970 = vsub.f32 %v8914, %v8952
  %v8971 = vsub.f32 %v8919, %v8954
  %v8972 = vsub.f32 %v8922, %v8956
  %v8973 = vsub.f32 %v8927, %v8958
  %v8974 = vsub.f32 %v8930, %v8960
  %v8975 = vmul.f32 %v8961, 1.442695
  %v8976 = vpow.pop %v8975
  %v8977 = vmul.f32 %v8962, 1.442695
  %v8978 = vpow.pop %v8977
  %v8979 = vmul.f32 %v8963, 1.442695
  %v8980 = vpow.pop %v8979
  %v8981 = vmul.f32 %v8964, 1.442695
  %v8982 = vpow.pop %v8981
  %v8983 = vmul.f32 %v8965, 1.442695
  %v8984 = vpow.pop %v8983
  %v8985 = vmul.f32 %v8966, 1.442695
  %v8986 = vpow.pop %v8985
  %v8987 = vmul.f32 %v8967, 1.442695
  %v8988 = vpow.pop %v8987
  %v8989 = vmul.f32 %v8968, 1.442695
  %v8990 = vpow.pop %v8989
  %v8991 = vmul.f32 %v8969, 1.442695
  %v8992 = vpow.pop %v8991
  %v8993 = vmul.f32 %v8970, 1.442695
  %v8994 = vpow.pop %v8993
  %v8995 = vmul.f32 %v8971, 1.442695
  %v8996 = vpow.pop %v8995
  %v8997 = vmul.f32 %v8972, 1.442695
  %v8998 = vpow.pop %v8997
  %v8999 = vmul.f32 %v8973, 1.442695
  %v9000 = vpow.pop %v8999
  %v9001 = vmul.f32 %v8974, 1.442695
  %v9002 = vpow.pop %v9001
  %9003 = vadd.xlane.f32.xlu0 %v8976
  %v9004 = vpop.xlane.xlu0 %9003
  %9005 = vadd.xlane.f32.xlu0 %v8978
  %v9006 = vpop.xlane.xlu0 %9005
  %9007 = vadd.xlane.f32.xlu0 %v8980
  %v9008 = vpop.xlane.xlu0 %9007
  %9009 = vadd.xlane.f32.xlu0 %v8982
  %v9010 = vpop.xlane.xlu0 %9009
  %9011 = vadd.xlane.f32.xlu0 %v8984
  %v9012 = vpop.xlane.xlu0 %9011
  %9013 = vadd.xlane.f32.xlu0 %v8986
  %v9014 = vpop.xlane.xlu0 %9013
  %9015 = vadd.xlane.f32.xlu0 %v8988
  %v9016 = vpop.xlane.xlu0 %9015
  %9017 = vadd.xlane.f32.xlu0 %v8990
  %v9018 = vpop.xlane.xlu0 %9017
  %9019 = vadd.xlane.f32.xlu0 %v8992
  %v9020 = vpop.xlane.xlu0 %9019
  %9021 = vadd.xlane.f32.xlu0 %v8994
  %v9022 = vpop.xlane.xlu0 %9021
  %9023 = vadd.xlane.f32.xlu0 %v8996
  %v9024 = vpop.xlane.xlu0 %9023
  %9025 = vadd.xlane.f32.xlu0 %v8998
  %v9026 = vpop.xlane.xlu0 %9025
  %9027 = vadd.xlane.f32.xlu0 %v9000
  %v9028 = vpop.xlane.xlu0 %9027
  %9029 = vadd.xlane.f32.xlu0 %v9002
  %v9030 = vpop.xlane.xlu0 %9029
  %v9031 = vlog2.pop %v9004
  %v9032 = vmul.f32 %v9031, 0.6931472
  %v9033 = vlog2.pop %v9006
  %v9034 = vmul.f32 %v9033, 0.6931472
  %v9035 = vlog2.pop %v9008
  %v9036 = vmul.f32 %v9035, 0.6931472
  %v9037 = vlog2.pop %v9010
  %v9038 = vmul.f32 %v9037, 0.6931472
  %v9039 = vlog2.pop %v9012
  %v9040 = vmul.f32 %v9039, 0.6931472
  %v9041 = vlog2.pop %v9014
  %v9042 = vmul.f32 %v9041, 0.6931472
  %v9043 = vlog2.pop %v9016
  %v9044 = vmul.f32 %v9043, 0.6931472
  %v9045 = vlog2.pop %v9018
  %v9046 = vmul.f32 %v9045, 0.6931472
  %v9047 = vlog2.pop %v9020
  %v9048 = vmul.f32 %v9047, 0.6931472
  %v9049 = vlog2.pop %v9022
  %v9050 = vmul.f32 %v9049, 0.6931472
  %v9051 = vlog2.pop %v9024
  %v9052 = vmul.f32 %v9051, 0.6931472
  %v9053 = vlog2.pop %v9026
  %v9054 = vmul.f32 %v9053, 0.6931472
  %v9055 = vlog2.pop %v9028
  %v9056 = vmul.f32 %v9055, 0.6931472
  %v9057 = vlog2.pop %v9030
  %v9058 = vmul.f32 %v9057, 0.6931472
  %v9059 = vadd.f32 %v8934, %v9032
  %v9060 = vadd.f32 %v8936, %v9034
  %v9061 = vadd.f32 %v8938, %v9036
  %v9062 = vadd.f32 %v8940, %v9038
  %v9063 = vadd.f32 %v8942, %v9040
  %v9064 = vadd.f32 %v8944, %v9042
  %v9065 = vadd.f32 %v8946, %v9044
  %v9066 = vadd.f32 %v8948, %v9046
  %v9067 = vadd.f32 %v8950, %v9048
  %v9068 = vadd.f32 %v8952, %v9050
  %v9069 = vadd.f32 %v8954, %v9052
  %v9070 = vadd.f32 %v8956, %v9054
  %v9071 = vadd.f32 %v8958, %v9056
  %v9072 = vadd.f32 %v8960, %v9058
  %v9073 = vld [vmem:[%s4] sm:$0xff]
  %v9074 = vld [vmem:[%s4 + $0x8] sm:$0xff]
  %v9075 = vld [vmem:[%s4 + $0x10] sm:$0xff]
  %v9076 = vld [vmem:[%s4 + $0x18] sm:$0xff]
  %v9077 = vld [vmem:[%s4 + $0x20] sm:$0xff]
  %v9078 = vld [vmem:[%s4 + $0x28] sm:$0xff]
  %v9079 = vld [vmem:[%s4 + $0x30] sm:$0xff]
  %v9080 = vld [vmem:[%s4 + $0x38] sm:$0xff]
  %v9081 = vld [vmem:[%s4 + $0x40] sm:$0xff]
  %v9082 = vld [vmem:[%s4 + $0x48] sm:$0xff]
  %v9083 = vld [vmem:[%s4 + $0x50] sm:$0xff]
  %v9084 = vld [vmem:[%s4 + $0x58] sm:$0xff]
  %v9085 = vld [vmem:[%s4 + $0x60] sm:$0xff]
  %v9086 = vld [vmem:[%s4 + $0x68] sm:$0xff]
  %v9087 = vlaneseq
  %v9088 = vand.u32 %v9087, 127
  %9089 = vset.pattern.permute.xlu0 0
  %9090 = vperm.xlu0 %9089, %v9073
  %v9091 = vpop.permute.xlu0 %9090
  %9092 = vset.pattern.permute.xlu0 0
  %9093 = vperm.xlu0 %9092, %v9074
  %v9094 = vpop.permute.xlu0 %9093
  %9095 = vset.pattern.permute.xlu0 0
  %9096 = vperm.xlu0 %9095, %v9075
  %v9097 = vpop.permute.xlu0 %9096
  %9098 = vset.pattern.permute.xlu0 0
  %9099 = vperm.xlu0 %9098, %v9076
  %v9100 = vpop.permute.xlu0 %9099
  %9101 = vset.pattern.permute.xlu0 0
  %9102 = vperm.xlu0 %9101, %v9077
  %v9103 = vpop.permute.xlu0 %9102
  %9104 = vset.pattern.permute.xlu0 0
  %9105 = vperm.xlu0 %9104, %v9078
  %v9106 = vpop.permute.xlu0 %9105
  %9107 = vset.pattern.permute.xlu0 0
  %9108 = vperm.xlu0 %9107, %v9079
  %v9109 = vpop.permute.xlu0 %9108
  %9110 = vset.pattern.permute.xlu0 0
  %9111 = vperm.xlu0 %9110, %v9080
  %v9112 = vpop.permute.xlu0 %9111
  %9113 = vset.pattern.permute.xlu0 0
  %9114 = vperm.xlu0 %9113, %v9081
  %v9115 = vpop.permute.xlu0 %9114
  %9116 = vset.pattern.permute.xlu0 0
  %9117 = vperm.xlu0 %9116, %v9082
  %v9118 = vpop.permute.xlu0 %9117
  %9119 = vset.pattern.permute.xlu0 0
  %9120 = vperm.xlu0 %9119, %v9083
  %v9121 = vpop.permute.xlu0 %9120
  %9122 = vset.pattern.permute.xlu0 0
  %9123 = vperm.xlu0 %9122, %v9084
  %v9124 = vpop.permute.xlu0 %9123
  %9125 = vset.pattern.permute.xlu0 0
  %9126 = vperm.xlu0 %9125, %v9085
  %v9127 = vpop.permute.xlu0 %9126
  %9128 = vset.pattern.permute.xlu0 0
  %9129 = vperm.xlu0 %9128, %v9086
  %v9130 = vpop.permute.xlu0 %9129
  %vm9131 = vcmp.eq.s32.totalorder %v9088, %v9091
  %vm9132 = vcmp.eq.s32.totalorder %v9088, %v9094
  %vm9133 = vcmp.eq.s32.totalorder %v9088, %v9097
  %vm9134 = vcmp.eq.s32.totalorder %v9088, %v9100
  %vm9135 = vcmp.eq.s32.totalorder %v9088, %v9103
  %vm9136 = vcmp.eq.s32.totalorder %v9088, %v9106
  %vm9137 = vcmp.eq.s32.totalorder %v9088, %v9109
  %vm9138 = vcmp.eq.s32.totalorder %v9088, %v9112
  %vm9139 = vcmp.eq.s32.totalorder %v9088, %v9115
  %vm9140 = vcmp.eq.s32.totalorder %v9088, %v9118
  %vm9141 = vcmp.eq.s32.totalorder %v9088, %v9121
  %vm9142 = vcmp.eq.s32.totalorder %v9088, %v9124
  %vm9143 = vcmp.eq.s32.totalorder %v9088, %v9127
  %vm9144 = vcmp.eq.s32.totalorder %v9088, %v9130
  %v9145 = vsel %vm9131, %v8879, 0.0
  %v9146 = vsel %vm9132, %v8882, 0.0
  %v9147 = vsel %vm9133, %v8887, 0.0
  %v9148 = vsel %vm9134, %v8890, 0.0
  %v9149 = vsel %vm9135, %v8895, 0.0
  %v9150 = vsel %vm9136, %v8898, 0.0
  %v9151 = vsel %vm9137, %v8903, 0.0
  %v9152 = vsel %vm9138, %v8906, 0.0
  %v9153 = vsel %vm9139, %v8911, 0.0
  %v9154 = vsel %vm9140, %v8914, 0.0
  %v9155 = vsel %vm9141, %v8919, 0.0
  %v9156 = vsel %vm9142, %v8922, 0.0
  %v9157 = vsel %vm9143, %v8927, 0.0
  %v9158 = vsel %vm9144, %v8930, 0.0
  %9159 = vadd.xlane.f32.xlu0 %v9145
  %v9160 = vpop.xlane.xlu0 %9159
  %9161 = vadd.xlane.f32.xlu0 %v9146
  %v9162 = vpop.xlane.xlu0 %9161
  %9163 = vadd.xlane.f32.xlu0 %v9147
  %v9164 = vpop.xlane.xlu0 %9163
  %9165 = vadd.xlane.f32.xlu0 %v9148
  %v9166 = vpop.xlane.xlu0 %9165
  %9167 = vadd.xlane.f32.xlu0 %v9149
  %v9168 = vpop.xlane.xlu0 %9167
  %9169 = vadd.xlane.f32.xlu0 %v9150
  %v9170 = vpop.xlane.xlu0 %9169
  %9171 = vadd.xlane.f32.xlu0 %v9151
  %v9172 = vpop.xlane.xlu0 %9171
  %9173 = vadd.xlane.f32.xlu0 %v9152
  %v9174 = vpop.xlane.xlu0 %9173
  %9175 = vadd.xlane.f32.xlu0 %v9153
  %v9176 = vpop.xlane.xlu0 %9175
  %9177 = vadd.xlane.f32.xlu0 %v9154
  %v9178 = vpop.xlane.xlu0 %9177
  %9179 = vadd.xlane.f32.xlu0 %v9155
  %v9180 = vpop.xlane.xlu0 %9179
  %9181 = vadd.xlane.f32.xlu0 %v9156
  %v9182 = vpop.xlane.xlu0 %9181
  %9183 = vadd.xlane.f32.xlu0 %v9157
  %v9184 = vpop.xlane.xlu0 %9183
  %9185 = vadd.xlane.f32.xlu0 %v9158
  %v9186 = vpop.xlane.xlu0 %9185
  %v9187 = vsub.f32 %v9059, %v9160
  %v9188 = vsub.f32 %v9060, %v9162
  %v9189 = vsub.f32 %v9061, %v9164
  %v9190 = vsub.f32 %v9062, %v9166
  %v9191 = vsub.f32 %v9063, %v9168
  %v9192 = vsub.f32 %v9064, %v9170
  %v9193 = vsub.f32 %v9065, %v9172
  %v9194 = vsub.f32 %v9066, %v9174
  %v9195 = vsub.f32 %v9067, %v9176
  %v9196 = vsub.f32 %v9068, %v9178
  %v9197 = vsub.f32 %v9069, %v9180
  %v9198 = vsub.f32 %v9070, %v9182
  %v9199 = vsub.f32 %v9071, %v9184
  %v9200 = vsub.f32 %v9072, %v9186
  %v9201 = vld [vmem:[%s3] sm:$0xff]
  %v9202 = vld [vmem:[%s3 + $0x8] sm:$0xff]
  %v9203 = vld [vmem:[%s3 + $0x10] sm:$0xff]
  %v9204 = vld [vmem:[%s3 + $0x18] sm:$0xff]
  %v9205 = vld [vmem:[%s3 + $0x20] sm:$0xff]
  %v9206 = vld [vmem:[%s3 + $0x28] sm:$0xff]
  %v9207 = vld [vmem:[%s3 + $0x30] sm:$0xff]
  %v9208 = vld [vmem:[%s3 + $0x38] sm:$0xff]
  %v9209 = vld [vmem:[%s3 + $0x40] sm:$0xff]
  %v9210 = vld [vmem:[%s3 + $0x48] sm:$0xff]
  %v9211 = vld [vmem:[%s3 + $0x50] sm:$0xff]
  %v9212 = vld [vmem:[%s3 + $0x58] sm:$0xff]
  %v9213 = vld [vmem:[%s3 + $0x60] sm:$0xff]
  %v9214 = vld [vmem:[%s3 + $0x68] sm:$0xff]
  %v9215 = vmul.f32 %v9187, %v9201
  %v9216 = vmul.f32 %v9188, %v9202
  %v9217 = vmul.f32 %v9189, %v9203
  %v9218 = vmul.f32 %v9190, %v9204
  %v9219 = vmul.f32 %v9191, %v9205
  %v9220 = vmul.f32 %v9192, %v9206
  %v9221 = vmul.f32 %v9193, %v9207
  %v9222 = vmul.f32 %v9194, %v9208
  %v9223 = vmul.f32 %v9195, %v9209
  %v9224 = vmul.f32 %v9196, %v9210
  %v9225 = vmul.f32 %v9197, %v9211
  %v9226 = vmul.f32 %v9198, %v9212
  %v9227 = vmul.f32 %v9199, %v9213
  %v9228 = vmul.f32 %v9200, %v9214
  %vm9229 = vcmask 7168
  %v9230 = vsel %vm9229, %v9215, 0.0
  %v9231 = vsel %vm9229, %v9216, 0.0
  %v9232 = vadd.f32 %v9230, %v9231
  %v9233 = vsel %vm9229, %v9217, 0.0
  %v9234 = vadd.f32 %v9232, %v9233
  %v9235 = vsel %vm9229, %v9218, 0.0
  %v9236 = vadd.f32 %v9234, %v9235
  %v9237 = vsel %vm9229, %v9219, 0.0
  %v9238 = vadd.f32 %v9236, %v9237
  %v9239 = vsel %vm9229, %v9220, 0.0
  %v9240 = vadd.f32 %v9238, %v9239
  %v9241 = vsel %vm9229, %v9221, 0.0
  %v9242 = vadd.f32 %v9240, %v9241
  %v9243 = vsel %vm9229, %v9222, 0.0
  %v9244 = vadd.f32 %v9242, %v9243
  %v9245 = vsel %vm9229, %v9223, 0.0
  %v9246 = vadd.f32 %v9244, %v9245
  %v9247 = vsel %vm9229, %v9224, 0.0
  %v9248 = vadd.f32 %v9246, %v9247
  %v9249 = vsel %vm9229, %v9225, 0.0
  %v9250 = vadd.f32 %v9248, %v9249
  %v9251 = vsel %vm9229, %v9226, 0.0
  %v9252 = vadd.f32 %v9250, %v9251
  %v9253 = vsel %vm9229, %v9227, 0.0
  %v9254 = vadd.f32 %v9252, %v9253
  %v9255 = vsel %vm9229, %v9228, 0.0
  %v9256 = vadd.f32 %v9254, %v9255
  %9257 = vadd.xlane.f32.xlu0 %v9256
  %v9258 = vpop.xlane.xlu0 %9257
  %v9259 = vrot.slane %v9258, 4
  %v9260 = vadd.f32 %v9258, %v9259
  %v9261 = vrot.slane %v9260, 2
  %v9262 = vadd.f32 %v9260, %v9261
  %v9263 = vrot.slane %v9262, 1
  %v9264 = vadd.f32 %v9262, %v9263
  %s9265 = vtos %v9264
  %v9266 = vsel %vm9229, %v9201, 0.0
  %v9267 = vsel %vm9229, %v9202, 0.0
  %v9268 = vadd.f32 %v9266, %v9267
  %v9269 = vsel %vm9229, %v9203, 0.0
  %v9270 = vadd.f32 %v9268, %v9269
  %v9271 = vsel %vm9229, %v9204, 0.0
  %v9272 = vadd.f32 %v9270, %v9271
  %v9273 = vsel %vm9229, %v9205, 0.0
  %v9274 = vadd.f32 %v9272, %v9273
  %v9275 = vsel %vm9229, %v9206, 0.0
  %v9276 = vadd.f32 %v9274, %v9275
  %v9277 = vsel %vm9229, %v9207, 0.0
  %v9278 = vadd.f32 %v9276, %v9277
  %v9279 = vsel %vm9229, %v9208, 0.0
  %v9280 = vadd.f32 %v9278, %v9279
  %v9281 = vsel %vm9229, %v9209, 0.0
  %v9282 = vadd.f32 %v9280, %v9281
  %v9283 = vsel %vm9229, %v9210, 0.0
  %v9284 = vadd.f32 %v9282, %v9283
  %v9285 = vsel %vm9229, %v9211, 0.0
  %v9286 = vadd.f32 %v9284, %v9285
  %v9287 = vsel %vm9229, %v9212, 0.0
  %v9288 = vadd.f32 %v9286, %v9287
  %v9289 = vsel %vm9229, %v9213, 0.0
  %v9290 = vadd.f32 %v9288, %v9289
  %v9291 = vsel %vm9229, %v9214, 0.0
  %v9292 = vadd.f32 %v9290, %v9291
  %9293 = vadd.xlane.f32.xlu0 %v9292
  %v9294 = vpop.xlane.xlu0 %9293
  %v9295 = vrot.slane %v9294, 4
  %v9296 = vadd.f32 %v9294, %v9295
  %v9297 = vrot.slane %v9296, 2
  %v9298 = vadd.f32 %v9296, %v9297
  %v9299 = vrot.slane %v9298, 1
  %v9300 = vadd.f32 %v9298, %v9299
  %s9301 = vtos %v9300
  %vm9302 = vcmp.eq.s32.totalorder %v9088, 0
  %vm9303 = vcmp.eq.s32.totalorder %v9088, 1
  %v9304 = vstv %s9301
  %v9305 = vsel %vm9303, %v9304, 0.0
  %v9306 = vstv %s9265
  %v9307 = vsel %vm9302, %v9306, %v9305
  %9308 = vst [vmem:[%s18] sm:$0xff] %v9307
  // Predicated region
  $region104: #{seq2seq_forward.1} parent=0 // pred_check
    _
  $region105: #{seq2seq_forward.1} parent=0 // pred_check_branch
    %9310 = sbr.rel (0) target = $region107
  $region106: #{seq2seq_forward.1} parent=0 // pred_region
    _
  $region107: #{seq2seq_forward.1} parent=0 // pred_fallthru
    _
  // Predicated region
  $region108: #{seq2seq_forward.1} parent=0 // pred_check
    _
  $region109: #{seq2seq_forward.1} parent=0 // pred_check_branch
    %9312 = sbr.rel (0) target = $region111
  $region110: #{seq2seq_forward.1} parent=0 // pred_region
    _
  $region111: #{seq2seq_forward.1} parent=0 // pred_fallthru
    _
  %9313 = vsyncmov [#allocation7]
  %s9314 = vpop.sfrf %9313
  %p9315 = scmp.eq.s32.totalorder %s9314, 0
  %p9316 = pneg %p9315
  %9318 = shalt.err (%p9316)

</llo_original>
